<compile_context>
chip_gen: v5e
topology: v5e:2x2
jax: 0.10.0
libtpu: 0.0.40
codegen_flags: <defaults>
</compile_context>

<pallas_src>
import functools

import jax
import jax.numpy as jnp
from jax.experimental import pallas as pl
from jax.experimental.pallas import tpu as pltpu


def _largest_divisor_leq(n, cap):
    for d in range(min(n, cap), 0, -1):
        if n % d == 0:
            return d
    return 1


def _pick_rows_per_dot(w2, tr2):
    # M (= rows*W2) ~ 256 feeds the 256-wide MXUs on v6e/v7x.  The
    # (R, W2, C) -> (R*W2, C) merge is layout-trivial only when W2 is a
    # multiple of the bf16 sublane tile (16); otherwise one row per dot.
    if w2 % 16 != 0:
        return 1
    r = max(1, min(tr2, 256 // w2))
    while r > 1 and tr2 % r != 0:
        r -= 1
    return r


def _upblock_kernel(x_ref, uw_ref, s1_ref, b1_ref, w1_ref, fb1_ref,
                    w2_ref, cb2_ref, o_ref, u_pad, h_pad, *, rows_per_dot):
    f32 = jnp.float32
    _, H, W, Cin = x_ref.shape
    _, TR2, W2, Cout = o_ref.shape            # TR2 = 2*TR output rows per slab
    TR = TR2 // 2
    Cmid = w1_ref.shape[2]
    R = rows_per_dot
    cdt = u_pad.dtype                         # bf16 conv operands (f32 accum)

    s = pl.program_id(1)
    nslab = pl.num_programs(1)
    r0 = s * TR                               # first input row of this slab

    # ---- zero ONLY the 1-px left/right halo columns; interiors are fully
    # overwritten below, top/bottom halo rows handled per branch. ----
    u_pad[:, 0:1, :] = jnp.zeros((TR2 + 4, 1, Cin), cdt)
    u_pad[:, W2 + 1:W2 + 2, :] = jnp.zeros((TR2 + 4, 1, Cin), cdt)
    h_pad[:, 0:1, :] = jnp.zeros((TR2 + 2, 1, Cmid), cdt)
    h_pad[:, W2 + 1:W2 + 2, :] = jnp.zeros((TR2 + 2, 1, Cmid), cdt)

    uw = uw_ref[...]                          # (W2, W) exact 0/1, f32
    s1 = s1_ref[...]                          # (1, Cin) folded BN1 scale
    b1 = b1_ref[...]                          # (1, Cin) folded BN1 bias

    def bn_up(r):
        """BN1 + ReLU + 2x nearest W-upsample of input row r -> (W2, Cin) f32."""
        xr = x_ref[0, pl.ds(r, 1)][0]                          # (W, Cin)
        a = jnp.maximum(xr * s1 + b1, 0.0)
        return jnp.dot(uw, a, preferred_element_type=f32)      # (W2, Cin)

    # ---- Phase 1: slab interior: upsampled activation -> u_pad; the identity
    # (upsample of raw x) is computed once per input row and written straight
    # into o_ref for both duplicated output rows. ----
    @pl.loop(0, TR)
    def _(i):
        rr = pl.multiple_of(2 * i, 2)
        up = bn_up(r0 + i).astype(cdt)
        u_pad[pl.ds(2 + rr, 2), 1:1 + W2, :] = jnp.broadcast_to(
            up[None], (2, W2, Cin))
        ident = jnp.dot(uw, x_ref[0, pl.ds(r0 + i, 1)][0],
                        preferred_element_type=f32)            # (W2, Cin==Cout)
        o_ref[0, pl.ds(rr, 2)] = jnp.broadcast_to(
            ident[None], (2, W2, Cout)).astype(o_ref.dtype)

    # ---- Phase 1b: top / bottom upsampled halo rows (recomputed from the
    # neighbouring input rows) or zeros (= conv SAME padding at image edge).
    @pl.when(s > 0)
    def _():
        up = bn_up(r0 - 1).astype(cdt)
        u_pad[0:2, 1:1 + W2, :] = jnp.broadcast_to(up[None], (2, W2, Cin))

    @pl.when(s == 0)
    def _():
        u_pad[0:2, :, :] = jnp.zeros((2, W2 + 2, Cin), cdt)

    @pl.when(s < nslab - 1)
    def _():
        up = bn_up(r0 + TR).astype(cdt)
        u_pad[TR2 + 2:TR2 + 4, 1:1 + W2, :] = jnp.broadcast_to(
            up[None], (2, W2, Cin))

    @pl.when(s == nslab - 1)
    def _():
        u_pad[TR2 + 2:TR2 + 4, :, :] = jnp.zeros((2, W2 + 2, Cin), cdt)

    def conv_rows(src, w_taps, base, nrows):
        """3x3 SAME conv over `nrows` consecutive rows: output row i uses src
        rows base+i .. base+i+2, columns dx..dx+W2-1.  bf16 operands, f32
        accumulation on the MXU.  Returns (nrows*W2, Cw) f32."""
        cs = src.shape[-1]
        cw = w_taps.shape[-1]
        acc = jnp.zeros((nrows * W2, cw), f32)
        for dy in range(3):
            for dx in range(3):
                # TODO(synk): dx=1,2 slices are sublane-misaligned; a per-dy
                # im2col (K = 3*C) would remove the realignment work.
                if nrows == 1:
                    lhs = src[base + dy, dx:dx + W2, :]
                else:
                    lhs = src[pl.ds(base + dy, nrows), dx:dx + W2, :]
                    lhs = lhs.reshape(nrows * W2, cs)
                acc = acc + jnp.dot(lhs, w_taps[3 * dy + dx],
                                    preferred_element_type=f32)
        return acc

    fb1 = fb1_ref[...]                        # (1, Cmid): s2*conv1_bias + bn2_bias
    cb2 = cb2_ref[...]                        # (1, Cout)
    nblk = TR2 // R

    # ---- Phase 2: conv1 (BN2 scale folded into weights) + fused bias + ReLU.
    @pl.loop(0, nblk)
    def _(b):
        j0 = 1 + pl.multiple_of(b * R, R)     # first h_pad row of this block
        acc = conv_rows(u_pad, w1_ref, j0, R)                  # (R*W2, Cmid)
        hv = jnp.maximum(acc + fb1, 0.0).astype(cdt)
        h_pad[pl.ds(j0, R), 1:1 + W2, :] = hv.reshape(R, W2, Cmid)

    # ---- Phase 2b: the two conv1 halo rows needed by conv2 (or zero padding).
    @pl.when(s > 0)
    def _():
        acc = conv_rows(u_pad, w1_ref, 0, 1)                   # h row y0-1
        h_pad[0:1, 1:1 + W2, :] = jnp.maximum(acc + fb1, 0.0).astype(cdt)[None]

    @pl.when(s == 0)
    def _():
        h_pad[0:1, :, :] = jnp.zeros((1, W2 + 2, Cmid), cdt)

    @pl.when(s < nslab - 1)
    def _():
        acc = conv_rows(u_pad, w1_ref, TR2 + 1, 1)             # h row y1
        h_pad[TR2 + 1:TR2 + 2, 1:1 + W2, :] = jnp.maximum(
            acc + fb1, 0.0).astype(cdt)[None]

    @pl.when(s == nslab - 1)
    def _():
        h_pad[TR2 + 1:TR2 + 2, :, :] = jnp.zeros((1, W2 + 2, Cmid), cdt)

    # ---- Phase 3: conv2 + bias, added onto the identity already in o_ref.
    @pl.loop(0, nblk)
    def _(b):
        t0 = pl.multiple_of(b * R, R)
        acc = conv_rows(h_pad, w2_ref, t0, R)                  # (R*W2, Cout)
        out = acc.reshape(R, W2, Cout) + cb2 + o_ref[0, pl.ds(t0, R)]
        o_ref[0, pl.ds(t0, R)] = out.astype(o_ref.dtype)


def upblock_forward(x, *, bn1, conv1, bn2, conv2, eps=1e-5, rows_per_slab=8):
    """UpBlock forward pass.

    x:       (N, Cin, H, W) float32, PyTorch NCHW layout.
    bn1/2:   (gamma, beta, running_mean, running_var), each (C,).
    conv1/2: (weight OIHW (Cout, Cin, 3, 3), bias (Cout,)) as in nn.Conv2d.
    Returns (N, Cout, 2H, 2W) float32 (NCHW).
    """
    g1, be1, m1, v1 = bn1
    g2, be2, m2, v2 = bn2
    w1, cb1 = conv1
    w2, cb2 = conv2

    N, Cin, H, W = x.shape
    Cmid = w1.shape[0]
    Cout = w2.shape[0]
    assert w1.shape == (Cmid, Cin, 3, 3) and w2.shape == (Cout, Cmid, 3, 3)
    # TODO(synk): in_channels != out_channels adds a 1x1 conv on the identity
    # path and with_non_local=True adds the Attention block; neither is part of
    # the default UpBlock config and they are not implemented here.
    assert Cin == Cout, "identity 1x1-conv path not implemented"
    # TODO(synk): BatchNorm is inference-mode only (folded running stats).

    f32, bf16 = jnp.float32, jnp.bfloat16
    H2, W2 = 2 * H, 2 * W

    # TODO(synk): keep the surrounding network NHWC to drop these two
    # full-tensor HBM transposes.
    x_nhwc = jnp.transpose(x.astype(f32), (0, 2, 3, 1))        # (N, H, W, Cin)

    # Fold BN1 (inference) into a per-channel scale/bias applied pre-upsample.
    s1 = (g1 / jnp.sqrt(v1 + eps)).astype(f32)
    b1 = (be1 - m1 * s1).astype(f32)
    # Fold BN2 into conv1: relu(s2*(conv1(u)+cb1)+b2) == relu(conv1'(u)+fb1),
    # conv1' = conv1 scaled by s2 along its output channels.
    s2 = (g2 / jnp.sqrt(v2 + eps)).astype(f32)
    b2 = (be2 - m2 * s2).astype(f32)
    fb1 = (s2 * cb1 + b2).astype(f32)

    # OIHW -> (ky*3+kx, Cin, Cout) tap matrices, bf16 operands for the MXU.
    w1_taps = (jnp.transpose(w1.astype(f32), (2, 3, 1, 0)) *
               s2[None, None, None, :]).reshape(9, Cin, Cmid).astype(bf16)
    w2_taps = jnp.transpose(w2.astype(f32), (2, 3, 1, 0)
                            ).reshape(9, Cmid, Cout).astype(bf16)

    # Exact 0/1 nearest-neighbour W-duplication matrix (f32 so the identity
    # path stays exact): Uw[o, w] = 1 iff w == o // 2.
    Uw = (jnp.arange(W2)[:, None] // 2 == jnp.arange(W)[None, :]).astype(f32)

    # ---- tiling: row-slab grid axis keeps per-step VMEM bounded (v7x 64 MiB).
    TR = _largest_divisor_leq(H, rows_per_slab)   # input rows per slab
    nslab = H // TR
    TR2 = 2 * TR                                  # output rows per slab
    R = _pick_rows_per_dot(W2, TR2)               # output rows per MXU dot

    # ---- explicit VMEM budget: double-buffered in/out blocks + scratch. ----
    def pad(v, m):
        return -(-v // m) * m

    lane = lambda c: pad(c, 128)
    vmem = (2 * (H * pad(W, 8) * lane(Cin) * 4                   # x block
                 + TR2 * pad(W2, 8) * lane(Cout) * 4             # out block
                 + pad(W2, 8) * lane(W) * 4                      # Uw
                 + 9 * (pad(Cin, 16) + pad(Cmid, 16)) * 128 * 2  # weight taps
                 + 4 * 8 * 128 * 4)                              # channel vecs
            + (TR2 + 4) * pad(W2 + 2, 16) * lane(Cin) * 2        # u_pad scratch
            + (TR2 + 2) * pad(W2 + 2, 16) * lane(Cmid) * 2)      # h_pad scratch
    vmem = min(max(int(vmem * 1.5) + (4 << 20), 16 << 20), 64 << 20)

    vec = lambda c: pl.BlockSpec((1, c), lambda n, s: (0, 0))

    out_nhwc = pl.pallas_call(
        functools.partial(_upblock_kernel, rows_per_dot=R),
        out_shape=jax.ShapeDtypeStruct((N, H2, W2, Cout), f32),
        grid_spec=pltpu.PrefetchScalarGridSpec(
            num_scalar_prefetch=0,
            grid=(N, nslab),
            in_specs=[
                # The whole input sample stays resident across the slab axis
                # (block index depends only on n).
                pl.BlockSpec((1, H, W, Cin), lambda n, s: (n, 0, 0, 0)),
                pl.BlockSpec((W2, W), lambda n, s: (0, 0)),
                vec(Cin), vec(Cin),
                pl.BlockSpec((9, Cin, Cmid), lambda n, s: (0, 0, 0)),
                vec(Cmid),
                pl.BlockSpec((9, Cmid, Cout), lambda n, s: (0, 0, 0)),
                vec(Cout),
            ],
            out_specs=pl.BlockSpec((1, TR2, W2, Cout),
                                   lambda n, s: (n, s, 0, 0)),
            scratch_shapes=[
                pltpu.VMEM((TR2 + 4, W2 + 2, Cin), bf16),    # upsampled act
                pltpu.VMEM((TR2 + 2, W2 + 2, Cmid), bf16),   # conv1 output
            ],
        ),
        compiler_params=pltpu.CompilerParams(
            # Both axes are independent -> sharded across the 2 TCs on v7x
            # even when N is 1 or odd.
            dimension_semantics=("parallel", "parallel"),
            vmem_limit_bytes=vmem,
        ),
    )(x_nhwc, Uw, s1.reshape(1, Cin), b1.reshape(1, Cin),
      w1_taps, fb1.reshape(1, Cmid), w2_taps,
      cb2.astype(f32).reshape(1, Cout))

    return jnp.transpose(out_nhwc, (0, 3, 1, 2))


def _ref_upblock(x, bn1, conv1, bn2, conv2, eps=1e-5):
    """Pure-JAX reference (inference-mode BN), NCHW in / NCHW out."""
    g1, be1, m1, v1 = bn1
    g2, be2, m2, v2 = bn2
    w1, cb1 = conv1
    w2, cb2 = conv2
    dn = ("NHWC", "HWIO", "NHWC")
    hi = jax.lax.Precision.HIGHEST

    xh = jnp.transpose(x, (0, 2, 3, 1))
    s1 = g1 / jnp.sqrt(v1 + eps)
    a = jax.nn.relu(xh * s1 + (be1 - m1 * s1))
    u = jnp.repeat(jnp.repeat(a, 2, axis=1), 2, axis=2)
    h = jax.lax.conv_general_dilated(u, jnp.transpose(w1, (2, 3, 1, 0)),
                                     (1, 1), "SAME", dimension_numbers=dn,
                                     precision=hi) + cb1
    s2 = g2 / jnp.sqrt(v2 + eps)
    h = jax.nn.relu(h * s2 + (be2 - m2 * s2))
    o = jax.lax.conv_general_dilated(h, jnp.transpose(w2, (2, 3, 1, 0)),
                                     (1, 1), "SAME", dimension_numbers=dn,
                                     precision=hi) + cb2
    ident = jnp.repeat(jnp.repeat(xh, 2, axis=1), 2, axis=2)
    return jnp.transpose(o + ident, (0, 3, 1, 2))


if __name__ == "__main__":
    key = jax.random.PRNGKey(0)
    ks = jax.random.split(key, 13)

    # Small test shapes (real UpBlock uses C=128); default config Cout=Cmid=Cin.
    # H=16 exercises the multi-slab path (2 slabs) and the R>1 matmul blocking.
    N, Cin, H, W = 2, 8, 16, 16
    Cout = Cmid = Cin

    x = jax.random.normal(ks[0], (N, Cin, H, W), jnp.float32)
    bn1 = (1.0 + 0.1 * jax.random.normal(ks[1], (Cin,), jnp.float32),
           0.1 * jax.random.normal(ks[2], (Cin,), jnp.float32),
           0.1 * jax.random.normal(ks[3], (Cin,), jnp.float32),
           jax.random.uniform(ks[4], (Cin,), jnp.float32, 0.5, 1.5))
    conv1 = (0.2 * jax.random.normal(ks[5], (Cmid, Cin, 3, 3), jnp.float32),
             0.1 * jax.random.normal(ks[6], (Cmid,), jnp.float32))
    bn2 = (1.0 + 0.1 * jax.random.normal(ks[7], (Cmid,), jnp.float32),
           0.1 * jax.random.normal(ks[8], (Cmid,), jnp.float32),
           0.1 * jax.random.normal(ks[9], (Cmid,), jnp.float32),
           jax.random.uniform(ks[10], (Cmid,), jnp.float32, 0.5, 1.5))
    conv2 = (0.2 * jax.random.normal(ks[11], (Cout, Cmid, 3, 3), jnp.float32),
             0.1 * jax.random.normal(ks[12], (Cout,), jnp.float32))

    out = upblock_forward(x, bn1=bn1, conv1=conv1, bn2=bn2, conv2=conv2)
    out = jax.block_until_ready(out)

    ref = _ref_upblock(x, bn1, conv1, bn2, conv2)

    assert out.shape == (N, Cout, 2 * H, 2 * W), (out.shape,)
    assert out.dtype == jnp.float32
    assert bool(jnp.all(jnp.isfinite(out)))
    max_err = float(jnp.max(jnp.abs(out - ref)))
    # bf16 conv operands with f32 accumulation -> slightly looser tolerance
    # than the pure-f32 version; real indexing bugs give O(1) errors.
    assert bool(jnp.allclose(out, ref, rtol=5e-2, atol=8e-2)), max_err

    print("KERNEL_OK")
</pallas_src>

<mosaic_0001>
module attributes {stable_mosaic.version = 11 : i64} {
  func.func @_upblock_kernel(%arg0: i32, %arg1: i32, %arg2: memref<1x16x16x8xf32, #tpu.memory_space<vmem>>, %arg3: memref<32x16xf32, #tpu.memory_space<vmem>>, %arg4: memref<1x8xf32, #tpu.memory_space<vmem>>, %arg5: memref<1x8xf32, #tpu.memory_space<vmem>>, %arg6: memref<9x8x8xbf16, #tpu.memory_space<vmem>>, %arg7: memref<1x8xf32, #tpu.memory_space<vmem>>, %arg8: memref<9x8x8xbf16, #tpu.memory_space<vmem>>, %arg9: memref<1x8xf32, #tpu.memory_space<vmem>>, %arg10: memref<1x16x32x8xf32, #tpu.memory_space<vmem>>, %arg11: memref<20x34x8xbf16, #tpu.memory_space<vmem>>, %arg12: memref<18x34x8xbf16, #tpu.memory_space<vmem>>) attributes {dimension_semantics = [#tpu.dimension_semantics<parallel>, #tpu.dimension_semantics<parallel>], iteration_bounds = array<i64: 2, 2>, scalar_prefetch = 0 : i64, scratch_operands = 2 : i64, tpu.core_type = #tpu.core_type<tc>, window_params = [{transform_indices = @transform_0, window_bounds = array<i64: 1, 16, 16, 8>}, {pipeline_mode = #tpu.pipeline_mode<synchronous>, transform_indices = @transform_1, window_bounds = array<i64: 32, 16>}, {pipeline_mode = #tpu.pipeline_mode<synchronous>, transform_indices = @transform_2, window_bounds = array<i64: 1, 8>}, {pipeline_mode = #tpu.pipeline_mode<synchronous>, transform_indices = @transform_3, window_bounds = array<i64: 1, 8>}, {pipeline_mode = #tpu.pipeline_mode<synchronous>, transform_indices = @transform_4, window_bounds = array<i64: 9, 8, 8>}, {pipeline_mode = #tpu.pipeline_mode<synchronous>, transform_indices = @transform_5, window_bounds = array<i64: 1, 8>}, {pipeline_mode = #tpu.pipeline_mode<synchronous>, transform_indices = @transform_6, window_bounds = array<i64: 9, 8, 8>}, {pipeline_mode = #tpu.pipeline_mode<synchronous>, transform_indices = @transform_7, window_bounds = array<i64: 1, 8>}, {transform_indices = @transform_8, window_bounds = array<i64: 1, 16, 32, 8>}]} {
    %c8_i32 = arith.constant 8 : i32
    %0 = arith.muli %arg1, %c8_i32 : i32
    %cst = arith.constant 0.000000e+00 : bf16
    %1 = vector.broadcast %cst : bf16 to vector<20x1x8xbf16>
    %c0 = arith.constant 0 : index
    %c0_0 = arith.constant 0 : index
    %c0_1 = arith.constant 0 : index
    %2 = vector.load %arg11[%c0, %c0_0, %c0_1] : memref<20x34x8xbf16, #tpu.memory_space<vmem>>, vector<20x1x8xbf16>
    tpu.vector_store %arg11[%c0, %c0_0, %c0_1], %1 {strides = array<i32>} : memref<20x34x8xbf16, #tpu.memory_space<vmem>>, vector<20x1x8xbf16>,
    %cst_2 = arith.constant 0.000000e+00 : bf16
    %3 = vector.broadcast %cst_2 : bf16 to vector<20x1x8xbf16>
    %c0_3 = arith.constant 0 : index
    %c33 = arith.constant 33 : index
    %c0_4 = arith.constant 0 : index
    %4 = vector.load %arg11[%c0_3, %c33, %c0_4] : memref<20x34x8xbf16, #tpu.memory_space<vmem>>, vector<20x1x8xbf16>
    tpu.vector_store %arg11[%c0_3, %c33, %c0_4], %3 {strides = array<i32>} : memref<20x34x8xbf16, #tpu.memory_space<vmem>>, vector<20x1x8xbf16>,
    %cst_5 = arith.constant 0.000000e+00 : bf16
    %5 = vector.broadcast %cst_5 : bf16 to vector<18x1x8xbf16>
    %c0_6 = arith.constant 0 : index
    %c0_7 = arith.constant 0 : index
    %c0_8 = arith.constant 0 : index
    %6 = vector.load %arg12[%c0_6, %c0_7, %c0_8] : memref<18x34x8xbf16, #tpu.memory_space<vmem>>, vector<18x1x8xbf16>
    tpu.vector_store %arg12[%c0_6, %c0_7, %c0_8], %5 {strides = array<i32>} : memref<18x34x8xbf16, #tpu.memory_space<vmem>>, vector<18x1x8xbf16>,
    %cst_9 = arith.constant 0.000000e+00 : bf16
    %7 = vector.broadcast %cst_9 : bf16 to vector<18x1x8xbf16>
    %c0_10 = arith.constant 0 : index
    %c33_11 = arith.constant 33 : index
    %c0_12 = arith.constant 0 : index
    %8 = vector.load %arg12[%c0_10, %c33_11, %c0_12] : memref<18x34x8xbf16, #tpu.memory_space<vmem>>, vector<18x1x8xbf16>
    tpu.vector_store %arg12[%c0_10, %c33_11, %c0_12], %7 {strides = array<i32>} : memref<18x34x8xbf16, #tpu.memory_space<vmem>>, vector<18x1x8xbf16>,
    %c0_13 = arith.constant 0 : index
    %c0_14 = arith.constant 0 : index
    %9 = vector.load %arg3[%c0_13, %c0_14] : memref<32x16xf32, #tpu.memory_space<vmem>>, vector<32x16xf32>
    %c0_15 = arith.constant 0 : index
    %c0_16 = arith.constant 0 : index
    %10 = vector.load %arg4[%c0_15, %c0_16] : memref<1x8xf32, #tpu.memory_space<vmem>>, vector<1x8xf32>
    %c0_17 = arith.constant 0 : index
    %c0_18 = arith.constant 0 : index
    %11 = vector.load %arg5[%c0_17, %c0_18] : memref<1x8xf32, #tpu.memory_space<vmem>>, vector<1x8xf32>
    %c0_i32 = arith.constant 0 : i32
    %c8_i32_19 = arith.constant 8 : i32
    %12 = arith.addi %c0_i32, %c8_i32_19 : i32
    %c1_i32 = arith.constant 1 : i32
    scf.for %arg13 = %c0_i32 to %12 step %c1_i32  : i32 {
      %c1_i32_48 = arith.constant 1 : i32
      %41 = arith.muli %arg13, %c1_i32_48 : i32
      %c0_i32_49 = arith.constant 0 : i32
      %42 = arith.addi %c0_i32_49, %41 : i32
      %c2_i32_50 = arith.constant 2 : i32
      %43 = arith.muli %c2_i32_50, %42 : i32
      %44 = tpu.assume_multiple %43, 2 : i32
      %45 = arith.addi %0, %42 : i32
      %c0_51 = arith.constant 0 : index
      %46 = arith.index_cast %45 : i32 to index
      %c0_52 = arith.constant 0 : index
      %c0_53 = arith.constant 0 : index
      %47 = vector.load %arg2[%c0_51, %46, %c0_52, %c0_53] : memref<1x16x16x8xf32, #tpu.memory_space<vmem>>, vector<1x1x16x8xf32>
      %48 = vector.shape_cast %47 : vector<1x1x16x8xf32> to vector<1x16x8xf32>
      %49 = vector.shape_cast %48 : vector<1x16x8xf32> to vector<16x8xf32>
      %50 = vector.broadcast %10 : vector<1x8xf32> to vector<16x8xf32>
      %51 = arith.mulf %49, %50 : vector<16x8xf32>
      %52 = vector.broadcast %11 : vector<1x8xf32> to vector<16x8xf32>
      %53 = arith.addf %51, %52 : vector<16x8xf32>
      %cst_54 = arith.constant 0.000000e+00 : f32
      %54 = vector.broadcast %cst_54 : f32 to vector<16x8xf32>
      %55 = arith.maximumf %53, %54 : vector<16x8xf32>
      %cst_55 = arith.constant dense<0.000000e+00> : vector<32x8xf32>
      %56 = tpu.matmul %9, %55, %cst_55 {dimension_numbers = #tpu.dot_dimension_numbers<[1], [0], [0], [1], [0, 0, 1, 1], [], []>} : vector<32x16xf32>, vector<16x8xf32>, vector<32x8xf32> -> vector<32x8xf32>
      %57 = arith.truncf %56 : vector<32x8xf32> to vector<32x8xbf16>
      %58 = vector.shape_cast %57 : vector<32x8xbf16> to vector<1x32x8xbf16>
      %59 = vector.shape_cast %58 : vector<1x32x8xbf16> to vector<1x32x8xbf16>
      %60 = vector.broadcast %59 : vector<1x32x8xbf16> to vector<2x32x8xbf16>
      %c2_i32_56 = arith.constant 2 : i32
      %61 = arith.addi %c2_i32_56, %44 : i32
      %62 = arith.index_cast %61 : i32 to index
      %c1 = arith.constant 1 : index
      %c0_57 = arith.constant 0 : index
      %63 = vector.load %arg11[%62, %c1, %c0_57] : memref<20x34x8xbf16, #tpu.memory_space<vmem>>, vector<2x32x8xbf16>
      tpu.vector_store %arg11[%62, %c1, %c0_57], %60 {strides = array<i32>} : memref<20x34x8xbf16, #tpu.memory_space<vmem>>, vector<2x32x8xbf16>,
      %64 = arith.addi %0, %42 : i32
      %c0_58 = arith.constant 0 : index
      %65 = arith.index_cast %64 : i32 to index
      %c0_59 = arith.constant 0 : index
      %c0_60 = arith.constant 0 : index
      %66 = vector.load %arg2[%c0_58, %65, %c0_59, %c0_60] : memref<1x16x16x8xf32, #tpu.memory_space<vmem>>, vector<1x1x16x8xf32>
      %67 = vector.shape_cast %66 : vector<1x1x16x8xf32> to vector<1x16x8xf32>
      %68 = vector.shape_cast %67 : vector<1x16x8xf32> to vector<16x8xf32>
      %cst_61 = arith.constant dense<0.000000e+00> : vector<32x8xf32>
      %69 = tpu.matmul %9, %68, %cst_61 {dimension_numbers = #tpu.dot_dimension_numbers<[1], [0], [0], [1], [0, 0, 1, 1], [], []>} : vector<32x16xf32>, vector<16x8xf32>, vector<32x8xf32> -> vector<32x8xf32>
      %70 = vector.shape_cast %69 : vector<32x8xf32> to vector<1x32x8xf32>
      %71 = vector.shape_cast %70 : vector<1x32x8xf32> to vector<1x32x8xf32>
      %72 = vector.broadcast %71 : vector<1x32x8xf32> to vector<2x32x8xf32>
      %c0_62 = arith.constant 0 : index
      %73 = arith.index_cast %44 : i32 to index
      %c0_63 = arith.constant 0 : index
      %c0_64 = arith.constant 0 : index
      %74 = vector.load %arg10[%c0_62, %73, %c0_63, %c0_64] : memref<1x16x32x8xf32, #tpu.memory_space<vmem>>, vector<1x2x32x8xf32>
      %75 = vector.shape_cast %74 : vector<1x2x32x8xf32> to vector<2x32x8xf32>
      %76 = vector.shape_cast %72 : vector<2x32x8xf32> to vector<1x2x32x8xf32>
      tpu.vector_store %arg10[%c0_62, %73, %c0_63, %c0_64], %76 {strides = array<i32>} : memref<1x16x32x8xf32, #tpu.memory_space<vmem>>, vector<1x2x32x8xf32>,
    }
    %c8_i32_20 = arith.constant 8 : i32
    %c0_i32_21 = arith.constant 0 : i32
    %13 = arith.cmpi sgt, %arg1, %c0_i32_21 : i32
    %14 = arith.extui %13 : i1 to i32
    %c0_i32_22 = arith.constant 0 : i32
    %15 = arith.cmpi ne, %14, %c0_i32_22 : i32
    scf.if %15 {
      %c1_i32_48 = arith.constant 1 : i32
      %41 = arith.subi %0, %c1_i32_48 : i32
      %c0_49 = arith.constant 0 : index
      %42 = arith.index_cast %41 : i32 to index
      %c0_50 = arith.constant 0 : index
      %c0_51 = arith.constant 0 : index
      %43 = vector.load %arg2[%c0_49, %42, %c0_50, %c0_51] : memref<1x16x16x8xf32, #tpu.memory_space<vmem>>, vector<1x1x16x8xf32>
      %44 = vector.shape_cast %43 : vector<1x1x16x8xf32> to vector<1x16x8xf32>
      %45 = vector.shape_cast %44 : vector<1x16x8xf32> to vector<16x8xf32>
      %46 = vector.broadcast %10 : vector<1x8xf32> to vector<16x8xf32>
      %47 = arith.mulf %45, %46 : vector<16x8xf32>
      %48 = vector.broadcast %11 : vector<1x8xf32> to vector<16x8xf32>
      %49 = arith.addf %47, %48 : vector<16x8xf32>
      %cst_52 = arith.constant 0.000000e+00 : f32
      %50 = vector.broadcast %cst_52 : f32 to vector<16x8xf32>
      %51 = arith.maximumf %49, %50 : vector<16x8xf32>
      %cst_53 = arith.constant dense<0.000000e+00> : vector<32x8xf32>
      %52 = tpu.matmul %9, %51, %cst_53 {dimension_numbers = #tpu.dot_dimension_numbers<[1], [0], [0], [1], [0, 0, 1, 1], [], []>} : vector<32x16xf32>, vector<16x8xf32>, vector<32x8xf32> -> vector<32x8xf32>
      %53 = arith.truncf %52 : vector<32x8xf32> to vector<32x8xbf16>
      %54 = vector.shape_cast %53 : vector<32x8xbf16> to vector<1x32x8xbf16>
      %55 = vector.shape_cast %54 : vector<1x32x8xbf16> to vector<1x32x8xbf16>
      %56 = vector.broadcast %55 : vector<1x32x8xbf16> to vector<2x32x8xbf16>
      %c0_54 = arith.constant 0 : index
      %c1 = arith.constant 1 : index
      %c0_55 = arith.constant 0 : index
      %57 = vector.load %arg11[%c0_54, %c1, %c0_55] : memref<20x34x8xbf16, #tpu.memory_space<vmem>>, vector<2x32x8xbf16>
      tpu.vector_store %arg11[%c0_54, %c1, %c0_55], %56 {strides = array<i32>} : memref<20x34x8xbf16, #tpu.memory_space<vmem>>, vector<2x32x8xbf16>,
    } else {
    }
    %c0_i32_23 = arith.constant 0 : i32
    %16 = arith.cmpi eq, %arg1, %c0_i32_23 : i32
    %17 = arith.extui %16 : i1 to i32
    %c0_i32_24 = arith.constant 0 : i32
    %18 = arith.cmpi ne, %17, %c0_i32_24 : i32
    scf.if %18 {
      %cst_48 = arith.constant 0.000000e+00 : bf16
      %41 = vector.broadcast %cst_48 : bf16 to vector<2x34x8xbf16>
      %c0_49 = arith.constant 0 : index
      %c0_50 = arith.constant 0 : index
      %c0_51 = arith.constant 0 : index
      %42 = vector.load %arg11[%c0_49, %c0_50, %c0_51] : memref<20x34x8xbf16, #tpu.memory_space<vmem>>, vector<2x34x8xbf16>
      tpu.vector_store %arg11[%c0_49, %c0_50, %c0_51], %41 {strides = array<i32>} : memref<20x34x8xbf16, #tpu.memory_space<vmem>>, vector<2x34x8xbf16>,
    } else {
    }
    %c1_i32_25 = arith.constant 1 : i32
    %19 = arith.cmpi slt, %arg1, %c1_i32_25 : i32
    %20 = arith.extui %19 : i1 to i32
    %c0_i32_26 = arith.constant 0 : i32
    %21 = arith.cmpi ne, %20, %c0_i32_26 : i32
    scf.if %21 {
      %c8_i32_48 = arith.constant 8 : i32
      %41 = arith.addi %0, %c8_i32_48 : i32
      %c0_49 = arith.constant 0 : index
      %42 = arith.index_cast %41 : i32 to index
      %c0_50 = arith.constant 0 : index
      %c0_51 = arith.constant 0 : index
      %43 = vector.load %arg2[%c0_49, %42, %c0_50, %c0_51] : memref<1x16x16x8xf32, #tpu.memory_space<vmem>>, vector<1x1x16x8xf32>
      %44 = vector.shape_cast %43 : vector<1x1x16x8xf32> to vector<1x16x8xf32>
      %45 = vector.shape_cast %44 : vector<1x16x8xf32> to vector<16x8xf32>
      %46 = vector.broadcast %10 : vector<1x8xf32> to vector<16x8xf32>
      %47 = arith.mulf %45, %46 : vector<16x8xf32>
      %48 = vector.broadcast %11 : vector<1x8xf32> to vector<16x8xf32>
      %49 = arith.addf %47, %48 : vector<16x8xf32>
      %cst_52 = arith.constant 0.000000e+00 : f32
      %50 = vector.broadcast %cst_52 : f32 to vector<16x8xf32>
      %51 = arith.maximumf %49, %50 : vector<16x8xf32>
      %cst_53 = arith.constant dense<0.000000e+00> : vector<32x8xf32>
      %52 = tpu.matmul %9, %51, %cst_53 {dimension_numbers = #tpu.dot_dimension_numbers<[1], [0], [0], [1], [0, 0, 1, 1], [], []>} : vector<32x16xf32>, vector<16x8xf32>, vector<32x8xf32> -> vector<32x8xf32>
      %53 = arith.truncf %52 : vector<32x8xf32> to vector<32x8xbf16>
      %54 = vector.shape_cast %53 : vector<32x8xbf16> to vector<1x32x8xbf16>
      %55 = vector.shape_cast %54 : vector<1x32x8xbf16> to vector<1x32x8xbf16>
      %56 = vector.broadcast %55 : vector<1x32x8xbf16> to vector<2x32x8xbf16>
      %c18 = arith.constant 18 : index
      %c1 = arith.constant 1 : index
      %c0_54 = arith.constant 0 : index
      %57 = vector.load %arg11[%c18, %c1, %c0_54] : memref<20x34x8xbf16, #tpu.memory_space<vmem>>, vector<2x32x8xbf16>
      tpu.vector_store %arg11[%c18, %c1, %c0_54], %56 {strides = array<i32>} : memref<20x34x8xbf16, #tpu.memory_space<vmem>>, vector<2x32x8xbf16>,
    } else {
    }
    %c1_i32_27 = arith.constant 1 : i32
    %22 = arith.cmpi eq, %arg1, %c1_i32_27 : i32
    %23 = arith.extui %22 : i1 to i32
    %c0_i32_28 = arith.constant 0 : i32
    %24 = arith.cmpi ne, %23, %c0_i32_28 : i32
    scf.if %24 {
      %cst_48 = arith.constant 0.000000e+00 : bf16
      %41 = vector.broadcast %cst_48 : bf16 to vector<2x34x8xbf16>
      %c18 = arith.constant 18 : index
      %c0_49 = arith.constant 0 : index
      %c0_50 = arith.constant 0 : index
      %42 = vector.load %arg11[%c18, %c0_49, %c0_50] : memref<20x34x8xbf16, #tpu.memory_space<vmem>>, vector<2x34x8xbf16>
      tpu.vector_store %arg11[%c18, %c0_49, %c0_50], %41 {strides = array<i32>} : memref<20x34x8xbf16, #tpu.memory_space<vmem>>, vector<2x34x8xbf16>,
    } else {
    }
    %c0_29 = arith.constant 0 : index
    %c0_30 = arith.constant 0 : index
    %25 = vector.load %arg7[%c0_29, %c0_30] : memref<1x8xf32, #tpu.memory_space<vmem>>, vector<1x8xf32>
    %c0_31 = arith.constant 0 : index
    %c0_32 = arith.constant 0 : index
    %26 = vector.load %arg9[%c0_31, %c0_32] : memref<1x8xf32, #tpu.memory_space<vmem>>, vector<1x8xf32>
    %c0_i32_33 = arith.constant 0 : i32
    %c2_i32 = arith.constant 2 : i32
    %27 = arith.addi %c0_i32_33, %c2_i32 : i32
    %c1_i32_34 = arith.constant 1 : i32
    scf.for %arg13 = %c0_i32_33 to %27 step %c1_i32_34  : i32 {
      %c1_i32_48 = arith.constant 1 : i32
      %41 = arith.muli %arg13, %c1_i32_48 : i32
      %c0_i32_49 = arith.constant 0 : i32
      %42 = arith.addi %c0_i32_49, %41 : i32
      %c8_i32_50 = arith.constant 8 : i32
      %43 = arith.muli %42, %c8_i32_50 : i32
      %44 = tpu.assume_multiple %43, 8 : i32
      %c1_i32_51 = arith.constant 1 : i32
      %45 = arith.addi %c1_i32_51, %44 : i32
      %cst_52 = arith.constant 0.000000e+00 : f32
      %46 = vector.broadcast %cst_52 : f32 to vector<256x8xf32>
      %c0_i32_53 = arith.constant 0 : i32
      %47 = arith.addi %45, %c0_i32_53 : i32
      %48 = arith.index_cast %47 : i32 to index
      %c0_54 = arith.constant 0 : index
      %c0_55 = arith.constant 0 : index
      %49 = vector.load %arg11[%48, %c0_54, %c0_55] : memref<20x34x8xbf16, #tpu.memory_space<vmem>>, vector<8x32x8xbf16>
      %50 = vector.shape_cast %49 : vector<8x32x8xbf16> to vector<256x8xbf16>
      %c0_56 = arith.constant 0 : index
      %c0_57 = arith.constant 0 : index
      %c0_58 = arith.constant 0 : index
      %51 = vector.load %arg6[%c0_56, %c0_57, %c0_58] : memref<9x8x8xbf16, #tpu.memory_space<vmem>>, vector<1x8x8xbf16>
      %52 = vector.shape_cast %51 : vector<1x8x8xbf16> to vector<8x8xbf16>
      %cst_59 = arith.constant dense<0.000000e+00> : vector<256x8xf32>
      %53 = tpu.matmul %50, %52, %cst_59 {dimension_numbers = #tpu.dot_dimension_numbers<[1], [0], [0], [1], [0, 0, 1, 1], [], []>} : vector<256x8xbf16>, vector<8x8xbf16>, vector<256x8xf32> -> vector<256x8xf32>
      %54 = arith.addf %46, %53 : vector<256x8xf32>
      %c0_i32_60 = arith.constant 0 : i32
      %55 = arith.addi %45, %c0_i32_60 : i32
      %56 = arith.index_cast %55 : i32 to index
      %c1 = arith.constant 1 : index
      %c0_61 = arith.constant 0 : index
      %57 = vector.load %arg11[%56, %c1, %c0_61] : memref<20x34x8xbf16, #tpu.memory_space<vmem>>, vector<8x32x8xbf16>
      %58 = vector.shape_cast %57 : vector<8x32x8xbf16> to vector<256x8xbf16>
      %c1_62 = arith.constant 1 : index
      %c0_63 = arith.constant 0 : index
      %c0_64 = arith.constant 0 : index
      %59 = vector.load %arg6[%c1_62, %c0_63, %c0_64] : memref<9x8x8xbf16, #tpu.memory_space<vmem>>, vector<1x8x8xbf16>
      %60 = vector.shape_cast %59 : vector<1x8x8xbf16> to vector<8x8xbf16>
      %cst_65 = arith.constant dense<0.000000e+00> : vector<256x8xf32>
      %61 = tpu.matmul %58, %60, %cst_65 {dimension_numbers = #tpu.dot_dimension_numbers<[1], [0], [0], [1], [0, 0, 1, 1], [], []>} : vector<256x8xbf16>, vector<8x8xbf16>, vector<256x8xf32> -> vector<256x8xf32>
      %62 = arith.addf %54, %61 : vector<256x8xf32>
      %c0_i32_66 = arith.constant 0 : i32
      %63 = arith.addi %45, %c0_i32_66 : i32
      %64 = arith.index_cast %63 : i32 to index
      %c2 = arith.constant 2 : index
      %c0_67 = arith.constant 0 : index
      %65 = vector.load %arg11[%64, %c2, %c0_67] : memref<20x34x8xbf16, #tpu.memory_space<vmem>>, vector<8x32x8xbf16>
      %66 = vector.shape_cast %65 : vector<8x32x8xbf16> to vector<256x8xbf16>
      %c2_68 = arith.constant 2 : index
      %c0_69 = arith.constant 0 : index
      %c0_70 = arith.constant 0 : index
      %67 = vector.load %arg6[%c2_68, %c0_69, %c0_70] : memref<9x8x8xbf16, #tpu.memory_space<vmem>>, vector<1x8x8xbf16>
      %68 = vector.shape_cast %67 : vector<1x8x8xbf16> to vector<8x8xbf16>
      %cst_71 = arith.constant dense<0.000000e+00> : vector<256x8xf32>
      %69 = tpu.matmul %66, %68, %cst_71 {dimension_numbers = #tpu.dot_dimension_numbers<[1], [0], [0], [1], [0, 0, 1, 1], [], []>} : vector<256x8xbf16>, vector<8x8xbf16>, vector<256x8xf32> -> vector<256x8xf32>
      %70 = arith.addf %62, %69 : vector<256x8xf32>
      %c1_i32_72 = arith.constant 1 : i32
      %71 = arith.addi %45, %c1_i32_72 : i32
      %72 = arith.index_cast %71 : i32 to index
      %c0_73 = arith.constant 0 : index
      %c0_74 = arith.constant 0 : index
      %73 = vector.load %arg11[%72, %c0_73, %c0_74] : memref<20x34x8xbf16, #tpu.memory_space<vmem>>, vector<8x32x8xbf16>
      %74 = vector.shape_cast %73 : vector<8x32x8xbf16> to vector<256x8xbf16>
      %c3 = arith.constant 3 : index
      %c0_75 = arith.constant 0 : index
      %c0_76 = arith.constant 0 : index
      %75 = vector.load %arg6[%c3, %c0_75, %c0_76] : memref<9x8x8xbf16, #tpu.memory_space<vmem>>, vector<1x8x8xbf16>
      %76 = vector.shape_cast %75 : vector<1x8x8xbf16> to vector<8x8xbf16>
      %cst_77 = arith.constant dense<0.000000e+00> : vector<256x8xf32>
      %77 = tpu.matmul %74, %76, %cst_77 {dimension_numbers = #tpu.dot_dimension_numbers<[1], [0], [0], [1], [0, 0, 1, 1], [], []>} : vector<256x8xbf16>, vector<8x8xbf16>, vector<256x8xf32> -> vector<256x8xf32>
      %78 = arith.addf %70, %77 : vector<256x8xf32>
      %c1_i32_78 = arith.constant 1 : i32
      %79 = arith.addi %45, %c1_i32_78 : i32
      %80 = arith.index_cast %79 : i32 to index
      %c1_79 = arith.constant 1 : index
      %c0_80 = arith.constant 0 : index
      %81 = vector.load %arg11[%80, %c1_79, %c0_80] : memref<20x34x8xbf16, #tpu.memory_space<vmem>>, vector<8x32x8xbf16>
      %82 = vector.shape_cast %81 : vector<8x32x8xbf16> to vector<256x8xbf16>
      %c4 = arith.constant 4 : index
      %c0_81 = arith.constant 0 : index
      %c0_82 = arith.constant 0 : index
      %83 = vector.load %arg6[%c4, %c0_81, %c0_82] : memref<9x8x8xbf16, #tpu.memory_space<vmem>>, vector<1x8x8xbf16>
      %84 = vector.shape_cast %83 : vector<1x8x8xbf16> to vector<8x8xbf16>
      %cst_83 = arith.constant dense<0.000000e+00> : vector<256x8xf32>
      %85 = tpu.matmul %82, %84, %cst_83 {dimension_numbers = #tpu.dot_dimension_numbers<[1], [0], [0], [1], [0, 0, 1, 1], [], []>} : vector<256x8xbf16>, vector<8x8xbf16>, vector<256x8xf32> -> vector<256x8xf32>
      %86 = arith.addf %78, %85 : vector<256x8xf32>
      %c1_i32_84 = arith.constant 1 : i32
      %87 = arith.addi %45, %c1_i32_84 : i32
      %88 = arith.index_cast %87 : i32 to index
      %c2_85 = arith.constant 2 : index
      %c0_86 = arith.constant 0 : index
      %89 = vector.load %arg11[%88, %c2_85, %c0_86] : memref<20x34x8xbf16, #tpu.memory_space<vmem>>, vector<8x32x8xbf16>
      %90 = vector.shape_cast %89 : vector<8x32x8xbf16> to vector<256x8xbf16>
      %c5 = arith.constant 5 : index
      %c0_87 = arith.constant 0 : index
      %c0_88 = arith.constant 0 : index
      %91 = vector.load %arg6[%c5, %c0_87, %c0_88] : memref<9x8x8xbf16, #tpu.memory_space<vmem>>, vector<1x8x8xbf16>
      %92 = vector.shape_cast %91 : vector<1x8x8xbf16> to vector<8x8xbf16>
      %cst_89 = arith.constant dense<0.000000e+00> : vector<256x8xf32>
      %93 = tpu.matmul %90, %92, %cst_89 {dimension_numbers = #tpu.dot_dimension_numbers<[1], [0], [0], [1], [0, 0, 1, 1], [], []>} : vector<256x8xbf16>, vector<8x8xbf16>, vector<256x8xf32> -> vector<256x8xf32>
      %94 = arith.addf %86, %93 : vector<256x8xf32>
      %c2_i32_90 = arith.constant 2 : i32
      %95 = arith.addi %45, %c2_i32_90 : i32
      %96 = arith.index_cast %95 : i32 to index
      %c0_91 = arith.constant 0 : index
      %c0_92 = arith.constant 0 : index
      %97 = vector.load %arg11[%96, %c0_91, %c0_92] : memref<20x34x8xbf16, #tpu.memory_space<vmem>>, vector<8x32x8xbf16>
      %98 = vector.shape_cast %97 : vector<8x32x8xbf16> to vector<256x8xbf16>
      %c6 = arith.constant 6 : index
      %c0_93 = arith.constant 0 : index
      %c0_94 = arith.constant 0 : index
      %99 = vector.load %arg6[%c6, %c0_93, %c0_94] : memref<9x8x8xbf16, #tpu.memory_space<vmem>>, vector<1x8x8xbf16>
      %100 = vector.shape_cast %99 : vector<1x8x8xbf16> to vector<8x8xbf16>
      %cst_95 = arith.constant dense<0.000000e+00> : vector<256x8xf32>
      %101 = tpu.matmul %98, %100, %cst_95 {dimension_numbers = #tpu.dot_dimension_numbers<[1], [0], [0], [1], [0, 0, 1, 1], [], []>} : vector<256x8xbf16>, vector<8x8xbf16>, vector<256x8xf32> -> vector<256x8xf32>
      %102 = arith.addf %94, %101 : vector<256x8xf32>
      %c2_i32_96 = arith.constant 2 : i32
      %103 = arith.addi %45, %c2_i32_96 : i32
      %104 = arith.index_cast %103 : i32 to index
      %c1_97 = arith.constant 1 : index
      %c0_98 = arith.constant 0 : index
      %105 = vector.load %arg11[%104, %c1_97, %c0_98] : memref<20x34x8xbf16, #tpu.memory_space<vmem>>, vector<8x32x8xbf16>
      %106 = vector.shape_cast %105 : vector<8x32x8xbf16> to vector<256x8xbf16>
      %c7 = arith.constant 7 : index
      %c0_99 = arith.constant 0 : index
      %c0_100 = arith.constant 0 : index
      %107 = vector.load %arg6[%c7, %c0_99, %c0_100] : memref<9x8x8xbf16, #tpu.memory_space<vmem>>, vector<1x8x8xbf16>
      %108 = vector.shape_cast %107 : vector<1x8x8xbf16> to vector<8x8xbf16>
      %cst_101 = arith.constant dense<0.000000e+00> : vector<256x8xf32>
      %109 = tpu.matmul %106, %108, %cst_101 {dimension_numbers = #tpu.dot_dimension_numbers<[1], [0], [0], [1], [0, 0, 1, 1], [], []>} : vector<256x8xbf16>, vector<8x8xbf16>, vector<256x8xf32> -> vector<256x8xf32>
      %110 = arith.addf %102, %109 : vector<256x8xf32>
      %c2_i32_102 = arith.constant 2 : i32
      %111 = arith.addi %45, %c2_i32_102 : i32
      %112 = arith.index_cast %111 : i32 to index
      %c2_103 = arith.constant 2 : index
      %c0_104 = arith.constant 0 : index
      %113 = vector.load %arg11[%112, %c2_103, %c0_104] : memref<20x34x8xbf16, #tpu.memory_space<vmem>>, vector<8x32x8xbf16>
      %114 = vector.shape_cast %113 : vector<8x32x8xbf16> to vector<256x8xbf16>
      %c8 = arith.constant 8 : index
      %c0_105 = arith.constant 0 : index
      %c0_106 = arith.constant 0 : index
      %115 = vector.load %arg6[%c8, %c0_105, %c0_106] : memref<9x8x8xbf16, #tpu.memory_space<vmem>>, vector<1x8x8xbf16>
      %116 = vector.shape_cast %115 : vector<1x8x8xbf16> to vector<8x8xbf16>
      %cst_107 = arith.constant dense<0.000000e+00> : vector<256x8xf32>
      %117 = tpu.matmul %114, %116, %cst_107 {dimension_numbers = #tpu.dot_dimension_numbers<[1], [0], [0], [1], [0, 0, 1, 1], [], []>} : vector<256x8xbf16>, vector<8x8xbf16>, vector<256x8xf32> -> vector<256x8xf32>
      %118 = arith.addf %110, %117 : vector<256x8xf32>
      %119 = vector.broadcast %25 : vector<1x8xf32> to vector<256x8xf32>
      %120 = arith.addf %118, %119 : vector<256x8xf32>
      %cst_108 = arith.constant 0.000000e+00 : f32
      %121 = vector.broadcast %cst_108 : f32 to vector<256x8xf32>
      %122 = arith.maximumf %120, %121 : vector<256x8xf32>
      %123 = arith.truncf %122 : vector<256x8xf32> to vector<256x8xbf16>
      %124 = vector.shape_cast %123 : vector<256x8xbf16> to vector<8x32x8xbf16>
      %125 = arith.index_cast %45 : i32 to index
      %c1_109 = arith.constant 1 : index
      %c0_110 = arith.constant 0 : index
      %126 = vector.load %arg12[%125, %c1_109, %c0_110] : memref<18x34x8xbf16, #tpu.memory_space<vmem>>, vector<8x32x8xbf16>
      tpu.vector_store %arg12[%125, %c1_109, %c0_110], %124 {strides = array<i32>} : memref<18x34x8xbf16, #tpu.memory_space<vmem>>, vector<8x32x8xbf16>,
    }
    %c2_i32_35 = arith.constant 2 : i32
    %c0_i32_36 = arith.constant 0 : i32
    %28 = arith.cmpi sgt, %arg1, %c0_i32_36 : i32
    %29 = arith.extui %28 : i1 to i32
    %c0_i32_37 = arith.constant 0 : i32
    %30 = arith.cmpi ne, %29, %c0_i32_37 : i32
    scf.if %30 {
      %cst_48 = arith.constant 0.000000e+00 : f32
      %41 = vector.broadcast %cst_48 : f32 to vector<32x8xf32>
      %c0_49 = arith.constant 0 : index
      %c0_50 = arith.constant 0 : index
      %c0_51 = arith.constant 0 : index
      %42 = vector.load %arg11[%c0_49, %c0_50, %c0_51] : memref<20x34x8xbf16, #tpu.memory_space<vmem>>, vector<1x32x8xbf16>
      %43 = vector.shape_cast %42 : vector<1x32x8xbf16> to vector<32x8xbf16>
      %c0_52 = arith.constant 0 : index
      %c0_53 = arith.constant 0 : index
      %c0_54 = arith.constant 0 : index
      %44 = vector.load %arg6[%c0_52, %c0_53, %c0_54] : memref<9x8x8xbf16, #tpu.memory_space<vmem>>, vector<1x8x8xbf16>
      %45 = vector.shape_cast %44 : vector<1x8x8xbf16> to vector<8x8xbf16>
      %cst_55 = arith.constant dense<0.000000e+00> : vector<32x8xf32>
      %46 = tpu.matmul %43, %45, %cst_55 {dimension_numbers = #tpu.dot_dimension_numbers<[1], [0], [0], [1], [0, 0, 1, 1], [], []>} : vector<32x8xbf16>, vector<8x8xbf16>, vector<32x8xf32> -> vector<32x8xf32>
      %47 = arith.addf %41, %46 : vector<32x8xf32>
      %c0_56 = arith.constant 0 : index
      %c1 = arith.constant 1 : index
      %c0_57 = arith.constant 0 : index
      %48 = vector.load %arg11[%c0_56, %c1, %c0_57] : memref<20x34x8xbf16, #tpu.memory_space<vmem>>, vector<1x32x8xbf16>
      %49 = vector.shape_cast %48 : vector<1x32x8xbf16> to vector<32x8xbf16>
      %c1_58 = arith.constant 1 : index
      %c0_59 = arith.constant 0 : index
      %c0_60 = arith.constant 0 : index
      %50 = vector.load %arg6[%c1_58, %c0_59, %c0_60] : memref<9x8x8xbf16, #tpu.memory_space<vmem>>, vector<1x8x8xbf16>
      %51 = vector.shape_cast %50 : vector<1x8x8xbf16> to vector<8x8xbf16>
      %cst_61 = arith.constant dense<0.000000e+00> : vector<32x8xf32>
      %52 = tpu.matmul %49, %51, %cst_61 {dimension_numbers = #tpu.dot_dimension_numbers<[1], [0], [0], [1], [0, 0, 1, 1], [], []>} : vector<32x8xbf16>, vector<8x8xbf16>, vector<32x8xf32> -> vector<32x8xf32>
      %53 = arith.addf %47, %52 : vector<32x8xf32>
      %c0_62 = arith.constant 0 : index
      %c2 = arith.constant 2 : index
      %c0_63 = arith.constant 0 : index
      %54 = vector.load %arg11[%c0_62, %c2, %c0_63] : memref<20x34x8xbf16, #tpu.memory_space<vmem>>, vector<1x32x8xbf16>
      %55 = vector.shape_cast %54 : vector<1x32x8xbf16> to vector<32x8xbf16>
      %c2_64 = arith.constant 2 : index
      %c0_65 = arith.constant 0 : index
      %c0_66 = arith.constant 0 : index
      %56 = vector.load %arg6[%c2_64, %c0_65, %c0_66] : memref<9x8x8xbf16, #tpu.memory_space<vmem>>, vector<1x8x8xbf16>
      %57 = vector.shape_cast %56 : vector<1x8x8xbf16> to vector<8x8xbf16>
      %cst_67 = arith.constant dense<0.000000e+00> : vector<32x8xf32>
      %58 = tpu.matmul %55, %57, %cst_67 {dimension_numbers = #tpu.dot_dimension_numbers<[1], [0], [0], [1], [0, 0, 1, 1], [], []>} : vector<32x8xbf16>, vector<8x8xbf16>, vector<32x8xf32> -> vector<32x8xf32>
      %59 = arith.addf %53, %58 : vector<32x8xf32>
      %c1_68 = arith.constant 1 : index
      %c0_69 = arith.constant 0 : index
      %c0_70 = arith.constant 0 : index
      %60 = vector.load %arg11[%c1_68, %c0_69, %c0_70] : memref<20x34x8xbf16, #tpu.memory_space<vmem>>, vector<1x32x8xbf16>
      %61 = vector.shape_cast %60 : vector<1x32x8xbf16> to vector<32x8xbf16>
      %c3 = arith.constant 3 : index
      %c0_71 = arith.constant 0 : index
      %c0_72 = arith.constant 0 : index
      %62 = vector.load %arg6[%c3, %c0_71, %c0_72] : memref<9x8x8xbf16, #tpu.memory_space<vmem>>, vector<1x8x8xbf16>
      %63 = vector.shape_cast %62 : vector<1x8x8xbf16> to vector<8x8xbf16>
      %cst_73 = arith.constant dense<0.000000e+00> : vector<32x8xf32>
      %64 = tpu.matmul %61, %63, %cst_73 {dimension_numbers = #tpu.dot_dimension_numbers<[1], [0], [0], [1], [0, 0, 1, 1], [], []>} : vector<32x8xbf16>, vector<8x8xbf16>, vector<32x8xf32> -> vector<32x8xf32>
      %65 = arith.addf %59, %64 : vector<32x8xf32>
      %c1_74 = arith.constant 1 : index
      %c1_75 = arith.constant 1 : index
      %c0_76 = arith.constant 0 : index
      %66 = vector.load %arg11[%c1_74, %c1_75, %c0_76] : memref<20x34x8xbf16, #tpu.memory_space<vmem>>, vector<1x32x8xbf16>
      %67 = vector.shape_cast %66 : vector<1x32x8xbf16> to vector<32x8xbf16>
      %c4 = arith.constant 4 : index
      %c0_77 = arith.constant 0 : index
      %c0_78 = arith.constant 0 : index
      %68 = vector.load %arg6[%c4, %c0_77, %c0_78] : memref<9x8x8xbf16, #tpu.memory_space<vmem>>, vector<1x8x8xbf16>
      %69 = vector.shape_cast %68 : vector<1x8x8xbf16> to vector<8x8xbf16>
      %cst_79 = arith.constant dense<0.000000e+00> : vector<32x8xf32>
      %70 = tpu.matmul %67, %69, %cst_79 {dimension_numbers = #tpu.dot_dimension_numbers<[1], [0], [0], [1], [0, 0, 1, 1], [], []>} : vector<32x8xbf16>, vector<8x8xbf16>, vector<32x8xf32> -> vector<32x8xf32>
      %71 = arith.addf %65, %70 : vector<32x8xf32>
      %c1_80 = arith.constant 1 : index
      %c2_81 = arith.constant 2 : index
      %c0_82 = arith.constant 0 : index
      %72 = vector.load %arg11[%c1_80, %c2_81, %c0_82] : memref<20x34x8xbf16, #tpu.memory_space<vmem>>, vector<1x32x8xbf16>
      %73 = vector.shape_cast %72 : vector<1x32x8xbf16> to vector<32x8xbf16>
      %c5 = arith.constant 5 : index
      %c0_83 = arith.constant 0 : index
      %c0_84 = arith.constant 0 : index
      %74 = vector.load %arg6[%c5, %c0_83, %c0_84] : memref<9x8x8xbf16, #tpu.memory_space<vmem>>, vector<1x8x8xbf16>
      %75 = vector.shape_cast %74 : vector<1x8x8xbf16> to vector<8x8xbf16>
      %cst_85 = arith.constant dense<0.000000e+00> : vector<32x8xf32>
      %76 = tpu.matmul %73, %75, %cst_85 {dimension_numbers = #tpu.dot_dimension_numbers<[1], [0], [0], [1], [0, 0, 1, 1], [], []>} : vector<32x8xbf16>, vector<8x8xbf16>, vector<32x8xf32> -> vector<32x8xf32>
      %77 = arith.addf %71, %76 : vector<32x8xf32>
      %c2_86 = arith.constant 2 : index
      %c0_87 = arith.constant 0 : index
      %c0_88 = arith.constant 0 : index
      %78 = vector.load %arg11[%c2_86, %c0_87, %c0_88] : memref<20x34x8xbf16, #tpu.memory_space<vmem>>, vector<1x32x8xbf16>
      %79 = vector.shape_cast %78 : vector<1x32x8xbf16> to vector<32x8xbf16>
      %c6 = arith.constant 6 : index
      %c0_89 = arith.constant 0 : index
      %c0_90 = arith.constant 0 : index
      %80 = vector.load %arg6[%c6, %c0_89, %c0_90] : memref<9x8x8xbf16, #tpu.memory_space<vmem>>, vector<1x8x8xbf16>
      %81 = vector.shape_cast %80 : vector<1x8x8xbf16> to vector<8x8xbf16>
      %cst_91 = arith.constant dense<0.000000e+00> : vector<32x8xf32>
      %82 = tpu.matmul %79, %81, %cst_91 {dimension_numbers = #tpu.dot_dimension_numbers<[1], [0], [0], [1], [0, 0, 1, 1], [], []>} : vector<32x8xbf16>, vector<8x8xbf16>, vector<32x8xf32> -> vector<32x8xf32>
      %83 = arith.addf %77, %82 : vector<32x8xf32>
      %c2_92 = arith.constant 2 : index
      %c1_93 = arith.constant 1 : index
      %c0_94 = arith.constant 0 : index
      %84 = vector.load %arg11[%c2_92, %c1_93, %c0_94] : memref<20x34x8xbf16, #tpu.memory_space<vmem>>, vector<1x32x8xbf16>
      %85 = vector.shape_cast %84 : vector<1x32x8xbf16> to vector<32x8xbf16>
      %c7 = arith.constant 7 : index
      %c0_95 = arith.constant 0 : index
      %c0_96 = arith.constant 0 : index
      %86 = vector.load %arg6[%c7, %c0_95, %c0_96] : memref<9x8x8xbf16, #tpu.memory_space<vmem>>, vector<1x8x8xbf16>
      %87 = vector.shape_cast %86 : vector<1x8x8xbf16> to vector<8x8xbf16>
      %cst_97 = arith.constant dense<0.000000e+00> : vector<32x8xf32>
      %88 = tpu.matmul %85, %87, %cst_97 {dimension_numbers = #tpu.dot_dimension_numbers<[1], [0], [0], [1], [0, 0, 1, 1], [], []>} : vector<32x8xbf16>, vector<8x8xbf16>, vector<32x8xf32> -> vector<32x8xf32>
      %89 = arith.addf %83, %88 : vector<32x8xf32>
      %c2_98 = arith.constant 2 : index
      %c2_99 = arith.constant 2 : index
      %c0_100 = arith.constant 0 : index
      %90 = vector.load %arg11[%c2_98, %c2_99, %c0_100] : memref<20x34x8xbf16, #tpu.memory_space<vmem>>, vector<1x32x8xbf16>
      %91 = vector.shape_cast %90 : vector<1x32x8xbf16> to vector<32x8xbf16>
      %c8 = arith.constant 8 : index
      %c0_101 = arith.constant 0 : index
      %c0_102 = arith.constant 0 : index
      %92 = vector.load %arg6[%c8, %c0_101, %c0_102] : memref<9x8x8xbf16, #tpu.memory_space<vmem>>, vector<1x8x8xbf16>
      %93 = vector.shape_cast %92 : vector<1x8x8xbf16> to vector<8x8xbf16>
      %cst_103 = arith.constant dense<0.000000e+00> : vector<32x8xf32>
      %94 = tpu.matmul %91, %93, %cst_103 {dimension_numbers = #tpu.dot_dimension_numbers<[1], [0], [0], [1], [0, 0, 1, 1], [], []>} : vector<32x8xbf16>, vector<8x8xbf16>, vector<32x8xf32> -> vector<32x8xf32>
      %95 = arith.addf %89, %94 : vector<32x8xf32>
      %96 = vector.broadcast %25 : vector<1x8xf32> to vector<32x8xf32>
      %97 = arith.addf %95, %96 : vector<32x8xf32>
      %cst_104 = arith.constant 0.000000e+00 : f32
      %98 = vector.broadcast %cst_104 : f32 to vector<32x8xf32>
      %99 = arith.maximumf %97, %98 : vector<32x8xf32>
      %100 = arith.truncf %99 : vector<32x8xf32> to vector<32x8xbf16>
      %101 = vector.shape_cast %100 : vector<32x8xbf16> to vector<1x32x8xbf16>
      %c0_105 = arith.constant 0 : index
      %c1_106 = arith.constant 1 : index
      %c0_107 = arith.constant 0 : index
      %102 = vector.load %arg12[%c0_105, %c1_106, %c0_107] : memref<18x34x8xbf16, #tpu.memory_space<vmem>>, vector<1x32x8xbf16>
      tpu.vector_store %arg12[%c0_105, %c1_106, %c0_107], %101 {strides = array<i32>} : memref<18x34x8xbf16, #tpu.memory_space<vmem>>, vector<1x32x8xbf16>,
    } else {
    }
    %c0_i32_38 = arith.constant 0 : i32
    %31 = arith.cmpi eq, %arg1, %c0_i32_38 : i32
    %32 = arith.extui %31 : i1 to i32
    %c0_i32_39 = arith.constant 0 : i32
    %33 = arith.cmpi ne, %32, %c0_i32_39 : i32
    scf.if %33 {
      %cst_48 = arith.constant 0.000000e+00 : bf16
      %41 = vector.broadcast %cst_48 : bf16 to vector<1x34x8xbf16>
      %c0_49 = arith.constant 0 : index
      %c0_50 = arith.constant 0 : index
      %c0_51 = arith.constant 0 : index
      %42 = vector.load %arg12[%c0_49, %c0_50, %c0_51] : memref<18x34x8xbf16, #tpu.memory_space<vmem>>, vector<1x34x8xbf16>
      tpu.vector_store %arg12[%c0_49, %c0_50, %c0_51], %41 {strides = array<i32>} : memref<18x34x8xbf16, #tpu.memory_space<vmem>>, vector<1x34x8xbf16>,
    } else {
    }
    %c1_i32_40 = arith.constant 1 : i32
    %34 = arith.cmpi slt, %arg1, %c1_i32_40 : i32
    %35 = arith.extui %34 : i1 to i32
    %c0_i32_41 = arith.constant 0 : i32
    %36 = arith.cmpi ne, %35, %c0_i32_41 : i32
    scf.if %36 {
      %cst_48 = arith.constant 0.000000e+00 : f32
      %41 = vector.broadcast %cst_48 : f32 to vector<32x8xf32>
      %c17 = arith.constant 17 : index
      %c0_49 = arith.constant 0 : index
      %c0_50 = arith.constant 0 : index
      %42 = vector.load %arg11[%c17, %c0_49, %c0_50] : memref<20x34x8xbf16, #tpu.memory_space<vmem>>, vector<1x32x8xbf16>
      %43 = vector.shape_cast %42 : vector<1x32x8xbf16> to vector<32x8xbf16>
      %c0_51 = arith.constant 0 : index
      %c0_52 = arith.constant 0 : index
      %c0_53 = arith.constant 0 : index
      %44 = vector.load %arg6[%c0_51, %c0_52, %c0_53] : memref<9x8x8xbf16, #tpu.memory_space<vmem>>, vector<1x8x8xbf16>
      %45 = vector.shape_cast %44 : vector<1x8x8xbf16> to vector<8x8xbf16>
      %cst_54 = arith.constant dense<0.000000e+00> : vector<32x8xf32>
      %46 = tpu.matmul %43, %45, %cst_54 {dimension_numbers = #tpu.dot_dimension_numbers<[1], [0], [0], [1], [0, 0, 1, 1], [], []>} : vector<32x8xbf16>, vector<8x8xbf16>, vector<32x8xf32> -> vector<32x8xf32>
      %47 = arith.addf %41, %46 : vector<32x8xf32>
      %c17_55 = arith.constant 17 : index
      %c1 = arith.constant 1 : index
      %c0_56 = arith.constant 0 : index
      %48 = vector.load %arg11[%c17_55, %c1, %c0_56] : memref<20x34x8xbf16, #tpu.memory_space<vmem>>, vector<1x32x8xbf16>
      %49 = vector.shape_cast %48 : vector<1x32x8xbf16> to vector<32x8xbf16>
      %c1_57 = arith.constant 1 : index
      %c0_58 = arith.constant 0 : index
      %c0_59 = arith.constant 0 : index
      %50 = vector.load %arg6[%c1_57, %c0_58, %c0_59] : memref<9x8x8xbf16, #tpu.memory_space<vmem>>, vector<1x8x8xbf16>
      %51 = vector.shape_cast %50 : vector<1x8x8xbf16> to vector<8x8xbf16>
      %cst_60 = arith.constant dense<0.000000e+00> : vector<32x8xf32>
      %52 = tpu.matmul %49, %51, %cst_60 {dimension_numbers = #tpu.dot_dimension_numbers<[1], [0], [0], [1], [0, 0, 1, 1], [], []>} : vector<32x8xbf16>, vector<8x8xbf16>, vector<32x8xf32> -> vector<32x8xf32>
      %53 = arith.addf %47, %52 : vector<32x8xf32>
      %c17_61 = arith.constant 17 : index
      %c2 = arith.constant 2 : index
      %c0_62 = arith.constant 0 : index
      %54 = vector.load %arg11[%c17_61, %c2, %c0_62] : memref<20x34x8xbf16, #tpu.memory_space<vmem>>, vector<1x32x8xbf16>
      %55 = vector.shape_cast %54 : vector<1x32x8xbf16> to vector<32x8xbf16>
      %c2_63 = arith.constant 2 : index
      %c0_64 = arith.constant 0 : index
      %c0_65 = arith.constant 0 : index
      %56 = vector.load %arg6[%c2_63, %c0_64, %c0_65] : memref<9x8x8xbf16, #tpu.memory_space<vmem>>, vector<1x8x8xbf16>
      %57 = vector.shape_cast %56 : vector<1x8x8xbf16> to vector<8x8xbf16>
      %cst_66 = arith.constant dense<0.000000e+00> : vector<32x8xf32>
      %58 = tpu.matmul %55, %57, %cst_66 {dimension_numbers = #tpu.dot_dimension_numbers<[1], [0], [0], [1], [0, 0, 1, 1], [], []>} : vector<32x8xbf16>, vector<8x8xbf16>, vector<32x8xf32> -> vector<32x8xf32>
      %59 = arith.addf %53, %58 : vector<32x8xf32>
      %c18 = arith.constant 18 : index
      %c0_67 = arith.constant 0 : index
      %c0_68 = arith.constant 0 : index
      %60 = vector.load %arg11[%c18, %c0_67, %c0_68] : memref<20x34x8xbf16, #tpu.memory_space<vmem>>, vector<1x32x8xbf16>
      %61 = vector.shape_cast %60 : vector<1x32x8xbf16> to vector<32x8xbf16>
      %c3 = arith.constant 3 : index
      %c0_69 = arith.constant 0 : index
      %c0_70 = arith.constant 0 : index
      %62 = vector.load %arg6[%c3, %c0_69, %c0_70] : memref<9x8x8xbf16, #tpu.memory_space<vmem>>, vector<1x8x8xbf16>
      %63 = vector.shape_cast %62 : vector<1x8x8xbf16> to vector<8x8xbf16>
      %cst_71 = arith.constant dense<0.000000e+00> : vector<32x8xf32>
      %64 = tpu.matmul %61, %63, %cst_71 {dimension_numbers = #tpu.dot_dimension_numbers<[1], [0], [0], [1], [0, 0, 1, 1], [], []>} : vector<32x8xbf16>, vector<8x8xbf16>, vector<32x8xf32> -> vector<32x8xf32>
      %65 = arith.addf %59, %64 : vector<32x8xf32>
      %c18_72 = arith.constant 18 : index
      %c1_73 = arith.constant 1 : index
      %c0_74 = arith.constant 0 : index
      %66 = vector.load %arg11[%c18_72, %c1_73, %c0_74] : memref<20x34x8xbf16, #tpu.memory_space<vmem>>, vector<1x32x8xbf16>
      %67 = vector.shape_cast %66 : vector<1x32x8xbf16> to vector<32x8xbf16>
      %c4 = arith.constant 4 : index
      %c0_75 = arith.constant 0 : index
      %c0_76 = arith.constant 0 : index
      %68 = vector.load %arg6[%c4, %c0_75, %c0_76] : memref<9x8x8xbf16, #tpu.memory_space<vmem>>, vector<1x8x8xbf16>
      %69 = vector.shape_cast %68 : vector<1x8x8xbf16> to vector<8x8xbf16>
      %cst_77 = arith.constant dense<0.000000e+00> : vector<32x8xf32>
      %70 = tpu.matmul %67, %69, %cst_77 {dimension_numbers = #tpu.dot_dimension_numbers<[1], [0], [0], [1], [0, 0, 1, 1], [], []>} : vector<32x8xbf16>, vector<8x8xbf16>, vector<32x8xf32> -> vector<32x8xf32>
      %71 = arith.addf %65, %70 : vector<32x8xf32>
      %c18_78 = arith.constant 18 : index
      %c2_79 = arith.constant 2 : index
      %c0_80 = arith.constant 0 : index
      %72 = vector.load %arg11[%c18_78, %c2_79, %c0_80] : memref<20x34x8xbf16, #tpu.memory_space<vmem>>, vector<1x32x8xbf16>
      %73 = vector.shape_cast %72 : vector<1x32x8xbf16> to vector<32x8xbf16>
      %c5 = arith.constant 5 : index
      %c0_81 = arith.constant 0 : index
      %c0_82 = arith.constant 0 : index
      %74 = vector.load %arg6[%c5, %c0_81, %c0_82] : memref<9x8x8xbf16, #tpu.memory_space<vmem>>, vector<1x8x8xbf16>
      %75 = vector.shape_cast %74 : vector<1x8x8xbf16> to vector<8x8xbf16>
      %cst_83 = arith.constant dense<0.000000e+00> : vector<32x8xf32>
      %76 = tpu.matmul %73, %75, %cst_83 {dimension_numbers = #tpu.dot_dimension_numbers<[1], [0], [0], [1], [0, 0, 1, 1], [], []>} : vector<32x8xbf16>, vector<8x8xbf16>, vector<32x8xf32> -> vector<32x8xf32>
      %77 = arith.addf %71, %76 : vector<32x8xf32>
      %c19 = arith.constant 19 : index
      %c0_84 = arith.constant 0 : index
      %c0_85 = arith.constant 0 : index
      %78 = vector.load %arg11[%c19, %c0_84, %c0_85] : memref<20x34x8xbf16, #tpu.memory_space<vmem>>, vector<1x32x8xbf16>
      %79 = vector.shape_cast %78 : vector<1x32x8xbf16> to vector<32x8xbf16>
      %c6 = arith.constant 6 : index
      %c0_86 = arith.constant 0 : index
      %c0_87 = arith.constant 0 : index
      %80 = vector.load %arg6[%c6, %c0_86, %c0_87] : memref<9x8x8xbf16, #tpu.memory_space<vmem>>, vector<1x8x8xbf16>
      %81 = vector.shape_cast %80 : vector<1x8x8xbf16> to vector<8x8xbf16>
      %cst_88 = arith.constant dense<0.000000e+00> : vector<32x8xf32>
      %82 = tpu.matmul %79, %81, %cst_88 {dimension_numbers = #tpu.dot_dimension_numbers<[1], [0], [0], [1], [0, 0, 1, 1], [], []>} : vector<32x8xbf16>, vector<8x8xbf16>, vector<32x8xf32> -> vector<32x8xf32>
      %83 = arith.addf %77, %82 : vector<32x8xf32>
      %c19_89 = arith.constant 19 : index
      %c1_90 = arith.constant 1 : index
      %c0_91 = arith.constant 0 : index
      %84 = vector.load %arg11[%c19_89, %c1_90, %c0_91] : memref<20x34x8xbf16, #tpu.memory_space<vmem>>, vector<1x32x8xbf16>
      %85 = vector.shape_cast %84 : vector<1x32x8xbf16> to vector<32x8xbf16>
      %c7 = arith.constant 7 : index
      %c0_92 = arith.constant 0 : index
      %c0_93 = arith.constant 0 : index
      %86 = vector.load %arg6[%c7, %c0_92, %c0_93] : memref<9x8x8xbf16, #tpu.memory_space<vmem>>, vector<1x8x8xbf16>
      %87 = vector.shape_cast %86 : vector<1x8x8xbf16> to vector<8x8xbf16>
      %cst_94 = arith.constant dense<0.000000e+00> : vector<32x8xf32>
      %88 = tpu.matmul %85, %87, %cst_94 {dimension_numbers = #tpu.dot_dimension_numbers<[1], [0], [0], [1], [0, 0, 1, 1], [], []>} : vector<32x8xbf16>, vector<8x8xbf16>, vector<32x8xf32> -> vector<32x8xf32>
      %89 = arith.addf %83, %88 : vector<32x8xf32>
      %c19_95 = arith.constant 19 : index
      %c2_96 = arith.constant 2 : index
      %c0_97 = arith.constant 0 : index
      %90 = vector.load %arg11[%c19_95, %c2_96, %c0_97] : memref<20x34x8xbf16, #tpu.memory_space<vmem>>, vector<1x32x8xbf16>
      %91 = vector.shape_cast %90 : vector<1x32x8xbf16> to vector<32x8xbf16>
      %c8 = arith.constant 8 : index
      %c0_98 = arith.constant 0 : index
      %c0_99 = arith.constant 0 : index
      %92 = vector.load %arg6[%c8, %c0_98, %c0_99] : memref<9x8x8xbf16, #tpu.memory_space<vmem>>, vector<1x8x8xbf16>
      %93 = vector.shape_cast %92 : vector<1x8x8xbf16> to vector<8x8xbf16>
      %cst_100 = arith.constant dense<0.000000e+00> : vector<32x8xf32>
      %94 = tpu.matmul %91, %93, %cst_100 {dimension_numbers = #tpu.dot_dimension_numbers<[1], [0], [0], [1], [0, 0, 1, 1], [], []>} : vector<32x8xbf16>, vector<8x8xbf16>, vector<32x8xf32> -> vector<32x8xf32>
      %95 = arith.addf %89, %94 : vector<32x8xf32>
      %96 = vector.broadcast %25 : vector<1x8xf32> to vector<32x8xf32>
      %97 = arith.addf %95, %96 : vector<32x8xf32>
      %cst_101 = arith.constant 0.000000e+00 : f32
      %98 = vector.broadcast %cst_101 : f32 to vector<32x8xf32>
      %99 = arith.maximumf %97, %98 : vector<32x8xf32>
      %100 = arith.truncf %99 : vector<32x8xf32> to vector<32x8xbf16>
      %101 = vector.shape_cast %100 : vector<32x8xbf16> to vector<1x32x8xbf16>
      %c17_102 = arith.constant 17 : index
      %c1_103 = arith.constant 1 : index
      %c0_104 = arith.constant 0 : index
      %102 = vector.load %arg12[%c17_102, %c1_103, %c0_104] : memref<18x34x8xbf16, #tpu.memory_space<vmem>>, vector<1x32x8xbf16>
      tpu.vector_store %arg12[%c17_102, %c1_103, %c0_104], %101 {strides = array<i32>} : memref<18x34x8xbf16, #tpu.memory_space<vmem>>, vector<1x32x8xbf16>,
    } else {
    }
    %c1_i32_42 = arith.constant 1 : i32
    %37 = arith.cmpi eq, %arg1, %c1_i32_42 : i32
    %38 = arith.extui %37 : i1 to i32
    %c0_i32_43 = arith.constant 0 : i32
    %39 = arith.cmpi ne, %38, %c0_i32_43 : i32
    scf.if %39 {
      %cst_48 = arith.constant 0.000000e+00 : bf16
      %41 = vector.broadcast %cst_48 : bf16 to vector<1x34x8xbf16>
      %c17 = arith.constant 17 : index
      %c0_49 = arith.constant 0 : index
      %c0_50 = arith.constant 0 : index
      %42 = vector.load %arg12[%c17, %c0_49, %c0_50] : memref<18x34x8xbf16, #tpu.memory_space<vmem>>, vector<1x34x8xbf16>
      tpu.vector_store %arg12[%c17, %c0_49, %c0_50], %41 {strides = array<i32>} : memref<18x34x8xbf16, #tpu.memory_space<vmem>>, vector<1x34x8xbf16>,
    } else {
    }
    %c0_i32_44 = arith.constant 0 : i32
    %c2_i32_45 = arith.constant 2 : i32
    %40 = arith.addi %c0_i32_44, %c2_i32_45 : i32
    %c1_i32_46 = arith.constant 1 : i32
    scf.for %arg13 = %c0_i32_44 to %40 step %c1_i32_46  : i32 {
      %c1_i32_48 = arith.constant 1 : i32
      %41 = arith.muli %arg13, %c1_i32_48 : i32
      %c0_i32_49 = arith.constant 0 : i32
      %42 = arith.addi %c0_i32_49, %41 : i32
      %c8_i32_50 = arith.constant 8 : i32
      %43 = arith.muli %42, %c8_i32_50 : i32
      %44 = tpu.assume_multiple %43, 8 : i32
      %cst_51 = arith.constant 0.000000e+00 : f32
      %45 = vector.broadcast %cst_51 : f32 to vector<256x8xf32>
      %c0_i32_52 = arith.constant 0 : i32
      %46 = arith.addi %44, %c0_i32_52 : i32
      %47 = arith.index_cast %46 : i32 to index
      %c0_53 = arith.constant 0 : index
      %c0_54 = arith.constant 0 : index
      %48 = vector.load %arg12[%47, %c0_53, %c0_54] : memref<18x34x8xbf16, #tpu.memory_space<vmem>>, vector<8x32x8xbf16>
      %49 = vector.shape_cast %48 : vector<8x32x8xbf16> to vector<256x8xbf16>
      %c0_55 = arith.constant 0 : index
      %c0_56 = arith.constant 0 : index
      %c0_57 = arith.constant 0 : index
      %50 = vector.load %arg8[%c0_55, %c0_56, %c0_57] : memref<9x8x8xbf16, #tpu.memory_space<vmem>>, vector<1x8x8xbf16>
      %51 = vector.shape_cast %50 : vector<1x8x8xbf16> to vector<8x8xbf16>
      %cst_58 = arith.constant dense<0.000000e+00> : vector<256x8xf32>
      %52 = tpu.matmul %49, %51, %cst_58 {dimension_numbers = #tpu.dot_dimension_numbers<[1], [0], [0], [1], [0, 0, 1, 1], [], []>} : vector<256x8xbf16>, vector<8x8xbf16>, vector<256x8xf32> -> vector<256x8xf32>
      %53 = arith.addf %45, %52 : vector<256x8xf32>
      %c0_i32_59 = arith.constant 0 : i32
      %54 = arith.addi %44, %c0_i32_59 : i32
      %55 = arith.index_cast %54 : i32 to index
      %c1 = arith.constant 1 : index
      %c0_60 = arith.constant 0 : index
      %56 = vector.load %arg12[%55, %c1, %c0_60] : memref<18x34x8xbf16, #tpu.memory_space<vmem>>, vector<8x32x8xbf16>
      %57 = vector.shape_cast %56 : vector<8x32x8xbf16> to vector<256x8xbf16>
      %c1_61 = arith.constant 1 : index
      %c0_62 = arith.constant 0 : index
      %c0_63 = arith.constant 0 : index
      %58 = vector.load %arg8[%c1_61, %c0_62, %c0_63] : memref<9x8x8xbf16, #tpu.memory_space<vmem>>, vector<1x8x8xbf16>
      %59 = vector.shape_cast %58 : vector<1x8x8xbf16> to vector<8x8xbf16>
      %cst_64 = arith.constant dense<0.000000e+00> : vector<256x8xf32>
      %60 = tpu.matmul %57, %59, %cst_64 {dimension_numbers = #tpu.dot_dimension_numbers<[1], [0], [0], [1], [0, 0, 1, 1], [], []>} : vector<256x8xbf16>, vector<8x8xbf16>, vector<256x8xf32> -> vector<256x8xf32>
      %61 = arith.addf %53, %60 : vector<256x8xf32>
      %c0_i32_65 = arith.constant 0 : i32
      %62 = arith.addi %44, %c0_i32_65 : i32
      %63 = arith.index_cast %62 : i32 to index
      %c2 = arith.constant 2 : index
      %c0_66 = arith.constant 0 : index
      %64 = vector.load %arg12[%63, %c2, %c0_66] : memref<18x34x8xbf16, #tpu.memory_space<vmem>>, vector<8x32x8xbf16>
      %65 = vector.shape_cast %64 : vector<8x32x8xbf16> to vector<256x8xbf16>
      %c2_67 = arith.constant 2 : index
      %c0_68 = arith.constant 0 : index
      %c0_69 = arith.constant 0 : index
      %66 = vector.load %arg8[%c2_67, %c0_68, %c0_69] : memref<9x8x8xbf16, #tpu.memory_space<vmem>>, vector<1x8x8xbf16>
      %67 = vector.shape_cast %66 : vector<1x8x8xbf16> to vector<8x8xbf16>
      %cst_70 = arith.constant dense<0.000000e+00> : vector<256x8xf32>
      %68 = tpu.matmul %65, %67, %cst_70 {dimension_numbers = #tpu.dot_dimension_numbers<[1], [0], [0], [1], [0, 0, 1, 1], [], []>} : vector<256x8xbf16>, vector<8x8xbf16>, vector<256x8xf32> -> vector<256x8xf32>
      %69 = arith.addf %61, %68 : vector<256x8xf32>
      %c1_i32_71 = arith.constant 1 : i32
      %70 = arith.addi %44, %c1_i32_71 : i32
      %71 = arith.index_cast %70 : i32 to index
      %c0_72 = arith.constant 0 : index
      %c0_73 = arith.constant 0 : index
      %72 = vector.load %arg12[%71, %c0_72, %c0_73] : memref<18x34x8xbf16, #tpu.memory_space<vmem>>, vector<8x32x8xbf16>
      %73 = vector.shape_cast %72 : vector<8x32x8xbf16> to vector<256x8xbf16>
      %c3 = arith.constant 3 : index
      %c0_74 = arith.constant 0 : index
      %c0_75 = arith.constant 0 : index
      %74 = vector.load %arg8[%c3, %c0_74, %c0_75] : memref<9x8x8xbf16, #tpu.memory_space<vmem>>, vector<1x8x8xbf16>
      %75 = vector.shape_cast %74 : vector<1x8x8xbf16> to vector<8x8xbf16>
      %cst_76 = arith.constant dense<0.000000e+00> : vector<256x8xf32>
      %76 = tpu.matmul %73, %75, %cst_76 {dimension_numbers = #tpu.dot_dimension_numbers<[1], [0], [0], [1], [0, 0, 1, 1], [], []>} : vector<256x8xbf16>, vector<8x8xbf16>, vector<256x8xf32> -> vector<256x8xf32>
      %77 = arith.addf %69, %76 : vector<256x8xf32>
      %c1_i32_77 = arith.constant 1 : i32
      %78 = arith.addi %44, %c1_i32_77 : i32
      %79 = arith.index_cast %78 : i32 to index
      %c1_78 = arith.constant 1 : index
      %c0_79 = arith.constant 0 : index
      %80 = vector.load %arg12[%79, %c1_78, %c0_79] : memref<18x34x8xbf16, #tpu.memory_space<vmem>>, vector<8x32x8xbf16>
      %81 = vector.shape_cast %80 : vector<8x32x8xbf16> to vector<256x8xbf16>
      %c4 = arith.constant 4 : index
      %c0_80 = arith.constant 0 : index
      %c0_81 = arith.constant 0 : index
      %82 = vector.load %arg8[%c4, %c0_80, %c0_81] : memref<9x8x8xbf16, #tpu.memory_space<vmem>>, vector<1x8x8xbf16>
      %83 = vector.shape_cast %82 : vector<1x8x8xbf16> to vector<8x8xbf16>
      %cst_82 = arith.constant dense<0.000000e+00> : vector<256x8xf32>
      %84 = tpu.matmul %81, %83, %cst_82 {dimension_numbers = #tpu.dot_dimension_numbers<[1], [0], [0], [1], [0, 0, 1, 1], [], []>} : vector<256x8xbf16>, vector<8x8xbf16>, vector<256x8xf32> -> vector<256x8xf32>
      %85 = arith.addf %77, %84 : vector<256x8xf32>
      %c1_i32_83 = arith.constant 1 : i32
      %86 = arith.addi %44, %c1_i32_83 : i32
      %87 = arith.index_cast %86 : i32 to index
      %c2_84 = arith.constant 2 : index
      %c0_85 = arith.constant 0 : index
      %88 = vector.load %arg12[%87, %c2_84, %c0_85] : memref<18x34x8xbf16, #tpu.memory_space<vmem>>, vector<8x32x8xbf16>
      %89 = vector.shape_cast %88 : vector<8x32x8xbf16> to vector<256x8xbf16>
      %c5 = arith.constant 5 : index
      %c0_86 = arith.constant 0 : index
      %c0_87 = arith.constant 0 : index
      %90 = vector.load %arg8[%c5, %c0_86, %c0_87] : memref<9x8x8xbf16, #tpu.memory_space<vmem>>, vector<1x8x8xbf16>
      %91 = vector.shape_cast %90 : vector<1x8x8xbf16> to vector<8x8xbf16>
      %cst_88 = arith.constant dense<0.000000e+00> : vector<256x8xf32>
      %92 = tpu.matmul %89, %91, %cst_88 {dimension_numbers = #tpu.dot_dimension_numbers<[1], [0], [0], [1], [0, 0, 1, 1], [], []>} : vector<256x8xbf16>, vector<8x8xbf16>, vector<256x8xf32> -> vector<256x8xf32>
      %93 = arith.addf %85, %92 : vector<256x8xf32>
      %c2_i32_89 = arith.constant 2 : i32
      %94 = arith.addi %44, %c2_i32_89 : i32
      %95 = arith.index_cast %94 : i32 to index
      %c0_90 = arith.constant 0 : index
      %c0_91 = arith.constant 0 : index
      %96 = vector.load %arg12[%95, %c0_90, %c0_91] : memref<18x34x8xbf16, #tpu.memory_space<vmem>>, vector<8x32x8xbf16>
      %97 = vector.shape_cast %96 : vector<8x32x8xbf16> to vector<256x8xbf16>
      %c6 = arith.constant 6 : index
      %c0_92 = arith.constant 0 : index
      %c0_93 = arith.constant 0 : index
      %98 = vector.load %arg8[%c6, %c0_92, %c0_93] : memref<9x8x8xbf16, #tpu.memory_space<vmem>>, vector<1x8x8xbf16>
      %99 = vector.shape_cast %98 : vector<1x8x8xbf16> to vector<8x8xbf16>
      %cst_94 = arith.constant dense<0.000000e+00> : vector<256x8xf32>
      %100 = tpu.matmul %97, %99, %cst_94 {dimension_numbers = #tpu.dot_dimension_numbers<[1], [0], [0], [1], [0, 0, 1, 1], [], []>} : vector<256x8xbf16>, vector<8x8xbf16>, vector<256x8xf32> -> vector<256x8xf32>
      %101 = arith.addf %93, %100 : vector<256x8xf32>
      %c2_i32_95 = arith.constant 2 : i32
      %102 = arith.addi %44, %c2_i32_95 : i32
      %103 = arith.index_cast %102 : i32 to index
      %c1_96 = arith.constant 1 : index
      %c0_97 = arith.constant 0 : index
      %104 = vector.load %arg12[%103, %c1_96, %c0_97] : memref<18x34x8xbf16, #tpu.memory_space<vmem>>, vector<8x32x8xbf16>
      %105 = vector.shape_cast %104 : vector<8x32x8xbf16> to vector<256x8xbf16>
      %c7 = arith.constant 7 : index
      %c0_98 = arith.constant 0 : index
      %c0_99 = arith.constant 0 : index
      %106 = vector.load %arg8[%c7, %c0_98, %c0_99] : memref<9x8x8xbf16, #tpu.memory_space<vmem>>, vector<1x8x8xbf16>
      %107 = vector.shape_cast %106 : vector<1x8x8xbf16> to vector<8x8xbf16>
      %cst_100 = arith.constant dense<0.000000e+00> : vector<256x8xf32>
      %108 = tpu.matmul %105, %107, %cst_100 {dimension_numbers = #tpu.dot_dimension_numbers<[1], [0], [0], [1], [0, 0, 1, 1], [], []>} : vector<256x8xbf16>, vector<8x8xbf16>, vector<256x8xf32> -> vector<256x8xf32>
      %109 = arith.addf %101, %108 : vector<256x8xf32>
      %c2_i32_101 = arith.constant 2 : i32
      %110 = arith.addi %44, %c2_i32_101 : i32
      %111 = arith.index_cast %110 : i32 to index
      %c2_102 = arith.constant 2 : index
      %c0_103 = arith.constant 0 : index
      %112 = vector.load %arg12[%111, %c2_102, %c0_103] : memref<18x34x8xbf16, #tpu.memory_space<vmem>>, vector<8x32x8xbf16>
      %113 = vector.shape_cast %112 : vector<8x32x8xbf16> to vector<256x8xbf16>
      %c8 = arith.constant 8 : index
      %c0_104 = arith.constant 0 : index
      %c0_105 = arith.constant 0 : index
      %114 = vector.load %arg8[%c8, %c0_104, %c0_105] : memref<9x8x8xbf16, #tpu.memory_space<vmem>>, vector<1x8x8xbf16>
      %115 = vector.shape_cast %114 : vector<1x8x8xbf16> to vector<8x8xbf16>
      %cst_106 = arith.constant dense<0.000000e+00> : vector<256x8xf32>
      %116 = tpu.matmul %113, %115, %cst_106 {dimension_numbers = #tpu.dot_dimension_numbers<[1], [0], [0], [1], [0, 0, 1, 1], [], []>} : vector<256x8xbf16>, vector<8x8xbf16>, vector<256x8xf32> -> vector<256x8xf32>
      %117 = arith.addf %109, %116 : vector<256x8xf32>
      %118 = vector.shape_cast %117 : vector<256x8xf32> to vector<8x32x8xf32>
      %119 = vector.shape_cast %26 : vector<1x8xf32> to vector<1x1x8xf32>
      %120 = vector.broadcast %119 : vector<1x1x8xf32> to vector<8x32x8xf32>
      %121 = arith.addf %118, %120 : vector<8x32x8xf32>
      %c0_107 = arith.constant 0 : index
      %122 = arith.index_cast %44 : i32 to index
      %c0_108 = arith.constant 0 : index
      %c0_109 = arith.constant 0 : index
      %123 = vector.load %arg10[%c0_107, %122, %c0_108, %c0_109] : memref<1x16x32x8xf32, #tpu.memory_space<vmem>>, vector<1x8x32x8xf32>
      %124 = vector.shape_cast %123 : vector<1x8x32x8xf32> to vector<8x32x8xf32>
      %125 = arith.addf %121, %124 : vector<8x32x8xf32>
      %c0_110 = arith.constant 0 : index
      %126 = arith.index_cast %44 : i32 to index
      %c0_111 = arith.constant 0 : index
      %c0_112 = arith.constant 0 : index
      %127 = vector.load %arg10[%c0_110, %126, %c0_111, %c0_112] : memref<1x16x32x8xf32, #tpu.memory_space<vmem>>, vector<1x8x32x8xf32>
      %128 = vector.shape_cast %127 : vector<1x8x32x8xf32> to vector<8x32x8xf32>
      %129 = vector.shape_cast %125 : vector<8x32x8xf32> to vector<1x8x32x8xf32>
      tpu.vector_store %arg10[%c0_110, %126, %c0_111, %c0_112], %129 {strides = array<i32>} : memref<1x16x32x8xf32, #tpu.memory_space<vmem>>, vector<1x8x32x8xf32>,
    }
    %c2_i32_47 = arith.constant 2 : i32
    return
  }
  func.func @transform_0(%arg0: i32, %arg1: i32) -> (i32, i32, i32, i32) {
    %c0_i32 = arith.constant 0 : i32
    %c0_i32_0 = arith.constant 0 : i32
    %c0_i32_1 = arith.constant 0 : i32
    %c0_i32_2 = arith.constant 0 : i32
    return %arg0, %c0_i32, %c0_i32_0, %c0_i32_1 : i32, i32, i32, i32
  }
  func.func @transform_1(%arg0: i32, %arg1: i32) -> (i32, i32) {
    %c0_i32 = arith.constant 0 : i32
    %c0_i32_0 = arith.constant 0 : i32
    %c0_i32_1 = arith.constant 0 : i32
    return %c0_i32, %c0_i32_0 : i32, i32
  }
  func.func @transform_2(%arg0: i32, %arg1: i32) -> (i32, i32) {
    %c0_i32 = arith.constant 0 : i32
    %c0_i32_0 = arith.constant 0 : i32
    %c0_i32_1 = arith.constant 0 : i32
    return %c0_i32, %c0_i32_0 : i32, i32
  }
  func.func @transform_3(%arg0: i32, %arg1: i32) -> (i32, i32) {
    %c0_i32 = arith.constant 0 : i32
    %c0_i32_0 = arith.constant 0 : i32
    %c0_i32_1 = arith.constant 0 : i32
    return %c0_i32, %c0_i32_0 : i32, i32
  }
  func.func @transform_4(%arg0: i32, %arg1: i32) -> (i32, i32, i32) {
    %c0_i32 = arith.constant 0 : i32
    %c0_i32_0 = arith.constant 0 : i32
    %c0_i32_1 = arith.constant 0 : i32
    %c0_i32_2 = arith.constant 0 : i32
    return %c0_i32, %c0_i32_0, %c0_i32_1 : i32, i32, i32
  }
  func.func @transform_5(%arg0: i32, %arg1: i32) -> (i32, i32) {
    %c0_i32 = arith.constant 0 : i32
    %c0_i32_0 = arith.constant 0 : i32
    %c0_i32_1 = arith.constant 0 : i32
    return %c0_i32, %c0_i32_0 : i32, i32
  }
  func.func @transform_6(%arg0: i32, %arg1: i32) -> (i32, i32, i32) {
    %c0_i32 = arith.constant 0 : i32
    %c0_i32_0 = arith.constant 0 : i32
    %c0_i32_1 = arith.constant 0 : i32
    %c0_i32_2 = arith.constant 0 : i32
    return %c0_i32, %c0_i32_0, %c0_i32_1 : i32, i32, i32
  }
  func.func @transform_7(%arg0: i32, %arg1: i32) -> (i32, i32) {
    %c0_i32 = arith.constant 0 : i32
    %c0_i32_0 = arith.constant 0 : i32
    %c0_i32_1 = arith.constant 0 : i32
    return %c0_i32, %c0_i32_0 : i32, i32
  }
  func.func @transform_8(%arg0: i32, %arg1: i32) -> (i32, i32, i32, i32) {
    %c0_i32 = arith.constant 0 : i32
    %c0_i32_0 = arith.constant 0 : i32
    %c0_i32_1 = arith.constant 0 : i32
    return %arg0, %arg1, %c0_i32, %c0_i32_0 : i32, i32, i32, i32
  }
}

</mosaic_0001>

<llo_original>
// kernel: tpu_custom_call.1
$region0: #{tpu_custom_call.1}
  #allocation0 [shape = 'u32[]', space=smem, size = 0x4, offset = 0x4, fixed_abs, tag = 'smem constant byte address 0x4 - core index']
  #allocation1 [shape = 'u32[72,128]{1,0:T(1,128)}', space=vmem, size = 0x9000, scoped, tag = 'internal scratch']
  #allocation2 [shape = 'bf16[20,34,8]{2,1,0:T(8,128)(2,1)}', space=vmem, size = 0x32000, scoped, tag = 'scratch operand']
  #allocation3 [shape = 'bf16[18,34,8]{2,1,0:T(8,128)(2,1)}', space=vmem, size = 0x2d000, scoped, tag = 'scratch operand']
  %s0 = inlined_call_operand.vmem [shape: f32[2,16,16,8], index: 0, kind: input, shape index: {}]
  %s1 = inlined_call_operand.vmem [shape: f32[32,16], index: 1, kind: input, shape index: {}]
  %s2 = inlined_call_operand.vmem [shape: f32[1,8], index: 2, kind: input, shape index: {}]
  %s3 = inlined_call_operand.vmem [shape: f32[1,8], index: 3, kind: input, shape index: {}]
  %s4 = inlined_call_operand.vmem [shape: bf16[9,8,8], index: 4, kind: input, shape index: {}]
  %s5 = inlined_call_operand.vmem [shape: f32[1,8], index: 5, kind: input, shape index: {}]
  %s6 = inlined_call_operand.vmem [shape: bf16[9,8,8], index: 6, kind: input, shape index: {}]
  %s7 = inlined_call_operand.vmem [shape: f32[1,8], index: 7, kind: input, shape index: {}]
  %s8 = inlined_call_operand.vmem [shape: f32[2,32,32,8], index: 8, kind: output, shape index: {}]
  %s9 = sld [smem:[#allocation0]]
  $region118: #{tpu_custom_call.1} parent=0
    _
  %s11 = ssub.s32 1, %s9
  %s12 = scalar_select 0, %s11, %s9
  loop: start=0, step=1, limit=6
  $region2: #{tpu_custom_call.1} parent=0 // loop_pre_header
    _
  $region3: #{tpu_custom_call.1} parent=0 // loop_header
    %s14 = sphi 0, %s18
    %p15 = scmp.ge.s32.totalorder %s14, 6
    %s21 = sphi 0, %s33
    %s22 = sphi 0, %s29
    %s23 = sphi 0, %s21
    %s24 = sphi 0, %s22
    %s25 = sphi 0, %s23
    %s26 = sphi 0, %s24
    %s36 = sphi 0, %s38
    %s39 = sphi 0, %s36
    %s40 = sphi 0, %s39
    %s56 = sphi 0, %s40
    %s60 = sphi 0, %s60
    %s62 = sphi 0, %s60
    %s63 = sphi 0, %s62
    %s77 = sphi 0, %s63
    %s81 = sphi 0, %s81
    %s83 = sphi 0, %s81
    %s84 = sphi 0, %s83
    %s98 = sphi 0, %s84
    %s102 = sphi 0, %s102
    %s104 = sphi 0, %s102
    %s105 = sphi 0, %s104
    %s119 = sphi 0, %s105
    %s123 = sphi 0, %s123
    %s125 = sphi 0, %s123
    %s126 = sphi 0, %s125
    %s140 = sphi 0, %s126
    %s144 = sphi 0, %s144
    %s146 = sphi 0, %s144
    %s147 = sphi 0, %s146
    %s161 = sphi 0, %s147
    %s165 = sphi 0, %s165
    %s167 = sphi 0, %s165
    %s168 = sphi 0, %s167
    %s182 = sphi 0, %s168
    %s186 = sphi 0, %s186
    %s188 = sphi 0, %s186
    %s189 = sphi 0, %s188
    %s203 = sphi 0, %s189
    %s211 = sphi 0, %s213
    %s214 = sphi 0, %s211
    %s215 = sphi 0, %s214
    %s231 = sphi 0, %s215
  $region4: #{tpu_custom_call.1} parent=0 // loop_header_branch
    %17 = sbr.rel (%p15) target = $region8
  $region5: #{tpu_custom_call.1} parent=0 // loop_body
    %s19 = ssub.s32 %s14, 1
    %s20 = ssub.s32 %s14, 2
    %s27 = sadd.s32 1, %s22
    %p28 = scmp.ge.s32.totalorder %s27, 2
    %s29 = scalar_select %p28, 0, %s27
    %s30 = sadd.s32 1, %s21
    %s31 = scalar_select %p28, %s30, %s21
    %p32 = scmp.ge.s32.totalorder %s31, 2
    %s33 = scalar_select %p32, 0, %s31
    %s34 = ssub.s32 %s21, %s33
    %p35 = scmp.eq.s32.totalorder %s34, 0
    %s37 = sadd.s32 %s36, 1
    %s38 = scalar_select %p35, %s36, %s37
    %p41 = pneg %p35
    %p42 = scmp.eq.s32.totalorder %s14, 3
    %p43 = por %p41, %p42
    %p44 = scmp.ne.s32.totalorder %s36, %s39
    %p45 = scmp.eq.s32.totalorder %s14, 0
    %p46 = por %p44, %p45
    %p47 = scmp.ne.s32.totalorder %s36, %s39
    %p48 = scmp.eq.s32.totalorder %s19, 3
    %p49 = por %p47, %p48
    %p50 = scmp.ne.s32.totalorder %s39, %s40
    %p51 = scmp.eq.s32.totalorder %s19, 0
    %p52 = por %p50, %p51
    %p53 = scmp.ne.s32.totalorder %s39, %s40
    %p54 = scmp.eq.s32.totalorder %s20, 3
    %p55 = por %p53, %p54
    %p57 = scmp.ne.s32.totalorder %s40, %s56
    %p58 = scmp.eq.s32.totalorder %s20, 0
    %p59 = por %p57, %p58
    %s61 = sadd.s32 %s60, 1
    %p64 = scmp.eq.s32.totalorder %s14, 3
    %p65 = scmp.ne.s32.totalorder %s60, %s62
    %p66 = scmp.eq.s32.totalorder %s14, 0
    %p67 = por %p65, %p66
    %p68 = scmp.ne.s32.totalorder %s60, %s62
    %p69 = scmp.eq.s32.totalorder %s19, 3
    %p70 = por %p68, %p69
    %p71 = scmp.ne.s32.totalorder %s62, %s63
    %p72 = scmp.eq.s32.totalorder %s19, 0
    %p73 = por %p71, %p72
    %p74 = scmp.ne.s32.totalorder %s62, %s63
    %p75 = scmp.eq.s32.totalorder %s20, 3
    %p76 = por %p74, %p75
    %p78 = scmp.ne.s32.totalorder %s63, %s77
    %p79 = scmp.eq.s32.totalorder %s20, 0
    %p80 = por %p78, %p79
    %s82 = sadd.s32 %s81, 1
    %p85 = scmp.eq.s32.totalorder %s14, 3
    %p86 = scmp.ne.s32.totalorder %s81, %s83
    %p87 = scmp.eq.s32.totalorder %s14, 0
    %p88 = por %p86, %p87
    %p89 = scmp.ne.s32.totalorder %s81, %s83
    %p90 = scmp.eq.s32.totalorder %s19, 3
    %p91 = por %p89, %p90
    %p92 = scmp.ne.s32.totalorder %s83, %s84
    %p93 = scmp.eq.s32.totalorder %s19, 0
    %p94 = por %p92, %p93
    %p95 = scmp.ne.s32.totalorder %s83, %s84
    %p96 = scmp.eq.s32.totalorder %s20, 3
    %p97 = por %p95, %p96
    %p99 = scmp.ne.s32.totalorder %s84, %s98
    %p100 = scmp.eq.s32.totalorder %s20, 0
    %p101 = por %p99, %p100
    %s103 = sadd.s32 %s102, 1
    %p106 = scmp.eq.s32.totalorder %s14, 3
    %p107 = scmp.ne.s32.totalorder %s102, %s104
    %p108 = scmp.eq.s32.totalorder %s14, 0
    %p109 = por %p107, %p108
    %p110 = scmp.ne.s32.totalorder %s102, %s104
    %p111 = scmp.eq.s32.totalorder %s19, 3
    %p112 = por %p110, %p111
    %p113 = scmp.ne.s32.totalorder %s104, %s105
    %p114 = scmp.eq.s32.totalorder %s19, 0
    %p115 = por %p113, %p114
    %p116 = scmp.ne.s32.totalorder %s104, %s105
    %p117 = scmp.eq.s32.totalorder %s20, 3
    %p118 = por %p116, %p117
    %p120 = scmp.ne.s32.totalorder %s105, %s119
    %p121 = scmp.eq.s32.totalorder %s20, 0
    %p122 = por %p120, %p121
    %s124 = sadd.s32 %s123, 1
    %p127 = scmp.eq.s32.totalorder %s14, 3
    %p128 = scmp.ne.s32.totalorder %s123, %s125
    %p129 = scmp.eq.s32.totalorder %s14, 0
    %p130 = por %p128, %p129
    %p131 = scmp.ne.s32.totalorder %s123, %s125
    %p132 = scmp.eq.s32.totalorder %s19, 3
    %p133 = por %p131, %p132
    %p134 = scmp.ne.s32.totalorder %s125, %s126
    %p135 = scmp.eq.s32.totalorder %s19, 0
    %p136 = por %p134, %p135
    %p137 = scmp.ne.s32.totalorder %s125, %s126
    %p138 = scmp.eq.s32.totalorder %s20, 3
    %p139 = por %p137, %p138
    %p141 = scmp.ne.s32.totalorder %s126, %s140
    %p142 = scmp.eq.s32.totalorder %s20, 0
    %p143 = por %p141, %p142
    %s145 = sadd.s32 %s144, 1
    %p148 = scmp.eq.s32.totalorder %s14, 3
    %p149 = scmp.ne.s32.totalorder %s144, %s146
    %p150 = scmp.eq.s32.totalorder %s14, 0
    %p151 = por %p149, %p150
    %p152 = scmp.ne.s32.totalorder %s144, %s146
    %p153 = scmp.eq.s32.totalorder %s19, 3
    %p154 = por %p152, %p153
    %p155 = scmp.ne.s32.totalorder %s146, %s147
    %p156 = scmp.eq.s32.totalorder %s19, 0
    %p157 = por %p155, %p156
    %p158 = scmp.ne.s32.totalorder %s146, %s147
    %p159 = scmp.eq.s32.totalorder %s20, 3
    %p160 = por %p158, %p159
    %p162 = scmp.ne.s32.totalorder %s147, %s161
    %p163 = scmp.eq.s32.totalorder %s20, 0
    %p164 = por %p162, %p163
    %s166 = sadd.s32 %s165, 1
    %p169 = scmp.eq.s32.totalorder %s14, 3
    %p170 = scmp.ne.s32.totalorder %s165, %s167
    %p171 = scmp.eq.s32.totalorder %s14, 0
    %p172 = por %p170, %p171
    %p173 = scmp.ne.s32.totalorder %s165, %s167
    %p174 = scmp.eq.s32.totalorder %s19, 3
    %p175 = por %p173, %p174
    %p176 = scmp.ne.s32.totalorder %s167, %s168
    %p177 = scmp.eq.s32.totalorder %s19, 0
    %p178 = por %p176, %p177
    %p179 = scmp.ne.s32.totalorder %s167, %s168
    %p180 = scmp.eq.s32.totalorder %s20, 3
    %p181 = por %p179, %p180
    %p183 = scmp.ne.s32.totalorder %s168, %s182
    %p184 = scmp.eq.s32.totalorder %s20, 0
    %p185 = por %p183, %p184
    %s187 = sadd.s32 %s186, 1
    %p190 = scmp.eq.s32.totalorder %s14, 3
    %p191 = scmp.ne.s32.totalorder %s186, %s188
    %p192 = scmp.eq.s32.totalorder %s14, 0
    %p193 = por %p191, %p192
    %p194 = scmp.ne.s32.totalorder %s186, %s188
    %p195 = scmp.eq.s32.totalorder %s19, 3
    %p196 = por %p194, %p195
    %p197 = scmp.ne.s32.totalorder %s188, %s189
    %p198 = scmp.eq.s32.totalorder %s19, 0
    %p199 = por %p197, %p198
    %p200 = scmp.ne.s32.totalorder %s188, %s189
    %p201 = scmp.eq.s32.totalorder %s20, 3
    %p202 = por %p200, %p201
    %p204 = scmp.ne.s32.totalorder %s189, %s203
    %p205 = scmp.eq.s32.totalorder %s20, 0
    %p206 = por %p204, %p205
    %s207 = ssub.s32 %s21, %s33
    %s208 = ssub.s32 %s22, %s29
    %s209 = sor.u32 %s207, %s208
    %p210 = scmp.eq.s32.totalorder %s209, 0
    %s212 = sadd.s32 %s211, 1
    %s213 = scalar_select %p210, %s211, %s212
    %p216 = pneg %p210
    %p217 = scmp.eq.s32.totalorder %s14, 3
    %p218 = por %p216, %p217
    %p219 = scmp.ne.s32.totalorder %s211, %s214
    %p220 = scmp.eq.s32.totalorder %s14, 0
    %p221 = por %p219, %p220
    %p222 = scmp.ne.s32.totalorder %s211, %s214
    %p223 = scmp.eq.s32.totalorder %s19, 3
    %p224 = por %p222, %p223
    %p225 = scmp.ne.s32.totalorder %s214, %s215
    %p226 = scmp.eq.s32.totalorder %s19, 0
    %p227 = por %p225, %p226
    %p228 = scmp.ne.s32.totalorder %s214, %s215
    %p229 = scmp.eq.s32.totalorder %s20, 3
    %p230 = por %p228, %p229
    %p232 = scmp.ne.s32.totalorder %s215, %s231
    %p233 = scmp.eq.s32.totalorder %s20, 0
    %p234 = por %p232, %p233
    %p235 = scmp.le.s32.totalorder 1, %s14
    %p236 = scmp.lt.s32.totalorder %s14, 5
    %p237 = pnand %p235, %p236
    %p238 = pneg %p237
    // Predicated region
    $region9: #{tpu_custom_call.1} parent=5 // pred_check
      _
    $region10: #{tpu_custom_call.1} parent=5 // pred_check_branch
      %240 = sbr.rel (%p237) target = $region12
    $region11: #{tpu_custom_call.1} parent=5 // pred_region
      %s241 = ssub.s32 %s14, 1
      // Predicated region
      $region13: #{tpu_custom_call.1} parent=11 // pred_check
        %p242 = pneg %p73
      $region14: #{tpu_custom_call.1} parent=11 // pred_check_branch
        %244 = sbr.rel (%p242) target = $region16
      $region15: #{tpu_custom_call.1} parent=11 // pred_region
        _
      $region16: #{tpu_custom_call.1} parent=11 // pred_fallthru
        _
      // Predicated region
      $region17: #{tpu_custom_call.1} parent=11 // pred_check
        %p245 = pneg %p94
      $region18: #{tpu_custom_call.1} parent=11 // pred_check_branch
        %247 = sbr.rel (%p245) target = $region20
      $region19: #{tpu_custom_call.1} parent=11 // pred_region
        _
      $region20: #{tpu_custom_call.1} parent=11 // pred_fallthru
        _
      // Predicated region
      $region21: #{tpu_custom_call.1} parent=11 // pred_check
        %p248 = pneg %p115
      $region22: #{tpu_custom_call.1} parent=11 // pred_check_branch
        %250 = sbr.rel (%p248) target = $region24
      $region23: #{tpu_custom_call.1} parent=11 // pred_region
        _
      $region24: #{tpu_custom_call.1} parent=11 // pred_fallthru
        _
      // Predicated region
      $region25: #{tpu_custom_call.1} parent=11 // pred_check
        %p251 = pneg %p136
      $region26: #{tpu_custom_call.1} parent=11 // pred_check_branch
        %253 = sbr.rel (%p251) target = $region28
      $region27: #{tpu_custom_call.1} parent=11 // pred_region
        _
      $region28: #{tpu_custom_call.1} parent=11 // pred_fallthru
        _
      // Predicated region
      $region29: #{tpu_custom_call.1} parent=11 // pred_check
        %p254 = pneg %p157
      $region30: #{tpu_custom_call.1} parent=11 // pred_check_branch
        %256 = sbr.rel (%p254) target = $region32
      $region31: #{tpu_custom_call.1} parent=11 // pred_region
        _
      $region32: #{tpu_custom_call.1} parent=11 // pred_fallthru
        _
      // Predicated region
      $region33: #{tpu_custom_call.1} parent=11 // pred_check
        %p257 = pneg %p178
      $region34: #{tpu_custom_call.1} parent=11 // pred_check_branch
        %259 = sbr.rel (%p257) target = $region36
      $region35: #{tpu_custom_call.1} parent=11 // pred_region
        _
      $region36: #{tpu_custom_call.1} parent=11 // pred_fallthru
        _
      // Predicated region
      $region37: #{tpu_custom_call.1} parent=11 // pred_check
        %p260 = pneg %p199
      $region38: #{tpu_custom_call.1} parent=11 // pred_check_branch
        %262 = sbr.rel (%p260) target = $region40
      $region39: #{tpu_custom_call.1} parent=11 // pred_region
        _
      $region40: #{tpu_custom_call.1} parent=11 // pred_fallthru
        _
    $region12: #{tpu_custom_call.1} parent=5 // pred_fallthru
      _
    %p263 = scmp.lt.s32.totalorder %s14, 4
    // Predicated region
    $region41: #{tpu_custom_call.1} parent=5 // pred_check
      %p264 = pneg %p263
    $region42: #{tpu_custom_call.1} parent=5 // pred_check_branch
      %266 = sbr.rel (%p264) target = $region44
    $region43: #{tpu_custom_call.1} parent=5 // pred_region
      // Predicated region
      $region45: #{tpu_custom_call.1} parent=43 // pred_check
        %p267 = pneg %p46
      $region46: #{tpu_custom_call.1} parent=43 // pred_check_branch
        %269 = sbr.rel (%p267) target = $region48
      $region47: #{tpu_custom_call.1} parent=43 // pred_region
        %p270 = scmp.lt.s32.totalorder %s21, 1
        %s271 = scalar_select %p270, %s21, 1
        %s272 = smul.addr %s271, 32
        %s273 = smul.addr %s272, 8
        %s274 = scalar_lea.vmem %s0, %s273
      $region48: #{tpu_custom_call.1} parent=43 // pred_fallthru
        _
    $region44: #{tpu_custom_call.1} parent=5 // pred_fallthru
      _
    %p275 = scmp.le.s32.totalorder 1, %s14
    %p276 = scmp.lt.s32.totalorder %s14, 5
    %p277 = pnand %p275, %p276
    %p278 = pneg %p277
    // Predicated region
    $region49: #{tpu_custom_call.1} parent=5 // pred_check
      _
    $region50: #{tpu_custom_call.1} parent=5 // pred_check_branch
      %280 = sbr.rel (%p277) target = $region52
    $region51: #{tpu_custom_call.1} parent=5 // pred_region
      %s281 = ssub.s32 %s14, 1
      %p282 = scmp.lt.s32.totalorder %s23, 1
      %s283 = scalar_select %p282, %s23, 1
      %s284 = smul.addr %s283, 32
      %s285 = smul.addr %s284, 8
      %s286 = scalar_lea.vmem %s0, %s285
      %p287 = pneg %p52
      %p288 = pneg %p49
      %p289 = pneg %p73
      %p290 = pneg %p70
      %p291 = pneg %p94
      %p292 = pneg %p91
      %p293 = pneg %p115
      %p294 = pneg %p112
      %p295 = pneg %p136
      %p296 = pneg %p133
      %p297 = pneg %p157
      %p298 = pneg %p154
      %p299 = pneg %p178
      %p300 = pneg %p175
      %p301 = pneg %p199
      %p302 = pneg %p196
      %p303 = pneg %p227
      %p304 = pneg %p224
      %s305 = smul.u32 16, %s24
      %p306 = scmp.lt.s32.totalorder %s23, 1
      %s307 = scalar_select %p306, %s23, 1
      %p308 = scmp.lt.s32.totalorder %s305, 31
      %s309 = scalar_select %p308, %s305, 31
      %s310 = smul.addr %s309, 4
      %s311 = smul.addr %s307, 128
      %s312 = sadd.s32 %s310, %s311
      %s313 = smul.addr %s312, 8
      %s314 = scalar_lea.vmem %s8, %s313
      %p315 = scmp.lt.s32.totalorder %s23, 1
      %s316 = scalar_select %p315, %s23, 1
      %s317 = smul.addr %s316, 32
      %s318 = smul.addr %s317, 8
      %s319 = scalar_lea.vmem %s0, %s318
      %s320 = smul.u32 16, %s24
      %p321 = scmp.lt.s32.totalorder %s23, 1
      %s322 = scalar_select %p321, %s23, 1
      %p323 = scmp.lt.s32.totalorder %s320, 31
      %s324 = scalar_select %p323, %s320, 31
      %s325 = smul.addr %s324, 4
      %s326 = smul.addr %s322, 128
      %s327 = sadd.s32 %s325, %s326
      %s328 = smul.addr %s327, 8
      %s329 = scalar_lea.vmem %s8, %s328
      %s330 = smul.u32 16, %s24
      %s332 = smul.u32 %s24, 8
      %vm333 = vcmask 57344
      %vm334 = vsmask.f32 256
      %vm335 = vmand %vm333, %vm334
      %v336 = vld [vmem:[#allocation2] sm:$0x1]
      %v337 = vsel %vm335, 0, %v336
      %338 = vst [vmem:[#allocation2] sm:$0x1] %v337
      %v339 = vld [vmem:[#allocation2 + $0x14] sm:$0x1]
      %v340 = vsel %vm335, 0, %v339
      %341 = vst [vmem:[#allocation2 + $0x14] sm:$0x1] %v340
      %v342 = vld [vmem:[#allocation2 + $0x28] sm:$0x1]
      %v343 = vsel %vm335, 0, %v342
      %344 = vst [vmem:[#allocation2 + $0x28] sm:$0x1] %v343
      %v345 = vld [vmem:[#allocation2 + $0x3c] sm:$0x1]
      %v346 = vsel %vm335, 0, %v345
      %347 = vst [vmem:[#allocation2 + $0x3c] sm:$0x1] %v346
      %v348 = vld [vmem:[#allocation2 + $0x50] sm:$0x1]
      %v349 = vsel %vm335, 0, %v348
      %350 = vst [vmem:[#allocation2 + $0x50] sm:$0x1] %v349
      %v351 = vld [vmem:[#allocation2 + $0x64] sm:$0x1]
      %v352 = vsel %vm335, 0, %v351
      %353 = vst [vmem:[#allocation2 + $0x64] sm:$0x1] %v352
      %v354 = vld [vmem:[#allocation2 + $0x78] sm:$0x1]
      %v355 = vsel %vm335, 0, %v354
      %356 = vst [vmem:[#allocation2 + $0x78] sm:$0x1] %v355
      %v357 = vld [vmem:[#allocation2 + $0x8c] sm:$0x1]
      %v358 = vsel %vm335, 0, %v357
      %359 = vst [vmem:[#allocation2 + $0x8c] sm:$0x1] %v358
      %v360 = vld [vmem:[#allocation2 + $0xa0] sm:$0x1]
      %v361 = vsel %vm335, 0, %v360
      %362 = vst [vmem:[#allocation2 + $0xa0] sm:$0x1] %v361
      %v363 = vld [vmem:[#allocation2 + $0xb4] sm:$0x1]
      %v364 = vsel %vm335, 0, %v363
      %365 = vst [vmem:[#allocation2 + $0xb4] sm:$0x1] %v364
      %v366 = vld [vmem:[#allocation2 + $0xc8] sm:$0x1]
      %v367 = vsel %vm335, 0, %v366
      %368 = vst [vmem:[#allocation2 + $0xc8] sm:$0x1] %v367
      %v369 = vld [vmem:[#allocation2 + $0xdc] sm:$0x1]
      %v370 = vsel %vm335, 0, %v369
      %371 = vst [vmem:[#allocation2 + $0xdc] sm:$0x1] %v370
      %v372 = vld [vmem:[#allocation2 + $0xf0] sm:$0x1]
      %v373 = vsel %vm335, 0, %v372
      %374 = vst [vmem:[#allocation2 + $0xf0] sm:$0x1] %v373
      %v375 = vld [vmem:[#allocation2 + $0x104] sm:$0x1]
      %v376 = vsel %vm335, 0, %v375
      %377 = vst [vmem:[#allocation2 + $0x104] sm:$0x1] %v376
      %v378 = vld [vmem:[#allocation2 + $0x118] sm:$0x1]
      %v379 = vsel %vm335, 0, %v378
      %380 = vst [vmem:[#allocation2 + $0x118] sm:$0x1] %v379
      %v381 = vld [vmem:[#allocation2 + $0x12c] sm:$0x1]
      %v382 = vsel %vm335, 0, %v381
      %383 = vst [vmem:[#allocation2 + $0x12c] sm:$0x1] %v382
      %v384 = vld [vmem:[#allocation2 + $0x140] sm:$0x1]
      %v385 = vsel %vm335, 0, %v384
      %386 = vst [vmem:[#allocation2 + $0x140] sm:$0x1] %v385
      %v387 = vld [vmem:[#allocation2 + $0x154] sm:$0x1]
      %v388 = vsel %vm335, 0, %v387
      %389 = vst [vmem:[#allocation2 + $0x154] sm:$0x1] %v388
      %v390 = vld [vmem:[#allocation2 + $0x168] sm:$0x1]
      %v391 = vsel %vm335, 0, %v390
      %392 = vst [vmem:[#allocation2 + $0x168] sm:$0x1] %v391
      %v393 = vld [vmem:[#allocation2 + $0x17c] sm:$0x1]
      %v394 = vsel %vm335, 0, %v393
      %395 = vst [vmem:[#allocation2 + $0x17c] sm:$0x1] %v394
      %vm396 = vsmask.f32 7938
      %vm397 = vmand %vm333, %vm396
      %v398 = vld [vmem:[#allocation2 + $0x10] sm:$0x1]
      %v399 = vsel %vm397, 0, %v398
      %400 = vst [vmem:[#allocation2 + $0x10] sm:$0x1] %v399
      %v401 = vld [vmem:[#allocation2 + $0x24] sm:$0x1]
      %v402 = vsel %vm397, 0, %v401
      %403 = vst [vmem:[#allocation2 + $0x24] sm:$0x1] %v402
      %v404 = vld [vmem:[#allocation2 + $0x38] sm:$0x1]
      %v405 = vsel %vm397, 0, %v404
      %406 = vst [vmem:[#allocation2 + $0x38] sm:$0x1] %v405
      %v407 = vld [vmem:[#allocation2 + $0x4c] sm:$0x1]
      %v408 = vsel %vm397, 0, %v407
      %409 = vst [vmem:[#allocation2 + $0x4c] sm:$0x1] %v408
      %v410 = vld [vmem:[#allocation2 + $0x60] sm:$0x1]
      %v411 = vsel %vm397, 0, %v410
      %412 = vst [vmem:[#allocation2 + $0x60] sm:$0x1] %v411
      %v413 = vld [vmem:[#allocation2 + $0x74] sm:$0x1]
      %v414 = vsel %vm397, 0, %v413
      %415 = vst [vmem:[#allocation2 + $0x74] sm:$0x1] %v414
      %v416 = vld [vmem:[#allocation2 + $0x88] sm:$0x1]
      %v417 = vsel %vm397, 0, %v416
      %418 = vst [vmem:[#allocation2 + $0x88] sm:$0x1] %v417
      %v419 = vld [vmem:[#allocation2 + $0x9c] sm:$0x1]
      %v420 = vsel %vm397, 0, %v419
      %421 = vst [vmem:[#allocation2 + $0x9c] sm:$0x1] %v420
      %v422 = vld [vmem:[#allocation2 + $0xb0] sm:$0x1]
      %v423 = vsel %vm397, 0, %v422
      %424 = vst [vmem:[#allocation2 + $0xb0] sm:$0x1] %v423
      %v425 = vld [vmem:[#allocation2 + $0xc4] sm:$0x1]
      %v426 = vsel %vm397, 0, %v425
      %427 = vst [vmem:[#allocation2 + $0xc4] sm:$0x1] %v426
      %v428 = vld [vmem:[#allocation2 + $0xd8] sm:$0x1]
      %v429 = vsel %vm397, 0, %v428
      %430 = vst [vmem:[#allocation2 + $0xd8] sm:$0x1] %v429
      %v431 = vld [vmem:[#allocation2 + $0xec] sm:$0x1]
      %v432 = vsel %vm397, 0, %v431
      %433 = vst [vmem:[#allocation2 + $0xec] sm:$0x1] %v432
      %v434 = vld [vmem:[#allocation2 + $0x100] sm:$0x1]
      %v435 = vsel %vm397, 0, %v434
      %436 = vst [vmem:[#allocation2 + $0x100] sm:$0x1] %v435
      %v437 = vld [vmem:[#allocation2 + $0x114] sm:$0x1]
      %v438 = vsel %vm397, 0, %v437
      %439 = vst [vmem:[#allocation2 + $0x114] sm:$0x1] %v438
      %v440 = vld [vmem:[#allocation2 + $0x128] sm:$0x1]
      %v441 = vsel %vm397, 0, %v440
      %442 = vst [vmem:[#allocation2 + $0x128] sm:$0x1] %v441
      %v443 = vld [vmem:[#allocation2 + $0x13c] sm:$0x1]
      %v444 = vsel %vm397, 0, %v443
      %445 = vst [vmem:[#allocation2 + $0x13c] sm:$0x1] %v444
      %v446 = vld [vmem:[#allocation2 + $0x150] sm:$0x1]
      %v447 = vsel %vm397, 0, %v446
      %448 = vst [vmem:[#allocation2 + $0x150] sm:$0x1] %v447
      %v449 = vld [vmem:[#allocation2 + $0x164] sm:$0x1]
      %v450 = vsel %vm397, 0, %v449
      %451 = vst [vmem:[#allocation2 + $0x164] sm:$0x1] %v450
      %v452 = vld [vmem:[#allocation2 + $0x178] sm:$0x1]
      %v453 = vsel %vm397, 0, %v452
      %454 = vst [vmem:[#allocation2 + $0x178] sm:$0x1] %v453
      %v455 = vld [vmem:[#allocation2 + $0x18c] sm:$0x1]
      %v456 = vsel %vm397, 0, %v455
      %457 = vst [vmem:[#allocation2 + $0x18c] sm:$0x1] %v456
      %v458 = vld [vmem:[#allocation3] sm:$0x1]
      %v459 = vsel %vm335, 0, %v458
      %460 = vst [vmem:[#allocation3] sm:$0x1] %v459
      %v461 = vld [vmem:[#allocation3 + $0x14] sm:$0x1]
      %v462 = vsel %vm335, 0, %v461
      %463 = vst [vmem:[#allocation3 + $0x14] sm:$0x1] %v462
      %v464 = vld [vmem:[#allocation3 + $0x28] sm:$0x1]
      %v465 = vsel %vm335, 0, %v464
      %466 = vst [vmem:[#allocation3 + $0x28] sm:$0x1] %v465
      %v467 = vld [vmem:[#allocation3 + $0x3c] sm:$0x1]
      %v468 = vsel %vm335, 0, %v467
      %469 = vst [vmem:[#allocation3 + $0x3c] sm:$0x1] %v468
      %v470 = vld [vmem:[#allocation3 + $0x50] sm:$0x1]
      %v471 = vsel %vm335, 0, %v470
      %472 = vst [vmem:[#allocation3 + $0x50] sm:$0x1] %v471
      %v473 = vld [vmem:[#allocation3 + $0x64] sm:$0x1]
      %v474 = vsel %vm335, 0, %v473
      %475 = vst [vmem:[#allocation3 + $0x64] sm:$0x1] %v474
      %v476 = vld [vmem:[#allocation3 + $0x78] sm:$0x1]
      %v477 = vsel %vm335, 0, %v476
      %478 = vst [vmem:[#allocation3 + $0x78] sm:$0x1] %v477
      %v479 = vld [vmem:[#allocation3 + $0x8c] sm:$0x1]
      %v480 = vsel %vm335, 0, %v479
      %481 = vst [vmem:[#allocation3 + $0x8c] sm:$0x1] %v480
      %v482 = vld [vmem:[#allocation3 + $0xa0] sm:$0x1]
      %v483 = vsel %vm335, 0, %v482
      %484 = vst [vmem:[#allocation3 + $0xa0] sm:$0x1] %v483
      %v485 = vld [vmem:[#allocation3 + $0xb4] sm:$0x1]
      %v486 = vsel %vm335, 0, %v485
      %487 = vst [vmem:[#allocation3 + $0xb4] sm:$0x1] %v486
      %v488 = vld [vmem:[#allocation3 + $0xc8] sm:$0x1]
      %v489 = vsel %vm335, 0, %v488
      %490 = vst [vmem:[#allocation3 + $0xc8] sm:$0x1] %v489
      %v491 = vld [vmem:[#allocation3 + $0xdc] sm:$0x1]
      %v492 = vsel %vm335, 0, %v491
      %493 = vst [vmem:[#allocation3 + $0xdc] sm:$0x1] %v492
      %v494 = vld [vmem:[#allocation3 + $0xf0] sm:$0x1]
      %v495 = vsel %vm335, 0, %v494
      %496 = vst [vmem:[#allocation3 + $0xf0] sm:$0x1] %v495
      %v497 = vld [vmem:[#allocation3 + $0x104] sm:$0x1]
      %v498 = vsel %vm335, 0, %v497
      %499 = vst [vmem:[#allocation3 + $0x104] sm:$0x1] %v498
      %v500 = vld [vmem:[#allocation3 + $0x118] sm:$0x1]
      %v501 = vsel %vm335, 0, %v500
      %502 = vst [vmem:[#allocation3 + $0x118] sm:$0x1] %v501
      %v503 = vld [vmem:[#allocation3 + $0x12c] sm:$0x1]
      %v504 = vsel %vm335, 0, %v503
      %505 = vst [vmem:[#allocation3 + $0x12c] sm:$0x1] %v504
      %v506 = vld [vmem:[#allocation3 + $0x140] sm:$0x1]
      %v507 = vsel %vm335, 0, %v506
      %508 = vst [vmem:[#allocation3 + $0x140] sm:$0x1] %v507
      %v509 = vld [vmem:[#allocation3 + $0x154] sm:$0x1]
      %v510 = vsel %vm335, 0, %v509
      %511 = vst [vmem:[#allocation3 + $0x154] sm:$0x1] %v510
      %v512 = vld [vmem:[#allocation3 + $0x10] sm:$0x1]
      %v513 = vsel %vm397, 0, %v512
      %514 = vst [vmem:[#allocation3 + $0x10] sm:$0x1] %v513
      %v515 = vld [vmem:[#allocation3 + $0x24] sm:$0x1]
      %v516 = vsel %vm397, 0, %v515
      %517 = vst [vmem:[#allocation3 + $0x24] sm:$0x1] %v516
      %v518 = vld [vmem:[#allocation3 + $0x38] sm:$0x1]
      %v519 = vsel %vm397, 0, %v518
      %520 = vst [vmem:[#allocation3 + $0x38] sm:$0x1] %v519
      %v521 = vld [vmem:[#allocation3 + $0x4c] sm:$0x1]
      %v522 = vsel %vm397, 0, %v521
      %523 = vst [vmem:[#allocation3 + $0x4c] sm:$0x1] %v522
      %v524 = vld [vmem:[#allocation3 + $0x60] sm:$0x1]
      %v525 = vsel %vm397, 0, %v524
      %526 = vst [vmem:[#allocation3 + $0x60] sm:$0x1] %v525
      %v527 = vld [vmem:[#allocation3 + $0x74] sm:$0x1]
      %v528 = vsel %vm397, 0, %v527
      %529 = vst [vmem:[#allocation3 + $0x74] sm:$0x1] %v528
      %v530 = vld [vmem:[#allocation3 + $0x88] sm:$0x1]
      %v531 = vsel %vm397, 0, %v530
      %532 = vst [vmem:[#allocation3 + $0x88] sm:$0x1] %v531
      %v533 = vld [vmem:[#allocation3 + $0x9c] sm:$0x1]
      %v534 = vsel %vm397, 0, %v533
      %535 = vst [vmem:[#allocation3 + $0x9c] sm:$0x1] %v534
      %v536 = vld [vmem:[#allocation3 + $0xb0] sm:$0x1]
      %v537 = vsel %vm397, 0, %v536
      %538 = vst [vmem:[#allocation3 + $0xb0] sm:$0x1] %v537
      %v539 = vld [vmem:[#allocation3 + $0xc4] sm:$0x1]
      %v540 = vsel %vm397, 0, %v539
      %541 = vst [vmem:[#allocation3 + $0xc4] sm:$0x1] %v540
      %v542 = vld [vmem:[#allocation3 + $0xd8] sm:$0x1]
      %v543 = vsel %vm397, 0, %v542
      %544 = vst [vmem:[#allocation3 + $0xd8] sm:$0x1] %v543
      %v545 = vld [vmem:[#allocation3 + $0xec] sm:$0x1]
      %v546 = vsel %vm397, 0, %v545
      %547 = vst [vmem:[#allocation3 + $0xec] sm:$0x1] %v546
      %v548 = vld [vmem:[#allocation3 + $0x100] sm:$0x1]
      %v549 = vsel %vm397, 0, %v548
      %550 = vst [vmem:[#allocation3 + $0x100] sm:$0x1] %v549
      %v551 = vld [vmem:[#allocation3 + $0x114] sm:$0x1]
      %v552 = vsel %vm397, 0, %v551
      %553 = vst [vmem:[#allocation3 + $0x114] sm:$0x1] %v552
      %v554 = vld [vmem:[#allocation3 + $0x128] sm:$0x1]
      %v555 = vsel %vm397, 0, %v554
      %556 = vst [vmem:[#allocation3 + $0x128] sm:$0x1] %v555
      %v557 = vld [vmem:[#allocation3 + $0x13c] sm:$0x1]
      %v558 = vsel %vm397, 0, %v557
      %559 = vst [vmem:[#allocation3 + $0x13c] sm:$0x1] %v558
      %v560 = vld [vmem:[#allocation3 + $0x150] sm:$0x1]
      %v561 = vsel %vm397, 0, %v560
      %562 = vst [vmem:[#allocation3 + $0x150] sm:$0x1] %v561
      %v563 = vld [vmem:[#allocation3 + $0x164] sm:$0x1]
      %v564 = vsel %vm397, 0, %v563
      %565 = vst [vmem:[#allocation3 + $0x164] sm:$0x1] %v564
      %v566 = vld [vmem:[%s1] sm:$0xff]
      %v567 = vld [vmem:[%s1 + $0x8] sm:$0xff]
      %v568 = vld [vmem:[%s1 + $0x10] sm:$0xff]
      %v569 = vld [vmem:[%s1 + $0x18] sm:$0xff]
      %v570 = vld [vmem:[%s2] sm:$0x1]
      %v571 = vld [vmem:[%s3] sm:$0x1]
      loop: start=0, step=1, limit=8
      $region53: #{tpu_custom_call.1} parent=51 // loop_pre_header
        _
      $region54: #{tpu_custom_call.1} parent=51 // loop_header
        %s573 = sphi 0, %s577
        %p574 = scmp.ge.s32.totalorder %s573, 8
      $region55: #{tpu_custom_call.1} parent=51 // loop_header_branch
        %576 = sbr.rel (%p574) target = $region59
      $region56: #{tpu_custom_call.1} parent=51 // loop_body
        %s578 = smul.u32 %s573, 2
        %s579 = sadd.s32 %s332, %s573
        %s580 = smul.u32 %s579, 16
        %s581 = scalar_lea.vmem %s319, %s580
        %v582 = vld [vmem:[%s581] sm:$0xff]
        %v583 = vld [vmem:[%s581 + $0x8] sm:$0xff]
        %v585 = vperm.slane %v570, 0
        %v587 = vmul.f32 %v582, %v585
        %v588 = vmul.f32 %v583, %v585
        %v590 = vperm.slane %v571, 0
        %v592 = vadd.f32 %v587, %v590
        %v593 = vadd.f32 %v588, %v590
        %v594 = vmax.f32 %v592, 0.0
        %v595 = vmax.f32 %v593, 0.0
        %vm596 = vcmask 130048
        %v598 = vsel %vm596, %v566, 0
        %v601 = vsel %vm596, %v567, 0
        %v604 = vsel %vm596, %v568, 0
        %v607 = vsel %vm596, %v569, 0
        %609 = vmatpush.msra.mxu0 0.0
        %610 = vmatpush.msra.mxu0 0.0
        %611 = vmatpush.msra.mxu0 0.0
        %612 = vmatpush.msra.mxu0 0.0
        %613 = vmatpush.msra.mxu0 0.0
        %614 = vmatpush.msra.mxu0 0.0
        %615 = vmatpush.msra.mxu0 0.0
        %616 = vmatpush.msra.mxu0 0.0
        %617 = vmatpush.msra.mxu0 0.0
        %618 = vmatpush.msra.mxu0 0.0
        %619 = vmatpush.msra.mxu0 0.0
        %620 = vmatpush.msra.mxu0 0.0
        %621 = vmatpush.msra.mxu0 0.0
        %622 = vmatpush.msra.mxu0 0.0
        %623 = vmatpush.msra.mxu0 %v595
        %624 = vmatpush.msra.mxu0 %v594
        %625 = vmatmul.f32.gmra.mxu0 %v598
        %v626 = vpop.f32.mrf.mxu0
        %v627 = vadd.f32 0.0, %v626
        %628 = vmatmul.f32.gmra.mxu0 %v601
        %v629 = vpop.f32.mrf.mxu0
        %v630 = vadd.f32 0.0, %v629
        %631 = vmatmul.f32.gmra.mxu0 %v604
        %v632 = vpop.f32.mrf.mxu0
        %v633 = vadd.f32 0.0, %v632
        %634 = vmatmul.f32.gmra.mxu0 %v607
        %v635 = vpop.f32.mrf.mxu0
        %v636 = vadd.f32 0.0, %v635
        %637 = vdwg.mxu0
        %v638 = vpack.c.bf16 %v627, %v627
        %v639 = vpack.c.bf16 %v630, %v630
        %v640 = vpack.c.bf16 %v633, %v633
        %v641 = vpack.c.bf16 %v636, %v636
        %s642 = sadd.s32 %s578, 2
        %vm643 = vsmask.f32 4368
        %vm644 = vmor %vm334, %vm643
        %v646 = vshrl.u32 %v638, 16
        %v648 = vrot.slane %v646, 7
        %v649 = vshll.u32 %v638, 16
        %v651 = vor.u32 %v648, %v649
        %v652 = vrot.slane %v648, 4
        %v654 = vshrl.u32 %v639, 16
        %v656 = vrot.slane %v654, 7
        %v657 = vshll.u32 %v639, 16
        %v659 = vor.u32 %v656, %v657
        %v660 = vsel %vm644, %v652, %v659
        %v661 = vrot.slane %v656, 4
        %v663 = vshrl.u32 %v640, 16
        %v665 = vrot.slane %v663, 7
        %v666 = vshll.u32 %v640, 16
        %v668 = vor.u32 %v665, %v666
        %v669 = vsel %vm644, %v661, %v668
        %v670 = vrot.slane %v665, 4
        %v672 = vshrl.u32 %v641, 16
        %v674 = vrot.slane %v672, 7
        %v675 = vshll.u32 %v641, 16
        %v677 = vor.u32 %v674, %v675
        %v678 = vsel %vm644, %v670, %v677
        %v679 = vrot.slane %v674, 4
        %s685 = smul.u32 %s642, 5
        %s686 = smul.addr %s685, 4
        %s687 = scalar_lea.vmem [#allocation2], %s686
        %vm688 = vcmask 60416
        %vm689 = vmand %vm688, %vm396
        %v690 = vld [vmem:[%s687] sm:$0xf]
        %v691 = vsel %vm689, %v651, %v690
        %692 = vst [vmem:[%s687] sm:$0xf] %v691
        %vm693 = vcmask 60416
        %694 = vst.msk [vmem:[%s687 + $0x4] sm:$0xf] %vm693, %v660
        %695 = vst.msk [vmem:[%s687 + $0x8] sm:$0xf] %vm693, %v669
        %696 = vst.msk [vmem:[%s687 + $0xc] sm:$0xf] %vm693, %v678
        %v697 = vld [vmem:[%s687 + $0x10] sm:$0x1]
        %v698 = vsel %vm335, %v679, %v697
        %699 = vst [vmem:[%s687 + $0x10] sm:$0x1] %v698
        %v700 = vld [vmem:[%s687 + $0x14] sm:$0xf]
        %v701 = vsel %vm689, %v651, %v700
        %702 = vst [vmem:[%s687 + $0x14] sm:$0xf] %v701
        %703 = vst.msk [vmem:[%s687 + $0x18] sm:$0xf] %vm693, %v660
        %704 = vst.msk [vmem:[%s687 + $0x1c] sm:$0xf] %vm693, %v669
        %705 = vst.msk [vmem:[%s687 + $0x20] sm:$0xf] %vm693, %v678
        %v706 = vld [vmem:[%s687 + $0x24] sm:$0x1]
        %v707 = vsel %vm335, %v679, %v706
        %708 = vst [vmem:[%s687 + $0x24] sm:$0x1] %v707
        %v709 = vld [vmem:[%s581] sm:$0xff]
        %v710 = vld [vmem:[%s581 + $0x8] sm:$0xff]
        %711 = vmatpush.msra.mxu0 0.0
        %712 = vmatpush.msra.mxu0 0.0
        %713 = vmatpush.msra.mxu0 0.0
        %714 = vmatpush.msra.mxu0 0.0
        %715 = vmatpush.msra.mxu0 0.0
        %716 = vmatpush.msra.mxu0 0.0
        %717 = vmatpush.msra.mxu0 0.0
        %718 = vmatpush.msra.mxu0 0.0
        %719 = vmatpush.msra.mxu0 0.0
        %720 = vmatpush.msra.mxu0 0.0
        %721 = vmatpush.msra.mxu0 0.0
        %722 = vmatpush.msra.mxu0 0.0
        %723 = vmatpush.msra.mxu0 0.0
        %724 = vmatpush.msra.mxu0 0.0
        %725 = vmatpush.msra.mxu0 %v710
        %726 = vmatpush.msra.mxu0 %v709
        %727 = vmatmul.f32.gmra.mxu0 %v598
        %v728 = vpop.f32.mrf.mxu0
        %v729 = vadd.f32 0.0, %v728
        %730 = vmatmul.f32.gmra.mxu0 %v601
        %v731 = vpop.f32.mrf.mxu0
        %v732 = vadd.f32 0.0, %v731
        %733 = vmatmul.f32.gmra.mxu0 %v604
        %v734 = vpop.f32.mrf.mxu0
        %v735 = vadd.f32 0.0, %v734
        %736 = vmatmul.f32.gmra.mxu0 %v607
        %v737 = vpop.f32.mrf.mxu0
        %v738 = vadd.f32 0.0, %v737
        %739 = vdwg.mxu0
        %s740 = smul.u32 %s578, 32
        %s741 = scalar_lea.vmem %s329, %s740
        %vm742 = vcmask 64512
        %743 = vst.msk [vmem:[%s741] sm:$0xff] %vm742, %v729
        %744 = vst.msk [vmem:[%s741 + $0x8] sm:$0xff] %vm742, %v732
        %745 = vst.msk [vmem:[%s741 + $0x10] sm:$0xff] %vm742, %v735
        %746 = vst.msk [vmem:[%s741 + $0x18] sm:$0xff] %vm742, %v738
        %747 = vst.msk [vmem:[%s741 + $0x20] sm:$0xff] %vm742, %v729
        %748 = vst.msk [vmem:[%s741 + $0x28] sm:$0xff] %vm742, %v732
        %749 = vst.msk [vmem:[%s741 + $0x30] sm:$0xff] %vm742, %v735
        %750 = vst.msk [vmem:[%s741 + $0x38] sm:$0xff] %vm742, %v738
      $region57: #{tpu_custom_call.1} parent=51 // loop_footer
        %s577 = sadd.s32 1, %s573
      $region58: #{tpu_custom_call.1} parent=51 // loop_footer_branch
        %572 = sbr.rel target = $region54
      $region59: #{tpu_custom_call.1} parent=51 // loop_exit
        _
      %p751 = scmp.gt.s32.totalorder %s24, 0
      // Predicated region
      $region60: #{tpu_custom_call.1} parent=51 // pred_check
        %p752 = pneg %p751
      $region61: #{tpu_custom_call.1} parent=51 // pred_check_branch
        %754 = sbr.rel (%p752) target = $region63
      $region62: #{tpu_custom_call.1} parent=51 // pred_region
        %s755 = ssub.s32 %s332, 1
        %s756 = smul.u32 %s755, 16
        %s757 = scalar_lea.vmem %s319, %s756
        %v758 = vld [vmem:[%s757] sm:$0xff]
        %v759 = vld [vmem:[%s757 + $0x8] sm:$0xff]
        %v761 = vperm.slane %v570, 0
        %v763 = vmul.f32 %v758, %v761
        %v764 = vmul.f32 %v759, %v761
        %v766 = vperm.slane %v571, 0
        %v768 = vadd.f32 %v763, %v766
        %v769 = vadd.f32 %v764, %v766
        %v770 = vmax.f32 %v768, 0.0
        %v771 = vmax.f32 %v769, 0.0
        %vm772 = vcmask 130048
        %v774 = vsel %vm772, %v566, 0
        %v777 = vsel %vm772, %v567, 0
        %v780 = vsel %vm772, %v568, 0
        %v783 = vsel %vm772, %v569, 0
        %785 = vmatpush.msra.mxu0 0.0
        %786 = vmatpush.msra.mxu0 0.0
        %787 = vmatpush.msra.mxu0 0.0
        %788 = vmatpush.msra.mxu0 0.0
        %789 = vmatpush.msra.mxu0 0.0
        %790 = vmatpush.msra.mxu0 0.0
        %791 = vmatpush.msra.mxu0 0.0
        %792 = vmatpush.msra.mxu0 0.0
        %793 = vmatpush.msra.mxu0 0.0
        %794 = vmatpush.msra.mxu0 0.0
        %795 = vmatpush.msra.mxu0 0.0
        %796 = vmatpush.msra.mxu0 0.0
        %797 = vmatpush.msra.mxu0 0.0
        %798 = vmatpush.msra.mxu0 0.0
        %799 = vmatpush.msra.mxu0 %v771
        %800 = vmatpush.msra.mxu0 %v770
        %801 = vmatmul.f32.gmra.mxu0 %v774
        %v802 = vpop.f32.mrf.mxu0
        %v803 = vadd.f32 0.0, %v802
        %804 = vmatmul.f32.gmra.mxu0 %v777
        %v805 = vpop.f32.mrf.mxu0
        %v806 = vadd.f32 0.0, %v805
        %807 = vmatmul.f32.gmra.mxu0 %v780
        %v808 = vpop.f32.mrf.mxu0
        %v809 = vadd.f32 0.0, %v808
        %810 = vmatmul.f32.gmra.mxu0 %v783
        %v811 = vpop.f32.mrf.mxu0
        %v812 = vadd.f32 0.0, %v811
        %813 = vdwg.mxu0
        %v814 = vpack.c.bf16 %v803, %v803
        %v815 = vpack.c.bf16 %v806, %v806
        %v816 = vpack.c.bf16 %v809, %v809
        %v817 = vpack.c.bf16 %v812, %v812
        %vm818 = vsmask.f32 4368
        %vm819 = vmor %vm334, %vm818
        %v821 = vshrl.u32 %v814, 16
        %v823 = vrot.slane %v821, 7
        %v824 = vshll.u32 %v814, 16
        %v826 = vor.u32 %v823, %v824
        %v827 = vrot.slane %v823, 4
        %v829 = vshrl.u32 %v815, 16
        %v831 = vrot.slane %v829, 7
        %v832 = vshll.u32 %v815, 16
        %v834 = vor.u32 %v831, %v832
        %v835 = vsel %vm819, %v827, %v834
        %v836 = vrot.slane %v831, 4
        %v838 = vshrl.u32 %v816, 16
        %v840 = vrot.slane %v838, 7
        %v841 = vshll.u32 %v816, 16
        %v843 = vor.u32 %v840, %v841
        %v844 = vsel %vm819, %v836, %v843
        %v845 = vrot.slane %v840, 4
        %v847 = vshrl.u32 %v817, 16
        %v849 = vrot.slane %v847, 7
        %v850 = vshll.u32 %v817, 16
        %v852 = vor.u32 %v849, %v850
        %v853 = vsel %vm819, %v845, %v852
        %v854 = vrot.slane %v849, 4
        %vm860 = vcmask 60416
        %vm861 = vmand %vm860, %vm396
        %v862 = vld [vmem:[#allocation2] sm:$0xf]
        %v863 = vsel %vm861, %v826, %v862
        %864 = vst [vmem:[#allocation2] sm:$0xf] %v863
        %vm865 = vcmask 60416
        %866 = vst.msk [vmem:[#allocation2 + $0x4] sm:$0xf] %vm865, %v835
        %867 = vst.msk [vmem:[#allocation2 + $0x8] sm:$0xf] %vm865, %v844
        %868 = vst.msk [vmem:[#allocation2 + $0xc] sm:$0xf] %vm865, %v853
        %v869 = vld [vmem:[#allocation2 + $0x10] sm:$0x1]
        %v870 = vsel %vm335, %v854, %v869
        %871 = vst [vmem:[#allocation2 + $0x10] sm:$0x1] %v870
        %v872 = vld [vmem:[#allocation2 + $0x14] sm:$0xf]
        %v873 = vsel %vm861, %v826, %v872
        %874 = vst [vmem:[#allocation2 + $0x14] sm:$0xf] %v873
        %875 = vst.msk [vmem:[#allocation2 + $0x18] sm:$0xf] %vm865, %v835
        %876 = vst.msk [vmem:[#allocation2 + $0x1c] sm:$0xf] %vm865, %v844
        %877 = vst.msk [vmem:[#allocation2 + $0x20] sm:$0xf] %vm865, %v853
        %v878 = vld [vmem:[#allocation2 + $0x24] sm:$0x1]
        %v879 = vsel %vm335, %v854, %v878
        %880 = vst [vmem:[#allocation2 + $0x24] sm:$0x1] %v879
      $region63: #{tpu_custom_call.1} parent=51 // pred_fallthru
        _
      %p881 = scmp.eq.s32.totalorder %s24, 0
      // Predicated region
      $region64: #{tpu_custom_call.1} parent=51 // pred_check
        %p882 = pneg %p881
      $region65: #{tpu_custom_call.1} parent=51 // pred_check_branch
        %884 = sbr.rel (%p882) target = $region67
      $region66: #{tpu_custom_call.1} parent=51 // pred_region
        %vm885 = vcmask 60416
        %886 = vst.msk [vmem:[#allocation2] sm:$0xf] %vm885, 0
        %887 = vst.msk [vmem:[#allocation2 + $0x4] sm:$0xf] %vm885, 0
        %888 = vst.msk [vmem:[#allocation2 + $0x8] sm:$0xf] %vm885, 0
        %889 = vst.msk [vmem:[#allocation2 + $0xc] sm:$0xf] %vm885, 0
        %vm890 = vcmask 57344
        %891 = vst.msk [vmem:[#allocation2 + $0x10] sm:$0x1] %vm890, 0
        %892 = vst.msk [vmem:[#allocation2 + $0x14] sm:$0xf] %vm885, 0
        %893 = vst.msk [vmem:[#allocation2 + $0x18] sm:$0xf] %vm885, 0
        %894 = vst.msk [vmem:[#allocation2 + $0x1c] sm:$0xf] %vm885, 0
        %895 = vst.msk [vmem:[#allocation2 + $0x20] sm:$0xf] %vm885, 0
        %896 = vst.msk [vmem:[#allocation2 + $0x24] sm:$0x1] %vm890, 0
      $region67: #{tpu_custom_call.1} parent=51 // pred_fallthru
        _
      %p897 = scmp.lt.s32.totalorder %s24, 1
      // Predicated region
      $region68: #{tpu_custom_call.1} parent=51 // pred_check
        %p898 = pneg %p897
      $region69: #{tpu_custom_call.1} parent=51 // pred_check_branch
        %900 = sbr.rel (%p898) target = $region71
      $region70: #{tpu_custom_call.1} parent=51 // pred_region
        %s901 = sadd.s32 %s332, 8
        %s902 = smul.u32 %s901, 16
        %s903 = scalar_lea.vmem %s319, %s902
        %v904 = vld [vmem:[%s903] sm:$0xff]
        %v905 = vld [vmem:[%s903 + $0x8] sm:$0xff]
        %v907 = vperm.slane %v570, 0
        %v909 = vmul.f32 %v904, %v907
        %v910 = vmul.f32 %v905, %v907
        %v912 = vperm.slane %v571, 0
        %v914 = vadd.f32 %v909, %v912
        %v915 = vadd.f32 %v910, %v912
        %v916 = vmax.f32 %v914, 0.0
        %v917 = vmax.f32 %v915, 0.0
        %vm918 = vcmask 130048
        %v920 = vsel %vm918, %v566, 0
        %v923 = vsel %vm918, %v567, 0
        %v926 = vsel %vm918, %v568, 0
        %v929 = vsel %vm918, %v569, 0
        %931 = vmatpush.msra.mxu0 0.0
        %932 = vmatpush.msra.mxu0 0.0
        %933 = vmatpush.msra.mxu0 0.0
        %934 = vmatpush.msra.mxu0 0.0
        %935 = vmatpush.msra.mxu0 0.0
        %936 = vmatpush.msra.mxu0 0.0
        %937 = vmatpush.msra.mxu0 0.0
        %938 = vmatpush.msra.mxu0 0.0
        %939 = vmatpush.msra.mxu0 0.0
        %940 = vmatpush.msra.mxu0 0.0
        %941 = vmatpush.msra.mxu0 0.0
        %942 = vmatpush.msra.mxu0 0.0
        %943 = vmatpush.msra.mxu0 0.0
        %944 = vmatpush.msra.mxu0 0.0
        %945 = vmatpush.msra.mxu0 %v917
        %946 = vmatpush.msra.mxu0 %v916
        %947 = vmatmul.f32.gmra.mxu0 %v920
        %v948 = vpop.f32.mrf.mxu0
        %v949 = vadd.f32 0.0, %v948
        %950 = vmatmul.f32.gmra.mxu0 %v923
        %v951 = vpop.f32.mrf.mxu0
        %v952 = vadd.f32 0.0, %v951
        %953 = vmatmul.f32.gmra.mxu0 %v926
        %v954 = vpop.f32.mrf.mxu0
        %v955 = vadd.f32 0.0, %v954
        %956 = vmatmul.f32.gmra.mxu0 %v929
        %v957 = vpop.f32.mrf.mxu0
        %v958 = vadd.f32 0.0, %v957
        %959 = vdwg.mxu0
        %v960 = vpack.c.bf16 %v949, %v949
        %v961 = vpack.c.bf16 %v952, %v952
        %v962 = vpack.c.bf16 %v955, %v955
        %v963 = vpack.c.bf16 %v958, %v958
        %vm964 = vsmask.f32 4368
        %vm965 = vmor %vm334, %vm964
        %v967 = vshrl.u32 %v960, 16
        %v969 = vrot.slane %v967, 7
        %v970 = vshll.u32 %v960, 16
        %v972 = vor.u32 %v969, %v970
        %v973 = vrot.slane %v969, 4
        %v975 = vshrl.u32 %v961, 16
        %v977 = vrot.slane %v975, 7
        %v978 = vshll.u32 %v961, 16
        %v980 = vor.u32 %v977, %v978
        %v981 = vsel %vm965, %v973, %v980
        %v982 = vrot.slane %v977, 4
        %v984 = vshrl.u32 %v962, 16
        %v986 = vrot.slane %v984, 7
        %v987 = vshll.u32 %v962, 16
        %v989 = vor.u32 %v986, %v987
        %v990 = vsel %vm965, %v982, %v989
        %v991 = vrot.slane %v986, 4
        %v993 = vshrl.u32 %v963, 16
        %v995 = vrot.slane %v993, 7
        %v996 = vshll.u32 %v963, 16
        %v998 = vor.u32 %v995, %v996
        %v999 = vsel %vm965, %v991, %v998
        %v1000 = vrot.slane %v995, 4
        %s1006 = scalar_lea.vmem [#allocation2], 360
        %vm1007 = vcmask 60416
        %vm1008 = vmand %vm1007, %vm396
        %v1009 = vld [vmem:[%s1006] sm:$0xf]
        %v1010 = vsel %vm1008, %v972, %v1009
        %1011 = vst [vmem:[%s1006] sm:$0xf] %v1010
        %vm1012 = vcmask 60416
        %1013 = vst.msk [vmem:[%s1006 + $0x4] sm:$0xf] %vm1012, %v981
        %1014 = vst.msk [vmem:[%s1006 + $0x8] sm:$0xf] %vm1012, %v990
        %1015 = vst.msk [vmem:[%s1006 + $0xc] sm:$0xf] %vm1012, %v999
        %v1016 = vld [vmem:[%s1006 + $0x10] sm:$0x1]
        %v1017 = vsel %vm335, %v1000, %v1016
        %1018 = vst [vmem:[%s1006 + $0x10] sm:$0x1] %v1017
        %v1019 = vld [vmem:[%s1006 + $0x14] sm:$0xf]
        %v1020 = vsel %vm1008, %v972, %v1019
        %1021 = vst [vmem:[%s1006 + $0x14] sm:$0xf] %v1020
        %1022 = vst.msk [vmem:[%s1006 + $0x18] sm:$0xf] %vm1012, %v981
        %1023 = vst.msk [vmem:[%s1006 + $0x1c] sm:$0xf] %vm1012, %v990
        %1024 = vst.msk [vmem:[%s1006 + $0x20] sm:$0xf] %vm1012, %v999
        %v1025 = vld [vmem:[%s1006 + $0x24] sm:$0x1]
        %v1026 = vsel %vm335, %v1000, %v1025
        %1027 = vst [vmem:[%s1006 + $0x24] sm:$0x1] %v1026
      $region71: #{tpu_custom_call.1} parent=51 // pred_fallthru
        _
      %p1028 = scmp.eq.s32.totalorder %s24, 1
      // Predicated region
      $region72: #{tpu_custom_call.1} parent=51 // pred_check
        %p1029 = pneg %p1028
      $region73: #{tpu_custom_call.1} parent=51 // pred_check_branch
        %1031 = sbr.rel (%p1029) target = $region75
      $region74: #{tpu_custom_call.1} parent=51 // pred_region
        %s1032 = scalar_lea.vmem [#allocation2], 360
        %vm1033 = vcmask 60416
        %1034 = vst.msk [vmem:[%s1032] sm:$0xf] %vm1033, 0
        %1035 = vst.msk [vmem:[%s1032 + $0x4] sm:$0xf] %vm1033, 0
        %1036 = vst.msk [vmem:[%s1032 + $0x8] sm:$0xf] %vm1033, 0
        %1037 = vst.msk [vmem:[%s1032 + $0xc] sm:$0xf] %vm1033, 0
        %vm1038 = vcmask 57344
        %1039 = vst.msk [vmem:[%s1032 + $0x10] sm:$0x1] %vm1038, 0
        %1040 = vst.msk [vmem:[%s1032 + $0x14] sm:$0xf] %vm1033, 0
        %1041 = vst.msk [vmem:[%s1032 + $0x18] sm:$0xf] %vm1033, 0
        %1042 = vst.msk [vmem:[%s1032 + $0x1c] sm:$0xf] %vm1033, 0
        %1043 = vst.msk [vmem:[%s1032 + $0x20] sm:$0xf] %vm1033, 0
        %1044 = vst.msk [vmem:[%s1032 + $0x24] sm:$0x1] %vm1038, 0
      $region75: #{tpu_custom_call.1} parent=51 // pred_fallthru
        _
      %v1045 = vld [vmem:[%s5] sm:$0x1]
      %v1046 = vld [vmem:[%s7] sm:$0x1]
      loop: start=0, step=1, limit=2
      $region76: #{tpu_custom_call.1} parent=51 // loop_pre_header
        _
      $region77: #{tpu_custom_call.1} parent=51 // loop_header
        %s1048 = sphi 0, %s1052
        %p1049 = scmp.ge.s32.totalorder %s1048, 2
      $region78: #{tpu_custom_call.1} parent=51 // loop_header_branch
        %1051 = sbr.rel (%p1049) target = $region82
      $region79: #{tpu_custom_call.1} parent=51 // loop_body
        %s1053 = smul.u32 %s1048, 8
        %s1054 = sadd.s32 %s1053, 1
        %s1055 = smul.u32 %s1054, 5
        %s1056 = smul.addr %s1055, 4
        %s1057 = scalar_lea.vmem [#allocation2], %s1056
        %v1058 = vld [vmem:[%s1057] sm:$0xf]
        %v1059 = vld [vmem:[%s1057 + $0x4] sm:$0xf]
        %v1060 = vld [vmem:[%s1057 + $0x8] sm:$0xf]
        %v1061 = vld [vmem:[%s1057 + $0xc] sm:$0xf]
        %v1062 = vld [vmem:[%s1057 + $0x14] sm:$0xf]
        %v1063 = vld [vmem:[%s1057 + $0x18] sm:$0xf]
        %v1064 = vld [vmem:[%s1057 + $0x1c] sm:$0xf]
        %v1065 = vld [vmem:[%s1057 + $0x20] sm:$0xf]
        %v1066 = vld [vmem:[%s1057 + $0x28] sm:$0xf]
        %v1067 = vld [vmem:[%s1057 + $0x2c] sm:$0xf]
        %v1068 = vld [vmem:[%s1057 + $0x30] sm:$0xf]
        %v1069 = vld [vmem:[%s1057 + $0x34] sm:$0xf]
        %v1070 = vld [vmem:[%s1057 + $0x3c] sm:$0xf]
        %v1071 = vld [vmem:[%s1057 + $0x40] sm:$0xf]
        %v1072 = vld [vmem:[%s1057 + $0x44] sm:$0xf]
        %v1073 = vld [vmem:[%s1057 + $0x48] sm:$0xf]
        %v1074 = vld [vmem:[%s1057 + $0x50] sm:$0xf]
        %v1075 = vld [vmem:[%s1057 + $0x54] sm:$0xf]
        %v1076 = vld [vmem:[%s1057 + $0x58] sm:$0xf]
        %v1077 = vld [vmem:[%s1057 + $0x5c] sm:$0xf]
        %v1078 = vld [vmem:[%s1057 + $0x64] sm:$0xf]
        %v1079 = vld [vmem:[%s1057 + $0x68] sm:$0xf]
        %v1080 = vld [vmem:[%s1057 + $0x6c] sm:$0xf]
        %v1081 = vld [vmem:[%s1057 + $0x70] sm:$0xf]
        %v1082 = vld [vmem:[%s1057 + $0x78] sm:$0xf]
        %v1083 = vld [vmem:[%s1057 + $0x7c] sm:$0xf]
        %v1084 = vld [vmem:[%s1057 + $0x80] sm:$0xf]
        %v1085 = vld [vmem:[%s1057 + $0x84] sm:$0xf]
        %v1086 = vld [vmem:[%s1057 + $0x8c] sm:$0xf]
        %v1087 = vld [vmem:[%s1057 + $0x90] sm:$0xf]
        %v1088 = vld [vmem:[%s1057 + $0x94] sm:$0xf]
        %v1089 = vld [vmem:[%s1057 + $0x98] sm:$0xf]
        %v1090 = vld [vmem:[%s4] sm:$0xf]
        %v1091 = vld [vmem:[%s1057 + $0x10] sm:$0x1]
        %v1092 = vld [vmem:[%s1057 + $0x24] sm:$0x1]
        %v1093 = vld [vmem:[%s1057 + $0x38] sm:$0x1]
        %v1094 = vld [vmem:[%s1057 + $0x4c] sm:$0x1]
        %v1095 = vld [vmem:[%s1057 + $0x60] sm:$0x1]
        %v1096 = vld [vmem:[%s1057 + $0x74] sm:$0x1]
        %v1097 = vld [vmem:[%s1057 + $0x88] sm:$0x1]
        %v1098 = vld [vmem:[%s1057 + $0x9c] sm:$0x1]
        %vm1099 = vsmask.f32 3328
        %vm1100 = vsmask.f32 7440
        %vm1101 = vmor %vm1099, %vm1100
        %v1103 = vshrl.u32 %v1058, 16
        %v1105 = vrot.slane %v1103, 4
        %v1106 = vshll.u32 %v1058, 16
        %v1108 = vrot.slane %v1106, 5
        %v1109 = vor.u32 %v1105, %v1108
        %v1110 = vrot.slane %v1109, 4
        %v1112 = vshll.u32 %v1059, 16
        %v1114 = vrot.slane %v1112, 5
        %v1115 = vsel %vm1101, %v1110, %v1114
        %v1116 = vshrl.u32 %v1059, 16
        %v1118 = vrot.slane %v1116, 4
        %v1119 = vor.u32 %v1118, %v1114
        %v1120 = vrot.slane %v1119, 4
        %v1122 = vshll.u32 %v1060, 16
        %v1124 = vrot.slane %v1122, 5
        %v1125 = vsel %vm1101, %v1120, %v1124
        %v1126 = vshrl.u32 %v1060, 16
        %v1128 = vrot.slane %v1126, 4
        %v1129 = vor.u32 %v1128, %v1124
        %v1130 = vrot.slane %v1129, 4
        %v1132 = vshll.u32 %v1061, 16
        %v1134 = vrot.slane %v1132, 5
        %v1135 = vsel %vm1101, %v1130, %v1134
        %v1136 = vshrl.u32 %v1061, 16
        %v1138 = vrot.slane %v1136, 4
        %v1139 = vor.u32 %v1138, %v1134
        %v1140 = vrot.slane %v1139, 4
        %v1142 = vshll.u32 %v1091, 16
        %v1144 = vrot.slane %v1142, 5
        %v1145 = vsel %vm1101, %v1140, %v1144
        %v1147 = vshrl.u32 %v1062, 16
        %v1149 = vrot.slane %v1147, 4
        %v1150 = vshll.u32 %v1062, 16
        %v1152 = vrot.slane %v1150, 5
        %v1153 = vor.u32 %v1149, %v1152
        %v1154 = vrot.slane %v1153, 4
        %v1156 = vshll.u32 %v1063, 16
        %v1158 = vrot.slane %v1156, 5
        %v1159 = vsel %vm1101, %v1154, %v1158
        %v1160 = vshrl.u32 %v1063, 16
        %v1162 = vrot.slane %v1160, 4
        %v1163 = vor.u32 %v1162, %v1158
        %v1164 = vrot.slane %v1163, 4
        %v1166 = vshll.u32 %v1064, 16
        %v1168 = vrot.slane %v1166, 5
        %v1169 = vsel %vm1101, %v1164, %v1168
        %v1170 = vshrl.u32 %v1064, 16
        %v1172 = vrot.slane %v1170, 4
        %v1173 = vor.u32 %v1172, %v1168
        %v1174 = vrot.slane %v1173, 4
        %v1176 = vshll.u32 %v1065, 16
        %v1178 = vrot.slane %v1176, 5
        %v1179 = vsel %vm1101, %v1174, %v1178
        %v1180 = vshrl.u32 %v1065, 16
        %v1182 = vrot.slane %v1180, 4
        %v1183 = vor.u32 %v1182, %v1178
        %v1184 = vrot.slane %v1183, 4
        %v1186 = vshll.u32 %v1092, 16
        %v1188 = vrot.slane %v1186, 5
        %v1189 = vsel %vm1101, %v1184, %v1188
        %v1191 = vshrl.u32 %v1066, 16
        %v1193 = vrot.slane %v1191, 4
        %v1194 = vshll.u32 %v1066, 16
        %v1196 = vrot.slane %v1194, 5
        %v1197 = vor.u32 %v1193, %v1196
        %v1198 = vrot.slane %v1197, 4
        %v1200 = vshll.u32 %v1067, 16
        %v1202 = vrot.slane %v1200, 5
        %v1203 = vsel %vm1101, %v1198, %v1202
        %v1204 = vshrl.u32 %v1067, 16
        %v1206 = vrot.slane %v1204, 4
        %v1207 = vor.u32 %v1206, %v1202
        %v1208 = vrot.slane %v1207, 4
        %v1210 = vshll.u32 %v1068, 16
        %v1212 = vrot.slane %v1210, 5
        %v1213 = vsel %vm1101, %v1208, %v1212
        %v1214 = vshrl.u32 %v1068, 16
        %v1216 = vrot.slane %v1214, 4
        %v1217 = vor.u32 %v1216, %v1212
        %v1218 = vrot.slane %v1217, 4
        %v1220 = vshll.u32 %v1069, 16
        %v1222 = vrot.slane %v1220, 5
        %v1223 = vsel %vm1101, %v1218, %v1222
        %v1224 = vshrl.u32 %v1069, 16
        %v1226 = vrot.slane %v1224, 4
        %v1227 = vor.u32 %v1226, %v1222
        %v1228 = vrot.slane %v1227, 4
        %v1230 = vshll.u32 %v1093, 16
        %v1232 = vrot.slane %v1230, 5
        %v1233 = vsel %vm1101, %v1228, %v1232
        %v1235 = vshrl.u32 %v1070, 16
        %v1237 = vrot.slane %v1235, 4
        %v1238 = vshll.u32 %v1070, 16
        %v1240 = vrot.slane %v1238, 5
        %v1241 = vor.u32 %v1237, %v1240
        %v1242 = vrot.slane %v1241, 4
        %v1244 = vshll.u32 %v1071, 16
        %v1246 = vrot.slane %v1244, 5
        %v1247 = vsel %vm1101, %v1242, %v1246
        %v1248 = vshrl.u32 %v1071, 16
        %v1250 = vrot.slane %v1248, 4
        %v1251 = vor.u32 %v1250, %v1246
        %v1252 = vrot.slane %v1251, 4
        %v1254 = vshll.u32 %v1072, 16
        %v1256 = vrot.slane %v1254, 5
        %v1257 = vsel %vm1101, %v1252, %v1256
        %v1258 = vshrl.u32 %v1072, 16
        %v1260 = vrot.slane %v1258, 4
        %v1261 = vor.u32 %v1260, %v1256
        %v1262 = vrot.slane %v1261, 4
        %v1264 = vshll.u32 %v1073, 16
        %v1266 = vrot.slane %v1264, 5
        %v1267 = vsel %vm1101, %v1262, %v1266
        %v1268 = vshrl.u32 %v1073, 16
        %v1270 = vrot.slane %v1268, 4
        %v1271 = vor.u32 %v1270, %v1266
        %v1272 = vrot.slane %v1271, 4
        %v1274 = vshll.u32 %v1094, 16
        %v1276 = vrot.slane %v1274, 5
        %v1277 = vsel %vm1101, %v1272, %v1276
        %v1279 = vshrl.u32 %v1074, 16
        %v1281 = vrot.slane %v1279, 4
        %v1282 = vshll.u32 %v1074, 16
        %v1284 = vrot.slane %v1282, 5
        %v1285 = vor.u32 %v1281, %v1284
        %v1286 = vrot.slane %v1285, 4
        %v1288 = vshll.u32 %v1075, 16
        %v1290 = vrot.slane %v1288, 5
        %v1291 = vsel %vm1101, %v1286, %v1290
        %v1292 = vshrl.u32 %v1075, 16
        %v1294 = vrot.slane %v1292, 4
        %v1295 = vor.u32 %v1294, %v1290
        %v1296 = vrot.slane %v1295, 4
        %v1298 = vshll.u32 %v1076, 16
        %v1300 = vrot.slane %v1298, 5
        %v1301 = vsel %vm1101, %v1296, %v1300
        %v1302 = vshrl.u32 %v1076, 16
        %v1304 = vrot.slane %v1302, 4
        %v1305 = vor.u32 %v1304, %v1300
        %v1306 = vrot.slane %v1305, 4
        %v1308 = vshll.u32 %v1077, 16
        %v1310 = vrot.slane %v1308, 5
        %v1311 = vsel %vm1101, %v1306, %v1310
        %v1312 = vshrl.u32 %v1077, 16
        %v1314 = vrot.slane %v1312, 4
        %v1315 = vor.u32 %v1314, %v1310
        %v1316 = vrot.slane %v1315, 4
        %v1318 = vshll.u32 %v1095, 16
        %v1320 = vrot.slane %v1318, 5
        %v1321 = vsel %vm1101, %v1316, %v1320
        %v1323 = vshrl.u32 %v1078, 16
        %v1325 = vrot.slane %v1323, 4
        %v1326 = vshll.u32 %v1078, 16
        %v1328 = vrot.slane %v1326, 5
        %v1329 = vor.u32 %v1325, %v1328
        %v1330 = vrot.slane %v1329, 4
        %v1332 = vshll.u32 %v1079, 16
        %v1334 = vrot.slane %v1332, 5
        %v1335 = vsel %vm1101, %v1330, %v1334
        %v1336 = vshrl.u32 %v1079, 16
        %v1338 = vrot.slane %v1336, 4
        %v1339 = vor.u32 %v1338, %v1334
        %v1340 = vrot.slane %v1339, 4
        %v1342 = vshll.u32 %v1080, 16
        %v1344 = vrot.slane %v1342, 5
        %v1345 = vsel %vm1101, %v1340, %v1344
        %v1346 = vshrl.u32 %v1080, 16
        %v1348 = vrot.slane %v1346, 4
        %v1349 = vor.u32 %v1348, %v1344
        %v1350 = vrot.slane %v1349, 4
        %v1352 = vshll.u32 %v1081, 16
        %v1354 = vrot.slane %v1352, 5
        %v1355 = vsel %vm1101, %v1350, %v1354
        %v1356 = vshrl.u32 %v1081, 16
        %v1358 = vrot.slane %v1356, 4
        %v1359 = vor.u32 %v1358, %v1354
        %v1360 = vrot.slane %v1359, 4
        %v1362 = vshll.u32 %v1096, 16
        %v1364 = vrot.slane %v1362, 5
        %v1365 = vsel %vm1101, %v1360, %v1364
        %v1367 = vshrl.u32 %v1082, 16
        %v1369 = vrot.slane %v1367, 4
        %v1370 = vshll.u32 %v1082, 16
        %v1372 = vrot.slane %v1370, 5
        %v1373 = vor.u32 %v1369, %v1372
        %v1374 = vrot.slane %v1373, 4
        %v1376 = vshll.u32 %v1083, 16
        %v1378 = vrot.slane %v1376, 5
        %v1379 = vsel %vm1101, %v1374, %v1378
        %v1380 = vshrl.u32 %v1083, 16
        %v1382 = vrot.slane %v1380, 4
        %v1383 = vor.u32 %v1382, %v1378
        %v1384 = vrot.slane %v1383, 4
        %v1386 = vshll.u32 %v1084, 16
        %v1388 = vrot.slane %v1386, 5
        %v1389 = vsel %vm1101, %v1384, %v1388
        %v1390 = vshrl.u32 %v1084, 16
        %v1392 = vrot.slane %v1390, 4
        %v1393 = vor.u32 %v1392, %v1388
        %v1394 = vrot.slane %v1393, 4
        %v1396 = vshll.u32 %v1085, 16
        %v1398 = vrot.slane %v1396, 5
        %v1399 = vsel %vm1101, %v1394, %v1398
        %v1400 = vshrl.u32 %v1085, 16
        %v1402 = vrot.slane %v1400, 4
        %v1403 = vor.u32 %v1402, %v1398
        %v1404 = vrot.slane %v1403, 4
        %v1406 = vshll.u32 %v1097, 16
        %v1408 = vrot.slane %v1406, 5
        %v1409 = vsel %vm1101, %v1404, %v1408
        %v1411 = vshrl.u32 %v1086, 16
        %v1413 = vrot.slane %v1411, 4
        %v1414 = vshll.u32 %v1086, 16
        %v1416 = vrot.slane %v1414, 5
        %v1417 = vor.u32 %v1413, %v1416
        %v1418 = vrot.slane %v1417, 4
        %v1420 = vshll.u32 %v1087, 16
        %v1422 = vrot.slane %v1420, 5
        %v1423 = vsel %vm1101, %v1418, %v1422
        %v1424 = vshrl.u32 %v1087, 16
        %v1426 = vrot.slane %v1424, 4
        %v1427 = vor.u32 %v1426, %v1422
        %v1428 = vrot.slane %v1427, 4
        %v1430 = vshll.u32 %v1088, 16
        %v1432 = vrot.slane %v1430, 5
        %v1433 = vsel %vm1101, %v1428, %v1432
        %v1434 = vshrl.u32 %v1088, 16
        %v1436 = vrot.slane %v1434, 4
        %v1437 = vor.u32 %v1436, %v1432
        %v1438 = vrot.slane %v1437, 4
        %v1440 = vshll.u32 %v1089, 16
        %v1442 = vrot.slane %v1440, 5
        %v1443 = vsel %vm1101, %v1438, %v1442
        %v1444 = vshrl.u32 %v1089, 16
        %v1446 = vrot.slane %v1444, 4
        %v1447 = vor.u32 %v1446, %v1442
        %v1448 = vrot.slane %v1447, 4
        %v1450 = vshll.u32 %v1098, 16
        %v1452 = vrot.slane %v1450, 5
        %v1453 = vsel %vm1101, %v1448, %v1452
        %s1454 = scalar_lea.vmem %s4, 4
        %v1455 = vld [vmem:[%s1454] sm:$0xf]
        %v1456 = vunpack.c.l.b16 %v1115
        %v1457 = vunpack.c.l.b16 %v1125
        %v1458 = vunpack.c.l.b16 %v1135
        %v1459 = vunpack.c.l.b16 %v1145
        %v1460 = vunpack.c.l.b16 %v1159
        %v1461 = vunpack.c.l.b16 %v1169
        %v1462 = vunpack.c.l.b16 %v1179
        %v1463 = vunpack.c.l.b16 %v1189
        %v1464 = vunpack.c.l.b16 %v1203
        %v1465 = vunpack.c.l.b16 %v1213
        %v1466 = vunpack.c.l.b16 %v1223
        %v1467 = vunpack.c.l.b16 %v1233
        %v1468 = vunpack.c.l.b16 %v1247
        %v1469 = vunpack.c.l.b16 %v1257
        %v1470 = vunpack.c.l.b16 %v1267
        %v1471 = vunpack.c.l.b16 %v1277
        %v1472 = vunpack.c.l.b16 %v1291
        %v1473 = vunpack.c.l.b16 %v1301
        %v1474 = vunpack.c.l.b16 %v1311
        %v1475 = vunpack.c.l.b16 %v1321
        %v1476 = vunpack.c.l.b16 %v1335
        %v1477 = vunpack.c.l.b16 %v1345
        %v1478 = vunpack.c.l.b16 %v1355
        %v1479 = vunpack.c.l.b16 %v1365
        %v1480 = vunpack.c.l.b16 %v1379
        %v1481 = vunpack.c.l.b16 %v1389
        %v1482 = vunpack.c.l.b16 %v1399
        %v1483 = vunpack.c.l.b16 %v1409
        %v1484 = vunpack.c.l.b16 %v1423
        %v1485 = vunpack.c.l.b16 %v1433
        %v1486 = vunpack.c.l.b16 %v1443
        %v1487 = vunpack.c.l.b16 %v1453
        %v1488 = vpack.c.b16 %v1457, %v1456
        %v1489 = vpack.c.b16 %v1459, %v1458
        %v1490 = vpack.c.b16 %v1461, %v1460
        %v1491 = vpack.c.b16 %v1463, %v1462
        %v1492 = vpack.c.b16 %v1465, %v1464
        %v1493 = vpack.c.b16 %v1467, %v1466
        %v1494 = vpack.c.b16 %v1469, %v1468
        %v1495 = vpack.c.b16 %v1471, %v1470
        %v1496 = vpack.c.b16 %v1473, %v1472
        %v1497 = vpack.c.b16 %v1475, %v1474
        %v1498 = vpack.c.b16 %v1477, %v1476
        %v1499 = vpack.c.b16 %v1479, %v1478
        %v1500 = vpack.c.b16 %v1481, %v1480
        %v1501 = vpack.c.b16 %v1483, %v1482
        %v1502 = vpack.c.b16 %v1485, %v1484
        %v1503 = vpack.c.b16 %v1487, %v1486
        %vm1504 = vcmask 64512
        %v1506 = vsel %vm1504, %v1488, 0
        %v1509 = vsel %vm1504, %v1489, 0
        %v1512 = vsel %vm1504, %v1490, 0
        %v1515 = vsel %vm1504, %v1491, 0
        %v1518 = vsel %vm1504, %v1492, 0
        %v1521 = vsel %vm1504, %v1493, 0
        %v1524 = vsel %vm1504, %v1494, 0
        %v1527 = vsel %vm1504, %v1495, 0
        %v1530 = vsel %vm1504, %v1496, 0
        %v1533 = vsel %vm1504, %v1497, 0
        %v1536 = vsel %vm1504, %v1498, 0
        %v1539 = vsel %vm1504, %v1499, 0
        %v1542 = vsel %vm1504, %v1500, 0
        %v1545 = vsel %vm1504, %v1501, 0
        %v1548 = vsel %vm1504, %v1502, 0
        %v1551 = vsel %vm1504, %v1503, 0
        %vm1553 = vcmask 1043456
        %v1555 = vsel %vm1553, %v1455, 0
        %1557 = vmatpush.bf16.msra.mxu0 0
        %1558 = vmatpush.bf16.msra.mxu0 0
        %1559 = vmatpush.bf16.msra.mxu0 0
        %1560 = vmatpush.bf16.msra.mxu0 0
        %1561 = vmatpush.bf16.msra.mxu0 0
        %1562 = vmatpush.bf16.msra.mxu0 0
        %1563 = vmatpush.bf16.msra.mxu0 0
        %1564 = vmatpush.bf16.msra.mxu0 %v1555
        %1565 = vmatmul.bf16.gmra.mxu0 %v1506
        %v1566 = vpop.f32.mrf.mxu0
        %v1567 = vadd.f32 0.0, %v1566
        %v1568 = vpop.f32.mrf.mxu0
        %v1569 = vadd.f32 0.0, %v1568
        %1570 = vmatmul.bf16.gmra.mxu0 %v1509
        %v1571 = vpop.f32.mrf.mxu0
        %v1572 = vadd.f32 0.0, %v1571
        %v1573 = vpop.f32.mrf.mxu0
        %v1574 = vadd.f32 0.0, %v1573
        %1575 = vmatmul.bf16.gmra.mxu0 %v1512
        %v1576 = vpop.f32.mrf.mxu0
        %v1577 = vadd.f32 0.0, %v1576
        %v1578 = vpop.f32.mrf.mxu0
        %v1579 = vadd.f32 0.0, %v1578
        %1580 = vmatmul.bf16.gmra.mxu0 %v1515
        %v1581 = vpop.f32.mrf.mxu0
        %v1582 = vadd.f32 0.0, %v1581
        %v1583 = vpop.f32.mrf.mxu0
        %v1584 = vadd.f32 0.0, %v1583
        %1585 = vmatmul.bf16.gmra.mxu0 %v1518
        %v1586 = vpop.f32.mrf.mxu0
        %v1587 = vadd.f32 0.0, %v1586
        %v1588 = vpop.f32.mrf.mxu0
        %v1589 = vadd.f32 0.0, %v1588
        %1590 = vmatmul.bf16.gmra.mxu0 %v1521
        %v1591 = vpop.f32.mrf.mxu0
        %v1592 = vadd.f32 0.0, %v1591
        %v1593 = vpop.f32.mrf.mxu0
        %v1594 = vadd.f32 0.0, %v1593
        %1595 = vmatmul.bf16.gmra.mxu0 %v1524
        %v1596 = vpop.f32.mrf.mxu0
        %v1597 = vadd.f32 0.0, %v1596
        %v1598 = vpop.f32.mrf.mxu0
        %v1599 = vadd.f32 0.0, %v1598
        %1600 = vmatmul.bf16.gmra.mxu0 %v1527
        %v1601 = vpop.f32.mrf.mxu0
        %v1602 = vadd.f32 0.0, %v1601
        %v1603 = vpop.f32.mrf.mxu0
        %v1604 = vadd.f32 0.0, %v1603
        %1605 = vmatmul.bf16.gmra.mxu0 %v1530
        %v1606 = vpop.f32.mrf.mxu0
        %v1607 = vadd.f32 0.0, %v1606
        %v1608 = vpop.f32.mrf.mxu0
        %v1609 = vadd.f32 0.0, %v1608
        %1610 = vmatmul.bf16.gmra.mxu0 %v1533
        %v1611 = vpop.f32.mrf.mxu0
        %v1612 = vadd.f32 0.0, %v1611
        %v1613 = vpop.f32.mrf.mxu0
        %v1614 = vadd.f32 0.0, %v1613
        %1615 = vmatmul.bf16.gmra.mxu0 %v1536
        %v1616 = vpop.f32.mrf.mxu0
        %v1617 = vadd.f32 0.0, %v1616
        %v1618 = vpop.f32.mrf.mxu0
        %v1619 = vadd.f32 0.0, %v1618
        %1620 = vmatmul.bf16.gmra.mxu0 %v1539
        %v1621 = vpop.f32.mrf.mxu0
        %v1622 = vadd.f32 0.0, %v1621
        %v1623 = vpop.f32.mrf.mxu0
        %v1624 = vadd.f32 0.0, %v1623
        %1625 = vmatmul.bf16.gmra.mxu0 %v1542
        %v1626 = vpop.f32.mrf.mxu0
        %v1627 = vadd.f32 0.0, %v1626
        %v1628 = vpop.f32.mrf.mxu0
        %v1629 = vadd.f32 0.0, %v1628
        %1630 = vmatmul.bf16.gmra.mxu0 %v1545
        %v1631 = vpop.f32.mrf.mxu0
        %v1632 = vadd.f32 0.0, %v1631
        %v1633 = vpop.f32.mrf.mxu0
        %v1634 = vadd.f32 0.0, %v1633
        %1635 = vmatmul.bf16.gmra.mxu0 %v1548
        %v1636 = vpop.f32.mrf.mxu0
        %v1637 = vadd.f32 0.0, %v1636
        %v1638 = vpop.f32.mrf.mxu0
        %v1639 = vadd.f32 0.0, %v1638
        %1640 = vmatmul.bf16.gmra.mxu0 %v1551
        %v1641 = vpop.f32.mrf.mxu0
        %v1642 = vadd.f32 0.0, %v1641
        %v1643 = vpop.f32.mrf.mxu0
        %v1644 = vadd.f32 0.0, %v1643
        %1645 = vdwg.mxu0
        %v1678 = vunpack.c.l.b16 %v1058
        %v1679 = vunpack.c.l.b16 %v1059
        %v1680 = vunpack.c.l.b16 %v1060
        %v1681 = vunpack.c.l.b16 %v1061
        %v1682 = vunpack.c.l.b16 %v1062
        %v1683 = vunpack.c.l.b16 %v1063
        %v1684 = vunpack.c.l.b16 %v1064
        %v1685 = vunpack.c.l.b16 %v1065
        %v1686 = vunpack.c.l.b16 %v1066
        %v1687 = vunpack.c.l.b16 %v1067
        %v1688 = vunpack.c.l.b16 %v1068
        %v1689 = vunpack.c.l.b16 %v1069
        %v1690 = vunpack.c.l.b16 %v1070
        %v1691 = vunpack.c.l.b16 %v1071
        %v1692 = vunpack.c.l.b16 %v1072
        %v1693 = vunpack.c.l.b16 %v1073
        %v1694 = vunpack.c.l.b16 %v1074
        %v1695 = vunpack.c.l.b16 %v1075
        %v1696 = vunpack.c.l.b16 %v1076
        %v1697 = vunpack.c.l.b16 %v1077
        %v1698 = vunpack.c.l.b16 %v1078
        %v1699 = vunpack.c.l.b16 %v1079
        %v1700 = vunpack.c.l.b16 %v1080
        %v1701 = vunpack.c.l.b16 %v1081
        %v1702 = vunpack.c.l.b16 %v1082
        %v1703 = vunpack.c.l.b16 %v1083
        %v1704 = vunpack.c.l.b16 %v1084
        %v1705 = vunpack.c.l.b16 %v1085
        %v1706 = vunpack.c.l.b16 %v1086
        %v1707 = vunpack.c.l.b16 %v1087
        %v1708 = vunpack.c.l.b16 %v1088
        %v1709 = vunpack.c.l.b16 %v1089
        %v1710 = vpack.c.b16 %v1679, %v1678
        %v1711 = vpack.c.b16 %v1681, %v1680
        %v1712 = vpack.c.b16 %v1683, %v1682
        %v1713 = vpack.c.b16 %v1685, %v1684
        %v1714 = vpack.c.b16 %v1687, %v1686
        %v1715 = vpack.c.b16 %v1689, %v1688
        %v1716 = vpack.c.b16 %v1691, %v1690
        %v1717 = vpack.c.b16 %v1693, %v1692
        %v1718 = vpack.c.b16 %v1695, %v1694
        %v1719 = vpack.c.b16 %v1697, %v1696
        %v1720 = vpack.c.b16 %v1699, %v1698
        %v1721 = vpack.c.b16 %v1701, %v1700
        %v1722 = vpack.c.b16 %v1703, %v1702
        %v1723 = vpack.c.b16 %v1705, %v1704
        %v1724 = vpack.c.b16 %v1707, %v1706
        %v1725 = vpack.c.b16 %v1709, %v1708
        %v1727 = vsel %vm1504, %v1710, 0
        %v1730 = vsel %vm1504, %v1711, 0
        %v1733 = vsel %vm1504, %v1712, 0
        %v1736 = vsel %vm1504, %v1713, 0
        %v1739 = vsel %vm1504, %v1714, 0
        %v1742 = vsel %vm1504, %v1715, 0
        %v1745 = vsel %vm1504, %v1716, 0
        %v1748 = vsel %vm1504, %v1717, 0
        %v1751 = vsel %vm1504, %v1718, 0
        %v1754 = vsel %vm1504, %v1719, 0
        %v1757 = vsel %vm1504, %v1720, 0
        %v1760 = vsel %vm1504, %v1721, 0
        %v1763 = vsel %vm1504, %v1722, 0
        %v1766 = vsel %vm1504, %v1723, 0
        %v1769 = vsel %vm1504, %v1724, 0
        %v1772 = vsel %vm1504, %v1725, 0
        %v1775 = vsel %vm1553, %v1090, 0
        %1777 = vmatpush.bf16.msra.mxu0 0
        %1778 = vmatpush.bf16.msra.mxu0 0
        %1779 = vmatpush.bf16.msra.mxu0 0
        %1780 = vmatpush.bf16.msra.mxu0 0
        %1781 = vmatpush.bf16.msra.mxu0 0
        %1782 = vmatpush.bf16.msra.mxu0 0
        %1783 = vmatpush.bf16.msra.mxu0 0
        %1784 = vmatpush.bf16.msra.mxu0 %v1775
        %1785 = vmatmul.bf16.gmra.mxu0 %v1727
        %v1786 = vpop.f32.mrf.mxu0
        %v1787 = vadd.f32 %v1567, %v1786
        %v1788 = vpop.f32.mrf.mxu0
        %v1789 = vadd.f32 %v1569, %v1788
        %1790 = vmatmul.bf16.gmra.mxu0 %v1730
        %v1791 = vpop.f32.mrf.mxu0
        %v1792 = vadd.f32 %v1572, %v1791
        %v1793 = vpop.f32.mrf.mxu0
        %v1794 = vadd.f32 %v1574, %v1793
        %1795 = vmatmul.bf16.gmra.mxu0 %v1733
        %v1796 = vpop.f32.mrf.mxu0
        %v1797 = vadd.f32 %v1577, %v1796
        %v1798 = vpop.f32.mrf.mxu0
        %v1799 = vadd.f32 %v1579, %v1798
        %1800 = vmatmul.bf16.gmra.mxu0 %v1736
        %v1801 = vpop.f32.mrf.mxu0
        %v1802 = vadd.f32 %v1582, %v1801
        %v1803 = vpop.f32.mrf.mxu0
        %v1804 = vadd.f32 %v1584, %v1803
        %1805 = vmatmul.bf16.gmra.mxu0 %v1739
        %v1806 = vpop.f32.mrf.mxu0
        %v1807 = vadd.f32 %v1587, %v1806
        %v1808 = vpop.f32.mrf.mxu0
        %v1809 = vadd.f32 %v1589, %v1808
        %1810 = vmatmul.bf16.gmra.mxu0 %v1742
        %v1811 = vpop.f32.mrf.mxu0
        %v1812 = vadd.f32 %v1592, %v1811
        %v1813 = vpop.f32.mrf.mxu0
        %v1814 = vadd.f32 %v1594, %v1813
        %1815 = vmatmul.bf16.gmra.mxu0 %v1745
        %v1816 = vpop.f32.mrf.mxu0
        %v1817 = vadd.f32 %v1597, %v1816
        %v1818 = vpop.f32.mrf.mxu0
        %v1819 = vadd.f32 %v1599, %v1818
        %1820 = vmatmul.bf16.gmra.mxu0 %v1748
        %v1821 = vpop.f32.mrf.mxu0
        %v1822 = vadd.f32 %v1602, %v1821
        %v1823 = vpop.f32.mrf.mxu0
        %v1824 = vadd.f32 %v1604, %v1823
        %1825 = vmatmul.bf16.gmra.mxu0 %v1751
        %v1826 = vpop.f32.mrf.mxu0
        %v1827 = vadd.f32 %v1607, %v1826
        %v1828 = vpop.f32.mrf.mxu0
        %v1829 = vadd.f32 %v1609, %v1828
        %1830 = vmatmul.bf16.gmra.mxu0 %v1754
        %v1831 = vpop.f32.mrf.mxu0
        %v1832 = vadd.f32 %v1612, %v1831
        %v1833 = vpop.f32.mrf.mxu0
        %v1834 = vadd.f32 %v1614, %v1833
        %1835 = vmatmul.bf16.gmra.mxu0 %v1757
        %v1836 = vpop.f32.mrf.mxu0
        %v1837 = vadd.f32 %v1617, %v1836
        %v1838 = vpop.f32.mrf.mxu0
        %v1839 = vadd.f32 %v1619, %v1838
        %1840 = vmatmul.bf16.gmra.mxu0 %v1760
        %v1841 = vpop.f32.mrf.mxu0
        %v1842 = vadd.f32 %v1622, %v1841
        %v1843 = vpop.f32.mrf.mxu0
        %v1844 = vadd.f32 %v1624, %v1843
        %1845 = vmatmul.bf16.gmra.mxu0 %v1763
        %v1846 = vpop.f32.mrf.mxu0
        %v1847 = vadd.f32 %v1627, %v1846
        %v1848 = vpop.f32.mrf.mxu0
        %v1849 = vadd.f32 %v1629, %v1848
        %1850 = vmatmul.bf16.gmra.mxu0 %v1766
        %v1851 = vpop.f32.mrf.mxu0
        %v1852 = vadd.f32 %v1632, %v1851
        %v1853 = vpop.f32.mrf.mxu0
        %v1854 = vadd.f32 %v1634, %v1853
        %1855 = vmatmul.bf16.gmra.mxu0 %v1769
        %v1856 = vpop.f32.mrf.mxu0
        %v1857 = vadd.f32 %v1637, %v1856
        %v1858 = vpop.f32.mrf.mxu0
        %v1859 = vadd.f32 %v1639, %v1858
        %1860 = vmatmul.bf16.gmra.mxu0 %v1772
        %v1861 = vpop.f32.mrf.mxu0
        %v1862 = vadd.f32 %v1642, %v1861
        %v1863 = vpop.f32.mrf.mxu0
        %v1864 = vadd.f32 %v1644, %v1863
        %1865 = vdwg.mxu0
        %v1866 = vld [vmem:[%s1057] sm:$0xe]
        %v1867 = vld [vmem:[%s1057 + $0x14] sm:$0xe]
        %v1868 = vld [vmem:[%s1057 + $0x28] sm:$0xe]
        %v1869 = vld [vmem:[%s1057 + $0x3c] sm:$0xe]
        %v1870 = vld [vmem:[%s1057 + $0x50] sm:$0xe]
        %v1871 = vld [vmem:[%s1057 + $0x64] sm:$0xe]
        %v1872 = vld [vmem:[%s1057 + $0x78] sm:$0xe]
        %v1873 = vld [vmem:[%s1057 + $0x8c] sm:$0xe]
        %vm1890 = vcmask 1042432
        %vm1891 = vcmask 1046532
        %vm1892 = vmor %vm1890, %vm1891
        %v1893 = vrot.slane %v1866, 5
        %v1894 = vrot.slane %v1893, 4
        %v1895 = vrot.slane %v1059, 5
        %v1896 = vsel %vm1892, %v1894, %v1895
        %v1897 = vrot.slane %v1895, 4
        %v1898 = vrot.slane %v1060, 5
        %v1899 = vsel %vm1892, %v1897, %v1898
        %v1900 = vrot.slane %v1898, 4
        %v1901 = vrot.slane %v1061, 5
        %v1902 = vsel %vm1892, %v1900, %v1901
        %v1903 = vrot.slane %v1901, 4
        %v1904 = vrot.slane %v1091, 5
        %v1905 = vsel %vm1892, %v1903, %v1904
        %v1906 = vrot.slane %v1867, 5
        %v1907 = vrot.slane %v1906, 4
        %v1908 = vrot.slane %v1063, 5
        %v1909 = vsel %vm1892, %v1907, %v1908
        %v1910 = vrot.slane %v1908, 4
        %v1911 = vrot.slane %v1064, 5
        %v1912 = vsel %vm1892, %v1910, %v1911
        %v1913 = vrot.slane %v1911, 4
        %v1914 = vrot.slane %v1065, 5
        %v1915 = vsel %vm1892, %v1913, %v1914
        %v1916 = vrot.slane %v1914, 4
        %v1917 = vrot.slane %v1092, 5
        %v1918 = vsel %vm1892, %v1916, %v1917
        %v1919 = vrot.slane %v1868, 5
        %v1920 = vrot.slane %v1919, 4
        %v1921 = vrot.slane %v1067, 5
        %v1922 = vsel %vm1892, %v1920, %v1921
        %v1923 = vrot.slane %v1921, 4
        %v1924 = vrot.slane %v1068, 5
        %v1925 = vsel %vm1892, %v1923, %v1924
        %v1926 = vrot.slane %v1924, 4
        %v1927 = vrot.slane %v1069, 5
        %v1928 = vsel %vm1892, %v1926, %v1927
        %v1929 = vrot.slane %v1927, 4
        %v1930 = vrot.slane %v1093, 5
        %v1931 = vsel %vm1892, %v1929, %v1930
        %v1932 = vrot.slane %v1869, 5
        %v1933 = vrot.slane %v1932, 4
        %v1934 = vrot.slane %v1071, 5
        %v1935 = vsel %vm1892, %v1933, %v1934
        %v1936 = vrot.slane %v1934, 4
        %v1937 = vrot.slane %v1072, 5
        %v1938 = vsel %vm1892, %v1936, %v1937
        %v1939 = vrot.slane %v1937, 4
        %v1940 = vrot.slane %v1073, 5
        %v1941 = vsel %vm1892, %v1939, %v1940
        %v1942 = vrot.slane %v1940, 4
        %v1943 = vrot.slane %v1094, 5
        %v1944 = vsel %vm1892, %v1942, %v1943
        %v1945 = vrot.slane %v1870, 5
        %v1946 = vrot.slane %v1945, 4
        %v1947 = vrot.slane %v1075, 5
        %v1948 = vsel %vm1892, %v1946, %v1947
        %v1949 = vrot.slane %v1947, 4
        %v1950 = vrot.slane %v1076, 5
        %v1951 = vsel %vm1892, %v1949, %v1950
        %v1952 = vrot.slane %v1950, 4
        %v1953 = vrot.slane %v1077, 5
        %v1954 = vsel %vm1892, %v1952, %v1953
        %v1955 = vrot.slane %v1953, 4
        %v1956 = vrot.slane %v1095, 5
        %v1957 = vsel %vm1892, %v1955, %v1956
        %v1958 = vrot.slane %v1871, 5
        %v1959 = vrot.slane %v1958, 4
        %v1960 = vrot.slane %v1079, 5
        %v1961 = vsel %vm1892, %v1959, %v1960
        %v1962 = vrot.slane %v1960, 4
        %v1963 = vrot.slane %v1080, 5
        %v1964 = vsel %vm1892, %v1962, %v1963
        %v1965 = vrot.slane %v1963, 4
        %v1966 = vrot.slane %v1081, 5
        %v1967 = vsel %vm1892, %v1965, %v1966
        %v1968 = vrot.slane %v1966, 4
        %v1969 = vrot.slane %v1096, 5
        %v1970 = vsel %vm1892, %v1968, %v1969
        %v1971 = vrot.slane %v1872, 5
        %v1972 = vrot.slane %v1971, 4
        %v1973 = vrot.slane %v1083, 5
        %v1974 = vsel %vm1892, %v1972, %v1973
        %v1975 = vrot.slane %v1973, 4
        %v1976 = vrot.slane %v1084, 5
        %v1977 = vsel %vm1892, %v1975, %v1976
        %v1978 = vrot.slane %v1976, 4
        %v1979 = vrot.slane %v1085, 5
        %v1980 = vsel %vm1892, %v1978, %v1979
        %v1981 = vrot.slane %v1979, 4
        %v1982 = vrot.slane %v1097, 5
        %v1983 = vsel %vm1892, %v1981, %v1982
        %v1984 = vrot.slane %v1873, 5
        %v1985 = vrot.slane %v1984, 4
        %v1986 = vrot.slane %v1087, 5
        %v1987 = vsel %vm1892, %v1985, %v1986
        %v1988 = vrot.slane %v1986, 4
        %v1989 = vrot.slane %v1088, 5
        %v1990 = vsel %vm1892, %v1988, %v1989
        %v1991 = vrot.slane %v1989, 4
        %v1992 = vrot.slane %v1089, 5
        %v1993 = vsel %vm1892, %v1991, %v1992
        %v1994 = vrot.slane %v1992, 4
        %v1995 = vrot.slane %v1098, 5
        %v1996 = vsel %vm1892, %v1994, %v1995
        %s1997 = scalar_lea.vmem %s4, 8
        %v1998 = vld [vmem:[%s1997] sm:$0xf]
        %v1999 = vunpack.c.l.b16 %v1896
        %v2000 = vunpack.c.l.b16 %v1899
        %v2001 = vunpack.c.l.b16 %v1902
        %v2002 = vunpack.c.l.b16 %v1905
        %v2003 = vunpack.c.l.b16 %v1909
        %v2004 = vunpack.c.l.b16 %v1912
        %v2005 = vunpack.c.l.b16 %v1915
        %v2006 = vunpack.c.l.b16 %v1918
        %v2007 = vunpack.c.l.b16 %v1922
        %v2008 = vunpack.c.l.b16 %v1925
        %v2009 = vunpack.c.l.b16 %v1928
        %v2010 = vunpack.c.l.b16 %v1931
        %v2011 = vunpack.c.l.b16 %v1935
        %v2012 = vunpack.c.l.b16 %v1938
        %v2013 = vunpack.c.l.b16 %v1941
        %v2014 = vunpack.c.l.b16 %v1944
        %v2015 = vunpack.c.l.b16 %v1948
        %v2016 = vunpack.c.l.b16 %v1951
        %v2017 = vunpack.c.l.b16 %v1954
        %v2018 = vunpack.c.l.b16 %v1957
        %v2019 = vunpack.c.l.b16 %v1961
        %v2020 = vunpack.c.l.b16 %v1964
        %v2021 = vunpack.c.l.b16 %v1967
        %v2022 = vunpack.c.l.b16 %v1970
        %v2023 = vunpack.c.l.b16 %v1974
        %v2024 = vunpack.c.l.b16 %v1977
        %v2025 = vunpack.c.l.b16 %v1980
        %v2026 = vunpack.c.l.b16 %v1983
        %v2027 = vunpack.c.l.b16 %v1987
        %v2028 = vunpack.c.l.b16 %v1990
        %v2029 = vunpack.c.l.b16 %v1993
        %v2030 = vunpack.c.l.b16 %v1996
        %v2031 = vpack.c.b16 %v2000, %v1999
        %v2032 = vpack.c.b16 %v2002, %v2001
        %v2033 = vpack.c.b16 %v2004, %v2003
        %v2034 = vpack.c.b16 %v2006, %v2005
        %v2035 = vpack.c.b16 %v2008, %v2007
        %v2036 = vpack.c.b16 %v2010, %v2009
        %v2037 = vpack.c.b16 %v2012, %v2011
        %v2038 = vpack.c.b16 %v2014, %v2013
        %v2039 = vpack.c.b16 %v2016, %v2015
        %v2040 = vpack.c.b16 %v2018, %v2017
        %v2041 = vpack.c.b16 %v2020, %v2019
        %v2042 = vpack.c.b16 %v2022, %v2021
        %v2043 = vpack.c.b16 %v2024, %v2023
        %v2044 = vpack.c.b16 %v2026, %v2025
        %v2045 = vpack.c.b16 %v2028, %v2027
        %v2046 = vpack.c.b16 %v2030, %v2029
        %v2048 = vsel %vm1504, %v2031, 0
        %v2051 = vsel %vm1504, %v2032, 0
        %v2054 = vsel %vm1504, %v2033, 0
        %v2057 = vsel %vm1504, %v2034, 0
        %v2060 = vsel %vm1504, %v2035, 0
        %v2063 = vsel %vm1504, %v2036, 0
        %v2066 = vsel %vm1504, %v2037, 0
        %v2069 = vsel %vm1504, %v2038, 0
        %v2072 = vsel %vm1504, %v2039, 0
        %v2075 = vsel %vm1504, %v2040, 0
        %v2078 = vsel %vm1504, %v2041, 0
        %v2081 = vsel %vm1504, %v2042, 0
        %v2084 = vsel %vm1504, %v2043, 0
        %v2087 = vsel %vm1504, %v2044, 0
        %v2090 = vsel %vm1504, %v2045, 0
        %v2093 = vsel %vm1504, %v2046, 0
        %v2096 = vsel %vm1553, %v1998, 0
        %2098 = vmatpush.bf16.msra.mxu0 0
        %2099 = vmatpush.bf16.msra.mxu0 0
        %2100 = vmatpush.bf16.msra.mxu0 0
        %2101 = vmatpush.bf16.msra.mxu0 0
        %2102 = vmatpush.bf16.msra.mxu0 0
        %2103 = vmatpush.bf16.msra.mxu0 0
        %2104 = vmatpush.bf16.msra.mxu0 0
        %2105 = vmatpush.bf16.msra.mxu0 %v2096
        %2106 = vmatmul.bf16.gmra.mxu0 %v2048
        %v2107 = vpop.f32.mrf.mxu0
        %v2108 = vadd.f32 0.0, %v2107
        %v2109 = vpop.f32.mrf.mxu0
        %v2110 = vadd.f32 0.0, %v2109
        %2111 = vmatmul.bf16.gmra.mxu0 %v2051
        %v2112 = vpop.f32.mrf.mxu0
        %v2113 = vadd.f32 0.0, %v2112
        %v2114 = vpop.f32.mrf.mxu0
        %v2115 = vadd.f32 0.0, %v2114
        %2116 = vmatmul.bf16.gmra.mxu0 %v2054
        %v2117 = vpop.f32.mrf.mxu0
        %v2118 = vadd.f32 0.0, %v2117
        %v2119 = vpop.f32.mrf.mxu0
        %v2120 = vadd.f32 0.0, %v2119
        %2121 = vmatmul.bf16.gmra.mxu0 %v2057
        %v2122 = vpop.f32.mrf.mxu0
        %v2123 = vadd.f32 0.0, %v2122
        %v2124 = vpop.f32.mrf.mxu0
        %v2125 = vadd.f32 0.0, %v2124
        %2126 = vmatmul.bf16.gmra.mxu0 %v2060
        %v2127 = vpop.f32.mrf.mxu0
        %v2128 = vadd.f32 0.0, %v2127
        %v2129 = vpop.f32.mrf.mxu0
        %v2130 = vadd.f32 0.0, %v2129
        %2131 = vmatmul.bf16.gmra.mxu0 %v2063
        %v2132 = vpop.f32.mrf.mxu0
        %v2133 = vadd.f32 0.0, %v2132
        %v2134 = vpop.f32.mrf.mxu0
        %v2135 = vadd.f32 0.0, %v2134
        %2136 = vmatmul.bf16.gmra.mxu0 %v2066
        %v2137 = vpop.f32.mrf.mxu0
        %v2138 = vadd.f32 0.0, %v2137
        %v2139 = vpop.f32.mrf.mxu0
        %v2140 = vadd.f32 0.0, %v2139
        %2141 = vmatmul.bf16.gmra.mxu0 %v2069
        %v2142 = vpop.f32.mrf.mxu0
        %v2143 = vadd.f32 0.0, %v2142
        %v2144 = vpop.f32.mrf.mxu0
        %v2145 = vadd.f32 0.0, %v2144
        %2146 = vmatmul.bf16.gmra.mxu0 %v2072
        %v2147 = vpop.f32.mrf.mxu0
        %v2148 = vadd.f32 0.0, %v2147
        %v2149 = vpop.f32.mrf.mxu0
        %v2150 = vadd.f32 0.0, %v2149
        %2151 = vmatmul.bf16.gmra.mxu0 %v2075
        %v2152 = vpop.f32.mrf.mxu0
        %v2153 = vadd.f32 0.0, %v2152
        %v2154 = vpop.f32.mrf.mxu0
        %v2155 = vadd.f32 0.0, %v2154
        %2156 = vmatmul.bf16.gmra.mxu0 %v2078
        %v2157 = vpop.f32.mrf.mxu0
        %v2158 = vadd.f32 0.0, %v2157
        %v2159 = vpop.f32.mrf.mxu0
        %v2160 = vadd.f32 0.0, %v2159
        %2161 = vmatmul.bf16.gmra.mxu0 %v2081
        %v2162 = vpop.f32.mrf.mxu0
        %v2163 = vadd.f32 0.0, %v2162
        %v2164 = vpop.f32.mrf.mxu0
        %v2165 = vadd.f32 0.0, %v2164
        %2166 = vmatmul.bf16.gmra.mxu0 %v2084
        %v2167 = vpop.f32.mrf.mxu0
        %v2168 = vadd.f32 0.0, %v2167
        %v2169 = vpop.f32.mrf.mxu0
        %v2170 = vadd.f32 0.0, %v2169
        %2171 = vmatmul.bf16.gmra.mxu0 %v2087
        %v2172 = vpop.f32.mrf.mxu0
        %v2173 = vadd.f32 0.0, %v2172
        %v2174 = vpop.f32.mrf.mxu0
        %v2175 = vadd.f32 0.0, %v2174
        %2176 = vmatmul.bf16.gmra.mxu0 %v2090
        %v2177 = vpop.f32.mrf.mxu0
        %v2178 = vadd.f32 0.0, %v2177
        %v2179 = vpop.f32.mrf.mxu0
        %v2180 = vadd.f32 0.0, %v2179
        %2181 = vmatmul.bf16.gmra.mxu0 %v2093
        %v2182 = vpop.f32.mrf.mxu0
        %v2183 = vadd.f32 0.0, %v2182
        %v2184 = vpop.f32.mrf.mxu0
        %v2185 = vadd.f32 0.0, %v2184
        %2186 = vdwg.mxu0
        %v2187 = vadd.f32 %v1787, %v2108
        %v2188 = vadd.f32 %v1789, %v2110
        %v2189 = vadd.f32 %v1792, %v2113
        %v2190 = vadd.f32 %v1794, %v2115
        %v2191 = vadd.f32 %v1797, %v2118
        %v2192 = vadd.f32 %v1799, %v2120
        %v2193 = vadd.f32 %v1802, %v2123
        %v2194 = vadd.f32 %v1804, %v2125
        %v2195 = vadd.f32 %v1807, %v2128
        %v2196 = vadd.f32 %v1809, %v2130
        %v2197 = vadd.f32 %v1812, %v2133
        %v2198 = vadd.f32 %v1814, %v2135
        %v2199 = vadd.f32 %v1817, %v2138
        %v2200 = vadd.f32 %v1819, %v2140
        %v2201 = vadd.f32 %v1822, %v2143
        %v2202 = vadd.f32 %v1824, %v2145
        %v2203 = vadd.f32 %v1827, %v2148
        %v2204 = vadd.f32 %v1829, %v2150
        %v2205 = vadd.f32 %v1832, %v2153
        %v2206 = vadd.f32 %v1834, %v2155
        %v2207 = vadd.f32 %v1837, %v2158
        %v2208 = vadd.f32 %v1839, %v2160
        %v2209 = vadd.f32 %v1842, %v2163
        %v2210 = vadd.f32 %v1844, %v2165
        %v2211 = vadd.f32 %v1847, %v2168
        %v2212 = vadd.f32 %v1849, %v2170
        %v2213 = vadd.f32 %v1852, %v2173
        %v2214 = vadd.f32 %v1854, %v2175
        %v2215 = vadd.f32 %v1857, %v2178
        %v2216 = vadd.f32 %v1859, %v2180
        %v2217 = vadd.f32 %v1862, %v2183
        %v2218 = vadd.f32 %v1864, %v2185
        %s2219 = sadd.s32 %s1053, 2
        %s2220 = smul.u32 %s2219, 5
        %s2221 = smul.addr %s2220, 4
        %s2222 = scalar_lea.vmem [#allocation2], %s2221
        %v2223 = vld [vmem:[%s2222] sm:$0xf]
        %v2224 = vld [vmem:[%s2222 + $0x4] sm:$0xf]
        %v2225 = vld [vmem:[%s2222 + $0x8] sm:$0xf]
        %v2226 = vld [vmem:[%s2222 + $0xc] sm:$0xf]
        %v2227 = vld [vmem:[%s2222 + $0x14] sm:$0xf]
        %v2228 = vld [vmem:[%s2222 + $0x18] sm:$0xf]
        %v2229 = vld [vmem:[%s2222 + $0x1c] sm:$0xf]
        %v2230 = vld [vmem:[%s2222 + $0x20] sm:$0xf]
        %v2231 = vld [vmem:[%s2222 + $0x28] sm:$0xf]
        %v2232 = vld [vmem:[%s2222 + $0x2c] sm:$0xf]
        %v2233 = vld [vmem:[%s2222 + $0x30] sm:$0xf]
        %v2234 = vld [vmem:[%s2222 + $0x34] sm:$0xf]
        %v2235 = vld [vmem:[%s2222 + $0x3c] sm:$0xf]
        %v2236 = vld [vmem:[%s2222 + $0x40] sm:$0xf]
        %v2237 = vld [vmem:[%s2222 + $0x44] sm:$0xf]
        %v2238 = vld [vmem:[%s2222 + $0x48] sm:$0xf]
        %v2239 = vld [vmem:[%s2222 + $0x50] sm:$0xf]
        %v2240 = vld [vmem:[%s2222 + $0x54] sm:$0xf]
        %v2241 = vld [vmem:[%s2222 + $0x58] sm:$0xf]
        %v2242 = vld [vmem:[%s2222 + $0x5c] sm:$0xf]
        %v2243 = vld [vmem:[%s2222 + $0x64] sm:$0xf]
        %v2244 = vld [vmem:[%s2222 + $0x68] sm:$0xf]
        %v2245 = vld [vmem:[%s2222 + $0x6c] sm:$0xf]
        %v2246 = vld [vmem:[%s2222 + $0x70] sm:$0xf]
        %v2247 = vld [vmem:[%s2222 + $0x78] sm:$0xf]
        %v2248 = vld [vmem:[%s2222 + $0x7c] sm:$0xf]
        %v2249 = vld [vmem:[%s2222 + $0x80] sm:$0xf]
        %v2250 = vld [vmem:[%s2222 + $0x84] sm:$0xf]
        %v2251 = vld [vmem:[%s2222 + $0x8c] sm:$0xf]
        %v2252 = vld [vmem:[%s2222 + $0x90] sm:$0xf]
        %v2253 = vld [vmem:[%s2222 + $0x94] sm:$0xf]
        %v2254 = vld [vmem:[%s2222 + $0x98] sm:$0xf]
        %s2255 = scalar_lea.vmem %s4, 12
        %v2256 = vld [vmem:[%s2255] sm:$0xf]
        %v2289 = vunpack.c.l.b16 %v2223
        %v2290 = vunpack.c.l.b16 %v2224
        %v2291 = vunpack.c.l.b16 %v2225
        %v2292 = vunpack.c.l.b16 %v2226
        %v2293 = vunpack.c.l.b16 %v2227
        %v2294 = vunpack.c.l.b16 %v2228
        %v2295 = vunpack.c.l.b16 %v2229
        %v2296 = vunpack.c.l.b16 %v2230
        %v2297 = vunpack.c.l.b16 %v2231
        %v2298 = vunpack.c.l.b16 %v2232
        %v2299 = vunpack.c.l.b16 %v2233
        %v2300 = vunpack.c.l.b16 %v2234
        %v2301 = vunpack.c.l.b16 %v2235
        %v2302 = vunpack.c.l.b16 %v2236
        %v2303 = vunpack.c.l.b16 %v2237
        %v2304 = vunpack.c.l.b16 %v2238
        %v2305 = vunpack.c.l.b16 %v2239
        %v2306 = vunpack.c.l.b16 %v2240
        %v2307 = vunpack.c.l.b16 %v2241
        %v2308 = vunpack.c.l.b16 %v2242
        %v2309 = vunpack.c.l.b16 %v2243
        %v2310 = vunpack.c.l.b16 %v2244
        %v2311 = vunpack.c.l.b16 %v2245
        %v2312 = vunpack.c.l.b16 %v2246
        %v2313 = vunpack.c.l.b16 %v2247
        %v2314 = vunpack.c.l.b16 %v2248
        %v2315 = vunpack.c.l.b16 %v2249
        %v2316 = vunpack.c.l.b16 %v2250
        %v2317 = vunpack.c.l.b16 %v2251
        %v2318 = vunpack.c.l.b16 %v2252
        %v2319 = vunpack.c.l.b16 %v2253
        %v2320 = vunpack.c.l.b16 %v2254
        %v2321 = vpack.c.b16 %v2290, %v2289
        %v2322 = vpack.c.b16 %v2292, %v2291
        %v2323 = vpack.c.b16 %v2294, %v2293
        %v2324 = vpack.c.b16 %v2296, %v2295
        %v2325 = vpack.c.b16 %v2298, %v2297
        %v2326 = vpack.c.b16 %v2300, %v2299
        %v2327 = vpack.c.b16 %v2302, %v2301
        %v2328 = vpack.c.b16 %v2304, %v2303
        %v2329 = vpack.c.b16 %v2306, %v2305
        %v2330 = vpack.c.b16 %v2308, %v2307
        %v2331 = vpack.c.b16 %v2310, %v2309
        %v2332 = vpack.c.b16 %v2312, %v2311
        %v2333 = vpack.c.b16 %v2314, %v2313
        %v2334 = vpack.c.b16 %v2316, %v2315
        %v2335 = vpack.c.b16 %v2318, %v2317
        %v2336 = vpack.c.b16 %v2320, %v2319
        %v2338 = vsel %vm1504, %v2321, 0
        %v2341 = vsel %vm1504, %v2322, 0
        %v2344 = vsel %vm1504, %v2323, 0
        %v2347 = vsel %vm1504, %v2324, 0
        %v2350 = vsel %vm1504, %v2325, 0
        %v2353 = vsel %vm1504, %v2326, 0
        %v2356 = vsel %vm1504, %v2327, 0
        %v2359 = vsel %vm1504, %v2328, 0
        %v2362 = vsel %vm1504, %v2329, 0
        %v2365 = vsel %vm1504, %v2330, 0
        %v2368 = vsel %vm1504, %v2331, 0
        %v2371 = vsel %vm1504, %v2332, 0
        %v2374 = vsel %vm1504, %v2333, 0
        %v2377 = vsel %vm1504, %v2334, 0
        %v2380 = vsel %vm1504, %v2335, 0
        %v2383 = vsel %vm1504, %v2336, 0
        %v2386 = vsel %vm1553, %v2256, 0
        %2388 = vmatpush.bf16.msra.mxu0 0
        %2389 = vmatpush.bf16.msra.mxu0 0
        %2390 = vmatpush.bf16.msra.mxu0 0
        %2391 = vmatpush.bf16.msra.mxu0 0
        %2392 = vmatpush.bf16.msra.mxu0 0
        %2393 = vmatpush.bf16.msra.mxu0 0
        %2394 = vmatpush.bf16.msra.mxu0 0
        %2395 = vmatpush.bf16.msra.mxu0 %v2386
        %2396 = vmatmul.bf16.gmra.mxu0 %v2338
        %v2397 = vpop.f32.mrf.mxu0
        %v2398 = vadd.f32 0.0, %v2397
        %v2399 = vpop.f32.mrf.mxu0
        %v2400 = vadd.f32 0.0, %v2399
        %2401 = vmatmul.bf16.gmra.mxu0 %v2341
        %v2402 = vpop.f32.mrf.mxu0
        %v2403 = vadd.f32 0.0, %v2402
        %v2404 = vpop.f32.mrf.mxu0
        %v2405 = vadd.f32 0.0, %v2404
        %2406 = vmatmul.bf16.gmra.mxu0 %v2344
        %v2407 = vpop.f32.mrf.mxu0
        %v2408 = vadd.f32 0.0, %v2407
        %v2409 = vpop.f32.mrf.mxu0
        %v2410 = vadd.f32 0.0, %v2409
        %2411 = vmatmul.bf16.gmra.mxu0 %v2347
        %v2412 = vpop.f32.mrf.mxu0
        %v2413 = vadd.f32 0.0, %v2412
        %v2414 = vpop.f32.mrf.mxu0
        %v2415 = vadd.f32 0.0, %v2414
        %2416 = vmatmul.bf16.gmra.mxu0 %v2350
        %v2417 = vpop.f32.mrf.mxu0
        %v2418 = vadd.f32 0.0, %v2417
        %v2419 = vpop.f32.mrf.mxu0
        %v2420 = vadd.f32 0.0, %v2419
        %2421 = vmatmul.bf16.gmra.mxu0 %v2353
        %v2422 = vpop.f32.mrf.mxu0
        %v2423 = vadd.f32 0.0, %v2422
        %v2424 = vpop.f32.mrf.mxu0
        %v2425 = vadd.f32 0.0, %v2424
        %2426 = vmatmul.bf16.gmra.mxu0 %v2356
        %v2427 = vpop.f32.mrf.mxu0
        %v2428 = vadd.f32 0.0, %v2427
        %v2429 = vpop.f32.mrf.mxu0
        %v2430 = vadd.f32 0.0, %v2429
        %2431 = vmatmul.bf16.gmra.mxu0 %v2359
        %v2432 = vpop.f32.mrf.mxu0
        %v2433 = vadd.f32 0.0, %v2432
        %v2434 = vpop.f32.mrf.mxu0
        %v2435 = vadd.f32 0.0, %v2434
        %2436 = vmatmul.bf16.gmra.mxu0 %v2362
        %v2437 = vpop.f32.mrf.mxu0
        %v2438 = vadd.f32 0.0, %v2437
        %v2439 = vpop.f32.mrf.mxu0
        %v2440 = vadd.f32 0.0, %v2439
        %2441 = vmatmul.bf16.gmra.mxu0 %v2365
        %v2442 = vpop.f32.mrf.mxu0
        %v2443 = vadd.f32 0.0, %v2442
        %v2444 = vpop.f32.mrf.mxu0
        %v2445 = vadd.f32 0.0, %v2444
        %2446 = vmatmul.bf16.gmra.mxu0 %v2368
        %v2447 = vpop.f32.mrf.mxu0
        %v2448 = vadd.f32 0.0, %v2447
        %v2449 = vpop.f32.mrf.mxu0
        %v2450 = vadd.f32 0.0, %v2449
        %2451 = vmatmul.bf16.gmra.mxu0 %v2371
        %v2452 = vpop.f32.mrf.mxu0
        %v2453 = vadd.f32 0.0, %v2452
        %v2454 = vpop.f32.mrf.mxu0
        %v2455 = vadd.f32 0.0, %v2454
        %2456 = vmatmul.bf16.gmra.mxu0 %v2374
        %v2457 = vpop.f32.mrf.mxu0
        %v2458 = vadd.f32 0.0, %v2457
        %v2459 = vpop.f32.mrf.mxu0
        %v2460 = vadd.f32 0.0, %v2459
        %2461 = vmatmul.bf16.gmra.mxu0 %v2377
        %v2462 = vpop.f32.mrf.mxu0
        %v2463 = vadd.f32 0.0, %v2462
        %v2464 = vpop.f32.mrf.mxu0
        %v2465 = vadd.f32 0.0, %v2464
        %2466 = vmatmul.bf16.gmra.mxu0 %v2380
        %v2467 = vpop.f32.mrf.mxu0
        %v2468 = vadd.f32 0.0, %v2467
        %v2469 = vpop.f32.mrf.mxu0
        %v2470 = vadd.f32 0.0, %v2469
        %2471 = vmatmul.bf16.gmra.mxu0 %v2383
        %v2472 = vpop.f32.mrf.mxu0
        %v2473 = vadd.f32 0.0, %v2472
        %v2474 = vpop.f32.mrf.mxu0
        %v2475 = vadd.f32 0.0, %v2474
        %2476 = vdwg.mxu0
        %v2477 = vadd.f32 %v2187, %v2398
        %v2478 = vadd.f32 %v2188, %v2400
        %v2479 = vadd.f32 %v2189, %v2403
        %v2480 = vadd.f32 %v2190, %v2405
        %v2481 = vadd.f32 %v2191, %v2408
        %v2482 = vadd.f32 %v2192, %v2410
        %v2483 = vadd.f32 %v2193, %v2413
        %v2484 = vadd.f32 %v2194, %v2415
        %v2485 = vadd.f32 %v2195, %v2418
        %v2486 = vadd.f32 %v2196, %v2420
        %v2487 = vadd.f32 %v2197, %v2423
        %v2488 = vadd.f32 %v2198, %v2425
        %v2489 = vadd.f32 %v2199, %v2428
        %v2490 = vadd.f32 %v2200, %v2430
        %v2491 = vadd.f32 %v2201, %v2433
        %v2492 = vadd.f32 %v2202, %v2435
        %v2493 = vadd.f32 %v2203, %v2438
        %v2494 = vadd.f32 %v2204, %v2440
        %v2495 = vadd.f32 %v2205, %v2443
        %v2496 = vadd.f32 %v2206, %v2445
        %v2497 = vadd.f32 %v2207, %v2448
        %v2498 = vadd.f32 %v2208, %v2450
        %v2499 = vadd.f32 %v2209, %v2453
        %v2500 = vadd.f32 %v2210, %v2455
        %v2501 = vadd.f32 %v2211, %v2458
        %v2502 = vadd.f32 %v2212, %v2460
        %v2503 = vadd.f32 %v2213, %v2463
        %v2504 = vadd.f32 %v2214, %v2465
        %v2505 = vadd.f32 %v2215, %v2468
        %v2506 = vadd.f32 %v2216, %v2470
        %v2507 = vadd.f32 %v2217, %v2473
        %v2508 = vadd.f32 %v2218, %v2475
        %v2509 = vld [vmem:[%s2222] sm:$0xf]
        %v2510 = vld [vmem:[%s2222 + $0x4] sm:$0xf]
        %v2511 = vld [vmem:[%s2222 + $0x8] sm:$0xf]
        %v2512 = vld [vmem:[%s2222 + $0xc] sm:$0xf]
        %v2513 = vld [vmem:[%s2222 + $0x10] sm:$0x1]
        %v2514 = vld [vmem:[%s2222 + $0x14] sm:$0xf]
        %v2515 = vld [vmem:[%s2222 + $0x18] sm:$0xf]
        %v2516 = vld [vmem:[%s2222 + $0x1c] sm:$0xf]
        %v2517 = vld [vmem:[%s2222 + $0x20] sm:$0xf]
        %v2518 = vld [vmem:[%s2222 + $0x24] sm:$0x1]
        %v2519 = vld [vmem:[%s2222 + $0x28] sm:$0xf]
        %v2520 = vld [vmem:[%s2222 + $0x2c] sm:$0xf]
        %v2521 = vld [vmem:[%s2222 + $0x30] sm:$0xf]
        %v2522 = vld [vmem:[%s2222 + $0x34] sm:$0xf]
        %v2523 = vld [vmem:[%s2222 + $0x38] sm:$0x1]
        %v2524 = vld [vmem:[%s2222 + $0x3c] sm:$0xf]
        %v2525 = vld [vmem:[%s2222 + $0x40] sm:$0xf]
        %v2526 = vld [vmem:[%s2222 + $0x44] sm:$0xf]
        %v2527 = vld [vmem:[%s2222 + $0x48] sm:$0xf]
        %v2528 = vld [vmem:[%s2222 + $0x4c] sm:$0x1]
        %v2529 = vld [vmem:[%s2222 + $0x50] sm:$0xf]
        %v2530 = vld [vmem:[%s2222 + $0x54] sm:$0xf]
        %v2531 = vld [vmem:[%s2222 + $0x58] sm:$0xf]
        %v2532 = vld [vmem:[%s2222 + $0x5c] sm:$0xf]
        %v2533 = vld [vmem:[%s2222 + $0x60] sm:$0x1]
        %v2534 = vld [vmem:[%s2222 + $0x64] sm:$0xf]
        %v2535 = vld [vmem:[%s2222 + $0x68] sm:$0xf]
        %v2536 = vld [vmem:[%s2222 + $0x6c] sm:$0xf]
        %v2537 = vld [vmem:[%s2222 + $0x70] sm:$0xf]
        %v2538 = vld [vmem:[%s2222 + $0x74] sm:$0x1]
        %v2539 = vld [vmem:[%s2222 + $0x78] sm:$0xf]
        %v2540 = vld [vmem:[%s2222 + $0x7c] sm:$0xf]
        %v2541 = vld [vmem:[%s2222 + $0x80] sm:$0xf]
        %v2542 = vld [vmem:[%s2222 + $0x84] sm:$0xf]
        %v2543 = vld [vmem:[%s2222 + $0x88] sm:$0x1]
        %v2544 = vld [vmem:[%s2222 + $0x8c] sm:$0xf]
        %v2545 = vld [vmem:[%s2222 + $0x90] sm:$0xf]
        %v2546 = vld [vmem:[%s2222 + $0x94] sm:$0xf]
        %v2547 = vld [vmem:[%s2222 + $0x98] sm:$0xf]
        %v2548 = vld [vmem:[%s2222 + $0x9c] sm:$0x1]
        %v2550 = vshrl.u32 %v2509, 16
        %v2552 = vrot.slane %v2550, 4
        %v2553 = vshll.u32 %v2509, 16
        %v2555 = vrot.slane %v2553, 5
        %v2556 = vor.u32 %v2552, %v2555
        %v2557 = vrot.slane %v2556, 4
        %v2559 = vshll.u32 %v2510, 16
        %v2561 = vrot.slane %v2559, 5
        %v2562 = vsel %vm1101, %v2557, %v2561
        %v2563 = vshrl.u32 %v2510, 16
        %v2565 = vrot.slane %v2563, 4
        %v2566 = vor.u32 %v2565, %v2561
        %v2567 = vrot.slane %v2566, 4
        %v2569 = vshll.u32 %v2511, 16
        %v2571 = vrot.slane %v2569, 5
        %v2572 = vsel %vm1101, %v2567, %v2571
        %v2573 = vshrl.u32 %v2511, 16
        %v2575 = vrot.slane %v2573, 4
        %v2576 = vor.u32 %v2575, %v2571
        %v2577 = vrot.slane %v2576, 4
        %v2579 = vshll.u32 %v2512, 16
        %v2581 = vrot.slane %v2579, 5
        %v2582 = vsel %vm1101, %v2577, %v2581
        %v2583 = vshrl.u32 %v2512, 16
        %v2585 = vrot.slane %v2583, 4
        %v2586 = vor.u32 %v2585, %v2581
        %v2587 = vrot.slane %v2586, 4
        %v2589 = vshll.u32 %v2513, 16
        %v2591 = vrot.slane %v2589, 5
        %v2592 = vsel %vm1101, %v2587, %v2591
        %v2594 = vshrl.u32 %v2514, 16
        %v2596 = vrot.slane %v2594, 4
        %v2597 = vshll.u32 %v2514, 16
        %v2599 = vrot.slane %v2597, 5
        %v2600 = vor.u32 %v2596, %v2599
        %v2601 = vrot.slane %v2600, 4
        %v2603 = vshll.u32 %v2515, 16
        %v2605 = vrot.slane %v2603, 5
        %v2606 = vsel %vm1101, %v2601, %v2605
        %v2607 = vshrl.u32 %v2515, 16
        %v2609 = vrot.slane %v2607, 4
        %v2610 = vor.u32 %v2609, %v2605
        %v2611 = vrot.slane %v2610, 4
        %v2613 = vshll.u32 %v2516, 16
        %v2615 = vrot.slane %v2613, 5
        %v2616 = vsel %vm1101, %v2611, %v2615
        %v2617 = vshrl.u32 %v2516, 16
        %v2619 = vrot.slane %v2617, 4
        %v2620 = vor.u32 %v2619, %v2615
        %v2621 = vrot.slane %v2620, 4
        %v2623 = vshll.u32 %v2517, 16
        %v2625 = vrot.slane %v2623, 5
        %v2626 = vsel %vm1101, %v2621, %v2625
        %v2627 = vshrl.u32 %v2517, 16
        %v2629 = vrot.slane %v2627, 4
        %v2630 = vor.u32 %v2629, %v2625
        %v2631 = vrot.slane %v2630, 4
        %v2633 = vshll.u32 %v2518, 16
        %v2635 = vrot.slane %v2633, 5
        %v2636 = vsel %vm1101, %v2631, %v2635
        %v2638 = vshrl.u32 %v2519, 16
        %v2640 = vrot.slane %v2638, 4
        %v2641 = vshll.u32 %v2519, 16
        %v2643 = vrot.slane %v2641, 5
        %v2644 = vor.u32 %v2640, %v2643
        %v2645 = vrot.slane %v2644, 4
        %v2647 = vshll.u32 %v2520, 16
        %v2649 = vrot.slane %v2647, 5
        %v2650 = vsel %vm1101, %v2645, %v2649
        %v2651 = vshrl.u32 %v2520, 16
        %v2653 = vrot.slane %v2651, 4
        %v2654 = vor.u32 %v2653, %v2649
        %v2655 = vrot.slane %v2654, 4
        %v2657 = vshll.u32 %v2521, 16
        %v2659 = vrot.slane %v2657, 5
        %v2660 = vsel %vm1101, %v2655, %v2659
        %v2661 = vshrl.u32 %v2521, 16
        %v2663 = vrot.slane %v2661, 4
        %v2664 = vor.u32 %v2663, %v2659
        %v2665 = vrot.slane %v2664, 4
        %v2667 = vshll.u32 %v2522, 16
        %v2669 = vrot.slane %v2667, 5
        %v2670 = vsel %vm1101, %v2665, %v2669
        %v2671 = vshrl.u32 %v2522, 16
        %v2673 = vrot.slane %v2671, 4
        %v2674 = vor.u32 %v2673, %v2669
        %v2675 = vrot.slane %v2674, 4
        %v2677 = vshll.u32 %v2523, 16
        %v2679 = vrot.slane %v2677, 5
        %v2680 = vsel %vm1101, %v2675, %v2679
        %v2682 = vshrl.u32 %v2524, 16
        %v2684 = vrot.slane %v2682, 4
        %v2685 = vshll.u32 %v2524, 16
        %v2687 = vrot.slane %v2685, 5
        %v2688 = vor.u32 %v2684, %v2687
        %v2689 = vrot.slane %v2688, 4
        %v2691 = vshll.u32 %v2525, 16
        %v2693 = vrot.slane %v2691, 5
        %v2694 = vsel %vm1101, %v2689, %v2693
        %v2695 = vshrl.u32 %v2525, 16
        %v2697 = vrot.slane %v2695, 4
        %v2698 = vor.u32 %v2697, %v2693
        %v2699 = vrot.slane %v2698, 4
        %v2701 = vshll.u32 %v2526, 16
        %v2703 = vrot.slane %v2701, 5
        %v2704 = vsel %vm1101, %v2699, %v2703
        %v2705 = vshrl.u32 %v2526, 16
        %v2707 = vrot.slane %v2705, 4
        %v2708 = vor.u32 %v2707, %v2703
        %v2709 = vrot.slane %v2708, 4
        %v2711 = vshll.u32 %v2527, 16
        %v2713 = vrot.slane %v2711, 5
        %v2714 = vsel %vm1101, %v2709, %v2713
        %v2715 = vshrl.u32 %v2527, 16
        %v2717 = vrot.slane %v2715, 4
        %v2718 = vor.u32 %v2717, %v2713
        %v2719 = vrot.slane %v2718, 4
        %v2721 = vshll.u32 %v2528, 16
        %v2723 = vrot.slane %v2721, 5
        %v2724 = vsel %vm1101, %v2719, %v2723
        %v2726 = vshrl.u32 %v2529, 16
        %v2728 = vrot.slane %v2726, 4
        %v2729 = vshll.u32 %v2529, 16
        %v2731 = vrot.slane %v2729, 5
        %v2732 = vor.u32 %v2728, %v2731
        %v2733 = vrot.slane %v2732, 4
        %v2735 = vshll.u32 %v2530, 16
        %v2737 = vrot.slane %v2735, 5
        %v2738 = vsel %vm1101, %v2733, %v2737
        %v2739 = vshrl.u32 %v2530, 16
        %v2741 = vrot.slane %v2739, 4
        %v2742 = vor.u32 %v2741, %v2737
        %v2743 = vrot.slane %v2742, 4
        %v2745 = vshll.u32 %v2531, 16
        %v2747 = vrot.slane %v2745, 5
        %v2748 = vsel %vm1101, %v2743, %v2747
        %v2749 = vshrl.u32 %v2531, 16
        %v2751 = vrot.slane %v2749, 4
        %v2752 = vor.u32 %v2751, %v2747
        %v2753 = vrot.slane %v2752, 4
        %v2755 = vshll.u32 %v2532, 16
        %v2757 = vrot.slane %v2755, 5
        %v2758 = vsel %vm1101, %v2753, %v2757
        %v2759 = vshrl.u32 %v2532, 16
        %v2761 = vrot.slane %v2759, 4
        %v2762 = vor.u32 %v2761, %v2757
        %v2763 = vrot.slane %v2762, 4
        %v2765 = vshll.u32 %v2533, 16
        %v2767 = vrot.slane %v2765, 5
        %v2768 = vsel %vm1101, %v2763, %v2767
        %v2770 = vshrl.u32 %v2534, 16
        %v2772 = vrot.slane %v2770, 4
        %v2773 = vshll.u32 %v2534, 16
        %v2775 = vrot.slane %v2773, 5
        %v2776 = vor.u32 %v2772, %v2775
        %v2777 = vrot.slane %v2776, 4
        %v2779 = vshll.u32 %v2535, 16
        %v2781 = vrot.slane %v2779, 5
        %v2782 = vsel %vm1101, %v2777, %v2781
        %v2783 = vshrl.u32 %v2535, 16
        %v2785 = vrot.slane %v2783, 4
        %v2786 = vor.u32 %v2785, %v2781
        %v2787 = vrot.slane %v2786, 4
        %v2789 = vshll.u32 %v2536, 16
        %v2791 = vrot.slane %v2789, 5
        %v2792 = vsel %vm1101, %v2787, %v2791
        %v2793 = vshrl.u32 %v2536, 16
        %v2795 = vrot.slane %v2793, 4
        %v2796 = vor.u32 %v2795, %v2791
        %v2797 = vrot.slane %v2796, 4
        %v2799 = vshll.u32 %v2537, 16
        %v2801 = vrot.slane %v2799, 5
        %v2802 = vsel %vm1101, %v2797, %v2801
        %v2803 = vshrl.u32 %v2537, 16
        %v2805 = vrot.slane %v2803, 4
        %v2806 = vor.u32 %v2805, %v2801
        %v2807 = vrot.slane %v2806, 4
        %v2809 = vshll.u32 %v2538, 16
        %v2811 = vrot.slane %v2809, 5
        %v2812 = vsel %vm1101, %v2807, %v2811
        %v2814 = vshrl.u32 %v2539, 16
        %v2816 = vrot.slane %v2814, 4
        %v2817 = vshll.u32 %v2539, 16
        %v2819 = vrot.slane %v2817, 5
        %v2820 = vor.u32 %v2816, %v2819
        %v2821 = vrot.slane %v2820, 4
        %v2823 = vshll.u32 %v2540, 16
        %v2825 = vrot.slane %v2823, 5
        %v2826 = vsel %vm1101, %v2821, %v2825
        %v2827 = vshrl.u32 %v2540, 16
        %v2829 = vrot.slane %v2827, 4
        %v2830 = vor.u32 %v2829, %v2825
        %v2831 = vrot.slane %v2830, 4
        %v2833 = vshll.u32 %v2541, 16
        %v2835 = vrot.slane %v2833, 5
        %v2836 = vsel %vm1101, %v2831, %v2835
        %v2837 = vshrl.u32 %v2541, 16
        %v2839 = vrot.slane %v2837, 4
        %v2840 = vor.u32 %v2839, %v2835
        %v2841 = vrot.slane %v2840, 4
        %v2843 = vshll.u32 %v2542, 16
        %v2845 = vrot.slane %v2843, 5
        %v2846 = vsel %vm1101, %v2841, %v2845
        %v2847 = vshrl.u32 %v2542, 16
        %v2849 = vrot.slane %v2847, 4
        %v2850 = vor.u32 %v2849, %v2845
        %v2851 = vrot.slane %v2850, 4
        %v2853 = vshll.u32 %v2543, 16
        %v2855 = vrot.slane %v2853, 5
        %v2856 = vsel %vm1101, %v2851, %v2855
        %v2858 = vshrl.u32 %v2544, 16
        %v2860 = vrot.slane %v2858, 4
        %v2861 = vshll.u32 %v2544, 16
        %v2863 = vrot.slane %v2861, 5
        %v2864 = vor.u32 %v2860, %v2863
        %v2865 = vrot.slane %v2864, 4
        %v2867 = vshll.u32 %v2545, 16
        %v2869 = vrot.slane %v2867, 5
        %v2870 = vsel %vm1101, %v2865, %v2869
        %v2871 = vshrl.u32 %v2545, 16
        %v2873 = vrot.slane %v2871, 4
        %v2874 = vor.u32 %v2873, %v2869
        %v2875 = vrot.slane %v2874, 4
        %v2877 = vshll.u32 %v2546, 16
        %v2879 = vrot.slane %v2877, 5
        %v2880 = vsel %vm1101, %v2875, %v2879
        %v2881 = vshrl.u32 %v2546, 16
        %v2883 = vrot.slane %v2881, 4
        %v2884 = vor.u32 %v2883, %v2879
        %v2885 = vrot.slane %v2884, 4
        %v2887 = vshll.u32 %v2547, 16
        %v2889 = vrot.slane %v2887, 5
        %v2890 = vsel %vm1101, %v2885, %v2889
        %v2891 = vshrl.u32 %v2547, 16
        %v2893 = vrot.slane %v2891, 4
        %v2894 = vor.u32 %v2893, %v2889
        %v2895 = vrot.slane %v2894, 4
        %v2897 = vshll.u32 %v2548, 16
        %v2899 = vrot.slane %v2897, 5
        %v2900 = vsel %vm1101, %v2895, %v2899
        %s2901 = scalar_lea.vmem %s4, 16
        %v2902 = vld [vmem:[%s2901] sm:$0xf]
        %v2903 = vunpack.c.l.b16 %v2562
        %v2904 = vunpack.c.l.b16 %v2572
        %v2905 = vunpack.c.l.b16 %v2582
        %v2906 = vunpack.c.l.b16 %v2592
        %v2907 = vunpack.c.l.b16 %v2606
        %v2908 = vunpack.c.l.b16 %v2616
        %v2909 = vunpack.c.l.b16 %v2626
        %v2910 = vunpack.c.l.b16 %v2636
        %v2911 = vunpack.c.l.b16 %v2650
        %v2912 = vunpack.c.l.b16 %v2660
        %v2913 = vunpack.c.l.b16 %v2670
        %v2914 = vunpack.c.l.b16 %v2680
        %v2915 = vunpack.c.l.b16 %v2694
        %v2916 = vunpack.c.l.b16 %v2704
        %v2917 = vunpack.c.l.b16 %v2714
        %v2918 = vunpack.c.l.b16 %v2724
        %v2919 = vunpack.c.l.b16 %v2738
        %v2920 = vunpack.c.l.b16 %v2748
        %v2921 = vunpack.c.l.b16 %v2758
        %v2922 = vunpack.c.l.b16 %v2768
        %v2923 = vunpack.c.l.b16 %v2782
        %v2924 = vunpack.c.l.b16 %v2792
        %v2925 = vunpack.c.l.b16 %v2802
        %v2926 = vunpack.c.l.b16 %v2812
        %v2927 = vunpack.c.l.b16 %v2826
        %v2928 = vunpack.c.l.b16 %v2836
        %v2929 = vunpack.c.l.b16 %v2846
        %v2930 = vunpack.c.l.b16 %v2856
        %v2931 = vunpack.c.l.b16 %v2870
        %v2932 = vunpack.c.l.b16 %v2880
        %v2933 = vunpack.c.l.b16 %v2890
        %v2934 = vunpack.c.l.b16 %v2900
        %v2935 = vpack.c.b16 %v2904, %v2903
        %v2936 = vpack.c.b16 %v2906, %v2905
        %v2937 = vpack.c.b16 %v2908, %v2907
        %v2938 = vpack.c.b16 %v2910, %v2909
        %v2939 = vpack.c.b16 %v2912, %v2911
        %v2940 = vpack.c.b16 %v2914, %v2913
        %v2941 = vpack.c.b16 %v2916, %v2915
        %v2942 = vpack.c.b16 %v2918, %v2917
        %v2943 = vpack.c.b16 %v2920, %v2919
        %v2944 = vpack.c.b16 %v2922, %v2921
        %v2945 = vpack.c.b16 %v2924, %v2923
        %v2946 = vpack.c.b16 %v2926, %v2925
        %v2947 = vpack.c.b16 %v2928, %v2927
        %v2948 = vpack.c.b16 %v2930, %v2929
        %v2949 = vpack.c.b16 %v2932, %v2931
        %v2950 = vpack.c.b16 %v2934, %v2933
        %v2952 = vsel %vm1504, %v2935, 0
        %v2955 = vsel %vm1504, %v2936, 0
        %v2958 = vsel %vm1504, %v2937, 0
        %v2961 = vsel %vm1504, %v2938, 0
        %v2964 = vsel %vm1504, %v2939, 0
        %v2967 = vsel %vm1504, %v2940, 0
        %v2970 = vsel %vm1504, %v2941, 0
        %v2973 = vsel %vm1504, %v2942, 0
        %v2976 = vsel %vm1504, %v2943, 0
        %v2979 = vsel %vm1504, %v2944, 0
        %v2982 = vsel %vm1504, %v2945, 0
        %v2985 = vsel %vm1504, %v2946, 0
        %v2988 = vsel %vm1504, %v2947, 0
        %v2991 = vsel %vm1504, %v2948, 0
        %v2994 = vsel %vm1504, %v2949, 0
        %v2997 = vsel %vm1504, %v2950, 0
        %v3000 = vsel %vm1553, %v2902, 0
        %3002 = vmatpush.bf16.msra.mxu0 0
        %3003 = vmatpush.bf16.msra.mxu0 0
        %3004 = vmatpush.bf16.msra.mxu0 0
        %3005 = vmatpush.bf16.msra.mxu0 0
        %3006 = vmatpush.bf16.msra.mxu0 0
        %3007 = vmatpush.bf16.msra.mxu0 0
        %3008 = vmatpush.bf16.msra.mxu0 0
        %3009 = vmatpush.bf16.msra.mxu0 %v3000
        %3010 = vmatmul.bf16.gmra.mxu0 %v2952
        %v3011 = vpop.f32.mrf.mxu0
        %v3012 = vadd.f32 0.0, %v3011
        %v3013 = vpop.f32.mrf.mxu0
        %v3014 = vadd.f32 0.0, %v3013
        %3015 = vmatmul.bf16.gmra.mxu0 %v2955
        %v3016 = vpop.f32.mrf.mxu0
        %v3017 = vadd.f32 0.0, %v3016
        %v3018 = vpop.f32.mrf.mxu0
        %v3019 = vadd.f32 0.0, %v3018
        %3020 = vmatmul.bf16.gmra.mxu0 %v2958
        %v3021 = vpop.f32.mrf.mxu0
        %v3022 = vadd.f32 0.0, %v3021
        %v3023 = vpop.f32.mrf.mxu0
        %v3024 = vadd.f32 0.0, %v3023
        %3025 = vmatmul.bf16.gmra.mxu0 %v2961
        %v3026 = vpop.f32.mrf.mxu0
        %v3027 = vadd.f32 0.0, %v3026
        %v3028 = vpop.f32.mrf.mxu0
        %v3029 = vadd.f32 0.0, %v3028
        %3030 = vmatmul.bf16.gmra.mxu0 %v2964
        %v3031 = vpop.f32.mrf.mxu0
        %v3032 = vadd.f32 0.0, %v3031
        %v3033 = vpop.f32.mrf.mxu0
        %v3034 = vadd.f32 0.0, %v3033
        %3035 = vmatmul.bf16.gmra.mxu0 %v2967
        %v3036 = vpop.f32.mrf.mxu0
        %v3037 = vadd.f32 0.0, %v3036
        %v3038 = vpop.f32.mrf.mxu0
        %v3039 = vadd.f32 0.0, %v3038
        %3040 = vmatmul.bf16.gmra.mxu0 %v2970
        %v3041 = vpop.f32.mrf.mxu0
        %v3042 = vadd.f32 0.0, %v3041
        %v3043 = vpop.f32.mrf.mxu0
        %v3044 = vadd.f32 0.0, %v3043
        %3045 = vmatmul.bf16.gmra.mxu0 %v2973
        %v3046 = vpop.f32.mrf.mxu0
        %v3047 = vadd.f32 0.0, %v3046
        %v3048 = vpop.f32.mrf.mxu0
        %v3049 = vadd.f32 0.0, %v3048
        %3050 = vmatmul.bf16.gmra.mxu0 %v2976
        %v3051 = vpop.f32.mrf.mxu0
        %v3052 = vadd.f32 0.0, %v3051
        %v3053 = vpop.f32.mrf.mxu0
        %v3054 = vadd.f32 0.0, %v3053
        %3055 = vmatmul.bf16.gmra.mxu0 %v2979
        %v3056 = vpop.f32.mrf.mxu0
        %v3057 = vadd.f32 0.0, %v3056
        %v3058 = vpop.f32.mrf.mxu0
        %v3059 = vadd.f32 0.0, %v3058
        %3060 = vmatmul.bf16.gmra.mxu0 %v2982
        %v3061 = vpop.f32.mrf.mxu0
        %v3062 = vadd.f32 0.0, %v3061
        %v3063 = vpop.f32.mrf.mxu0
        %v3064 = vadd.f32 0.0, %v3063
        %3065 = vmatmul.bf16.gmra.mxu0 %v2985
        %v3066 = vpop.f32.mrf.mxu0
        %v3067 = vadd.f32 0.0, %v3066
        %v3068 = vpop.f32.mrf.mxu0
        %v3069 = vadd.f32 0.0, %v3068
        %3070 = vmatmul.bf16.gmra.mxu0 %v2988
        %v3071 = vpop.f32.mrf.mxu0
        %v3072 = vadd.f32 0.0, %v3071
        %v3073 = vpop.f32.mrf.mxu0
        %v3074 = vadd.f32 0.0, %v3073
        %3075 = vmatmul.bf16.gmra.mxu0 %v2991
        %v3076 = vpop.f32.mrf.mxu0
        %v3077 = vadd.f32 0.0, %v3076
        %v3078 = vpop.f32.mrf.mxu0
        %v3079 = vadd.f32 0.0, %v3078
        %3080 = vmatmul.bf16.gmra.mxu0 %v2994
        %v3081 = vpop.f32.mrf.mxu0
        %v3082 = vadd.f32 0.0, %v3081
        %v3083 = vpop.f32.mrf.mxu0
        %v3084 = vadd.f32 0.0, %v3083
        %3085 = vmatmul.bf16.gmra.mxu0 %v2997
        %v3086 = vpop.f32.mrf.mxu0
        %v3087 = vadd.f32 0.0, %v3086
        %v3088 = vpop.f32.mrf.mxu0
        %v3089 = vadd.f32 0.0, %v3088
        %3090 = vdwg.mxu0
        %v3091 = vadd.f32 %v2477, %v3012
        %v3092 = vadd.f32 %v2478, %v3014
        %v3093 = vadd.f32 %v2479, %v3017
        %v3094 = vadd.f32 %v2480, %v3019
        %v3095 = vadd.f32 %v2481, %v3022
        %v3096 = vadd.f32 %v2482, %v3024
        %v3097 = vadd.f32 %v2483, %v3027
        %v3098 = vadd.f32 %v2484, %v3029
        %v3099 = vadd.f32 %v2485, %v3032
        %v3100 = vadd.f32 %v2486, %v3034
        %v3101 = vadd.f32 %v2487, %v3037
        %v3102 = vadd.f32 %v2488, %v3039
        %v3103 = vadd.f32 %v2489, %v3042
        %v3104 = vadd.f32 %v2490, %v3044
        %v3105 = vadd.f32 %v2491, %v3047
        %v3106 = vadd.f32 %v2492, %v3049
        %v3107 = vadd.f32 %v2493, %v3052
        %v3108 = vadd.f32 %v2494, %v3054
        %v3109 = vadd.f32 %v2495, %v3057
        %v3110 = vadd.f32 %v2496, %v3059
        %v3111 = vadd.f32 %v2497, %v3062
        %v3112 = vadd.f32 %v2498, %v3064
        %v3113 = vadd.f32 %v2499, %v3067
        %v3114 = vadd.f32 %v2500, %v3069
        %v3115 = vadd.f32 %v2501, %v3072
        %v3116 = vadd.f32 %v2502, %v3074
        %v3117 = vadd.f32 %v2503, %v3077
        %v3118 = vadd.f32 %v2504, %v3079
        %v3119 = vadd.f32 %v2505, %v3082
        %v3120 = vadd.f32 %v2506, %v3084
        %v3121 = vadd.f32 %v2507, %v3087
        %v3122 = vadd.f32 %v2508, %v3089
        %v3123 = vld [vmem:[%s2222] sm:$0xe]
        %v3124 = vld [vmem:[%s2222 + $0x14] sm:$0xe]
        %v3125 = vld [vmem:[%s2222 + $0x28] sm:$0xe]
        %v3126 = vld [vmem:[%s2222 + $0x3c] sm:$0xe]
        %v3127 = vld [vmem:[%s2222 + $0x50] sm:$0xe]
        %v3128 = vld [vmem:[%s2222 + $0x64] sm:$0xe]
        %v3129 = vld [vmem:[%s2222 + $0x78] sm:$0xe]
        %v3130 = vld [vmem:[%s2222 + $0x8c] sm:$0xe]
        %v3171 = vrot.slane %v3123, 5
        %v3172 = vrot.slane %v3171, 4
        %v3173 = vrot.slane %v2510, 5
        %v3174 = vsel %vm1892, %v3172, %v3173
        %v3175 = vrot.slane %v3173, 4
        %v3176 = vrot.slane %v2511, 5
        %v3177 = vsel %vm1892, %v3175, %v3176
        %v3178 = vrot.slane %v3176, 4
        %v3179 = vrot.slane %v2512, 5
        %v3180 = vsel %vm1892, %v3178, %v3179
        %v3181 = vrot.slane %v3179, 4
        %v3182 = vrot.slane %v2513, 5
        %v3183 = vsel %vm1892, %v3181, %v3182
        %v3184 = vrot.slane %v3124, 5
        %v3185 = vrot.slane %v3184, 4
        %v3186 = vrot.slane %v2515, 5
        %v3187 = vsel %vm1892, %v3185, %v3186
        %v3188 = vrot.slane %v3186, 4
        %v3189 = vrot.slane %v2516, 5
        %v3190 = vsel %vm1892, %v3188, %v3189
        %v3191 = vrot.slane %v3189, 4
        %v3192 = vrot.slane %v2517, 5
        %v3193 = vsel %vm1892, %v3191, %v3192
        %v3194 = vrot.slane %v3192, 4
        %v3195 = vrot.slane %v2518, 5
        %v3196 = vsel %vm1892, %v3194, %v3195
        %v3197 = vrot.slane %v3125, 5
        %v3198 = vrot.slane %v3197, 4
        %v3199 = vrot.slane %v2520, 5
        %v3200 = vsel %vm1892, %v3198, %v3199
        %v3201 = vrot.slane %v3199, 4
        %v3202 = vrot.slane %v2521, 5
        %v3203 = vsel %vm1892, %v3201, %v3202
        %v3204 = vrot.slane %v3202, 4
        %v3205 = vrot.slane %v2522, 5
        %v3206 = vsel %vm1892, %v3204, %v3205
        %v3207 = vrot.slane %v3205, 4
        %v3208 = vrot.slane %v2523, 5
        %v3209 = vsel %vm1892, %v3207, %v3208
        %v3210 = vrot.slane %v3126, 5
        %v3211 = vrot.slane %v3210, 4
        %v3212 = vrot.slane %v2525, 5
        %v3213 = vsel %vm1892, %v3211, %v3212
        %v3214 = vrot.slane %v3212, 4
        %v3215 = vrot.slane %v2526, 5
        %v3216 = vsel %vm1892, %v3214, %v3215
        %v3217 = vrot.slane %v3215, 4
        %v3218 = vrot.slane %v2527, 5
        %v3219 = vsel %vm1892, %v3217, %v3218
        %v3220 = vrot.slane %v3218, 4
        %v3221 = vrot.slane %v2528, 5
        %v3222 = vsel %vm1892, %v3220, %v3221
        %v3223 = vrot.slane %v3127, 5
        %v3224 = vrot.slane %v3223, 4
        %v3225 = vrot.slane %v2530, 5
        %v3226 = vsel %vm1892, %v3224, %v3225
        %v3227 = vrot.slane %v3225, 4
        %v3228 = vrot.slane %v2531, 5
        %v3229 = vsel %vm1892, %v3227, %v3228
        %v3230 = vrot.slane %v3228, 4
        %v3231 = vrot.slane %v2532, 5
        %v3232 = vsel %vm1892, %v3230, %v3231
        %v3233 = vrot.slane %v3231, 4
        %v3234 = vrot.slane %v2533, 5
        %v3235 = vsel %vm1892, %v3233, %v3234
        %v3236 = vrot.slane %v3128, 5
        %v3237 = vrot.slane %v3236, 4
        %v3238 = vrot.slane %v2535, 5
        %v3239 = vsel %vm1892, %v3237, %v3238
        %v3240 = vrot.slane %v3238, 4
        %v3241 = vrot.slane %v2536, 5
        %v3242 = vsel %vm1892, %v3240, %v3241
        %v3243 = vrot.slane %v3241, 4
        %v3244 = vrot.slane %v2537, 5
        %v3245 = vsel %vm1892, %v3243, %v3244
        %v3246 = vrot.slane %v3244, 4
        %v3247 = vrot.slane %v2538, 5
        %v3248 = vsel %vm1892, %v3246, %v3247
        %v3249 = vrot.slane %v3129, 5
        %v3250 = vrot.slane %v3249, 4
        %v3251 = vrot.slane %v2540, 5
        %v3252 = vsel %vm1892, %v3250, %v3251
        %v3253 = vrot.slane %v3251, 4
        %v3254 = vrot.slane %v2541, 5
        %v3255 = vsel %vm1892, %v3253, %v3254
        %v3256 = vrot.slane %v3254, 4
        %v3257 = vrot.slane %v2542, 5
        %v3258 = vsel %vm1892, %v3256, %v3257
        %v3259 = vrot.slane %v3257, 4
        %v3260 = vrot.slane %v2543, 5
        %v3261 = vsel %vm1892, %v3259, %v3260
        %v3262 = vrot.slane %v3130, 5
        %v3263 = vrot.slane %v3262, 4
        %v3264 = vrot.slane %v2545, 5
        %v3265 = vsel %vm1892, %v3263, %v3264
        %v3266 = vrot.slane %v3264, 4
        %v3267 = vrot.slane %v2546, 5
        %v3268 = vsel %vm1892, %v3266, %v3267
        %v3269 = vrot.slane %v3267, 4
        %v3270 = vrot.slane %v2547, 5
        %v3271 = vsel %vm1892, %v3269, %v3270
        %v3272 = vrot.slane %v3270, 4
        %v3273 = vrot.slane %v2548, 5
        %v3274 = vsel %vm1892, %v3272, %v3273
        %s3275 = scalar_lea.vmem %s4, 20
        %v3276 = vld [vmem:[%s3275] sm:$0xf]
        %v3277 = vunpack.c.l.b16 %v3174
        %v3278 = vunpack.c.l.b16 %v3177
        %v3279 = vunpack.c.l.b16 %v3180
        %v3280 = vunpack.c.l.b16 %v3183
        %v3281 = vunpack.c.l.b16 %v3187
        %v3282 = vunpack.c.l.b16 %v3190
        %v3283 = vunpack.c.l.b16 %v3193
        %v3284 = vunpack.c.l.b16 %v3196
        %v3285 = vunpack.c.l.b16 %v3200
        %v3286 = vunpack.c.l.b16 %v3203
        %v3287 = vunpack.c.l.b16 %v3206
        %v3288 = vunpack.c.l.b16 %v3209
        %v3289 = vunpack.c.l.b16 %v3213
        %v3290 = vunpack.c.l.b16 %v3216
        %v3291 = vunpack.c.l.b16 %v3219
        %v3292 = vunpack.c.l.b16 %v3222
        %v3293 = vunpack.c.l.b16 %v3226
        %v3294 = vunpack.c.l.b16 %v3229
        %v3295 = vunpack.c.l.b16 %v3232
        %v3296 = vunpack.c.l.b16 %v3235
        %v3297 = vunpack.c.l.b16 %v3239
        %v3298 = vunpack.c.l.b16 %v3242
        %v3299 = vunpack.c.l.b16 %v3245
        %v3300 = vunpack.c.l.b16 %v3248
        %v3301 = vunpack.c.l.b16 %v3252
        %v3302 = vunpack.c.l.b16 %v3255
        %v3303 = vunpack.c.l.b16 %v3258
        %v3304 = vunpack.c.l.b16 %v3261
        %v3305 = vunpack.c.l.b16 %v3265
        %v3306 = vunpack.c.l.b16 %v3268
        %v3307 = vunpack.c.l.b16 %v3271
        %v3308 = vunpack.c.l.b16 %v3274
        %v3309 = vpack.c.b16 %v3278, %v3277
        %v3310 = vpack.c.b16 %v3280, %v3279
        %v3311 = vpack.c.b16 %v3282, %v3281
        %v3312 = vpack.c.b16 %v3284, %v3283
        %v3313 = vpack.c.b16 %v3286, %v3285
        %v3314 = vpack.c.b16 %v3288, %v3287
        %v3315 = vpack.c.b16 %v3290, %v3289
        %v3316 = vpack.c.b16 %v3292, %v3291
        %v3317 = vpack.c.b16 %v3294, %v3293
        %v3318 = vpack.c.b16 %v3296, %v3295
        %v3319 = vpack.c.b16 %v3298, %v3297
        %v3320 = vpack.c.b16 %v3300, %v3299
        %v3321 = vpack.c.b16 %v3302, %v3301
        %v3322 = vpack.c.b16 %v3304, %v3303
        %v3323 = vpack.c.b16 %v3306, %v3305
        %v3324 = vpack.c.b16 %v3308, %v3307
        %v3326 = vsel %vm1504, %v3309, 0
        %v3329 = vsel %vm1504, %v3310, 0
        %v3332 = vsel %vm1504, %v3311, 0
        %v3335 = vsel %vm1504, %v3312, 0
        %v3338 = vsel %vm1504, %v3313, 0
        %v3341 = vsel %vm1504, %v3314, 0
        %v3344 = vsel %vm1504, %v3315, 0
        %v3347 = vsel %vm1504, %v3316, 0
        %v3350 = vsel %vm1504, %v3317, 0
        %v3353 = vsel %vm1504, %v3318, 0
        %v3356 = vsel %vm1504, %v3319, 0
        %v3359 = vsel %vm1504, %v3320, 0
        %v3362 = vsel %vm1504, %v3321, 0
        %v3365 = vsel %vm1504, %v3322, 0
        %v3368 = vsel %vm1504, %v3323, 0
        %v3371 = vsel %vm1504, %v3324, 0
        %v3374 = vsel %vm1553, %v3276, 0
        %3376 = vmatpush.bf16.msra.mxu0 0
        %3377 = vmatpush.bf16.msra.mxu0 0
        %3378 = vmatpush.bf16.msra.mxu0 0
        %3379 = vmatpush.bf16.msra.mxu0 0
        %3380 = vmatpush.bf16.msra.mxu0 0
        %3381 = vmatpush.bf16.msra.mxu0 0
        %3382 = vmatpush.bf16.msra.mxu0 0
        %3383 = vmatpush.bf16.msra.mxu0 %v3374
        %3384 = vmatmul.bf16.gmra.mxu0 %v3326
        %v3385 = vpop.f32.mrf.mxu0
        %v3386 = vadd.f32 0.0, %v3385
        %v3387 = vpop.f32.mrf.mxu0
        %v3388 = vadd.f32 0.0, %v3387
        %3389 = vmatmul.bf16.gmra.mxu0 %v3329
        %v3390 = vpop.f32.mrf.mxu0
        %v3391 = vadd.f32 0.0, %v3390
        %v3392 = vpop.f32.mrf.mxu0
        %v3393 = vadd.f32 0.0, %v3392
        %3394 = vmatmul.bf16.gmra.mxu0 %v3332
        %v3395 = vpop.f32.mrf.mxu0
        %v3396 = vadd.f32 0.0, %v3395
        %v3397 = vpop.f32.mrf.mxu0
        %v3398 = vadd.f32 0.0, %v3397
        %3399 = vmatmul.bf16.gmra.mxu0 %v3335
        %v3400 = vpop.f32.mrf.mxu0
        %v3401 = vadd.f32 0.0, %v3400
        %v3402 = vpop.f32.mrf.mxu0
        %v3403 = vadd.f32 0.0, %v3402
        %3404 = vmatmul.bf16.gmra.mxu0 %v3338
        %v3405 = vpop.f32.mrf.mxu0
        %v3406 = vadd.f32 0.0, %v3405
        %v3407 = vpop.f32.mrf.mxu0
        %v3408 = vadd.f32 0.0, %v3407
        %3409 = vmatmul.bf16.gmra.mxu0 %v3341
        %v3410 = vpop.f32.mrf.mxu0
        %v3411 = vadd.f32 0.0, %v3410
        %v3412 = vpop.f32.mrf.mxu0
        %v3413 = vadd.f32 0.0, %v3412
        %3414 = vmatmul.bf16.gmra.mxu0 %v3344
        %v3415 = vpop.f32.mrf.mxu0
        %v3416 = vadd.f32 0.0, %v3415
        %v3417 = vpop.f32.mrf.mxu0
        %v3418 = vadd.f32 0.0, %v3417
        %3419 = vmatmul.bf16.gmra.mxu0 %v3347
        %v3420 = vpop.f32.mrf.mxu0
        %v3421 = vadd.f32 0.0, %v3420
        %v3422 = vpop.f32.mrf.mxu0
        %v3423 = vadd.f32 0.0, %v3422
        %3424 = vmatmul.bf16.gmra.mxu0 %v3350
        %v3425 = vpop.f32.mrf.mxu0
        %v3426 = vadd.f32 0.0, %v3425
        %v3427 = vpop.f32.mrf.mxu0
        %v3428 = vadd.f32 0.0, %v3427
        %3429 = vmatmul.bf16.gmra.mxu0 %v3353
        %v3430 = vpop.f32.mrf.mxu0
        %v3431 = vadd.f32 0.0, %v3430
        %v3432 = vpop.f32.mrf.mxu0
        %v3433 = vadd.f32 0.0, %v3432
        %3434 = vmatmul.bf16.gmra.mxu0 %v3356
        %v3435 = vpop.f32.mrf.mxu0
        %v3436 = vadd.f32 0.0, %v3435
        %v3437 = vpop.f32.mrf.mxu0
        %v3438 = vadd.f32 0.0, %v3437
        %3439 = vmatmul.bf16.gmra.mxu0 %v3359
        %v3440 = vpop.f32.mrf.mxu0
        %v3441 = vadd.f32 0.0, %v3440
        %v3442 = vpop.f32.mrf.mxu0
        %v3443 = vadd.f32 0.0, %v3442
        %3444 = vmatmul.bf16.gmra.mxu0 %v3362
        %v3445 = vpop.f32.mrf.mxu0
        %v3446 = vadd.f32 0.0, %v3445
        %v3447 = vpop.f32.mrf.mxu0
        %v3448 = vadd.f32 0.0, %v3447
        %3449 = vmatmul.bf16.gmra.mxu0 %v3365
        %v3450 = vpop.f32.mrf.mxu0
        %v3451 = vadd.f32 0.0, %v3450
        %v3452 = vpop.f32.mrf.mxu0
        %v3453 = vadd.f32 0.0, %v3452
        %3454 = vmatmul.bf16.gmra.mxu0 %v3368
        %v3455 = vpop.f32.mrf.mxu0
        %v3456 = vadd.f32 0.0, %v3455
        %v3457 = vpop.f32.mrf.mxu0
        %v3458 = vadd.f32 0.0, %v3457
        %3459 = vmatmul.bf16.gmra.mxu0 %v3371
        %v3460 = vpop.f32.mrf.mxu0
        %v3461 = vadd.f32 0.0, %v3460
        %v3462 = vpop.f32.mrf.mxu0
        %v3463 = vadd.f32 0.0, %v3462
        %3464 = vdwg.mxu0
        %v3465 = vadd.f32 %v3091, %v3386
        %v3466 = vadd.f32 %v3092, %v3388
        %v3467 = vadd.f32 %v3093, %v3391
        %v3468 = vadd.f32 %v3094, %v3393
        %v3469 = vadd.f32 %v3095, %v3396
        %v3470 = vadd.f32 %v3096, %v3398
        %v3471 = vadd.f32 %v3097, %v3401
        %v3472 = vadd.f32 %v3098, %v3403
        %v3473 = vadd.f32 %v3099, %v3406
        %v3474 = vadd.f32 %v3100, %v3408
        %v3475 = vadd.f32 %v3101, %v3411
        %v3476 = vadd.f32 %v3102, %v3413
        %v3477 = vadd.f32 %v3103, %v3416
        %v3478 = vadd.f32 %v3104, %v3418
        %v3479 = vadd.f32 %v3105, %v3421
        %v3480 = vadd.f32 %v3106, %v3423
        %v3481 = vadd.f32 %v3107, %v3426
        %v3482 = vadd.f32 %v3108, %v3428
        %v3483 = vadd.f32 %v3109, %v3431
        %v3484 = vadd.f32 %v3110, %v3433
        %v3485 = vadd.f32 %v3111, %v3436
        %v3486 = vadd.f32 %v3112, %v3438
        %v3487 = vadd.f32 %v3113, %v3441
        %v3488 = vadd.f32 %v3114, %v3443
        %v3489 = vadd.f32 %v3115, %v3446
        %v3490 = vadd.f32 %v3116, %v3448
        %v3491 = vadd.f32 %v3117, %v3451
        %v3492 = vadd.f32 %v3118, %v3453
        %v3493 = vadd.f32 %v3119, %v3456
        %v3494 = vadd.f32 %v3120, %v3458
        %v3495 = vadd.f32 %v3121, %v3461
        %v3496 = vadd.f32 %v3122, %v3463
        %s3497 = sadd.s32 %s1053, 3
        %s3498 = smul.u32 %s3497, 5
        %s3499 = smul.addr %s3498, 4
        %s3500 = scalar_lea.vmem [#allocation2], %s3499
        %v3501 = vld [vmem:[%s3500] sm:$0xf]
        %v3502 = vld [vmem:[%s3500 + $0x4] sm:$0xf]
        %v3503 = vld [vmem:[%s3500 + $0x8] sm:$0xf]
        %v3504 = vld [vmem:[%s3500 + $0xc] sm:$0xf]
        %v3505 = vld [vmem:[%s3500 + $0x14] sm:$0xf]
        %v3506 = vld [vmem:[%s3500 + $0x18] sm:$0xf]
        %v3507 = vld [vmem:[%s3500 + $0x1c] sm:$0xf]
        %v3508 = vld [vmem:[%s3500 + $0x20] sm:$0xf]
        %v3509 = vld [vmem:[%s3500 + $0x28] sm:$0xf]
        %v3510 = vld [vmem:[%s3500 + $0x2c] sm:$0xf]
        %v3511 = vld [vmem:[%s3500 + $0x30] sm:$0xf]
        %v3512 = vld [vmem:[%s3500 + $0x34] sm:$0xf]
        %v3513 = vld [vmem:[%s3500 + $0x3c] sm:$0xf]
        %v3514 = vld [vmem:[%s3500 + $0x40] sm:$0xf]
        %v3515 = vld [vmem:[%s3500 + $0x44] sm:$0xf]
        %v3516 = vld [vmem:[%s3500 + $0x48] sm:$0xf]
        %v3517 = vld [vmem:[%s3500 + $0x50] sm:$0xf]
        %v3518 = vld [vmem:[%s3500 + $0x54] sm:$0xf]
        %v3519 = vld [vmem:[%s3500 + $0x58] sm:$0xf]
        %v3520 = vld [vmem:[%s3500 + $0x5c] sm:$0xf]
        %v3521 = vld [vmem:[%s3500 + $0x64] sm:$0xf]
        %v3522 = vld [vmem:[%s3500 + $0x68] sm:$0xf]
        %v3523 = vld [vmem:[%s3500 + $0x6c] sm:$0xf]
        %v3524 = vld [vmem:[%s3500 + $0x70] sm:$0xf]
        %v3525 = vld [vmem:[%s3500 + $0x78] sm:$0xf]
        %v3526 = vld [vmem:[%s3500 + $0x7c] sm:$0xf]
        %v3527 = vld [vmem:[%s3500 + $0x80] sm:$0xf]
        %v3528 = vld [vmem:[%s3500 + $0x84] sm:$0xf]
        %v3529 = vld [vmem:[%s3500 + $0x8c] sm:$0xf]
        %v3530 = vld [vmem:[%s3500 + $0x90] sm:$0xf]
        %v3531 = vld [vmem:[%s3500 + $0x94] sm:$0xf]
        %v3532 = vld [vmem:[%s3500 + $0x98] sm:$0xf]
        %s3533 = scalar_lea.vmem %s4, 24
        %v3534 = vld [vmem:[%s3533] sm:$0xf]
        %v3567 = vunpack.c.l.b16 %v3501
        %v3568 = vunpack.c.l.b16 %v3502
        %v3569 = vunpack.c.l.b16 %v3503
        %v3570 = vunpack.c.l.b16 %v3504
        %v3571 = vunpack.c.l.b16 %v3505
        %v3572 = vunpack.c.l.b16 %v3506
        %v3573 = vunpack.c.l.b16 %v3507
        %v3574 = vunpack.c.l.b16 %v3508
        %v3575 = vunpack.c.l.b16 %v3509
        %v3576 = vunpack.c.l.b16 %v3510
        %v3577 = vunpack.c.l.b16 %v3511
        %v3578 = vunpack.c.l.b16 %v3512
        %v3579 = vunpack.c.l.b16 %v3513
        %v3580 = vunpack.c.l.b16 %v3514
        %v3581 = vunpack.c.l.b16 %v3515
        %v3582 = vunpack.c.l.b16 %v3516
        %v3583 = vunpack.c.l.b16 %v3517
        %v3584 = vunpack.c.l.b16 %v3518
        %v3585 = vunpack.c.l.b16 %v3519
        %v3586 = vunpack.c.l.b16 %v3520
        %v3587 = vunpack.c.l.b16 %v3521
        %v3588 = vunpack.c.l.b16 %v3522
        %v3589 = vunpack.c.l.b16 %v3523
        %v3590 = vunpack.c.l.b16 %v3524
        %v3591 = vunpack.c.l.b16 %v3525
        %v3592 = vunpack.c.l.b16 %v3526
        %v3593 = vunpack.c.l.b16 %v3527
        %v3594 = vunpack.c.l.b16 %v3528
        %v3595 = vunpack.c.l.b16 %v3529
        %v3596 = vunpack.c.l.b16 %v3530
        %v3597 = vunpack.c.l.b16 %v3531
        %v3598 = vunpack.c.l.b16 %v3532
        %v3599 = vpack.c.b16 %v3568, %v3567
        %v3600 = vpack.c.b16 %v3570, %v3569
        %v3601 = vpack.c.b16 %v3572, %v3571
        %v3602 = vpack.c.b16 %v3574, %v3573
        %v3603 = vpack.c.b16 %v3576, %v3575
        %v3604 = vpack.c.b16 %v3578, %v3577
        %v3605 = vpack.c.b16 %v3580, %v3579
        %v3606 = vpack.c.b16 %v3582, %v3581
        %v3607 = vpack.c.b16 %v3584, %v3583
        %v3608 = vpack.c.b16 %v3586, %v3585
        %v3609 = vpack.c.b16 %v3588, %v3587
        %v3610 = vpack.c.b16 %v3590, %v3589
        %v3611 = vpack.c.b16 %v3592, %v3591
        %v3612 = vpack.c.b16 %v3594, %v3593
        %v3613 = vpack.c.b16 %v3596, %v3595
        %v3614 = vpack.c.b16 %v3598, %v3597
        %v3616 = vsel %vm1504, %v3599, 0
        %v3619 = vsel %vm1504, %v3600, 0
        %v3622 = vsel %vm1504, %v3601, 0
        %v3625 = vsel %vm1504, %v3602, 0
        %v3628 = vsel %vm1504, %v3603, 0
        %v3631 = vsel %vm1504, %v3604, 0
        %v3634 = vsel %vm1504, %v3605, 0
        %v3637 = vsel %vm1504, %v3606, 0
        %v3640 = vsel %vm1504, %v3607, 0
        %v3643 = vsel %vm1504, %v3608, 0
        %v3646 = vsel %vm1504, %v3609, 0
        %v3649 = vsel %vm1504, %v3610, 0
        %v3652 = vsel %vm1504, %v3611, 0
        %v3655 = vsel %vm1504, %v3612, 0
        %v3658 = vsel %vm1504, %v3613, 0
        %v3661 = vsel %vm1504, %v3614, 0
        %v3664 = vsel %vm1553, %v3534, 0
        %3666 = vmatpush.bf16.msra.mxu0 0
        %3667 = vmatpush.bf16.msra.mxu0 0
        %3668 = vmatpush.bf16.msra.mxu0 0
        %3669 = vmatpush.bf16.msra.mxu0 0
        %3670 = vmatpush.bf16.msra.mxu0 0
        %3671 = vmatpush.bf16.msra.mxu0 0
        %3672 = vmatpush.bf16.msra.mxu0 0
        %3673 = vmatpush.bf16.msra.mxu0 %v3664
        %3674 = vmatmul.bf16.gmra.mxu0 %v3616
        %v3675 = vpop.f32.mrf.mxu0
        %v3676 = vadd.f32 0.0, %v3675
        %v3677 = vpop.f32.mrf.mxu0
        %v3678 = vadd.f32 0.0, %v3677
        %3679 = vmatmul.bf16.gmra.mxu0 %v3619
        %v3680 = vpop.f32.mrf.mxu0
        %v3681 = vadd.f32 0.0, %v3680
        %v3682 = vpop.f32.mrf.mxu0
        %v3683 = vadd.f32 0.0, %v3682
        %3684 = vmatmul.bf16.gmra.mxu0 %v3622
        %v3685 = vpop.f32.mrf.mxu0
        %v3686 = vadd.f32 0.0, %v3685
        %v3687 = vpop.f32.mrf.mxu0
        %v3688 = vadd.f32 0.0, %v3687
        %3689 = vmatmul.bf16.gmra.mxu0 %v3625
        %v3690 = vpop.f32.mrf.mxu0
        %v3691 = vadd.f32 0.0, %v3690
        %v3692 = vpop.f32.mrf.mxu0
        %v3693 = vadd.f32 0.0, %v3692
        %3694 = vmatmul.bf16.gmra.mxu0 %v3628
        %v3695 = vpop.f32.mrf.mxu0
        %v3696 = vadd.f32 0.0, %v3695
        %v3697 = vpop.f32.mrf.mxu0
        %v3698 = vadd.f32 0.0, %v3697
        %3699 = vmatmul.bf16.gmra.mxu0 %v3631
        %v3700 = vpop.f32.mrf.mxu0
        %v3701 = vadd.f32 0.0, %v3700
        %v3702 = vpop.f32.mrf.mxu0
        %v3703 = vadd.f32 0.0, %v3702
        %3704 = vmatmul.bf16.gmra.mxu0 %v3634
        %v3705 = vpop.f32.mrf.mxu0
        %v3706 = vadd.f32 0.0, %v3705
        %v3707 = vpop.f32.mrf.mxu0
        %v3708 = vadd.f32 0.0, %v3707
        %3709 = vmatmul.bf16.gmra.mxu0 %v3637
        %v3710 = vpop.f32.mrf.mxu0
        %v3711 = vadd.f32 0.0, %v3710
        %v3712 = vpop.f32.mrf.mxu0
        %v3713 = vadd.f32 0.0, %v3712
        %3714 = vmatmul.bf16.gmra.mxu0 %v3640
        %v3715 = vpop.f32.mrf.mxu0
        %v3716 = vadd.f32 0.0, %v3715
        %v3717 = vpop.f32.mrf.mxu0
        %v3718 = vadd.f32 0.0, %v3717
        %3719 = vmatmul.bf16.gmra.mxu0 %v3643
        %v3720 = vpop.f32.mrf.mxu0
        %v3721 = vadd.f32 0.0, %v3720
        %v3722 = vpop.f32.mrf.mxu0
        %v3723 = vadd.f32 0.0, %v3722
        %3724 = vmatmul.bf16.gmra.mxu0 %v3646
        %v3725 = vpop.f32.mrf.mxu0
        %v3726 = vadd.f32 0.0, %v3725
        %v3727 = vpop.f32.mrf.mxu0
        %v3728 = vadd.f32 0.0, %v3727
        %3729 = vmatmul.bf16.gmra.mxu0 %v3649
        %v3730 = vpop.f32.mrf.mxu0
        %v3731 = vadd.f32 0.0, %v3730
        %v3732 = vpop.f32.mrf.mxu0
        %v3733 = vadd.f32 0.0, %v3732
        %3734 = vmatmul.bf16.gmra.mxu0 %v3652
        %v3735 = vpop.f32.mrf.mxu0
        %v3736 = vadd.f32 0.0, %v3735
        %v3737 = vpop.f32.mrf.mxu0
        %v3738 = vadd.f32 0.0, %v3737
        %3739 = vmatmul.bf16.gmra.mxu0 %v3655
        %v3740 = vpop.f32.mrf.mxu0
        %v3741 = vadd.f32 0.0, %v3740
        %v3742 = vpop.f32.mrf.mxu0
        %v3743 = vadd.f32 0.0, %v3742
        %3744 = vmatmul.bf16.gmra.mxu0 %v3658
        %v3745 = vpop.f32.mrf.mxu0
        %v3746 = vadd.f32 0.0, %v3745
        %v3747 = vpop.f32.mrf.mxu0
        %v3748 = vadd.f32 0.0, %v3747
        %3749 = vmatmul.bf16.gmra.mxu0 %v3661
        %v3750 = vpop.f32.mrf.mxu0
        %v3751 = vadd.f32 0.0, %v3750
        %v3752 = vpop.f32.mrf.mxu0
        %v3753 = vadd.f32 0.0, %v3752
        %3754 = vdwg.mxu0
        %v3755 = vadd.f32 %v3465, %v3676
        %v3756 = vadd.f32 %v3466, %v3678
        %v3757 = vadd.f32 %v3467, %v3681
        %v3758 = vadd.f32 %v3468, %v3683
        %v3759 = vadd.f32 %v3469, %v3686
        %v3760 = vadd.f32 %v3470, %v3688
        %v3761 = vadd.f32 %v3471, %v3691
        %v3762 = vadd.f32 %v3472, %v3693
        %v3763 = vadd.f32 %v3473, %v3696
        %v3764 = vadd.f32 %v3474, %v3698
        %v3765 = vadd.f32 %v3475, %v3701
        %v3766 = vadd.f32 %v3476, %v3703
        %v3767 = vadd.f32 %v3477, %v3706
        %v3768 = vadd.f32 %v3478, %v3708
        %v3769 = vadd.f32 %v3479, %v3711
        %v3770 = vadd.f32 %v3480, %v3713
        %v3771 = vadd.f32 %v3481, %v3716
        %v3772 = vadd.f32 %v3482, %v3718
        %v3773 = vadd.f32 %v3483, %v3721
        %v3774 = vadd.f32 %v3484, %v3723
        %v3775 = vadd.f32 %v3485, %v3726
        %v3776 = vadd.f32 %v3486, %v3728
        %v3777 = vadd.f32 %v3487, %v3731
        %v3778 = vadd.f32 %v3488, %v3733
        %v3779 = vadd.f32 %v3489, %v3736
        %v3780 = vadd.f32 %v3490, %v3738
        %v3781 = vadd.f32 %v3491, %v3741
        %v3782 = vadd.f32 %v3492, %v3743
        %v3783 = vadd.f32 %v3493, %v3746
        %v3784 = vadd.f32 %v3494, %v3748
        %v3785 = vadd.f32 %v3495, %v3751
        %v3786 = vadd.f32 %v3496, %v3753
        %v3787 = vld [vmem:[%s3500] sm:$0xf]
        %v3788 = vld [vmem:[%s3500 + $0x4] sm:$0xf]
        %v3789 = vld [vmem:[%s3500 + $0x8] sm:$0xf]
        %v3790 = vld [vmem:[%s3500 + $0xc] sm:$0xf]
        %v3791 = vld [vmem:[%s3500 + $0x10] sm:$0x1]
        %v3792 = vld [vmem:[%s3500 + $0x14] sm:$0xf]
        %v3793 = vld [vmem:[%s3500 + $0x18] sm:$0xf]
        %v3794 = vld [vmem:[%s3500 + $0x1c] sm:$0xf]
        %v3795 = vld [vmem:[%s3500 + $0x20] sm:$0xf]
        %v3796 = vld [vmem:[%s3500 + $0x24] sm:$0x1]
        %v3797 = vld [vmem:[%s3500 + $0x28] sm:$0xf]
        %v3798 = vld [vmem:[%s3500 + $0x2c] sm:$0xf]
        %v3799 = vld [vmem:[%s3500 + $0x30] sm:$0xf]
        %v3800 = vld [vmem:[%s3500 + $0x34] sm:$0xf]
        %v3801 = vld [vmem:[%s3500 + $0x38] sm:$0x1]
        %v3802 = vld [vmem:[%s3500 + $0x3c] sm:$0xf]
        %v3803 = vld [vmem:[%s3500 + $0x40] sm:$0xf]
        %v3804 = vld [vmem:[%s3500 + $0x44] sm:$0xf]
        %v3805 = vld [vmem:[%s3500 + $0x48] sm:$0xf]
        %v3806 = vld [vmem:[%s3500 + $0x4c] sm:$0x1]
        %v3807 = vld [vmem:[%s3500 + $0x50] sm:$0xf]
        %v3808 = vld [vmem:[%s3500 + $0x54] sm:$0xf]
        %v3809 = vld [vmem:[%s3500 + $0x58] sm:$0xf]
        %v3810 = vld [vmem:[%s3500 + $0x5c] sm:$0xf]
        %v3811 = vld [vmem:[%s3500 + $0x60] sm:$0x1]
        %v3812 = vld [vmem:[%s3500 + $0x64] sm:$0xf]
        %v3813 = vld [vmem:[%s3500 + $0x68] sm:$0xf]
        %v3814 = vld [vmem:[%s3500 + $0x6c] sm:$0xf]
        %v3815 = vld [vmem:[%s3500 + $0x70] sm:$0xf]
        %v3816 = vld [vmem:[%s3500 + $0x74] sm:$0x1]
        %v3817 = vld [vmem:[%s3500 + $0x78] sm:$0xf]
        %v3818 = vld [vmem:[%s3500 + $0x7c] sm:$0xf]
        %v3819 = vld [vmem:[%s3500 + $0x80] sm:$0xf]
        %v3820 = vld [vmem:[%s3500 + $0x84] sm:$0xf]
        %v3821 = vld [vmem:[%s3500 + $0x88] sm:$0x1]
        %v3822 = vld [vmem:[%s3500 + $0x8c] sm:$0xf]
        %v3823 = vld [vmem:[%s3500 + $0x90] sm:$0xf]
        %v3824 = vld [vmem:[%s3500 + $0x94] sm:$0xf]
        %v3825 = vld [vmem:[%s3500 + $0x98] sm:$0xf]
        %v3826 = vld [vmem:[%s3500 + $0x9c] sm:$0x1]
        %v3828 = vshrl.u32 %v3787, 16
        %v3830 = vrot.slane %v3828, 4
        %v3831 = vshll.u32 %v3787, 16
        %v3833 = vrot.slane %v3831, 5
        %v3834 = vor.u32 %v3830, %v3833
        %v3835 = vrot.slane %v3834, 4
        %v3837 = vshll.u32 %v3788, 16
        %v3839 = vrot.slane %v3837, 5
        %v3840 = vsel %vm1101, %v3835, %v3839
        %v3841 = vshrl.u32 %v3788, 16
        %v3843 = vrot.slane %v3841, 4
        %v3844 = vor.u32 %v3843, %v3839
        %v3845 = vrot.slane %v3844, 4
        %v3847 = vshll.u32 %v3789, 16
        %v3849 = vrot.slane %v3847, 5
        %v3850 = vsel %vm1101, %v3845, %v3849
        %v3851 = vshrl.u32 %v3789, 16
        %v3853 = vrot.slane %v3851, 4
        %v3854 = vor.u32 %v3853, %v3849
        %v3855 = vrot.slane %v3854, 4
        %v3857 = vshll.u32 %v3790, 16
        %v3859 = vrot.slane %v3857, 5
        %v3860 = vsel %vm1101, %v3855, %v3859
        %v3861 = vshrl.u32 %v3790, 16
        %v3863 = vrot.slane %v3861, 4
        %v3864 = vor.u32 %v3863, %v3859
        %v3865 = vrot.slane %v3864, 4
        %v3867 = vshll.u32 %v3791, 16
        %v3869 = vrot.slane %v3867, 5
        %v3870 = vsel %vm1101, %v3865, %v3869
        %v3872 = vshrl.u32 %v3792, 16
        %v3874 = vrot.slane %v3872, 4
        %v3875 = vshll.u32 %v3792, 16
        %v3877 = vrot.slane %v3875, 5
        %v3878 = vor.u32 %v3874, %v3877
        %v3879 = vrot.slane %v3878, 4
        %v3881 = vshll.u32 %v3793, 16
        %v3883 = vrot.slane %v3881, 5
        %v3884 = vsel %vm1101, %v3879, %v3883
        %v3885 = vshrl.u32 %v3793, 16
        %v3887 = vrot.slane %v3885, 4
        %v3888 = vor.u32 %v3887, %v3883
        %v3889 = vrot.slane %v3888, 4
        %v3891 = vshll.u32 %v3794, 16
        %v3893 = vrot.slane %v3891, 5
        %v3894 = vsel %vm1101, %v3889, %v3893
        %v3895 = vshrl.u32 %v3794, 16
        %v3897 = vrot.slane %v3895, 4
        %v3898 = vor.u32 %v3897, %v3893
        %v3899 = vrot.slane %v3898, 4
        %v3901 = vshll.u32 %v3795, 16
        %v3903 = vrot.slane %v3901, 5
        %v3904 = vsel %vm1101, %v3899, %v3903
        %v3905 = vshrl.u32 %v3795, 16
        %v3907 = vrot.slane %v3905, 4
        %v3908 = vor.u32 %v3907, %v3903
        %v3909 = vrot.slane %v3908, 4
        %v3911 = vshll.u32 %v3796, 16
        %v3913 = vrot.slane %v3911, 5
        %v3914 = vsel %vm1101, %v3909, %v3913
        %v3916 = vshrl.u32 %v3797, 16
        %v3918 = vrot.slane %v3916, 4
        %v3919 = vshll.u32 %v3797, 16
        %v3921 = vrot.slane %v3919, 5
        %v3922 = vor.u32 %v3918, %v3921
        %v3923 = vrot.slane %v3922, 4
        %v3925 = vshll.u32 %v3798, 16
        %v3927 = vrot.slane %v3925, 5
        %v3928 = vsel %vm1101, %v3923, %v3927
        %v3929 = vshrl.u32 %v3798, 16
        %v3931 = vrot.slane %v3929, 4
        %v3932 = vor.u32 %v3931, %v3927
        %v3933 = vrot.slane %v3932, 4
        %v3935 = vshll.u32 %v3799, 16
        %v3937 = vrot.slane %v3935, 5
        %v3938 = vsel %vm1101, %v3933, %v3937
        %v3939 = vshrl.u32 %v3799, 16
        %v3941 = vrot.slane %v3939, 4
        %v3942 = vor.u32 %v3941, %v3937
        %v3943 = vrot.slane %v3942, 4
        %v3945 = vshll.u32 %v3800, 16
        %v3947 = vrot.slane %v3945, 5
        %v3948 = vsel %vm1101, %v3943, %v3947
        %v3949 = vshrl.u32 %v3800, 16
        %v3951 = vrot.slane %v3949, 4
        %v3952 = vor.u32 %v3951, %v3947
        %v3953 = vrot.slane %v3952, 4
        %v3955 = vshll.u32 %v3801, 16
        %v3957 = vrot.slane %v3955, 5
        %v3958 = vsel %vm1101, %v3953, %v3957
        %v3960 = vshrl.u32 %v3802, 16
        %v3962 = vrot.slane %v3960, 4
        %v3963 = vshll.u32 %v3802, 16
        %v3965 = vrot.slane %v3963, 5
        %v3966 = vor.u32 %v3962, %v3965
        %v3967 = vrot.slane %v3966, 4
        %v3969 = vshll.u32 %v3803, 16
        %v3971 = vrot.slane %v3969, 5
        %v3972 = vsel %vm1101, %v3967, %v3971
        %v3973 = vshrl.u32 %v3803, 16
        %v3975 = vrot.slane %v3973, 4
        %v3976 = vor.u32 %v3975, %v3971
        %v3977 = vrot.slane %v3976, 4
        %v3979 = vshll.u32 %v3804, 16
        %v3981 = vrot.slane %v3979, 5
        %v3982 = vsel %vm1101, %v3977, %v3981
        %v3983 = vshrl.u32 %v3804, 16
        %v3985 = vrot.slane %v3983, 4
        %v3986 = vor.u32 %v3985, %v3981
        %v3987 = vrot.slane %v3986, 4
        %v3989 = vshll.u32 %v3805, 16
        %v3991 = vrot.slane %v3989, 5
        %v3992 = vsel %vm1101, %v3987, %v3991
        %v3993 = vshrl.u32 %v3805, 16
        %v3995 = vrot.slane %v3993, 4
        %v3996 = vor.u32 %v3995, %v3991
        %v3997 = vrot.slane %v3996, 4
        %v3999 = vshll.u32 %v3806, 16
        %v4001 = vrot.slane %v3999, 5
        %v4002 = vsel %vm1101, %v3997, %v4001
        %v4004 = vshrl.u32 %v3807, 16
        %v4006 = vrot.slane %v4004, 4
        %v4007 = vshll.u32 %v3807, 16
        %v4009 = vrot.slane %v4007, 5
        %v4010 = vor.u32 %v4006, %v4009
        %v4011 = vrot.slane %v4010, 4
        %v4013 = vshll.u32 %v3808, 16
        %v4015 = vrot.slane %v4013, 5
        %v4016 = vsel %vm1101, %v4011, %v4015
        %v4017 = vshrl.u32 %v3808, 16
        %v4019 = vrot.slane %v4017, 4
        %v4020 = vor.u32 %v4019, %v4015
        %v4021 = vrot.slane %v4020, 4
        %v4023 = vshll.u32 %v3809, 16
        %v4025 = vrot.slane %v4023, 5
        %v4026 = vsel %vm1101, %v4021, %v4025
        %v4027 = vshrl.u32 %v3809, 16
        %v4029 = vrot.slane %v4027, 4
        %v4030 = vor.u32 %v4029, %v4025
        %v4031 = vrot.slane %v4030, 4
        %v4033 = vshll.u32 %v3810, 16
        %v4035 = vrot.slane %v4033, 5
        %v4036 = vsel %vm1101, %v4031, %v4035
        %v4037 = vshrl.u32 %v3810, 16
        %v4039 = vrot.slane %v4037, 4
        %v4040 = vor.u32 %v4039, %v4035
        %v4041 = vrot.slane %v4040, 4
        %v4043 = vshll.u32 %v3811, 16
        %v4045 = vrot.slane %v4043, 5
        %v4046 = vsel %vm1101, %v4041, %v4045
        %v4048 = vshrl.u32 %v3812, 16
        %v4050 = vrot.slane %v4048, 4
        %v4051 = vshll.u32 %v3812, 16
        %v4053 = vrot.slane %v4051, 5
        %v4054 = vor.u32 %v4050, %v4053
        %v4055 = vrot.slane %v4054, 4
        %v4057 = vshll.u32 %v3813, 16
        %v4059 = vrot.slane %v4057, 5
        %v4060 = vsel %vm1101, %v4055, %v4059
        %v4061 = vshrl.u32 %v3813, 16
        %v4063 = vrot.slane %v4061, 4
        %v4064 = vor.u32 %v4063, %v4059
        %v4065 = vrot.slane %v4064, 4
        %v4067 = vshll.u32 %v3814, 16
        %v4069 = vrot.slane %v4067, 5
        %v4070 = vsel %vm1101, %v4065, %v4069
        %v4071 = vshrl.u32 %v3814, 16
        %v4073 = vrot.slane %v4071, 4
        %v4074 = vor.u32 %v4073, %v4069
        %v4075 = vrot.slane %v4074, 4
        %v4077 = vshll.u32 %v3815, 16
        %v4079 = vrot.slane %v4077, 5
        %v4080 = vsel %vm1101, %v4075, %v4079
        %v4081 = vshrl.u32 %v3815, 16
        %v4083 = vrot.slane %v4081, 4
        %v4084 = vor.u32 %v4083, %v4079
        %v4085 = vrot.slane %v4084, 4
        %v4087 = vshll.u32 %v3816, 16
        %v4089 = vrot.slane %v4087, 5
        %v4090 = vsel %vm1101, %v4085, %v4089
        %v4092 = vshrl.u32 %v3817, 16
        %v4094 = vrot.slane %v4092, 4
        %v4095 = vshll.u32 %v3817, 16
        %v4097 = vrot.slane %v4095, 5
        %v4098 = vor.u32 %v4094, %v4097
        %v4099 = vrot.slane %v4098, 4
        %v4101 = vshll.u32 %v3818, 16
        %v4103 = vrot.slane %v4101, 5
        %v4104 = vsel %vm1101, %v4099, %v4103
        %v4105 = vshrl.u32 %v3818, 16
        %v4107 = vrot.slane %v4105, 4
        %v4108 = vor.u32 %v4107, %v4103
        %v4109 = vrot.slane %v4108, 4
        %v4111 = vshll.u32 %v3819, 16
        %v4113 = vrot.slane %v4111, 5
        %v4114 = vsel %vm1101, %v4109, %v4113
        %v4115 = vshrl.u32 %v3819, 16
        %v4117 = vrot.slane %v4115, 4
        %v4118 = vor.u32 %v4117, %v4113
        %v4119 = vrot.slane %v4118, 4
        %v4121 = vshll.u32 %v3820, 16
        %v4123 = vrot.slane %v4121, 5
        %v4124 = vsel %vm1101, %v4119, %v4123
        %v4125 = vshrl.u32 %v3820, 16
        %v4127 = vrot.slane %v4125, 4
        %v4128 = vor.u32 %v4127, %v4123
        %v4129 = vrot.slane %v4128, 4
        %v4131 = vshll.u32 %v3821, 16
        %v4133 = vrot.slane %v4131, 5
        %v4134 = vsel %vm1101, %v4129, %v4133
        %v4136 = vshrl.u32 %v3822, 16
        %v4138 = vrot.slane %v4136, 4
        %v4139 = vshll.u32 %v3822, 16
        %v4141 = vrot.slane %v4139, 5
        %v4142 = vor.u32 %v4138, %v4141
        %v4143 = vrot.slane %v4142, 4
        %v4145 = vshll.u32 %v3823, 16
        %v4147 = vrot.slane %v4145, 5
        %v4148 = vsel %vm1101, %v4143, %v4147
        %v4149 = vshrl.u32 %v3823, 16
        %v4151 = vrot.slane %v4149, 4
        %v4152 = vor.u32 %v4151, %v4147
        %v4153 = vrot.slane %v4152, 4
        %v4155 = vshll.u32 %v3824, 16
        %v4157 = vrot.slane %v4155, 5
        %v4158 = vsel %vm1101, %v4153, %v4157
        %v4159 = vshrl.u32 %v3824, 16
        %v4161 = vrot.slane %v4159, 4
        %v4162 = vor.u32 %v4161, %v4157
        %v4163 = vrot.slane %v4162, 4
        %v4165 = vshll.u32 %v3825, 16
        %v4167 = vrot.slane %v4165, 5
        %v4168 = vsel %vm1101, %v4163, %v4167
        %v4169 = vshrl.u32 %v3825, 16
        %v4171 = vrot.slane %v4169, 4
        %v4172 = vor.u32 %v4171, %v4167
        %v4173 = vrot.slane %v4172, 4
        %v4175 = vshll.u32 %v3826, 16
        %v4177 = vrot.slane %v4175, 5
        %v4178 = vsel %vm1101, %v4173, %v4177
        %s4179 = scalar_lea.vmem %s4, 28
        %v4180 = vld [vmem:[%s4179] sm:$0xf]
        %v4181 = vunpack.c.l.b16 %v3840
        %v4182 = vunpack.c.l.b16 %v3850
        %v4183 = vunpack.c.l.b16 %v3860
        %v4184 = vunpack.c.l.b16 %v3870
        %v4185 = vunpack.c.l.b16 %v3884
        %v4186 = vunpack.c.l.b16 %v3894
        %v4187 = vunpack.c.l.b16 %v3904
        %v4188 = vunpack.c.l.b16 %v3914
        %v4189 = vunpack.c.l.b16 %v3928
        %v4190 = vunpack.c.l.b16 %v3938
        %v4191 = vunpack.c.l.b16 %v3948
        %v4192 = vunpack.c.l.b16 %v3958
        %v4193 = vunpack.c.l.b16 %v3972
        %v4194 = vunpack.c.l.b16 %v3982
        %v4195 = vunpack.c.l.b16 %v3992
        %v4196 = vunpack.c.l.b16 %v4002
        %v4197 = vunpack.c.l.b16 %v4016
        %v4198 = vunpack.c.l.b16 %v4026
        %v4199 = vunpack.c.l.b16 %v4036
        %v4200 = vunpack.c.l.b16 %v4046
        %v4201 = vunpack.c.l.b16 %v4060
        %v4202 = vunpack.c.l.b16 %v4070
        %v4203 = vunpack.c.l.b16 %v4080
        %v4204 = vunpack.c.l.b16 %v4090
        %v4205 = vunpack.c.l.b16 %v4104
        %v4206 = vunpack.c.l.b16 %v4114
        %v4207 = vunpack.c.l.b16 %v4124
        %v4208 = vunpack.c.l.b16 %v4134
        %v4209 = vunpack.c.l.b16 %v4148
        %v4210 = vunpack.c.l.b16 %v4158
        %v4211 = vunpack.c.l.b16 %v4168
        %v4212 = vunpack.c.l.b16 %v4178
        %v4213 = vpack.c.b16 %v4182, %v4181
        %v4214 = vpack.c.b16 %v4184, %v4183
        %v4215 = vpack.c.b16 %v4186, %v4185
        %v4216 = vpack.c.b16 %v4188, %v4187
        %v4217 = vpack.c.b16 %v4190, %v4189
        %v4218 = vpack.c.b16 %v4192, %v4191
        %v4219 = vpack.c.b16 %v4194, %v4193
        %v4220 = vpack.c.b16 %v4196, %v4195
        %v4221 = vpack.c.b16 %v4198, %v4197
        %v4222 = vpack.c.b16 %v4200, %v4199
        %v4223 = vpack.c.b16 %v4202, %v4201
        %v4224 = vpack.c.b16 %v4204, %v4203
        %v4225 = vpack.c.b16 %v4206, %v4205
        %v4226 = vpack.c.b16 %v4208, %v4207
        %v4227 = vpack.c.b16 %v4210, %v4209
        %v4228 = vpack.c.b16 %v4212, %v4211
        %v4230 = vsel %vm1504, %v4213, 0
        %v4233 = vsel %vm1504, %v4214, 0
        %v4236 = vsel %vm1504, %v4215, 0
        %v4239 = vsel %vm1504, %v4216, 0
        %v4242 = vsel %vm1504, %v4217, 0
        %v4245 = vsel %vm1504, %v4218, 0
        %v4248 = vsel %vm1504, %v4219, 0
        %v4251 = vsel %vm1504, %v4220, 0
        %v4254 = vsel %vm1504, %v4221, 0
        %v4257 = vsel %vm1504, %v4222, 0
        %v4260 = vsel %vm1504, %v4223, 0
        %v4263 = vsel %vm1504, %v4224, 0
        %v4266 = vsel %vm1504, %v4225, 0
        %v4269 = vsel %vm1504, %v4226, 0
        %v4272 = vsel %vm1504, %v4227, 0
        %v4275 = vsel %vm1504, %v4228, 0
        %v4278 = vsel %vm1553, %v4180, 0
        %4280 = vmatpush.bf16.msra.mxu0 0
        %4281 = vmatpush.bf16.msra.mxu0 0
        %4282 = vmatpush.bf16.msra.mxu0 0
        %4283 = vmatpush.bf16.msra.mxu0 0
        %4284 = vmatpush.bf16.msra.mxu0 0
        %4285 = vmatpush.bf16.msra.mxu0 0
        %4286 = vmatpush.bf16.msra.mxu0 0
        %4287 = vmatpush.bf16.msra.mxu0 %v4278
        %4288 = vmatmul.bf16.gmra.mxu0 %v4230
        %v4289 = vpop.f32.mrf.mxu0
        %v4290 = vadd.f32 0.0, %v4289
        %v4291 = vpop.f32.mrf.mxu0
        %v4292 = vadd.f32 0.0, %v4291
        %4293 = vmatmul.bf16.gmra.mxu0 %v4233
        %v4294 = vpop.f32.mrf.mxu0
        %v4295 = vadd.f32 0.0, %v4294
        %v4296 = vpop.f32.mrf.mxu0
        %v4297 = vadd.f32 0.0, %v4296
        %4298 = vmatmul.bf16.gmra.mxu0 %v4236
        %v4299 = vpop.f32.mrf.mxu0
        %v4300 = vadd.f32 0.0, %v4299
        %v4301 = vpop.f32.mrf.mxu0
        %v4302 = vadd.f32 0.0, %v4301
        %4303 = vmatmul.bf16.gmra.mxu0 %v4239
        %v4304 = vpop.f32.mrf.mxu0
        %v4305 = vadd.f32 0.0, %v4304
        %v4306 = vpop.f32.mrf.mxu0
        %v4307 = vadd.f32 0.0, %v4306
        %4308 = vmatmul.bf16.gmra.mxu0 %v4242
        %v4309 = vpop.f32.mrf.mxu0
        %v4310 = vadd.f32 0.0, %v4309
        %v4311 = vpop.f32.mrf.mxu0
        %v4312 = vadd.f32 0.0, %v4311
        %4313 = vmatmul.bf16.gmra.mxu0 %v4245
        %v4314 = vpop.f32.mrf.mxu0
        %v4315 = vadd.f32 0.0, %v4314
        %v4316 = vpop.f32.mrf.mxu0
        %v4317 = vadd.f32 0.0, %v4316
        %4318 = vmatmul.bf16.gmra.mxu0 %v4248
        %v4319 = vpop.f32.mrf.mxu0
        %v4320 = vadd.f32 0.0, %v4319
        %v4321 = vpop.f32.mrf.mxu0
        %v4322 = vadd.f32 0.0, %v4321
        %4323 = vmatmul.bf16.gmra.mxu0 %v4251
        %v4324 = vpop.f32.mrf.mxu0
        %v4325 = vadd.f32 0.0, %v4324
        %v4326 = vpop.f32.mrf.mxu0
        %v4327 = vadd.f32 0.0, %v4326
        %4328 = vmatmul.bf16.gmra.mxu0 %v4254
        %v4329 = vpop.f32.mrf.mxu0
        %v4330 = vadd.f32 0.0, %v4329
        %v4331 = vpop.f32.mrf.mxu0
        %v4332 = vadd.f32 0.0, %v4331
        %4333 = vmatmul.bf16.gmra.mxu0 %v4257
        %v4334 = vpop.f32.mrf.mxu0
        %v4335 = vadd.f32 0.0, %v4334
        %v4336 = vpop.f32.mrf.mxu0
        %v4337 = vadd.f32 0.0, %v4336
        %4338 = vmatmul.bf16.gmra.mxu0 %v4260
        %v4339 = vpop.f32.mrf.mxu0
        %v4340 = vadd.f32 0.0, %v4339
        %v4341 = vpop.f32.mrf.mxu0
        %v4342 = vadd.f32 0.0, %v4341
        %4343 = vmatmul.bf16.gmra.mxu0 %v4263
        %v4344 = vpop.f32.mrf.mxu0
        %v4345 = vadd.f32 0.0, %v4344
        %v4346 = vpop.f32.mrf.mxu0
        %v4347 = vadd.f32 0.0, %v4346
        %4348 = vmatmul.bf16.gmra.mxu0 %v4266
        %v4349 = vpop.f32.mrf.mxu0
        %v4350 = vadd.f32 0.0, %v4349
        %v4351 = vpop.f32.mrf.mxu0
        %v4352 = vadd.f32 0.0, %v4351
        %4353 = vmatmul.bf16.gmra.mxu0 %v4269
        %v4354 = vpop.f32.mrf.mxu0
        %v4355 = vadd.f32 0.0, %v4354
        %v4356 = vpop.f32.mrf.mxu0
        %v4357 = vadd.f32 0.0, %v4356
        %4358 = vmatmul.bf16.gmra.mxu0 %v4272
        %v4359 = vpop.f32.mrf.mxu0
        %v4360 = vadd.f32 0.0, %v4359
        %v4361 = vpop.f32.mrf.mxu0
        %v4362 = vadd.f32 0.0, %v4361
        %4363 = vmatmul.bf16.gmra.mxu0 %v4275
        %v4364 = vpop.f32.mrf.mxu0
        %v4365 = vadd.f32 0.0, %v4364
        %v4366 = vpop.f32.mrf.mxu0
        %v4367 = vadd.f32 0.0, %v4366
        %4368 = vdwg.mxu0
        %v4369 = vadd.f32 %v3755, %v4290
        %v4370 = vadd.f32 %v3756, %v4292
        %v4371 = vadd.f32 %v3757, %v4295
        %v4372 = vadd.f32 %v3758, %v4297
        %v4373 = vadd.f32 %v3759, %v4300
        %v4374 = vadd.f32 %v3760, %v4302
        %v4375 = vadd.f32 %v3761, %v4305
        %v4376 = vadd.f32 %v3762, %v4307
        %v4377 = vadd.f32 %v3763, %v4310
        %v4378 = vadd.f32 %v3764, %v4312
        %v4379 = vadd.f32 %v3765, %v4315
        %v4380 = vadd.f32 %v3766, %v4317
        %v4381 = vadd.f32 %v3767, %v4320
        %v4382 = vadd.f32 %v3768, %v4322
        %v4383 = vadd.f32 %v3769, %v4325
        %v4384 = vadd.f32 %v3770, %v4327
        %v4385 = vadd.f32 %v3771, %v4330
        %v4386 = vadd.f32 %v3772, %v4332
        %v4387 = vadd.f32 %v3773, %v4335
        %v4388 = vadd.f32 %v3774, %v4337
        %v4389 = vadd.f32 %v3775, %v4340
        %v4390 = vadd.f32 %v3776, %v4342
        %v4391 = vadd.f32 %v3777, %v4345
        %v4392 = vadd.f32 %v3778, %v4347
        %v4393 = vadd.f32 %v3779, %v4350
        %v4394 = vadd.f32 %v3780, %v4352
        %v4395 = vadd.f32 %v3781, %v4355
        %v4396 = vadd.f32 %v3782, %v4357
        %v4397 = vadd.f32 %v3783, %v4360
        %v4398 = vadd.f32 %v3784, %v4362
        %v4399 = vadd.f32 %v3785, %v4365
        %v4400 = vadd.f32 %v3786, %v4367
        %v4401 = vld [vmem:[%s3500] sm:$0xe]
        %v4402 = vld [vmem:[%s3500 + $0x14] sm:$0xe]
        %v4403 = vld [vmem:[%s3500 + $0x28] sm:$0xe]
        %v4404 = vld [vmem:[%s3500 + $0x3c] sm:$0xe]
        %v4405 = vld [vmem:[%s3500 + $0x50] sm:$0xe]
        %v4406 = vld [vmem:[%s3500 + $0x64] sm:$0xe]
        %v4407 = vld [vmem:[%s3500 + $0x78] sm:$0xe]
        %v4408 = vld [vmem:[%s3500 + $0x8c] sm:$0xe]
        %v4449 = vrot.slane %v4401, 5
        %v4450 = vrot.slane %v4449, 4
        %v4451 = vrot.slane %v3788, 5
        %v4452 = vsel %vm1892, %v4450, %v4451
        %v4453 = vrot.slane %v4451, 4
        %v4454 = vrot.slane %v3789, 5
        %v4455 = vsel %vm1892, %v4453, %v4454
        %v4456 = vrot.slane %v4454, 4
        %v4457 = vrot.slane %v3790, 5
        %v4458 = vsel %vm1892, %v4456, %v4457
        %v4459 = vrot.slane %v4457, 4
        %v4460 = vrot.slane %v3791, 5
        %v4461 = vsel %vm1892, %v4459, %v4460
        %v4462 = vrot.slane %v4402, 5
        %v4463 = vrot.slane %v4462, 4
        %v4464 = vrot.slane %v3793, 5
        %v4465 = vsel %vm1892, %v4463, %v4464
        %v4466 = vrot.slane %v4464, 4
        %v4467 = vrot.slane %v3794, 5
        %v4468 = vsel %vm1892, %v4466, %v4467
        %v4469 = vrot.slane %v4467, 4
        %v4470 = vrot.slane %v3795, 5
        %v4471 = vsel %vm1892, %v4469, %v4470
        %v4472 = vrot.slane %v4470, 4
        %v4473 = vrot.slane %v3796, 5
        %v4474 = vsel %vm1892, %v4472, %v4473
        %v4475 = vrot.slane %v4403, 5
        %v4476 = vrot.slane %v4475, 4
        %v4477 = vrot.slane %v3798, 5
        %v4478 = vsel %vm1892, %v4476, %v4477
        %v4479 = vrot.slane %v4477, 4
        %v4480 = vrot.slane %v3799, 5
        %v4481 = vsel %vm1892, %v4479, %v4480
        %v4482 = vrot.slane %v4480, 4
        %v4483 = vrot.slane %v3800, 5
        %v4484 = vsel %vm1892, %v4482, %v4483
        %v4485 = vrot.slane %v4483, 4
        %v4486 = vrot.slane %v3801, 5
        %v4487 = vsel %vm1892, %v4485, %v4486
        %v4488 = vrot.slane %v4404, 5
        %v4489 = vrot.slane %v4488, 4
        %v4490 = vrot.slane %v3803, 5
        %v4491 = vsel %vm1892, %v4489, %v4490
        %v4492 = vrot.slane %v4490, 4
        %v4493 = vrot.slane %v3804, 5
        %v4494 = vsel %vm1892, %v4492, %v4493
        %v4495 = vrot.slane %v4493, 4
        %v4496 = vrot.slane %v3805, 5
        %v4497 = vsel %vm1892, %v4495, %v4496
        %v4498 = vrot.slane %v4496, 4
        %v4499 = vrot.slane %v3806, 5
        %v4500 = vsel %vm1892, %v4498, %v4499
        %v4501 = vrot.slane %v4405, 5
        %v4502 = vrot.slane %v4501, 4
        %v4503 = vrot.slane %v3808, 5
        %v4504 = vsel %vm1892, %v4502, %v4503
        %v4505 = vrot.slane %v4503, 4
        %v4506 = vrot.slane %v3809, 5
        %v4507 = vsel %vm1892, %v4505, %v4506
        %v4508 = vrot.slane %v4506, 4
        %v4509 = vrot.slane %v3810, 5
        %v4510 = vsel %vm1892, %v4508, %v4509
        %v4511 = vrot.slane %v4509, 4
        %v4512 = vrot.slane %v3811, 5
        %v4513 = vsel %vm1892, %v4511, %v4512
        %v4514 = vrot.slane %v4406, 5
        %v4515 = vrot.slane %v4514, 4
        %v4516 = vrot.slane %v3813, 5
        %v4517 = vsel %vm1892, %v4515, %v4516
        %v4518 = vrot.slane %v4516, 4
        %v4519 = vrot.slane %v3814, 5
        %v4520 = vsel %vm1892, %v4518, %v4519
        %v4521 = vrot.slane %v4519, 4
        %v4522 = vrot.slane %v3815, 5
        %v4523 = vsel %vm1892, %v4521, %v4522
        %v4524 = vrot.slane %v4522, 4
        %v4525 = vrot.slane %v3816, 5
        %v4526 = vsel %vm1892, %v4524, %v4525
        %v4527 = vrot.slane %v4407, 5
        %v4528 = vrot.slane %v4527, 4
        %v4529 = vrot.slane %v3818, 5
        %v4530 = vsel %vm1892, %v4528, %v4529
        %v4531 = vrot.slane %v4529, 4
        %v4532 = vrot.slane %v3819, 5
        %v4533 = vsel %vm1892, %v4531, %v4532
        %v4534 = vrot.slane %v4532, 4
        %v4535 = vrot.slane %v3820, 5
        %v4536 = vsel %vm1892, %v4534, %v4535
        %v4537 = vrot.slane %v4535, 4
        %v4538 = vrot.slane %v3821, 5
        %v4539 = vsel %vm1892, %v4537, %v4538
        %v4540 = vrot.slane %v4408, 5
        %v4541 = vrot.slane %v4540, 4
        %v4542 = vrot.slane %v3823, 5
        %v4543 = vsel %vm1892, %v4541, %v4542
        %v4544 = vrot.slane %v4542, 4
        %v4545 = vrot.slane %v3824, 5
        %v4546 = vsel %vm1892, %v4544, %v4545
        %v4547 = vrot.slane %v4545, 4
        %v4548 = vrot.slane %v3825, 5
        %v4549 = vsel %vm1892, %v4547, %v4548
        %v4550 = vrot.slane %v4548, 4
        %v4551 = vrot.slane %v3826, 5
        %v4552 = vsel %vm1892, %v4550, %v4551
        %s4553 = scalar_lea.vmem %s4, 32
        %v4554 = vld [vmem:[%s4553] sm:$0xf]
        %v4555 = vunpack.c.l.b16 %v4452
        %v4556 = vunpack.c.l.b16 %v4455
        %v4557 = vunpack.c.l.b16 %v4458
        %v4558 = vunpack.c.l.b16 %v4461
        %v4559 = vunpack.c.l.b16 %v4465
        %v4560 = vunpack.c.l.b16 %v4468
        %v4561 = vunpack.c.l.b16 %v4471
        %v4562 = vunpack.c.l.b16 %v4474
        %v4563 = vunpack.c.l.b16 %v4478
        %v4564 = vunpack.c.l.b16 %v4481
        %v4565 = vunpack.c.l.b16 %v4484
        %v4566 = vunpack.c.l.b16 %v4487
        %v4567 = vunpack.c.l.b16 %v4491
        %v4568 = vunpack.c.l.b16 %v4494
        %v4569 = vunpack.c.l.b16 %v4497
        %v4570 = vunpack.c.l.b16 %v4500
        %v4571 = vunpack.c.l.b16 %v4504
        %v4572 = vunpack.c.l.b16 %v4507
        %v4573 = vunpack.c.l.b16 %v4510
        %v4574 = vunpack.c.l.b16 %v4513
        %v4575 = vunpack.c.l.b16 %v4517
        %v4576 = vunpack.c.l.b16 %v4520
        %v4577 = vunpack.c.l.b16 %v4523
        %v4578 = vunpack.c.l.b16 %v4526
        %v4579 = vunpack.c.l.b16 %v4530
        %v4580 = vunpack.c.l.b16 %v4533
        %v4581 = vunpack.c.l.b16 %v4536
        %v4582 = vunpack.c.l.b16 %v4539
        %v4583 = vunpack.c.l.b16 %v4543
        %v4584 = vunpack.c.l.b16 %v4546
        %v4585 = vunpack.c.l.b16 %v4549
        %v4586 = vunpack.c.l.b16 %v4552
        %v4587 = vpack.c.b16 %v4556, %v4555
        %v4588 = vpack.c.b16 %v4558, %v4557
        %v4589 = vpack.c.b16 %v4560, %v4559
        %v4590 = vpack.c.b16 %v4562, %v4561
        %v4591 = vpack.c.b16 %v4564, %v4563
        %v4592 = vpack.c.b16 %v4566, %v4565
        %v4593 = vpack.c.b16 %v4568, %v4567
        %v4594 = vpack.c.b16 %v4570, %v4569
        %v4595 = vpack.c.b16 %v4572, %v4571
        %v4596 = vpack.c.b16 %v4574, %v4573
        %v4597 = vpack.c.b16 %v4576, %v4575
        %v4598 = vpack.c.b16 %v4578, %v4577
        %v4599 = vpack.c.b16 %v4580, %v4579
        %v4600 = vpack.c.b16 %v4582, %v4581
        %v4601 = vpack.c.b16 %v4584, %v4583
        %v4602 = vpack.c.b16 %v4586, %v4585
        %v4604 = vsel %vm1504, %v4587, 0
        %v4607 = vsel %vm1504, %v4588, 0
        %v4610 = vsel %vm1504, %v4589, 0
        %v4613 = vsel %vm1504, %v4590, 0
        %v4616 = vsel %vm1504, %v4591, 0
        %v4619 = vsel %vm1504, %v4592, 0
        %v4622 = vsel %vm1504, %v4593, 0
        %v4625 = vsel %vm1504, %v4594, 0
        %v4628 = vsel %vm1504, %v4595, 0
        %v4631 = vsel %vm1504, %v4596, 0
        %v4634 = vsel %vm1504, %v4597, 0
        %v4637 = vsel %vm1504, %v4598, 0
        %v4640 = vsel %vm1504, %v4599, 0
        %v4643 = vsel %vm1504, %v4600, 0
        %v4646 = vsel %vm1504, %v4601, 0
        %v4649 = vsel %vm1504, %v4602, 0
        %v4652 = vsel %vm1553, %v4554, 0
        %4654 = vmatpush.bf16.msra.mxu0 0
        %4655 = vmatpush.bf16.msra.mxu0 0
        %4656 = vmatpush.bf16.msra.mxu0 0
        %4657 = vmatpush.bf16.msra.mxu0 0
        %4658 = vmatpush.bf16.msra.mxu0 0
        %4659 = vmatpush.bf16.msra.mxu0 0
        %4660 = vmatpush.bf16.msra.mxu0 0
        %4661 = vmatpush.bf16.msra.mxu0 %v4652
        %4662 = vmatmul.bf16.gmra.mxu0 %v4604
        %v4663 = vpop.f32.mrf.mxu0
        %v4664 = vadd.f32 0.0, %v4663
        %v4665 = vpop.f32.mrf.mxu0
        %v4666 = vadd.f32 0.0, %v4665
        %4667 = vmatmul.bf16.gmra.mxu0 %v4607
        %v4668 = vpop.f32.mrf.mxu0
        %v4669 = vadd.f32 0.0, %v4668
        %v4670 = vpop.f32.mrf.mxu0
        %v4671 = vadd.f32 0.0, %v4670
        %4672 = vmatmul.bf16.gmra.mxu0 %v4610
        %v4673 = vpop.f32.mrf.mxu0
        %v4674 = vadd.f32 0.0, %v4673
        %v4675 = vpop.f32.mrf.mxu0
        %v4676 = vadd.f32 0.0, %v4675
        %4677 = vmatmul.bf16.gmra.mxu0 %v4613
        %v4678 = vpop.f32.mrf.mxu0
        %v4679 = vadd.f32 0.0, %v4678
        %v4680 = vpop.f32.mrf.mxu0
        %v4681 = vadd.f32 0.0, %v4680
        %4682 = vmatmul.bf16.gmra.mxu0 %v4616
        %v4683 = vpop.f32.mrf.mxu0
        %v4684 = vadd.f32 0.0, %v4683
        %v4685 = vpop.f32.mrf.mxu0
        %v4686 = vadd.f32 0.0, %v4685
        %4687 = vmatmul.bf16.gmra.mxu0 %v4619
        %v4688 = vpop.f32.mrf.mxu0
        %v4689 = vadd.f32 0.0, %v4688
        %v4690 = vpop.f32.mrf.mxu0
        %v4691 = vadd.f32 0.0, %v4690
        %4692 = vmatmul.bf16.gmra.mxu0 %v4622
        %v4693 = vpop.f32.mrf.mxu0
        %v4694 = vadd.f32 0.0, %v4693
        %v4695 = vpop.f32.mrf.mxu0
        %v4696 = vadd.f32 0.0, %v4695
        %4697 = vmatmul.bf16.gmra.mxu0 %v4625
        %v4698 = vpop.f32.mrf.mxu0
        %v4699 = vadd.f32 0.0, %v4698
        %v4700 = vpop.f32.mrf.mxu0
        %v4701 = vadd.f32 0.0, %v4700
        %4702 = vmatmul.bf16.gmra.mxu0 %v4628
        %v4703 = vpop.f32.mrf.mxu0
        %v4704 = vadd.f32 0.0, %v4703
        %v4705 = vpop.f32.mrf.mxu0
        %v4706 = vadd.f32 0.0, %v4705
        %4707 = vmatmul.bf16.gmra.mxu0 %v4631
        %v4708 = vpop.f32.mrf.mxu0
        %v4709 = vadd.f32 0.0, %v4708
        %v4710 = vpop.f32.mrf.mxu0
        %v4711 = vadd.f32 0.0, %v4710
        %4712 = vmatmul.bf16.gmra.mxu0 %v4634
        %v4713 = vpop.f32.mrf.mxu0
        %v4714 = vadd.f32 0.0, %v4713
        %v4715 = vpop.f32.mrf.mxu0
        %v4716 = vadd.f32 0.0, %v4715
        %4717 = vmatmul.bf16.gmra.mxu0 %v4637
        %v4718 = vpop.f32.mrf.mxu0
        %v4719 = vadd.f32 0.0, %v4718
        %v4720 = vpop.f32.mrf.mxu0
        %v4721 = vadd.f32 0.0, %v4720
        %4722 = vmatmul.bf16.gmra.mxu0 %v4640
        %v4723 = vpop.f32.mrf.mxu0
        %v4724 = vadd.f32 0.0, %v4723
        %v4725 = vpop.f32.mrf.mxu0
        %v4726 = vadd.f32 0.0, %v4725
        %4727 = vmatmul.bf16.gmra.mxu0 %v4643
        %v4728 = vpop.f32.mrf.mxu0
        %v4729 = vadd.f32 0.0, %v4728
        %v4730 = vpop.f32.mrf.mxu0
        %v4731 = vadd.f32 0.0, %v4730
        %4732 = vmatmul.bf16.gmra.mxu0 %v4646
        %v4733 = vpop.f32.mrf.mxu0
        %v4734 = vadd.f32 0.0, %v4733
        %v4735 = vpop.f32.mrf.mxu0
        %v4736 = vadd.f32 0.0, %v4735
        %4737 = vmatmul.bf16.gmra.mxu0 %v4649
        %v4738 = vpop.f32.mrf.mxu0
        %v4739 = vadd.f32 0.0, %v4738
        %v4740 = vpop.f32.mrf.mxu0
        %v4741 = vadd.f32 0.0, %v4740
        %4742 = vdwg.mxu0
        %v4743 = vadd.f32 %v4369, %v4664
        %v4744 = vadd.f32 %v4370, %v4666
        %v4745 = vadd.f32 %v4371, %v4669
        %v4746 = vadd.f32 %v4372, %v4671
        %v4747 = vadd.f32 %v4373, %v4674
        %v4748 = vadd.f32 %v4374, %v4676
        %v4749 = vadd.f32 %v4375, %v4679
        %v4750 = vadd.f32 %v4376, %v4681
        %v4751 = vadd.f32 %v4377, %v4684
        %v4752 = vadd.f32 %v4378, %v4686
        %v4753 = vadd.f32 %v4379, %v4689
        %v4754 = vadd.f32 %v4380, %v4691
        %v4755 = vadd.f32 %v4381, %v4694
        %v4756 = vadd.f32 %v4382, %v4696
        %v4757 = vadd.f32 %v4383, %v4699
        %v4758 = vadd.f32 %v4384, %v4701
        %v4759 = vadd.f32 %v4385, %v4704
        %v4760 = vadd.f32 %v4386, %v4706
        %v4761 = vadd.f32 %v4387, %v4709
        %v4762 = vadd.f32 %v4388, %v4711
        %v4763 = vadd.f32 %v4389, %v4714
        %v4764 = vadd.f32 %v4390, %v4716
        %v4765 = vadd.f32 %v4391, %v4719
        %v4766 = vadd.f32 %v4392, %v4721
        %v4767 = vadd.f32 %v4393, %v4724
        %v4768 = vadd.f32 %v4394, %v4726
        %v4769 = vadd.f32 %v4395, %v4729
        %v4770 = vadd.f32 %v4396, %v4731
        %v4771 = vadd.f32 %v4397, %v4734
        %v4772 = vadd.f32 %v4398, %v4736
        %v4773 = vadd.f32 %v4399, %v4739
        %v4774 = vadd.f32 %v4400, %v4741
        %v4776 = vperm.slane %v1045, 0
        %v4778 = vadd.f32 %v4743, %v4776
        %v4779 = vadd.f32 %v4744, %v4776
        %v4780 = vadd.f32 %v4745, %v4776
        %v4781 = vadd.f32 %v4746, %v4776
        %v4782 = vadd.f32 %v4747, %v4776
        %v4783 = vadd.f32 %v4748, %v4776
        %v4784 = vadd.f32 %v4749, %v4776
        %v4785 = vadd.f32 %v4750, %v4776
        %v4786 = vadd.f32 %v4751, %v4776
        %v4787 = vadd.f32 %v4752, %v4776
        %v4788 = vadd.f32 %v4753, %v4776
        %v4789 = vadd.f32 %v4754, %v4776
        %v4790 = vadd.f32 %v4755, %v4776
        %v4791 = vadd.f32 %v4756, %v4776
        %v4792 = vadd.f32 %v4757, %v4776
        %v4793 = vadd.f32 %v4758, %v4776
        %v4794 = vadd.f32 %v4759, %v4776
        %v4795 = vadd.f32 %v4760, %v4776
        %v4796 = vadd.f32 %v4761, %v4776
        %v4797 = vadd.f32 %v4762, %v4776
        %v4798 = vadd.f32 %v4763, %v4776
        %v4799 = vadd.f32 %v4764, %v4776
        %v4800 = vadd.f32 %v4765, %v4776
        %v4801 = vadd.f32 %v4766, %v4776
        %v4802 = vadd.f32 %v4767, %v4776
        %v4803 = vadd.f32 %v4768, %v4776
        %v4804 = vadd.f32 %v4769, %v4776
        %v4805 = vadd.f32 %v4770, %v4776
        %v4806 = vadd.f32 %v4771, %v4776
        %v4807 = vadd.f32 %v4772, %v4776
        %v4808 = vadd.f32 %v4773, %v4776
        %v4809 = vadd.f32 %v4774, %v4776
        %v4810 = vmax.f32 %v4778, 0.0
        %v4811 = vmax.f32 %v4779, 0.0
        %v4812 = vmax.f32 %v4780, 0.0
        %v4813 = vmax.f32 %v4781, 0.0
        %v4814 = vmax.f32 %v4782, 0.0
        %v4815 = vmax.f32 %v4783, 0.0
        %v4816 = vmax.f32 %v4784, 0.0
        %v4817 = vmax.f32 %v4785, 0.0
        %v4818 = vmax.f32 %v4786, 0.0
        %v4819 = vmax.f32 %v4787, 0.0
        %v4820 = vmax.f32 %v4788, 0.0
        %v4821 = vmax.f32 %v4789, 0.0
        %v4822 = vmax.f32 %v4790, 0.0
        %v4823 = vmax.f32 %v4791, 0.0
        %v4824 = vmax.f32 %v4792, 0.0
        %v4825 = vmax.f32 %v4793, 0.0
        %v4826 = vmax.f32 %v4794, 0.0
        %v4827 = vmax.f32 %v4795, 0.0
        %v4828 = vmax.f32 %v4796, 0.0
        %v4829 = vmax.f32 %v4797, 0.0
        %v4830 = vmax.f32 %v4798, 0.0
        %v4831 = vmax.f32 %v4799, 0.0
        %v4832 = vmax.f32 %v4800, 0.0
        %v4833 = vmax.f32 %v4801, 0.0
        %v4834 = vmax.f32 %v4802, 0.0
        %v4835 = vmax.f32 %v4803, 0.0
        %v4836 = vmax.f32 %v4804, 0.0
        %v4837 = vmax.f32 %v4805, 0.0
        %v4838 = vmax.f32 %v4806, 0.0
        %v4839 = vmax.f32 %v4807, 0.0
        %v4840 = vmax.f32 %v4808, 0.0
        %v4841 = vmax.f32 %v4809, 0.0
        %v4842 = vpack.c.bf16 %v4810, %v4810
        %v4843 = vpack.c.bf16 %v4811, %v4811
        %v4844 = vpack.c.bf16 %v4812, %v4812
        %v4845 = vpack.c.bf16 %v4813, %v4813
        %v4846 = vpack.c.bf16 %v4814, %v4814
        %v4847 = vpack.c.bf16 %v4815, %v4815
        %v4848 = vpack.c.bf16 %v4816, %v4816
        %v4849 = vpack.c.bf16 %v4817, %v4817
        %v4850 = vpack.c.bf16 %v4818, %v4818
        %v4851 = vpack.c.bf16 %v4819, %v4819
        %v4852 = vpack.c.bf16 %v4820, %v4820
        %v4853 = vpack.c.bf16 %v4821, %v4821
        %v4854 = vpack.c.bf16 %v4822, %v4822
        %v4855 = vpack.c.bf16 %v4823, %v4823
        %v4856 = vpack.c.bf16 %v4824, %v4824
        %v4857 = vpack.c.bf16 %v4825, %v4825
        %v4858 = vpack.c.bf16 %v4826, %v4826
        %v4859 = vpack.c.bf16 %v4827, %v4827
        %v4860 = vpack.c.bf16 %v4828, %v4828
        %v4861 = vpack.c.bf16 %v4829, %v4829
        %v4862 = vpack.c.bf16 %v4830, %v4830
        %v4863 = vpack.c.bf16 %v4831, %v4831
        %v4864 = vpack.c.bf16 %v4832, %v4832
        %v4865 = vpack.c.bf16 %v4833, %v4833
        %v4866 = vpack.c.bf16 %v4834, %v4834
        %v4867 = vpack.c.bf16 %v4835, %v4835
        %v4868 = vpack.c.bf16 %v4836, %v4836
        %v4869 = vpack.c.bf16 %v4837, %v4837
        %v4870 = vpack.c.bf16 %v4838, %v4838
        %v4871 = vpack.c.bf16 %v4839, %v4839
        %v4872 = vpack.c.bf16 %v4840, %v4840
        %v4873 = vpack.c.bf16 %v4841, %v4841
        %vm4874 = vsmask.f32 4368
        %vm4875 = vmor %vm334, %vm4874
        %v4877 = vshrl.u32 %v4842, 16
        %v4879 = vrot.slane %v4877, 7
        %v4880 = vshll.u32 %v4842, 16
        %v4882 = vor.u32 %v4879, %v4880
        %v4883 = vrot.slane %v4879, 4
        %v4885 = vshrl.u32 %v4843, 16
        %v4887 = vrot.slane %v4885, 7
        %v4888 = vshll.u32 %v4843, 16
        %v4890 = vor.u32 %v4887, %v4888
        %v4891 = vsel %vm4875, %v4883, %v4890
        %v4892 = vrot.slane %v4887, 4
        %v4894 = vshrl.u32 %v4844, 16
        %v4896 = vrot.slane %v4894, 7
        %v4897 = vshll.u32 %v4844, 16
        %v4899 = vor.u32 %v4896, %v4897
        %v4900 = vsel %vm4875, %v4892, %v4899
        %v4901 = vrot.slane %v4896, 4
        %v4903 = vshrl.u32 %v4845, 16
        %v4905 = vrot.slane %v4903, 7
        %v4906 = vshll.u32 %v4845, 16
        %v4908 = vor.u32 %v4905, %v4906
        %v4909 = vsel %vm4875, %v4901, %v4908
        %v4910 = vrot.slane %v4905, 4
        %v4912 = vshrl.u32 %v4846, 16
        %v4914 = vrot.slane %v4912, 7
        %v4915 = vshll.u32 %v4846, 16
        %v4917 = vor.u32 %v4914, %v4915
        %v4918 = vrot.slane %v4914, 4
        %v4920 = vshrl.u32 %v4847, 16
        %v4922 = vrot.slane %v4920, 7
        %v4923 = vshll.u32 %v4847, 16
        %v4925 = vor.u32 %v4922, %v4923
        %v4926 = vsel %vm4875, %v4918, %v4925
        %v4927 = vrot.slane %v4922, 4
        %v4929 = vshrl.u32 %v4848, 16
        %v4931 = vrot.slane %v4929, 7
        %v4932 = vshll.u32 %v4848, 16
        %v4934 = vor.u32 %v4931, %v4932
        %v4935 = vsel %vm4875, %v4927, %v4934
        %v4936 = vrot.slane %v4931, 4
        %v4938 = vshrl.u32 %v4849, 16
        %v4940 = vrot.slane %v4938, 7
        %v4941 = vshll.u32 %v4849, 16
        %v4943 = vor.u32 %v4940, %v4941
        %v4944 = vsel %vm4875, %v4936, %v4943
        %v4945 = vrot.slane %v4940, 4
        %v4947 = vshrl.u32 %v4850, 16
        %v4949 = vrot.slane %v4947, 7
        %v4950 = vshll.u32 %v4850, 16
        %v4952 = vor.u32 %v4949, %v4950
        %v4953 = vrot.slane %v4949, 4
        %v4955 = vshrl.u32 %v4851, 16
        %v4957 = vrot.slane %v4955, 7
        %v4958 = vshll.u32 %v4851, 16
        %v4960 = vor.u32 %v4957, %v4958
        %v4961 = vsel %vm4875, %v4953, %v4960
        %v4962 = vrot.slane %v4957, 4
        %v4964 = vshrl.u32 %v4852, 16
        %v4966 = vrot.slane %v4964, 7
        %v4967 = vshll.u32 %v4852, 16
        %v4969 = vor.u32 %v4966, %v4967
        %v4970 = vsel %vm4875, %v4962, %v4969
        %v4971 = vrot.slane %v4966, 4
        %v4973 = vshrl.u32 %v4853, 16
        %v4975 = vrot.slane %v4973, 7
        %v4976 = vshll.u32 %v4853, 16
        %v4978 = vor.u32 %v4975, %v4976
        %v4979 = vsel %vm4875, %v4971, %v4978
        %v4980 = vrot.slane %v4975, 4
        %v4982 = vshrl.u32 %v4854, 16
        %v4984 = vrot.slane %v4982, 7
        %v4985 = vshll.u32 %v4854, 16
        %v4987 = vor.u32 %v4984, %v4985
        %v4988 = vrot.slane %v4984, 4
        %v4990 = vshrl.u32 %v4855, 16
        %v4992 = vrot.slane %v4990, 7
        %v4993 = vshll.u32 %v4855, 16
        %v4995 = vor.u32 %v4992, %v4993
        %v4996 = vsel %vm4875, %v4988, %v4995
        %v4997 = vrot.slane %v4992, 4
        %v4999 = vshrl.u32 %v4856, 16
        %v5001 = vrot.slane %v4999, 7
        %v5002 = vshll.u32 %v4856, 16
        %v5004 = vor.u32 %v5001, %v5002
        %v5005 = vsel %vm4875, %v4997, %v5004
        %v5006 = vrot.slane %v5001, 4
        %v5008 = vshrl.u32 %v4857, 16
        %v5010 = vrot.slane %v5008, 7
        %v5011 = vshll.u32 %v4857, 16
        %v5013 = vor.u32 %v5010, %v5011
        %v5014 = vsel %vm4875, %v5006, %v5013
        %v5015 = vrot.slane %v5010, 4
        %v5017 = vshrl.u32 %v4858, 16
        %v5019 = vrot.slane %v5017, 7
        %v5020 = vshll.u32 %v4858, 16
        %v5022 = vor.u32 %v5019, %v5020
        %v5023 = vrot.slane %v5019, 4
        %v5025 = vshrl.u32 %v4859, 16
        %v5027 = vrot.slane %v5025, 7
        %v5028 = vshll.u32 %v4859, 16
        %v5030 = vor.u32 %v5027, %v5028
        %v5031 = vsel %vm4875, %v5023, %v5030
        %v5032 = vrot.slane %v5027, 4
        %v5034 = vshrl.u32 %v4860, 16
        %v5036 = vrot.slane %v5034, 7
        %v5037 = vshll.u32 %v4860, 16
        %v5039 = vor.u32 %v5036, %v5037
        %v5040 = vsel %vm4875, %v5032, %v5039
        %v5041 = vrot.slane %v5036, 4
        %v5043 = vshrl.u32 %v4861, 16
        %v5045 = vrot.slane %v5043, 7
        %v5046 = vshll.u32 %v4861, 16
        %v5048 = vor.u32 %v5045, %v5046
        %v5049 = vsel %vm4875, %v5041, %v5048
        %v5050 = vrot.slane %v5045, 4
        %v5052 = vshrl.u32 %v4862, 16
        %v5054 = vrot.slane %v5052, 7
        %v5055 = vshll.u32 %v4862, 16
        %v5057 = vor.u32 %v5054, %v5055
        %v5058 = vrot.slane %v5054, 4
        %v5060 = vshrl.u32 %v4863, 16
        %v5062 = vrot.slane %v5060, 7
        %v5063 = vshll.u32 %v4863, 16
        %v5065 = vor.u32 %v5062, %v5063
        %v5066 = vsel %vm4875, %v5058, %v5065
        %v5067 = vrot.slane %v5062, 4
        %v5069 = vshrl.u32 %v4864, 16
        %v5071 = vrot.slane %v5069, 7
        %v5072 = vshll.u32 %v4864, 16
        %v5074 = vor.u32 %v5071, %v5072
        %v5075 = vsel %vm4875, %v5067, %v5074
        %v5076 = vrot.slane %v5071, 4
        %v5078 = vshrl.u32 %v4865, 16
        %v5080 = vrot.slane %v5078, 7
        %v5081 = vshll.u32 %v4865, 16
        %v5083 = vor.u32 %v5080, %v5081
        %v5084 = vsel %vm4875, %v5076, %v5083
        %v5085 = vrot.slane %v5080, 4
        %v5087 = vshrl.u32 %v4866, 16
        %v5089 = vrot.slane %v5087, 7
        %v5090 = vshll.u32 %v4866, 16
        %v5092 = vor.u32 %v5089, %v5090
        %v5093 = vrot.slane %v5089, 4
        %v5095 = vshrl.u32 %v4867, 16
        %v5097 = vrot.slane %v5095, 7
        %v5098 = vshll.u32 %v4867, 16
        %v5100 = vor.u32 %v5097, %v5098
        %v5101 = vsel %vm4875, %v5093, %v5100
        %v5102 = vrot.slane %v5097, 4
        %v5104 = vshrl.u32 %v4868, 16
        %v5106 = vrot.slane %v5104, 7
        %v5107 = vshll.u32 %v4868, 16
        %v5109 = vor.u32 %v5106, %v5107
        %v5110 = vsel %vm4875, %v5102, %v5109
        %v5111 = vrot.slane %v5106, 4
        %v5113 = vshrl.u32 %v4869, 16
        %v5115 = vrot.slane %v5113, 7
        %v5116 = vshll.u32 %v4869, 16
        %v5118 = vor.u32 %v5115, %v5116
        %v5119 = vsel %vm4875, %v5111, %v5118
        %v5120 = vrot.slane %v5115, 4
        %v5122 = vshrl.u32 %v4870, 16
        %v5124 = vrot.slane %v5122, 7
        %v5125 = vshll.u32 %v4870, 16
        %v5127 = vor.u32 %v5124, %v5125
        %v5128 = vrot.slane %v5124, 4
        %v5130 = vshrl.u32 %v4871, 16
        %v5132 = vrot.slane %v5130, 7
        %v5133 = vshll.u32 %v4871, 16
        %v5135 = vor.u32 %v5132, %v5133
        %v5136 = vsel %vm4875, %v5128, %v5135
        %v5137 = vrot.slane %v5132, 4
        %v5139 = vshrl.u32 %v4872, 16
        %v5141 = vrot.slane %v5139, 7
        %v5142 = vshll.u32 %v4872, 16
        %v5144 = vor.u32 %v5141, %v5142
        %v5145 = vsel %vm4875, %v5137, %v5144
        %v5146 = vrot.slane %v5141, 4
        %v5148 = vshrl.u32 %v4873, 16
        %v5150 = vrot.slane %v5148, 7
        %v5151 = vshll.u32 %v4873, 16
        %v5153 = vor.u32 %v5150, %v5151
        %v5154 = vsel %vm4875, %v5146, %v5153
        %v5155 = vrot.slane %v5150, 4
        %s5196 = smul.addr %s1055, 4
        %s5197 = scalar_lea.vmem [#allocation3], %s5196
        %vm5198 = vcmask 60416
        %vm5199 = vmand %vm5198, %vm396
        %v5200 = vld [vmem:[%s5197] sm:$0xf]
        %v5201 = vsel %vm5199, %v4882, %v5200
        %5202 = vst [vmem:[%s5197] sm:$0xf] %v5201
        %vm5203 = vcmask 60416
        %5204 = vst.msk [vmem:[%s5197 + $0x4] sm:$0xf] %vm5203, %v4891
        %5205 = vst.msk [vmem:[%s5197 + $0x8] sm:$0xf] %vm5203, %v4900
        %5206 = vst.msk [vmem:[%s5197 + $0xc] sm:$0xf] %vm5203, %v4909
        %v5207 = vld [vmem:[%s5197 + $0x10] sm:$0x1]
        %v5208 = vsel %vm335, %v4910, %v5207
        %5209 = vst [vmem:[%s5197 + $0x10] sm:$0x1] %v5208
        %v5210 = vld [vmem:[%s5197 + $0x14] sm:$0xf]
        %v5211 = vsel %vm5199, %v4917, %v5210
        %5212 = vst [vmem:[%s5197 + $0x14] sm:$0xf] %v5211
        %5213 = vst.msk [vmem:[%s5197 + $0x18] sm:$0xf] %vm5203, %v4926
        %5214 = vst.msk [vmem:[%s5197 + $0x1c] sm:$0xf] %vm5203, %v4935
        %5215 = vst.msk [vmem:[%s5197 + $0x20] sm:$0xf] %vm5203, %v4944
        %v5216 = vld [vmem:[%s5197 + $0x24] sm:$0x1]
        %v5217 = vsel %vm335, %v4945, %v5216
        %5218 = vst [vmem:[%s5197 + $0x24] sm:$0x1] %v5217
        %v5219 = vld [vmem:[%s5197 + $0x28] sm:$0xf]
        %v5220 = vsel %vm5199, %v4952, %v5219
        %5221 = vst [vmem:[%s5197 + $0x28] sm:$0xf] %v5220
        %5222 = vst.msk [vmem:[%s5197 + $0x2c] sm:$0xf] %vm5203, %v4961
        %5223 = vst.msk [vmem:[%s5197 + $0x30] sm:$0xf] %vm5203, %v4970
        %5224 = vst.msk [vmem:[%s5197 + $0x34] sm:$0xf] %vm5203, %v4979
        %v5225 = vld [vmem:[%s5197 + $0x38] sm:$0x1]
        %v5226 = vsel %vm335, %v4980, %v5225
        %5227 = vst [vmem:[%s5197 + $0x38] sm:$0x1] %v5226
        %v5228 = vld [vmem:[%s5197 + $0x3c] sm:$0xf]
        %v5229 = vsel %vm5199, %v4987, %v5228
        %5230 = vst [vmem:[%s5197 + $0x3c] sm:$0xf] %v5229
        %5231 = vst.msk [vmem:[%s5197 + $0x40] sm:$0xf] %vm5203, %v4996
        %5232 = vst.msk [vmem:[%s5197 + $0x44] sm:$0xf] %vm5203, %v5005
        %5233 = vst.msk [vmem:[%s5197 + $0x48] sm:$0xf] %vm5203, %v5014
        %v5234 = vld [vmem:[%s5197 + $0x4c] sm:$0x1]
        %v5235 = vsel %vm335, %v5015, %v5234
        %5236 = vst [vmem:[%s5197 + $0x4c] sm:$0x1] %v5235
        %v5237 = vld [vmem:[%s5197 + $0x50] sm:$0xf]
        %v5238 = vsel %vm5199, %v5022, %v5237
        %5239 = vst [vmem:[%s5197 + $0x50] sm:$0xf] %v5238
        %5240 = vst.msk [vmem:[%s5197 + $0x54] sm:$0xf] %vm5203, %v5031
        %5241 = vst.msk [vmem:[%s5197 + $0x58] sm:$0xf] %vm5203, %v5040
        %5242 = vst.msk [vmem:[%s5197 + $0x5c] sm:$0xf] %vm5203, %v5049
        %v5243 = vld [vmem:[%s5197 + $0x60] sm:$0x1]
        %v5244 = vsel %vm335, %v5050, %v5243
        %5245 = vst [vmem:[%s5197 + $0x60] sm:$0x1] %v5244
        %v5246 = vld [vmem:[%s5197 + $0x64] sm:$0xf]
        %v5247 = vsel %vm5199, %v5057, %v5246
        %5248 = vst [vmem:[%s5197 + $0x64] sm:$0xf] %v5247
        %5249 = vst.msk [vmem:[%s5197 + $0x68] sm:$0xf] %vm5203, %v5066
        %5250 = vst.msk [vmem:[%s5197 + $0x6c] sm:$0xf] %vm5203, %v5075
        %5251 = vst.msk [vmem:[%s5197 + $0x70] sm:$0xf] %vm5203, %v5084
        %v5252 = vld [vmem:[%s5197 + $0x74] sm:$0x1]
        %v5253 = vsel %vm335, %v5085, %v5252
        %5254 = vst [vmem:[%s5197 + $0x74] sm:$0x1] %v5253
        %v5255 = vld [vmem:[%s5197 + $0x78] sm:$0xf]
        %v5256 = vsel %vm5199, %v5092, %v5255
        %5257 = vst [vmem:[%s5197 + $0x78] sm:$0xf] %v5256
        %5258 = vst.msk [vmem:[%s5197 + $0x7c] sm:$0xf] %vm5203, %v5101
        %5259 = vst.msk [vmem:[%s5197 + $0x80] sm:$0xf] %vm5203, %v5110
        %5260 = vst.msk [vmem:[%s5197 + $0x84] sm:$0xf] %vm5203, %v5119
        %v5261 = vld [vmem:[%s5197 + $0x88] sm:$0x1]
        %v5262 = vsel %vm335, %v5120, %v5261
        %5263 = vst [vmem:[%s5197 + $0x88] sm:$0x1] %v5262
        %v5264 = vld [vmem:[%s5197 + $0x8c] sm:$0xf]
        %v5265 = vsel %vm5199, %v5127, %v5264
        %5266 = vst [vmem:[%s5197 + $0x8c] sm:$0xf] %v5265
        %5267 = vst.msk [vmem:[%s5197 + $0x90] sm:$0xf] %vm5203, %v5136
        %5268 = vst.msk [vmem:[%s5197 + $0x94] sm:$0xf] %vm5203, %v5145
        %5269 = vst.msk [vmem:[%s5197 + $0x98] sm:$0xf] %vm5203, %v5154
        %v5270 = vld [vmem:[%s5197 + $0x9c] sm:$0x1]
        %v5271 = vsel %vm335, %v5155, %v5270
        %5272 = vst [vmem:[%s5197 + $0x9c] sm:$0x1] %v5271
      $region80: #{tpu_custom_call.1} parent=51 // loop_footer
        %s1052 = sadd.s32 1, %s1048
      $region81: #{tpu_custom_call.1} parent=51 // loop_footer_branch
        %1047 = sbr.rel target = $region77
      $region82: #{tpu_custom_call.1} parent=51 // loop_exit
        _
      // Predicated region
      $region83: #{tpu_custom_call.1} parent=51 // pred_check
        %p5273 = pneg %p751
      $region84: #{tpu_custom_call.1} parent=51 // pred_check_branch
        %5275 = sbr.rel (%p5273) target = $region86
      $region85: #{tpu_custom_call.1} parent=51 // pred_region
        %v5276 = vld [vmem:[#allocation2] sm:$0xf]
        %v5277 = vld [vmem:[#allocation2 + $0x4] sm:$0xf]
        %v5278 = vld [vmem:[#allocation2 + $0x8] sm:$0xf]
        %v5279 = vld [vmem:[#allocation2 + $0xc] sm:$0xf]
        %v5280 = vld [vmem:[%s4] sm:$0xf]
        %v5281 = vld [vmem:[#allocation2 + $0x10] sm:$0x1]
        %s5282 = scalar_lea.vmem %s4, 4
        %v5283 = vld [vmem:[%s5282] sm:$0xf]
        %v5289 = vunpack.c.l.b16 %v5276
        %v5290 = vunpack.c.l.b16 %v5277
        %v5291 = vunpack.c.l.b16 %v5278
        %v5292 = vunpack.c.l.b16 %v5279
        %v5293 = vunpack.c.l.b16 %v5281
        %v5294 = vpack.c.b16 %v5290, %v5289
        %v5295 = vpack.c.b16 %v5292, %v5291
        %v5296 = vpack.c.b16 %v5293, %v5293
        %vm5297 = vsmask.f32 7424
        %v5299 = vshrl.u32 %v5294, 16
        %v5301 = vshll.u32 %v5294, 16
        %v5303 = vrot.slane %v5301, 1
        %v5304 = vor.u32 %v5299, %v5303
        %v5306 = vshll.u32 %v5295, 16
        %v5308 = vrot.slane %v5306, 1
        %v5309 = vsel %vm5297, %v5304, %v5308
        %v5310 = vshrl.u32 %v5295, 16
        %v5312 = vor.u32 %v5310, %v5308
        %v5314 = vshll.u32 %v5296, 16
        %v5316 = vrot.slane %v5314, 1
        %v5317 = vsel %vm5297, %v5312, %v5316
        %vm5318 = vcmask 64512
        %v5320 = vsel %vm5318, %v5309, 0
        %v5323 = vsel %vm5318, %v5317, 0
        %vm5325 = vcmask 1043456
        %v5327 = vsel %vm5325, %v5283, 0
        %5329 = vmatpush.bf16.msra.mxu0 0
        %5330 = vmatpush.bf16.msra.mxu0 0
        %5331 = vmatpush.bf16.msra.mxu0 0
        %5332 = vmatpush.bf16.msra.mxu0 0
        %5333 = vmatpush.bf16.msra.mxu0 0
        %5334 = vmatpush.bf16.msra.mxu0 0
        %5335 = vmatpush.bf16.msra.mxu0 0
        %5336 = vmatpush.bf16.msra.mxu0 %v5327
        %5337 = vmatmul.bf16.gmra.mxu0 %v5320
        %v5338 = vpop.f32.mrf.mxu0
        %v5339 = vadd.f32 0.0, %v5338
        %v5340 = vpop.f32.mrf.mxu0
        %v5341 = vadd.f32 0.0, %v5340
        %5342 = vmatmul.bf16.gmra.mxu0 %v5323
        %v5343 = vpop.f32.mrf.mxu0
        %v5344 = vadd.f32 0.0, %v5343
        %v5345 = vpop.f32.mrf.mxu0
        %v5346 = vadd.f32 0.0, %v5345
        %5347 = vdwg.mxu0
        %v5348 = vsel %vm5318, %v5294, 0
        %v5350 = vsel %vm5318, %v5295, 0
        %v5353 = vsel %vm5325, %v5280, 0
        %5355 = vmatpush.bf16.msra.mxu0 0
        %5356 = vmatpush.bf16.msra.mxu0 0
        %5357 = vmatpush.bf16.msra.mxu0 0
        %5358 = vmatpush.bf16.msra.mxu0 0
        %5359 = vmatpush.bf16.msra.mxu0 0
        %5360 = vmatpush.bf16.msra.mxu0 0
        %5361 = vmatpush.bf16.msra.mxu0 0
        %5362 = vmatpush.bf16.msra.mxu0 %v5353
        %5363 = vmatmul.bf16.gmra.mxu0 %v5348
        %v5364 = vpop.f32.mrf.mxu0
        %v5365 = vadd.f32 %v5339, %v5364
        %v5366 = vpop.f32.mrf.mxu0
        %v5367 = vadd.f32 %v5341, %v5366
        %5368 = vmatmul.bf16.gmra.mxu0 %v5350
        %v5369 = vpop.f32.mrf.mxu0
        %v5370 = vadd.f32 %v5344, %v5369
        %v5371 = vpop.f32.mrf.mxu0
        %v5372 = vadd.f32 %v5346, %v5371
        %5373 = vdwg.mxu0
        %v5374 = vld [vmem:[#allocation2] sm:$0xe]
        %s5375 = scalar_lea.vmem %s4, 8
        %v5376 = vld [vmem:[%s5375] sm:$0xf]
        %v5378 = vunpack.c.l.b16 %v5374
        %v5379 = vpack.c.b16 %v5290, %v5378
        %vm5380 = vcmask 1046528
        %v5381 = vrot.slane %v5379, 1
        %v5382 = vrot.slane %v5295, 1
        %v5383 = vsel %vm5380, %v5381, %v5382
        %v5384 = vrot.slane %v5296, 1
        %v5385 = vsel %vm5380, %v5382, %v5384
        %v5387 = vsel %vm5318, %v5383, 0
        %v5390 = vsel %vm5318, %v5385, 0
        %v5393 = vsel %vm5325, %v5376, 0
        %5395 = vmatpush.bf16.msra.mxu0 0
        %5396 = vmatpush.bf16.msra.mxu0 0
        %5397 = vmatpush.bf16.msra.mxu0 0
        %5398 = vmatpush.bf16.msra.mxu0 0
        %5399 = vmatpush.bf16.msra.mxu0 0
        %5400 = vmatpush.bf16.msra.mxu0 0
        %5401 = vmatpush.bf16.msra.mxu0 0
        %5402 = vmatpush.bf16.msra.mxu0 %v5393
        %5403 = vmatmul.bf16.gmra.mxu0 %v5387
        %v5404 = vpop.f32.mrf.mxu0
        %v5405 = vadd.f32 0.0, %v5404
        %v5406 = vpop.f32.mrf.mxu0
        %v5407 = vadd.f32 0.0, %v5406
        %5408 = vmatmul.bf16.gmra.mxu0 %v5390
        %v5409 = vpop.f32.mrf.mxu0
        %v5410 = vadd.f32 0.0, %v5409
        %v5411 = vpop.f32.mrf.mxu0
        %v5412 = vadd.f32 0.0, %v5411
        %5413 = vdwg.mxu0
        %v5414 = vadd.f32 %v5365, %v5405
        %v5415 = vadd.f32 %v5367, %v5407
        %v5416 = vadd.f32 %v5370, %v5410
        %v5417 = vadd.f32 %v5372, %v5412
        %s5418 = scalar_lea.vmem [#allocation2], 20
        %v5419 = vld [vmem:[%s5418] sm:$0xf]
        %v5420 = vld [vmem:[%s5418 + $0x4] sm:$0xf]
        %v5421 = vld [vmem:[%s5418 + $0x8] sm:$0xf]
        %v5422 = vld [vmem:[%s5418 + $0xc] sm:$0xf]
        %s5423 = scalar_lea.vmem %s4, 12
        %v5424 = vld [vmem:[%s5423] sm:$0xf]
        %v5429 = vunpack.c.l.b16 %v5419
        %v5430 = vunpack.c.l.b16 %v5420
        %v5431 = vunpack.c.l.b16 %v5421
        %v5432 = vunpack.c.l.b16 %v5422
        %v5433 = vpack.c.b16 %v5430, %v5429
        %v5434 = vpack.c.b16 %v5432, %v5431
        %v5436 = vsel %vm5318, %v5433, 0
        %v5439 = vsel %vm5318, %v5434, 0
        %v5442 = vsel %vm5325, %v5424, 0
        %5444 = vmatpush.bf16.msra.mxu0 0
        %5445 = vmatpush.bf16.msra.mxu0 0
        %5446 = vmatpush.bf16.msra.mxu0 0
        %5447 = vmatpush.bf16.msra.mxu0 0
        %5448 = vmatpush.bf16.msra.mxu0 0
        %5449 = vmatpush.bf16.msra.mxu0 0
        %5450 = vmatpush.bf16.msra.mxu0 0
        %5451 = vmatpush.bf16.msra.mxu0 %v5442
        %5452 = vmatmul.bf16.gmra.mxu0 %v5436
        %v5453 = vpop.f32.mrf.mxu0
        %v5454 = vadd.f32 0.0, %v5453
        %v5455 = vpop.f32.mrf.mxu0
        %v5456 = vadd.f32 0.0, %v5455
        %5457 = vmatmul.bf16.gmra.mxu0 %v5439
        %v5458 = vpop.f32.mrf.mxu0
        %v5459 = vadd.f32 0.0, %v5458
        %v5460 = vpop.f32.mrf.mxu0
        %v5461 = vadd.f32 0.0, %v5460
        %5462 = vdwg.mxu0
        %v5463 = vadd.f32 %v5414, %v5454
        %v5464 = vadd.f32 %v5415, %v5456
        %v5465 = vadd.f32 %v5416, %v5459
        %v5466 = vadd.f32 %v5417, %v5461
        %v5467 = vld [vmem:[%s5418] sm:$0xf]
        %v5468 = vld [vmem:[%s5418 + $0x4] sm:$0xf]
        %v5469 = vld [vmem:[%s5418 + $0x8] sm:$0xf]
        %v5470 = vld [vmem:[%s5418 + $0xc] sm:$0xf]
        %v5471 = vld [vmem:[%s5418 + $0x10] sm:$0x1]
        %s5472 = scalar_lea.vmem %s4, 16
        %v5473 = vld [vmem:[%s5472] sm:$0xf]
        %v5479 = vunpack.c.l.b16 %v5467
        %v5480 = vunpack.c.l.b16 %v5468
        %v5481 = vunpack.c.l.b16 %v5469
        %v5482 = vunpack.c.l.b16 %v5470
        %v5483 = vunpack.c.l.b16 %v5471
        %v5484 = vpack.c.b16 %v5480, %v5479
        %v5485 = vpack.c.b16 %v5482, %v5481
        %v5486 = vpack.c.b16 %v5483, %v5483
        %v5488 = vshrl.u32 %v5484, 16
        %v5490 = vshll.u32 %v5484, 16
        %v5492 = vrot.slane %v5490, 1
        %v5493 = vor.u32 %v5488, %v5492
        %v5495 = vshll.u32 %v5485, 16
        %v5497 = vrot.slane %v5495, 1
        %v5498 = vsel %vm5297, %v5493, %v5497
        %v5499 = vshrl.u32 %v5485, 16
        %v5501 = vor.u32 %v5499, %v5497
        %v5503 = vshll.u32 %v5486, 16
        %v5505 = vrot.slane %v5503, 1
        %v5506 = vsel %vm5297, %v5501, %v5505
        %v5508 = vsel %vm5318, %v5498, 0
        %v5511 = vsel %vm5318, %v5506, 0
        %v5514 = vsel %vm5325, %v5473, 0
        %5516 = vmatpush.bf16.msra.mxu0 0
        %5517 = vmatpush.bf16.msra.mxu0 0
        %5518 = vmatpush.bf16.msra.mxu0 0
        %5519 = vmatpush.bf16.msra.mxu0 0
        %5520 = vmatpush.bf16.msra.mxu0 0
        %5521 = vmatpush.bf16.msra.mxu0 0
        %5522 = vmatpush.bf16.msra.mxu0 0
        %5523 = vmatpush.bf16.msra.mxu0 %v5514
        %5524 = vmatmul.bf16.gmra.mxu0 %v5508
        %v5525 = vpop.f32.mrf.mxu0
        %v5526 = vadd.f32 0.0, %v5525
        %v5527 = vpop.f32.mrf.mxu0
        %v5528 = vadd.f32 0.0, %v5527
        %5529 = vmatmul.bf16.gmra.mxu0 %v5511
        %v5530 = vpop.f32.mrf.mxu0
        %v5531 = vadd.f32 0.0, %v5530
        %v5532 = vpop.f32.mrf.mxu0
        %v5533 = vadd.f32 0.0, %v5532
        %5534 = vdwg.mxu0
        %v5535 = vadd.f32 %v5463, %v5526
        %v5536 = vadd.f32 %v5464, %v5528
        %v5537 = vadd.f32 %v5465, %v5531
        %v5538 = vadd.f32 %v5466, %v5533
        %v5539 = vld [vmem:[%s5418] sm:$0xe]
        %s5540 = scalar_lea.vmem %s4, 20
        %v5541 = vld [vmem:[%s5540] sm:$0xf]
        %v5543 = vunpack.c.l.b16 %v5539
        %v5544 = vpack.c.b16 %v5480, %v5543
        %v5545 = vrot.slane %v5544, 1
        %v5546 = vrot.slane %v5485, 1
        %v5547 = vsel %vm5380, %v5545, %v5546
        %v5548 = vrot.slane %v5486, 1
        %v5549 = vsel %vm5380, %v5546, %v5548
        %v5551 = vsel %vm5318, %v5547, 0
        %v5554 = vsel %vm5318, %v5549, 0
        %v5557 = vsel %vm5325, %v5541, 0
        %5559 = vmatpush.bf16.msra.mxu0 0
        %5560 = vmatpush.bf16.msra.mxu0 0
        %5561 = vmatpush.bf16.msra.mxu0 0
        %5562 = vmatpush.bf16.msra.mxu0 0
        %5563 = vmatpush.bf16.msra.mxu0 0
        %5564 = vmatpush.bf16.msra.mxu0 0
        %5565 = vmatpush.bf16.msra.mxu0 0
        %5566 = vmatpush.bf16.msra.mxu0 %v5557
        %5567 = vmatmul.bf16.gmra.mxu0 %v5551
        %v5568 = vpop.f32.mrf.mxu0
        %v5569 = vadd.f32 0.0, %v5568
        %v5570 = vpop.f32.mrf.mxu0
        %v5571 = vadd.f32 0.0, %v5570
        %5572 = vmatmul.bf16.gmra.mxu0 %v5554
        %v5573 = vpop.f32.mrf.mxu0
        %v5574 = vadd.f32 0.0, %v5573
        %v5575 = vpop.f32.mrf.mxu0
        %v5576 = vadd.f32 0.0, %v5575
        %5577 = vdwg.mxu0
        %v5578 = vadd.f32 %v5535, %v5569
        %v5579 = vadd.f32 %v5536, %v5571
        %v5580 = vadd.f32 %v5537, %v5574
        %v5581 = vadd.f32 %v5538, %v5576
        %s5582 = scalar_lea.vmem [#allocation2], 40
        %v5583 = vld [vmem:[%s5582] sm:$0xf]
        %v5584 = vld [vmem:[%s5582 + $0x4] sm:$0xf]
        %v5585 = vld [vmem:[%s5582 + $0x8] sm:$0xf]
        %v5586 = vld [vmem:[%s5582 + $0xc] sm:$0xf]
        %s5587 = scalar_lea.vmem %s4, 24
        %v5588 = vld [vmem:[%s5587] sm:$0xf]
        %v5593 = vunpack.c.l.b16 %v5583
        %v5594 = vunpack.c.l.b16 %v5584
        %v5595 = vunpack.c.l.b16 %v5585
        %v5596 = vunpack.c.l.b16 %v5586
        %v5597 = vpack.c.b16 %v5594, %v5593
        %v5598 = vpack.c.b16 %v5596, %v5595
        %v5600 = vsel %vm5318, %v5597, 0
        %v5603 = vsel %vm5318, %v5598, 0
        %v5606 = vsel %vm5325, %v5588, 0
        %5608 = vmatpush.bf16.msra.mxu0 0
        %5609 = vmatpush.bf16.msra.mxu0 0
        %5610 = vmatpush.bf16.msra.mxu0 0
        %5611 = vmatpush.bf16.msra.mxu0 0
        %5612 = vmatpush.bf16.msra.mxu0 0
        %5613 = vmatpush.bf16.msra.mxu0 0
        %5614 = vmatpush.bf16.msra.mxu0 0
        %5615 = vmatpush.bf16.msra.mxu0 %v5606
        %5616 = vmatmul.bf16.gmra.mxu0 %v5600
        %v5617 = vpop.f32.mrf.mxu0
        %v5618 = vadd.f32 0.0, %v5617
        %v5619 = vpop.f32.mrf.mxu0
        %v5620 = vadd.f32 0.0, %v5619
        %5621 = vmatmul.bf16.gmra.mxu0 %v5603
        %v5622 = vpop.f32.mrf.mxu0
        %v5623 = vadd.f32 0.0, %v5622
        %v5624 = vpop.f32.mrf.mxu0
        %v5625 = vadd.f32 0.0, %v5624
        %5626 = vdwg.mxu0
        %v5627 = vadd.f32 %v5578, %v5618
        %v5628 = vadd.f32 %v5579, %v5620
        %v5629 = vadd.f32 %v5580, %v5623
        %v5630 = vadd.f32 %v5581, %v5625
        %v5631 = vld [vmem:[%s5582] sm:$0xf]
        %v5632 = vld [vmem:[%s5582 + $0x4] sm:$0xf]
        %v5633 = vld [vmem:[%s5582 + $0x8] sm:$0xf]
        %v5634 = vld [vmem:[%s5582 + $0xc] sm:$0xf]
        %v5635 = vld [vmem:[%s5582 + $0x10] sm:$0x1]
        %s5636 = scalar_lea.vmem %s4, 28
        %v5637 = vld [vmem:[%s5636] sm:$0xf]
        %v5643 = vunpack.c.l.b16 %v5631
        %v5644 = vunpack.c.l.b16 %v5632
        %v5645 = vunpack.c.l.b16 %v5633
        %v5646 = vunpack.c.l.b16 %v5634
        %v5647 = vunpack.c.l.b16 %v5635
        %v5648 = vpack.c.b16 %v5644, %v5643
        %v5649 = vpack.c.b16 %v5646, %v5645
        %v5650 = vpack.c.b16 %v5647, %v5647
        %v5652 = vshrl.u32 %v5648, 16
        %v5654 = vshll.u32 %v5648, 16
        %v5656 = vrot.slane %v5654, 1
        %v5657 = vor.u32 %v5652, %v5656
        %v5659 = vshll.u32 %v5649, 16
        %v5661 = vrot.slane %v5659, 1
        %v5662 = vsel %vm5297, %v5657, %v5661
        %v5663 = vshrl.u32 %v5649, 16
        %v5665 = vor.u32 %v5663, %v5661
        %v5667 = vshll.u32 %v5650, 16
        %v5669 = vrot.slane %v5667, 1
        %v5670 = vsel %vm5297, %v5665, %v5669
        %v5672 = vsel %vm5318, %v5662, 0
        %v5675 = vsel %vm5318, %v5670, 0
        %v5678 = vsel %vm5325, %v5637, 0
        %5680 = vmatpush.bf16.msra.mxu0 0
        %5681 = vmatpush.bf16.msra.mxu0 0
        %5682 = vmatpush.bf16.msra.mxu0 0
        %5683 = vmatpush.bf16.msra.mxu0 0
        %5684 = vmatpush.bf16.msra.mxu0 0
        %5685 = vmatpush.bf16.msra.mxu0 0
        %5686 = vmatpush.bf16.msra.mxu0 0
        %5687 = vmatpush.bf16.msra.mxu0 %v5678
        %5688 = vmatmul.bf16.gmra.mxu0 %v5672
        %v5689 = vpop.f32.mrf.mxu0
        %v5690 = vadd.f32 0.0, %v5689
        %v5691 = vpop.f32.mrf.mxu0
        %v5692 = vadd.f32 0.0, %v5691
        %5693 = vmatmul.bf16.gmra.mxu0 %v5675
        %v5694 = vpop.f32.mrf.mxu0
        %v5695 = vadd.f32 0.0, %v5694
        %v5696 = vpop.f32.mrf.mxu0
        %v5697 = vadd.f32 0.0, %v5696
        %5698 = vdwg.mxu0
        %v5699 = vadd.f32 %v5627, %v5690
        %v5700 = vadd.f32 %v5628, %v5692
        %v5701 = vadd.f32 %v5629, %v5695
        %v5702 = vadd.f32 %v5630, %v5697
        %v5703 = vld [vmem:[%s5582] sm:$0xe]
        %s5704 = scalar_lea.vmem %s4, 32
        %v5705 = vld [vmem:[%s5704] sm:$0xf]
        %v5707 = vunpack.c.l.b16 %v5703
        %v5708 = vpack.c.b16 %v5644, %v5707
        %v5709 = vrot.slane %v5708, 1
        %v5710 = vrot.slane %v5649, 1
        %v5711 = vsel %vm5380, %v5709, %v5710
        %v5712 = vrot.slane %v5650, 1
        %v5713 = vsel %vm5380, %v5710, %v5712
        %v5715 = vsel %vm5318, %v5711, 0
        %v5718 = vsel %vm5318, %v5713, 0
        %v5721 = vsel %vm5325, %v5705, 0
        %5723 = vmatpush.bf16.msra.mxu0 0
        %5724 = vmatpush.bf16.msra.mxu0 0
        %5725 = vmatpush.bf16.msra.mxu0 0
        %5726 = vmatpush.bf16.msra.mxu0 0
        %5727 = vmatpush.bf16.msra.mxu0 0
        %5728 = vmatpush.bf16.msra.mxu0 0
        %5729 = vmatpush.bf16.msra.mxu0 0
        %5730 = vmatpush.bf16.msra.mxu0 %v5721
        %5731 = vmatmul.bf16.gmra.mxu0 %v5715
        %v5732 = vpop.f32.mrf.mxu0
        %v5733 = vadd.f32 0.0, %v5732
        %v5734 = vpop.f32.mrf.mxu0
        %v5735 = vadd.f32 0.0, %v5734
        %5736 = vmatmul.bf16.gmra.mxu0 %v5718
        %v5737 = vpop.f32.mrf.mxu0
        %v5738 = vadd.f32 0.0, %v5737
        %v5739 = vpop.f32.mrf.mxu0
        %v5740 = vadd.f32 0.0, %v5739
        %5741 = vdwg.mxu0
        %v5742 = vadd.f32 %v5699, %v5733
        %v5743 = vadd.f32 %v5700, %v5735
        %v5744 = vadd.f32 %v5701, %v5738
        %v5745 = vadd.f32 %v5702, %v5740
        %v5747 = vperm.slane %v1045, 0
        %v5749 = vadd.f32 %v5742, %v5747
        %v5750 = vadd.f32 %v5743, %v5747
        %v5751 = vadd.f32 %v5744, %v5747
        %v5752 = vadd.f32 %v5745, %v5747
        %v5753 = vmax.f32 %v5749, 0.0
        %v5754 = vmax.f32 %v5750, 0.0
        %v5755 = vmax.f32 %v5751, 0.0
        %v5756 = vmax.f32 %v5752, 0.0
        %v5757 = vpack.c.bf16 %v5753, %v5753
        %v5758 = vpack.c.bf16 %v5754, %v5754
        %v5759 = vpack.c.bf16 %v5755, %v5755
        %v5760 = vpack.c.bf16 %v5756, %v5756
        %vm5761 = vsmask.f32 4368
        %vm5762 = vmor %vm334, %vm5761
        %v5764 = vshrl.u32 %v5757, 16
        %v5766 = vrot.slane %v5764, 7
        %v5767 = vshll.u32 %v5757, 16
        %v5769 = vor.u32 %v5766, %v5767
        %v5770 = vrot.slane %v5766, 4
        %v5772 = vshrl.u32 %v5758, 16
        %v5774 = vrot.slane %v5772, 7
        %v5775 = vshll.u32 %v5758, 16
        %v5777 = vor.u32 %v5774, %v5775
        %v5778 = vsel %vm5762, %v5770, %v5777
        %v5779 = vrot.slane %v5774, 4
        %v5781 = vshrl.u32 %v5759, 16
        %v5783 = vrot.slane %v5781, 7
        %v5784 = vshll.u32 %v5759, 16
        %v5786 = vor.u32 %v5783, %v5784
        %v5787 = vsel %vm5762, %v5779, %v5786
        %v5788 = vrot.slane %v5783, 4
        %v5790 = vshrl.u32 %v5760, 16
        %v5792 = vrot.slane %v5790, 7
        %v5793 = vshll.u32 %v5760, 16
        %v5795 = vor.u32 %v5792, %v5793
        %v5796 = vsel %vm5762, %v5788, %v5795
        %v5797 = vrot.slane %v5792, 4
        %vm5803 = vcmask 60416
        %vm5804 = vmand %vm5803, %vm396
        %v5805 = vld [vmem:[#allocation3] sm:$0xf]
        %v5806 = vsel %vm5804, %v5769, %v5805
        %5807 = vst [vmem:[#allocation3] sm:$0xf] %v5806
        %vm5808 = vcmask 60416
        %5809 = vst.msk [vmem:[#allocation3 + $0x4] sm:$0xf] %vm5808, %v5778
        %5810 = vst.msk [vmem:[#allocation3 + $0x8] sm:$0xf] %vm5808, %v5787
        %5811 = vst.msk [vmem:[#allocation3 + $0xc] sm:$0xf] %vm5808, %v5796
        %v5812 = vld [vmem:[#allocation3 + $0x10] sm:$0x1]
        %v5813 = vsel %vm335, %v5797, %v5812
        %5814 = vst [vmem:[#allocation3 + $0x10] sm:$0x1] %v5813
      $region86: #{tpu_custom_call.1} parent=51 // pred_fallthru
        _
      // Predicated region
      $region87: #{tpu_custom_call.1} parent=51 // pred_check
        %p5815 = pneg %p881
      $region88: #{tpu_custom_call.1} parent=51 // pred_check_branch
        %5817 = sbr.rel (%p5815) target = $region90
      $region89: #{tpu_custom_call.1} parent=51 // pred_region
        %vm5818 = vcmask 60416
        %5819 = vst.msk [vmem:[#allocation3] sm:$0xf] %vm5818, 0
        %5820 = vst.msk [vmem:[#allocation3 + $0x4] sm:$0xf] %vm5818, 0
        %5821 = vst.msk [vmem:[#allocation3 + $0x8] sm:$0xf] %vm5818, 0
        %5822 = vst.msk [vmem:[#allocation3 + $0xc] sm:$0xf] %vm5818, 0
        %vm5823 = vcmask 57344
        %5824 = vst.msk [vmem:[#allocation3 + $0x10] sm:$0x1] %vm5823, 0
      $region90: #{tpu_custom_call.1} parent=51 // pred_fallthru
        _
      // Predicated region
      $region91: #{tpu_custom_call.1} parent=51 // pred_check
        %p5825 = pneg %p897
      $region92: #{tpu_custom_call.1} parent=51 // pred_check_branch
        %5827 = sbr.rel (%p5825) target = $region94
      $region93: #{tpu_custom_call.1} parent=51 // pred_region
        %s5828 = scalar_lea.vmem [#allocation2], 340
        %v5829 = vld [vmem:[%s5828] sm:$0xf]
        %v5830 = vld [vmem:[%s5828 + $0x4] sm:$0xf]
        %v5831 = vld [vmem:[%s5828 + $0x8] sm:$0xf]
        %v5832 = vld [vmem:[%s5828 + $0xc] sm:$0xf]
        %v5833 = vld [vmem:[%s4] sm:$0xf]
        %v5834 = vld [vmem:[%s5828 + $0x10] sm:$0x1]
        %s5835 = scalar_lea.vmem %s4, 4
        %v5836 = vld [vmem:[%s5835] sm:$0xf]
        %v5842 = vunpack.c.l.b16 %v5829
        %v5843 = vunpack.c.l.b16 %v5830
        %v5844 = vunpack.c.l.b16 %v5831
        %v5845 = vunpack.c.l.b16 %v5832
        %v5846 = vunpack.c.l.b16 %v5834
        %v5847 = vpack.c.b16 %v5843, %v5842
        %v5848 = vpack.c.b16 %v5845, %v5844
        %v5849 = vpack.c.b16 %v5846, %v5846
        %vm5850 = vsmask.f32 7424
        %v5852 = vshrl.u32 %v5847, 16
        %v5854 = vshll.u32 %v5847, 16
        %v5856 = vrot.slane %v5854, 1
        %v5857 = vor.u32 %v5852, %v5856
        %v5859 = vshll.u32 %v5848, 16
        %v5861 = vrot.slane %v5859, 1
        %v5862 = vsel %vm5850, %v5857, %v5861
        %v5863 = vshrl.u32 %v5848, 16
        %v5865 = vor.u32 %v5863, %v5861
        %v5867 = vshll.u32 %v5849, 16
        %v5869 = vrot.slane %v5867, 1
        %v5870 = vsel %vm5850, %v5865, %v5869
        %vm5871 = vcmask 64512
        %v5873 = vsel %vm5871, %v5862, 0
        %v5876 = vsel %vm5871, %v5870, 0
        %vm5878 = vcmask 1043456
        %v5880 = vsel %vm5878, %v5836, 0
        %5882 = vmatpush.bf16.msra.mxu0 0
        %5883 = vmatpush.bf16.msra.mxu0 0
        %5884 = vmatpush.bf16.msra.mxu0 0
        %5885 = vmatpush.bf16.msra.mxu0 0
        %5886 = vmatpush.bf16.msra.mxu0 0
        %5887 = vmatpush.bf16.msra.mxu0 0
        %5888 = vmatpush.bf16.msra.mxu0 0
        %5889 = vmatpush.bf16.msra.mxu0 %v5880
        %5890 = vmatmul.bf16.gmra.mxu0 %v5873
        %v5891 = vpop.f32.mrf.mxu0
        %v5892 = vadd.f32 0.0, %v5891
        %v5893 = vpop.f32.mrf.mxu0
        %v5894 = vadd.f32 0.0, %v5893
        %5895 = vmatmul.bf16.gmra.mxu0 %v5876
        %v5896 = vpop.f32.mrf.mxu0
        %v5897 = vadd.f32 0.0, %v5896
        %v5898 = vpop.f32.mrf.mxu0
        %v5899 = vadd.f32 0.0, %v5898
        %5900 = vdwg.mxu0
        %v5901 = vsel %vm5871, %v5847, 0
        %v5903 = vsel %vm5871, %v5848, 0
        %v5906 = vsel %vm5878, %v5833, 0
        %5908 = vmatpush.bf16.msra.mxu0 0
        %5909 = vmatpush.bf16.msra.mxu0 0
        %5910 = vmatpush.bf16.msra.mxu0 0
        %5911 = vmatpush.bf16.msra.mxu0 0
        %5912 = vmatpush.bf16.msra.mxu0 0
        %5913 = vmatpush.bf16.msra.mxu0 0
        %5914 = vmatpush.bf16.msra.mxu0 0
        %5915 = vmatpush.bf16.msra.mxu0 %v5906
        %5916 = vmatmul.bf16.gmra.mxu0 %v5901
        %v5917 = vpop.f32.mrf.mxu0
        %v5918 = vadd.f32 %v5892, %v5917
        %v5919 = vpop.f32.mrf.mxu0
        %v5920 = vadd.f32 %v5894, %v5919
        %5921 = vmatmul.bf16.gmra.mxu0 %v5903
        %v5922 = vpop.f32.mrf.mxu0
        %v5923 = vadd.f32 %v5897, %v5922
        %v5924 = vpop.f32.mrf.mxu0
        %v5925 = vadd.f32 %v5899, %v5924
        %5926 = vdwg.mxu0
        %v5927 = vld [vmem:[%s5828] sm:$0xe]
        %s5928 = scalar_lea.vmem %s4, 8
        %v5929 = vld [vmem:[%s5928] sm:$0xf]
        %v5931 = vunpack.c.l.b16 %v5927
        %v5932 = vpack.c.b16 %v5843, %v5931
        %vm5933 = vcmask 1046528
        %v5934 = vrot.slane %v5932, 1
        %v5935 = vrot.slane %v5848, 1
        %v5936 = vsel %vm5933, %v5934, %v5935
        %v5937 = vrot.slane %v5849, 1
        %v5938 = vsel %vm5933, %v5935, %v5937
        %v5940 = vsel %vm5871, %v5936, 0
        %v5943 = vsel %vm5871, %v5938, 0
        %v5946 = vsel %vm5878, %v5929, 0
        %5948 = vmatpush.bf16.msra.mxu0 0
        %5949 = vmatpush.bf16.msra.mxu0 0
        %5950 = vmatpush.bf16.msra.mxu0 0
        %5951 = vmatpush.bf16.msra.mxu0 0
        %5952 = vmatpush.bf16.msra.mxu0 0
        %5953 = vmatpush.bf16.msra.mxu0 0
        %5954 = vmatpush.bf16.msra.mxu0 0
        %5955 = vmatpush.bf16.msra.mxu0 %v5946
        %5956 = vmatmul.bf16.gmra.mxu0 %v5940
        %v5957 = vpop.f32.mrf.mxu0
        %v5958 = vadd.f32 0.0, %v5957
        %v5959 = vpop.f32.mrf.mxu0
        %v5960 = vadd.f32 0.0, %v5959
        %5961 = vmatmul.bf16.gmra.mxu0 %v5943
        %v5962 = vpop.f32.mrf.mxu0
        %v5963 = vadd.f32 0.0, %v5962
        %v5964 = vpop.f32.mrf.mxu0
        %v5965 = vadd.f32 0.0, %v5964
        %5966 = vdwg.mxu0
        %v5967 = vadd.f32 %v5918, %v5958
        %v5968 = vadd.f32 %v5920, %v5960
        %v5969 = vadd.f32 %v5923, %v5963
        %v5970 = vadd.f32 %v5925, %v5965
        %s5971 = scalar_lea.vmem [#allocation2], 360
        %v5972 = vld [vmem:[%s5971] sm:$0xf]
        %v5973 = vld [vmem:[%s5971 + $0x4] sm:$0xf]
        %v5974 = vld [vmem:[%s5971 + $0x8] sm:$0xf]
        %v5975 = vld [vmem:[%s5971 + $0xc] sm:$0xf]
        %s5976 = scalar_lea.vmem %s4, 12
        %v5977 = vld [vmem:[%s5976] sm:$0xf]
        %v5982 = vunpack.c.l.b16 %v5972
        %v5983 = vunpack.c.l.b16 %v5973
        %v5984 = vunpack.c.l.b16 %v5974
        %v5985 = vunpack.c.l.b16 %v5975
        %v5986 = vpack.c.b16 %v5983, %v5982
        %v5987 = vpack.c.b16 %v5985, %v5984
        %v5989 = vsel %vm5871, %v5986, 0
        %v5992 = vsel %vm5871, %v5987, 0
        %v5995 = vsel %vm5878, %v5977, 0
        %5997 = vmatpush.bf16.msra.mxu0 0
        %5998 = vmatpush.bf16.msra.mxu0 0
        %5999 = vmatpush.bf16.msra.mxu0 0
        %6000 = vmatpush.bf16.msra.mxu0 0
        %6001 = vmatpush.bf16.msra.mxu0 0
        %6002 = vmatpush.bf16.msra.mxu0 0
        %6003 = vmatpush.bf16.msra.mxu0 0
        %6004 = vmatpush.bf16.msra.mxu0 %v5995
        %6005 = vmatmul.bf16.gmra.mxu0 %v5989
        %v6006 = vpop.f32.mrf.mxu0
        %v6007 = vadd.f32 0.0, %v6006
        %v6008 = vpop.f32.mrf.mxu0
        %v6009 = vadd.f32 0.0, %v6008
        %6010 = vmatmul.bf16.gmra.mxu0 %v5992
        %v6011 = vpop.f32.mrf.mxu0
        %v6012 = vadd.f32 0.0, %v6011
        %v6013 = vpop.f32.mrf.mxu0
        %v6014 = vadd.f32 0.0, %v6013
        %6015 = vdwg.mxu0
        %v6016 = vadd.f32 %v5967, %v6007
        %v6017 = vadd.f32 %v5968, %v6009
        %v6018 = vadd.f32 %v5969, %v6012
        %v6019 = vadd.f32 %v5970, %v6014
        %v6020 = vld [vmem:[%s5971] sm:$0xf]
        %v6021 = vld [vmem:[%s5971 + $0x4] sm:$0xf]
        %v6022 = vld [vmem:[%s5971 + $0x8] sm:$0xf]
        %v6023 = vld [vmem:[%s5971 + $0xc] sm:$0xf]
        %v6024 = vld [vmem:[%s5971 + $0x10] sm:$0x1]
        %s6025 = scalar_lea.vmem %s4, 16
        %v6026 = vld [vmem:[%s6025] sm:$0xf]
        %v6032 = vunpack.c.l.b16 %v6020
        %v6033 = vunpack.c.l.b16 %v6021
        %v6034 = vunpack.c.l.b16 %v6022
        %v6035 = vunpack.c.l.b16 %v6023
        %v6036 = vunpack.c.l.b16 %v6024
        %v6037 = vpack.c.b16 %v6033, %v6032
        %v6038 = vpack.c.b16 %v6035, %v6034
        %v6039 = vpack.c.b16 %v6036, %v6036
        %v6041 = vshrl.u32 %v6037, 16
        %v6043 = vshll.u32 %v6037, 16
        %v6045 = vrot.slane %v6043, 1
        %v6046 = vor.u32 %v6041, %v6045
        %v6048 = vshll.u32 %v6038, 16
        %v6050 = vrot.slane %v6048, 1
        %v6051 = vsel %vm5850, %v6046, %v6050
        %v6052 = vshrl.u32 %v6038, 16
        %v6054 = vor.u32 %v6052, %v6050
        %v6056 = vshll.u32 %v6039, 16
        %v6058 = vrot.slane %v6056, 1
        %v6059 = vsel %vm5850, %v6054, %v6058
        %v6061 = vsel %vm5871, %v6051, 0
        %v6064 = vsel %vm5871, %v6059, 0
        %v6067 = vsel %vm5878, %v6026, 0
        %6069 = vmatpush.bf16.msra.mxu0 0
        %6070 = vmatpush.bf16.msra.mxu0 0
        %6071 = vmatpush.bf16.msra.mxu0 0
        %6072 = vmatpush.bf16.msra.mxu0 0
        %6073 = vmatpush.bf16.msra.mxu0 0
        %6074 = vmatpush.bf16.msra.mxu0 0
        %6075 = vmatpush.bf16.msra.mxu0 0
        %6076 = vmatpush.bf16.msra.mxu0 %v6067
        %6077 = vmatmul.bf16.gmra.mxu0 %v6061
        %v6078 = vpop.f32.mrf.mxu0
        %v6079 = vadd.f32 0.0, %v6078
        %v6080 = vpop.f32.mrf.mxu0
        %v6081 = vadd.f32 0.0, %v6080
        %6082 = vmatmul.bf16.gmra.mxu0 %v6064
        %v6083 = vpop.f32.mrf.mxu0
        %v6084 = vadd.f32 0.0, %v6083
        %v6085 = vpop.f32.mrf.mxu0
        %v6086 = vadd.f32 0.0, %v6085
        %6087 = vdwg.mxu0
        %v6088 = vadd.f32 %v6016, %v6079
        %v6089 = vadd.f32 %v6017, %v6081
        %v6090 = vadd.f32 %v6018, %v6084
        %v6091 = vadd.f32 %v6019, %v6086
        %v6092 = vld [vmem:[%s5971] sm:$0xe]
        %s6093 = scalar_lea.vmem %s4, 20
        %v6094 = vld [vmem:[%s6093] sm:$0xf]
        %v6096 = vunpack.c.l.b16 %v6092
        %v6097 = vpack.c.b16 %v6033, %v6096
        %v6098 = vrot.slane %v6097, 1
        %v6099 = vrot.slane %v6038, 1
        %v6100 = vsel %vm5933, %v6098, %v6099
        %v6101 = vrot.slane %v6039, 1
        %v6102 = vsel %vm5933, %v6099, %v6101
        %v6104 = vsel %vm5871, %v6100, 0
        %v6107 = vsel %vm5871, %v6102, 0
        %v6110 = vsel %vm5878, %v6094, 0
        %6112 = vmatpush.bf16.msra.mxu0 0
        %6113 = vmatpush.bf16.msra.mxu0 0
        %6114 = vmatpush.bf16.msra.mxu0 0
        %6115 = vmatpush.bf16.msra.mxu0 0
        %6116 = vmatpush.bf16.msra.mxu0 0
        %6117 = vmatpush.bf16.msra.mxu0 0
        %6118 = vmatpush.bf16.msra.mxu0 0
        %6119 = vmatpush.bf16.msra.mxu0 %v6110
        %6120 = vmatmul.bf16.gmra.mxu0 %v6104
        %v6121 = vpop.f32.mrf.mxu0
        %v6122 = vadd.f32 0.0, %v6121
        %v6123 = vpop.f32.mrf.mxu0
        %v6124 = vadd.f32 0.0, %v6123
        %6125 = vmatmul.bf16.gmra.mxu0 %v6107
        %v6126 = vpop.f32.mrf.mxu0
        %v6127 = vadd.f32 0.0, %v6126
        %v6128 = vpop.f32.mrf.mxu0
        %v6129 = vadd.f32 0.0, %v6128
        %6130 = vdwg.mxu0
        %v6131 = vadd.f32 %v6088, %v6122
        %v6132 = vadd.f32 %v6089, %v6124
        %v6133 = vadd.f32 %v6090, %v6127
        %v6134 = vadd.f32 %v6091, %v6129
        %s6135 = scalar_lea.vmem [#allocation2], 380
        %v6136 = vld [vmem:[%s6135] sm:$0xf]
        %v6137 = vld [vmem:[%s6135 + $0x4] sm:$0xf]
        %v6138 = vld [vmem:[%s6135 + $0x8] sm:$0xf]
        %v6139 = vld [vmem:[%s6135 + $0xc] sm:$0xf]
        %s6140 = scalar_lea.vmem %s4, 24
        %v6141 = vld [vmem:[%s6140] sm:$0xf]
        %v6146 = vunpack.c.l.b16 %v6136
        %v6147 = vunpack.c.l.b16 %v6137
        %v6148 = vunpack.c.l.b16 %v6138
        %v6149 = vunpack.c.l.b16 %v6139
        %v6150 = vpack.c.b16 %v6147, %v6146
        %v6151 = vpack.c.b16 %v6149, %v6148
        %v6153 = vsel %vm5871, %v6150, 0
        %v6156 = vsel %vm5871, %v6151, 0
        %v6159 = vsel %vm5878, %v6141, 0
        %6161 = vmatpush.bf16.msra.mxu0 0
        %6162 = vmatpush.bf16.msra.mxu0 0
        %6163 = vmatpush.bf16.msra.mxu0 0
        %6164 = vmatpush.bf16.msra.mxu0 0
        %6165 = vmatpush.bf16.msra.mxu0 0
        %6166 = vmatpush.bf16.msra.mxu0 0
        %6167 = vmatpush.bf16.msra.mxu0 0
        %6168 = vmatpush.bf16.msra.mxu0 %v6159
        %6169 = vmatmul.bf16.gmra.mxu0 %v6153
        %v6170 = vpop.f32.mrf.mxu0
        %v6171 = vadd.f32 0.0, %v6170
        %v6172 = vpop.f32.mrf.mxu0
        %v6173 = vadd.f32 0.0, %v6172
        %6174 = vmatmul.bf16.gmra.mxu0 %v6156
        %v6175 = vpop.f32.mrf.mxu0
        %v6176 = vadd.f32 0.0, %v6175
        %v6177 = vpop.f32.mrf.mxu0
        %v6178 = vadd.f32 0.0, %v6177
        %6179 = vdwg.mxu0
        %v6180 = vadd.f32 %v6131, %v6171
        %v6181 = vadd.f32 %v6132, %v6173
        %v6182 = vadd.f32 %v6133, %v6176
        %v6183 = vadd.f32 %v6134, %v6178
        %v6184 = vld [vmem:[%s6135] sm:$0xf]
        %v6185 = vld [vmem:[%s6135 + $0x4] sm:$0xf]
        %v6186 = vld [vmem:[%s6135 + $0x8] sm:$0xf]
        %v6187 = vld [vmem:[%s6135 + $0xc] sm:$0xf]
        %v6188 = vld [vmem:[%s6135 + $0x10] sm:$0x1]
        %s6189 = scalar_lea.vmem %s4, 28
        %v6190 = vld [vmem:[%s6189] sm:$0xf]
        %v6196 = vunpack.c.l.b16 %v6184
        %v6197 = vunpack.c.l.b16 %v6185
        %v6198 = vunpack.c.l.b16 %v6186
        %v6199 = vunpack.c.l.b16 %v6187
        %v6200 = vunpack.c.l.b16 %v6188
        %v6201 = vpack.c.b16 %v6197, %v6196
        %v6202 = vpack.c.b16 %v6199, %v6198
        %v6203 = vpack.c.b16 %v6200, %v6200
        %v6205 = vshrl.u32 %v6201, 16
        %v6207 = vshll.u32 %v6201, 16
        %v6209 = vrot.slane %v6207, 1
        %v6210 = vor.u32 %v6205, %v6209
        %v6212 = vshll.u32 %v6202, 16
        %v6214 = vrot.slane %v6212, 1
        %v6215 = vsel %vm5850, %v6210, %v6214
        %v6216 = vshrl.u32 %v6202, 16
        %v6218 = vor.u32 %v6216, %v6214
        %v6220 = vshll.u32 %v6203, 16
        %v6222 = vrot.slane %v6220, 1
        %v6223 = vsel %vm5850, %v6218, %v6222
        %v6225 = vsel %vm5871, %v6215, 0
        %v6228 = vsel %vm5871, %v6223, 0
        %v6231 = vsel %vm5878, %v6190, 0
        %6233 = vmatpush.bf16.msra.mxu0 0
        %6234 = vmatpush.bf16.msra.mxu0 0
        %6235 = vmatpush.bf16.msra.mxu0 0
        %6236 = vmatpush.bf16.msra.mxu0 0
        %6237 = vmatpush.bf16.msra.mxu0 0
        %6238 = vmatpush.bf16.msra.mxu0 0
        %6239 = vmatpush.bf16.msra.mxu0 0
        %6240 = vmatpush.bf16.msra.mxu0 %v6231
        %6241 = vmatmul.bf16.gmra.mxu0 %v6225
        %v6242 = vpop.f32.mrf.mxu0
        %v6243 = vadd.f32 0.0, %v6242
        %v6244 = vpop.f32.mrf.mxu0
        %v6245 = vadd.f32 0.0, %v6244
        %6246 = vmatmul.bf16.gmra.mxu0 %v6228
        %v6247 = vpop.f32.mrf.mxu0
        %v6248 = vadd.f32 0.0, %v6247
        %v6249 = vpop.f32.mrf.mxu0
        %v6250 = vadd.f32 0.0, %v6249
        %6251 = vdwg.mxu0
        %v6252 = vadd.f32 %v6180, %v6243
        %v6253 = vadd.f32 %v6181, %v6245
        %v6254 = vadd.f32 %v6182, %v6248
        %v6255 = vadd.f32 %v6183, %v6250
        %v6256 = vld [vmem:[%s6135] sm:$0xe]
        %s6257 = scalar_lea.vmem %s4, 32
        %v6258 = vld [vmem:[%s6257] sm:$0xf]
        %v6260 = vunpack.c.l.b16 %v6256
        %v6261 = vpack.c.b16 %v6197, %v6260
        %v6262 = vrot.slane %v6261, 1
        %v6263 = vrot.slane %v6202, 1
        %v6264 = vsel %vm5933, %v6262, %v6263
        %v6265 = vrot.slane %v6203, 1
        %v6266 = vsel %vm5933, %v6263, %v6265
        %v6268 = vsel %vm5871, %v6264, 0
        %v6271 = vsel %vm5871, %v6266, 0
        %v6274 = vsel %vm5878, %v6258, 0
        %6276 = vmatpush.bf16.msra.mxu0 0
        %6277 = vmatpush.bf16.msra.mxu0 0
        %6278 = vmatpush.bf16.msra.mxu0 0
        %6279 = vmatpush.bf16.msra.mxu0 0
        %6280 = vmatpush.bf16.msra.mxu0 0
        %6281 = vmatpush.bf16.msra.mxu0 0
        %6282 = vmatpush.bf16.msra.mxu0 0
        %6283 = vmatpush.bf16.msra.mxu0 %v6274
        %6284 = vmatmul.bf16.gmra.mxu0 %v6268
        %v6285 = vpop.f32.mrf.mxu0
        %v6286 = vadd.f32 0.0, %v6285
        %v6287 = vpop.f32.mrf.mxu0
        %v6288 = vadd.f32 0.0, %v6287
        %6289 = vmatmul.bf16.gmra.mxu0 %v6271
        %v6290 = vpop.f32.mrf.mxu0
        %v6291 = vadd.f32 0.0, %v6290
        %v6292 = vpop.f32.mrf.mxu0
        %v6293 = vadd.f32 0.0, %v6292
        %6294 = vdwg.mxu0
        %v6295 = vadd.f32 %v6252, %v6286
        %v6296 = vadd.f32 %v6253, %v6288
        %v6297 = vadd.f32 %v6254, %v6291
        %v6298 = vadd.f32 %v6255, %v6293
        %v6300 = vperm.slane %v1045, 0
        %v6302 = vadd.f32 %v6295, %v6300
        %v6303 = vadd.f32 %v6296, %v6300
        %v6304 = vadd.f32 %v6297, %v6300
        %v6305 = vadd.f32 %v6298, %v6300
        %v6306 = vmax.f32 %v6302, 0.0
        %v6307 = vmax.f32 %v6303, 0.0
        %v6308 = vmax.f32 %v6304, 0.0
        %v6309 = vmax.f32 %v6305, 0.0
        %v6310 = vpack.c.bf16 %v6306, %v6306
        %v6311 = vpack.c.bf16 %v6307, %v6307
        %v6312 = vpack.c.bf16 %v6308, %v6308
        %v6313 = vpack.c.bf16 %v6309, %v6309
        %vm6314 = vsmask.f32 4368
        %vm6315 = vmor %vm334, %vm6314
        %v6317 = vshrl.u32 %v6310, 16
        %v6319 = vrot.slane %v6317, 7
        %v6320 = vshll.u32 %v6310, 16
        %v6322 = vor.u32 %v6319, %v6320
        %v6323 = vrot.slane %v6319, 4
        %v6325 = vshrl.u32 %v6311, 16
        %v6327 = vrot.slane %v6325, 7
        %v6328 = vshll.u32 %v6311, 16
        %v6330 = vor.u32 %v6327, %v6328
        %v6331 = vsel %vm6315, %v6323, %v6330
        %v6332 = vrot.slane %v6327, 4
        %v6334 = vshrl.u32 %v6312, 16
        %v6336 = vrot.slane %v6334, 7
        %v6337 = vshll.u32 %v6312, 16
        %v6339 = vor.u32 %v6336, %v6337
        %v6340 = vsel %vm6315, %v6332, %v6339
        %v6341 = vrot.slane %v6336, 4
        %v6343 = vshrl.u32 %v6313, 16
        %v6345 = vrot.slane %v6343, 7
        %v6346 = vshll.u32 %v6313, 16
        %v6348 = vor.u32 %v6345, %v6346
        %v6349 = vsel %vm6315, %v6341, %v6348
        %v6350 = vrot.slane %v6345, 4
        %s6356 = scalar_lea.vmem [#allocation3], 340
        %vm6357 = vcmask 60416
        %vm6358 = vmand %vm6357, %vm396
        %v6359 = vld [vmem:[%s6356] sm:$0xf]
        %v6360 = vsel %vm6358, %v6322, %v6359
        %6361 = vst [vmem:[%s6356] sm:$0xf] %v6360
        %vm6362 = vcmask 60416
        %6363 = vst.msk [vmem:[%s6356 + $0x4] sm:$0xf] %vm6362, %v6331
        %6364 = vst.msk [vmem:[%s6356 + $0x8] sm:$0xf] %vm6362, %v6340
        %6365 = vst.msk [vmem:[%s6356 + $0xc] sm:$0xf] %vm6362, %v6349
        %v6366 = vld [vmem:[%s6356 + $0x10] sm:$0x1]
        %v6367 = vsel %vm335, %v6350, %v6366
        %6368 = vst [vmem:[%s6356 + $0x10] sm:$0x1] %v6367
      $region94: #{tpu_custom_call.1} parent=51 // pred_fallthru
        _
      // Predicated region
      $region95: #{tpu_custom_call.1} parent=51 // pred_check
        %p6369 = pneg %p1028
      $region96: #{tpu_custom_call.1} parent=51 // pred_check_branch
        %6371 = sbr.rel (%p6369) target = $region98
      $region97: #{tpu_custom_call.1} parent=51 // pred_region
        %s6372 = scalar_lea.vmem [#allocation3], 340
        %vm6373 = vcmask 60416
        %6374 = vst.msk [vmem:[%s6372] sm:$0xf] %vm6373, 0
        %6375 = vst.msk [vmem:[%s6372 + $0x4] sm:$0xf] %vm6373, 0
        %6376 = vst.msk [vmem:[%s6372 + $0x8] sm:$0xf] %vm6373, 0
        %6377 = vst.msk [vmem:[%s6372 + $0xc] sm:$0xf] %vm6373, 0
        %vm6378 = vcmask 57344
        %6379 = vst.msk [vmem:[%s6372 + $0x10] sm:$0x1] %vm6378, 0
      $region98: #{tpu_custom_call.1} parent=51 // pred_fallthru
        _
      loop: start=0, step=1, limit=2
      $region99: #{tpu_custom_call.1} parent=51 // loop_pre_header
        _
      $region100: #{tpu_custom_call.1} parent=51 // loop_header
        %s6381 = sphi 0, %s6385
        %p6382 = scmp.ge.s32.totalorder %s6381, 2
      $region101: #{tpu_custom_call.1} parent=51 // loop_header_branch
        %6384 = sbr.rel (%p6382) target = $region105
      $region102: #{tpu_custom_call.1} parent=51 // loop_body
        %s6386 = smul.u32 %s6381, 8
        %s6387 = smul.u32 %s6386, 5
        %s6388 = smul.addr %s6387, 4
        %s6389 = scalar_lea.vmem [#allocation3], %s6388
        %v6390 = vld [vmem:[%s6389] sm:$0xf]
        %v6391 = vld [vmem:[%s6389 + $0x4] sm:$0xf]
        %v6392 = vld [vmem:[%s6389 + $0x8] sm:$0xf]
        %v6393 = vld [vmem:[%s6389 + $0xc] sm:$0xf]
        %v6394 = vld [vmem:[%s6389 + $0x14] sm:$0xf]
        %v6395 = vld [vmem:[%s6389 + $0x18] sm:$0xf]
        %v6396 = vld [vmem:[%s6389 + $0x1c] sm:$0xf]
        %v6397 = vld [vmem:[%s6389 + $0x20] sm:$0xf]
        %v6398 = vld [vmem:[%s6389 + $0x28] sm:$0xf]
        %v6399 = vld [vmem:[%s6389 + $0x2c] sm:$0xf]
        %v6400 = vld [vmem:[%s6389 + $0x30] sm:$0xf]
        %v6401 = vld [vmem:[%s6389 + $0x34] sm:$0xf]
        %v6402 = vld [vmem:[%s6389 + $0x3c] sm:$0xf]
        %v6403 = vld [vmem:[%s6389 + $0x40] sm:$0xf]
        %v6404 = vld [vmem:[%s6389 + $0x44] sm:$0xf]
        %v6405 = vld [vmem:[%s6389 + $0x48] sm:$0xf]
        %v6406 = vld [vmem:[%s6389 + $0x50] sm:$0xf]
        %v6407 = vld [vmem:[%s6389 + $0x54] sm:$0xf]
        %v6408 = vld [vmem:[%s6389 + $0x58] sm:$0xf]
        %v6409 = vld [vmem:[%s6389 + $0x5c] sm:$0xf]
        %v6410 = vld [vmem:[%s6389 + $0x64] sm:$0xf]
        %v6411 = vld [vmem:[%s6389 + $0x68] sm:$0xf]
        %v6412 = vld [vmem:[%s6389 + $0x6c] sm:$0xf]
        %v6413 = vld [vmem:[%s6389 + $0x70] sm:$0xf]
        %v6414 = vld [vmem:[%s6389 + $0x78] sm:$0xf]
        %v6415 = vld [vmem:[%s6389 + $0x7c] sm:$0xf]
        %v6416 = vld [vmem:[%s6389 + $0x80] sm:$0xf]
        %v6417 = vld [vmem:[%s6389 + $0x84] sm:$0xf]
        %v6418 = vld [vmem:[%s6389 + $0x8c] sm:$0xf]
        %v6419 = vld [vmem:[%s6389 + $0x90] sm:$0xf]
        %v6420 = vld [vmem:[%s6389 + $0x94] sm:$0xf]
        %v6421 = vld [vmem:[%s6389 + $0x98] sm:$0xf]
        %v6422 = vld [vmem:[%s6] sm:$0xf]
        %v6423 = vld [vmem:[%s6389 + $0x10] sm:$0x1]
        %v6424 = vld [vmem:[%s6389 + $0x24] sm:$0x1]
        %v6425 = vld [vmem:[%s6389 + $0x38] sm:$0x1]
        %v6426 = vld [vmem:[%s6389 + $0x4c] sm:$0x1]
        %v6427 = vld [vmem:[%s6389 + $0x60] sm:$0x1]
        %v6428 = vld [vmem:[%s6389 + $0x74] sm:$0x1]
        %v6429 = vld [vmem:[%s6389 + $0x88] sm:$0x1]
        %v6430 = vld [vmem:[%s6389 + $0x9c] sm:$0x1]
        %vm6431 = vsmask.f32 3328
        %vm6432 = vsmask.f32 7440
        %vm6433 = vmor %vm6431, %vm6432
        %v6435 = vshrl.u32 %v6390, 16
        %v6437 = vrot.slane %v6435, 4
        %v6438 = vshll.u32 %v6390, 16
        %v6440 = vrot.slane %v6438, 5
        %v6441 = vor.u32 %v6437, %v6440
        %v6442 = vrot.slane %v6441, 4
        %v6444 = vshll.u32 %v6391, 16
        %v6446 = vrot.slane %v6444, 5
        %v6447 = vsel %vm6433, %v6442, %v6446
        %v6448 = vshrl.u32 %v6391, 16
        %v6450 = vrot.slane %v6448, 4
        %v6451 = vor.u32 %v6450, %v6446
        %v6452 = vrot.slane %v6451, 4
        %v6454 = vshll.u32 %v6392, 16
        %v6456 = vrot.slane %v6454, 5
        %v6457 = vsel %vm6433, %v6452, %v6456
        %v6458 = vshrl.u32 %v6392, 16
        %v6460 = vrot.slane %v6458, 4
        %v6461 = vor.u32 %v6460, %v6456
        %v6462 = vrot.slane %v6461, 4
        %v6464 = vshll.u32 %v6393, 16
        %v6466 = vrot.slane %v6464, 5
        %v6467 = vsel %vm6433, %v6462, %v6466
        %v6468 = vshrl.u32 %v6393, 16
        %v6470 = vrot.slane %v6468, 4
        %v6471 = vor.u32 %v6470, %v6466
        %v6472 = vrot.slane %v6471, 4
        %v6474 = vshll.u32 %v6423, 16
        %v6476 = vrot.slane %v6474, 5
        %v6477 = vsel %vm6433, %v6472, %v6476
        %v6479 = vshrl.u32 %v6394, 16
        %v6481 = vrot.slane %v6479, 4
        %v6482 = vshll.u32 %v6394, 16
        %v6484 = vrot.slane %v6482, 5
        %v6485 = vor.u32 %v6481, %v6484
        %v6486 = vrot.slane %v6485, 4
        %v6488 = vshll.u32 %v6395, 16
        %v6490 = vrot.slane %v6488, 5
        %v6491 = vsel %vm6433, %v6486, %v6490
        %v6492 = vshrl.u32 %v6395, 16
        %v6494 = vrot.slane %v6492, 4
        %v6495 = vor.u32 %v6494, %v6490
        %v6496 = vrot.slane %v6495, 4
        %v6498 = vshll.u32 %v6396, 16
        %v6500 = vrot.slane %v6498, 5
        %v6501 = vsel %vm6433, %v6496, %v6500
        %v6502 = vshrl.u32 %v6396, 16
        %v6504 = vrot.slane %v6502, 4
        %v6505 = vor.u32 %v6504, %v6500
        %v6506 = vrot.slane %v6505, 4
        %v6508 = vshll.u32 %v6397, 16
        %v6510 = vrot.slane %v6508, 5
        %v6511 = vsel %vm6433, %v6506, %v6510
        %v6512 = vshrl.u32 %v6397, 16
        %v6514 = vrot.slane %v6512, 4
        %v6515 = vor.u32 %v6514, %v6510
        %v6516 = vrot.slane %v6515, 4
        %v6518 = vshll.u32 %v6424, 16
        %v6520 = vrot.slane %v6518, 5
        %v6521 = vsel %vm6433, %v6516, %v6520
        %v6523 = vshrl.u32 %v6398, 16
        %v6525 = vrot.slane %v6523, 4
        %v6526 = vshll.u32 %v6398, 16
        %v6528 = vrot.slane %v6526, 5
        %v6529 = vor.u32 %v6525, %v6528
        %v6530 = vrot.slane %v6529, 4
        %v6532 = vshll.u32 %v6399, 16
        %v6534 = vrot.slane %v6532, 5
        %v6535 = vsel %vm6433, %v6530, %v6534
        %v6536 = vshrl.u32 %v6399, 16
        %v6538 = vrot.slane %v6536, 4
        %v6539 = vor.u32 %v6538, %v6534
        %v6540 = vrot.slane %v6539, 4
        %v6542 = vshll.u32 %v6400, 16
        %v6544 = vrot.slane %v6542, 5
        %v6545 = vsel %vm6433, %v6540, %v6544
        %v6546 = vshrl.u32 %v6400, 16
        %v6548 = vrot.slane %v6546, 4
        %v6549 = vor.u32 %v6548, %v6544
        %v6550 = vrot.slane %v6549, 4
        %v6552 = vshll.u32 %v6401, 16
        %v6554 = vrot.slane %v6552, 5
        %v6555 = vsel %vm6433, %v6550, %v6554
        %v6556 = vshrl.u32 %v6401, 16
        %v6558 = vrot.slane %v6556, 4
        %v6559 = vor.u32 %v6558, %v6554
        %v6560 = vrot.slane %v6559, 4
        %v6562 = vshll.u32 %v6425, 16
        %v6564 = vrot.slane %v6562, 5
        %v6565 = vsel %vm6433, %v6560, %v6564
        %v6567 = vshrl.u32 %v6402, 16
        %v6569 = vrot.slane %v6567, 4
        %v6570 = vshll.u32 %v6402, 16
        %v6572 = vrot.slane %v6570, 5
        %v6573 = vor.u32 %v6569, %v6572
        %v6574 = vrot.slane %v6573, 4
        %v6576 = vshll.u32 %v6403, 16
        %v6578 = vrot.slane %v6576, 5
        %v6579 = vsel %vm6433, %v6574, %v6578
        %v6580 = vshrl.u32 %v6403, 16
        %v6582 = vrot.slane %v6580, 4
        %v6583 = vor.u32 %v6582, %v6578
        %v6584 = vrot.slane %v6583, 4
        %v6586 = vshll.u32 %v6404, 16
        %v6588 = vrot.slane %v6586, 5
        %v6589 = vsel %vm6433, %v6584, %v6588
        %v6590 = vshrl.u32 %v6404, 16
        %v6592 = vrot.slane %v6590, 4
        %v6593 = vor.u32 %v6592, %v6588
        %v6594 = vrot.slane %v6593, 4
        %v6596 = vshll.u32 %v6405, 16
        %v6598 = vrot.slane %v6596, 5
        %v6599 = vsel %vm6433, %v6594, %v6598
        %v6600 = vshrl.u32 %v6405, 16
        %v6602 = vrot.slane %v6600, 4
        %v6603 = vor.u32 %v6602, %v6598
        %v6604 = vrot.slane %v6603, 4
        %v6606 = vshll.u32 %v6426, 16
        %v6608 = vrot.slane %v6606, 5
        %v6609 = vsel %vm6433, %v6604, %v6608
        %v6611 = vshrl.u32 %v6406, 16
        %v6613 = vrot.slane %v6611, 4
        %v6614 = vshll.u32 %v6406, 16
        %v6616 = vrot.slane %v6614, 5
        %v6617 = vor.u32 %v6613, %v6616
        %v6618 = vrot.slane %v6617, 4
        %v6620 = vshll.u32 %v6407, 16
        %v6622 = vrot.slane %v6620, 5
        %v6623 = vsel %vm6433, %v6618, %v6622
        %v6624 = vshrl.u32 %v6407, 16
        %v6626 = vrot.slane %v6624, 4
        %v6627 = vor.u32 %v6626, %v6622
        %v6628 = vrot.slane %v6627, 4
        %v6630 = vshll.u32 %v6408, 16
        %v6632 = vrot.slane %v6630, 5
        %v6633 = vsel %vm6433, %v6628, %v6632
        %v6634 = vshrl.u32 %v6408, 16
        %v6636 = vrot.slane %v6634, 4
        %v6637 = vor.u32 %v6636, %v6632
        %v6638 = vrot.slane %v6637, 4
        %v6640 = vshll.u32 %v6409, 16
        %v6642 = vrot.slane %v6640, 5
        %v6643 = vsel %vm6433, %v6638, %v6642
        %v6644 = vshrl.u32 %v6409, 16
        %v6646 = vrot.slane %v6644, 4
        %v6647 = vor.u32 %v6646, %v6642
        %v6648 = vrot.slane %v6647, 4
        %v6650 = vshll.u32 %v6427, 16
        %v6652 = vrot.slane %v6650, 5
        %v6653 = vsel %vm6433, %v6648, %v6652
        %v6655 = vshrl.u32 %v6410, 16
        %v6657 = vrot.slane %v6655, 4
        %v6658 = vshll.u32 %v6410, 16
        %v6660 = vrot.slane %v6658, 5
        %v6661 = vor.u32 %v6657, %v6660
        %v6662 = vrot.slane %v6661, 4
        %v6664 = vshll.u32 %v6411, 16
        %v6666 = vrot.slane %v6664, 5
        %v6667 = vsel %vm6433, %v6662, %v6666
        %v6668 = vshrl.u32 %v6411, 16
        %v6670 = vrot.slane %v6668, 4
        %v6671 = vor.u32 %v6670, %v6666
        %v6672 = vrot.slane %v6671, 4
        %v6674 = vshll.u32 %v6412, 16
        %v6676 = vrot.slane %v6674, 5
        %v6677 = vsel %vm6433, %v6672, %v6676
        %v6678 = vshrl.u32 %v6412, 16
        %v6680 = vrot.slane %v6678, 4
        %v6681 = vor.u32 %v6680, %v6676
        %v6682 = vrot.slane %v6681, 4
        %v6684 = vshll.u32 %v6413, 16
        %v6686 = vrot.slane %v6684, 5
        %v6687 = vsel %vm6433, %v6682, %v6686
        %v6688 = vshrl.u32 %v6413, 16
        %v6690 = vrot.slane %v6688, 4
        %v6691 = vor.u32 %v6690, %v6686
        %v6692 = vrot.slane %v6691, 4
        %v6694 = vshll.u32 %v6428, 16
        %v6696 = vrot.slane %v6694, 5
        %v6697 = vsel %vm6433, %v6692, %v6696
        %v6699 = vshrl.u32 %v6414, 16
        %v6701 = vrot.slane %v6699, 4
        %v6702 = vshll.u32 %v6414, 16
        %v6704 = vrot.slane %v6702, 5
        %v6705 = vor.u32 %v6701, %v6704
        %v6706 = vrot.slane %v6705, 4
        %v6708 = vshll.u32 %v6415, 16
        %v6710 = vrot.slane %v6708, 5
        %v6711 = vsel %vm6433, %v6706, %v6710
        %v6712 = vshrl.u32 %v6415, 16
        %v6714 = vrot.slane %v6712, 4
        %v6715 = vor.u32 %v6714, %v6710
        %v6716 = vrot.slane %v6715, 4
        %v6718 = vshll.u32 %v6416, 16
        %v6720 = vrot.slane %v6718, 5
        %v6721 = vsel %vm6433, %v6716, %v6720
        %v6722 = vshrl.u32 %v6416, 16
        %v6724 = vrot.slane %v6722, 4
        %v6725 = vor.u32 %v6724, %v6720
        %v6726 = vrot.slane %v6725, 4
        %v6728 = vshll.u32 %v6417, 16
        %v6730 = vrot.slane %v6728, 5
        %v6731 = vsel %vm6433, %v6726, %v6730
        %v6732 = vshrl.u32 %v6417, 16
        %v6734 = vrot.slane %v6732, 4
        %v6735 = vor.u32 %v6734, %v6730
        %v6736 = vrot.slane %v6735, 4
        %v6738 = vshll.u32 %v6429, 16
        %v6740 = vrot.slane %v6738, 5
        %v6741 = vsel %vm6433, %v6736, %v6740
        %v6743 = vshrl.u32 %v6418, 16
        %v6745 = vrot.slane %v6743, 4
        %v6746 = vshll.u32 %v6418, 16
        %v6748 = vrot.slane %v6746, 5
        %v6749 = vor.u32 %v6745, %v6748
        %v6750 = vrot.slane %v6749, 4
        %v6752 = vshll.u32 %v6419, 16
        %v6754 = vrot.slane %v6752, 5
        %v6755 = vsel %vm6433, %v6750, %v6754
        %v6756 = vshrl.u32 %v6419, 16
        %v6758 = vrot.slane %v6756, 4
        %v6759 = vor.u32 %v6758, %v6754
        %v6760 = vrot.slane %v6759, 4
        %v6762 = vshll.u32 %v6420, 16
        %v6764 = vrot.slane %v6762, 5
        %v6765 = vsel %vm6433, %v6760, %v6764
        %v6766 = vshrl.u32 %v6420, 16
        %v6768 = vrot.slane %v6766, 4
        %v6769 = vor.u32 %v6768, %v6764
        %v6770 = vrot.slane %v6769, 4
        %v6772 = vshll.u32 %v6421, 16
        %v6774 = vrot.slane %v6772, 5
        %v6775 = vsel %vm6433, %v6770, %v6774
        %v6776 = vshrl.u32 %v6421, 16
        %v6778 = vrot.slane %v6776, 4
        %v6779 = vor.u32 %v6778, %v6774
        %v6780 = vrot.slane %v6779, 4
        %v6782 = vshll.u32 %v6430, 16
        %v6784 = vrot.slane %v6782, 5
        %v6785 = vsel %vm6433, %v6780, %v6784
        %s6786 = scalar_lea.vmem %s6, 4
        %v6787 = vld [vmem:[%s6786] sm:$0xf]
        %v6788 = vunpack.c.l.b16 %v6447
        %v6789 = vunpack.c.l.b16 %v6457
        %v6790 = vunpack.c.l.b16 %v6467
        %v6791 = vunpack.c.l.b16 %v6477
        %v6792 = vunpack.c.l.b16 %v6491
        %v6793 = vunpack.c.l.b16 %v6501
        %v6794 = vunpack.c.l.b16 %v6511
        %v6795 = vunpack.c.l.b16 %v6521
        %v6796 = vunpack.c.l.b16 %v6535
        %v6797 = vunpack.c.l.b16 %v6545
        %v6798 = vunpack.c.l.b16 %v6555
        %v6799 = vunpack.c.l.b16 %v6565
        %v6800 = vunpack.c.l.b16 %v6579
        %v6801 = vunpack.c.l.b16 %v6589
        %v6802 = vunpack.c.l.b16 %v6599
        %v6803 = vunpack.c.l.b16 %v6609
        %v6804 = vunpack.c.l.b16 %v6623
        %v6805 = vunpack.c.l.b16 %v6633
        %v6806 = vunpack.c.l.b16 %v6643
        %v6807 = vunpack.c.l.b16 %v6653
        %v6808 = vunpack.c.l.b16 %v6667
        %v6809 = vunpack.c.l.b16 %v6677
        %v6810 = vunpack.c.l.b16 %v6687
        %v6811 = vunpack.c.l.b16 %v6697
        %v6812 = vunpack.c.l.b16 %v6711
        %v6813 = vunpack.c.l.b16 %v6721
        %v6814 = vunpack.c.l.b16 %v6731
        %v6815 = vunpack.c.l.b16 %v6741
        %v6816 = vunpack.c.l.b16 %v6755
        %v6817 = vunpack.c.l.b16 %v6765
        %v6818 = vunpack.c.l.b16 %v6775
        %v6819 = vunpack.c.l.b16 %v6785
        %v6820 = vpack.c.b16 %v6789, %v6788
        %v6821 = vpack.c.b16 %v6791, %v6790
        %v6822 = vpack.c.b16 %v6793, %v6792
        %v6823 = vpack.c.b16 %v6795, %v6794
        %v6824 = vpack.c.b16 %v6797, %v6796
        %v6825 = vpack.c.b16 %v6799, %v6798
        %v6826 = vpack.c.b16 %v6801, %v6800
        %v6827 = vpack.c.b16 %v6803, %v6802
        %v6828 = vpack.c.b16 %v6805, %v6804
        %v6829 = vpack.c.b16 %v6807, %v6806
        %v6830 = vpack.c.b16 %v6809, %v6808
        %v6831 = vpack.c.b16 %v6811, %v6810
        %v6832 = vpack.c.b16 %v6813, %v6812
        %v6833 = vpack.c.b16 %v6815, %v6814
        %v6834 = vpack.c.b16 %v6817, %v6816
        %v6835 = vpack.c.b16 %v6819, %v6818
        %vm6836 = vcmask 64512
        %v6838 = vsel %vm6836, %v6820, 0
        %v6841 = vsel %vm6836, %v6821, 0
        %v6844 = vsel %vm6836, %v6822, 0
        %v6847 = vsel %vm6836, %v6823, 0
        %v6850 = vsel %vm6836, %v6824, 0
        %v6853 = vsel %vm6836, %v6825, 0
        %v6856 = vsel %vm6836, %v6826, 0
        %v6859 = vsel %vm6836, %v6827, 0
        %v6862 = vsel %vm6836, %v6828, 0
        %v6865 = vsel %vm6836, %v6829, 0
        %v6868 = vsel %vm6836, %v6830, 0
        %v6871 = vsel %vm6836, %v6831, 0
        %v6874 = vsel %vm6836, %v6832, 0
        %v6877 = vsel %vm6836, %v6833, 0
        %v6880 = vsel %vm6836, %v6834, 0
        %v6883 = vsel %vm6836, %v6835, 0
        %vm6885 = vcmask 1043456
        %v6887 = vsel %vm6885, %v6787, 0
        %6889 = vmatpush.bf16.msra.mxu0 0
        %6890 = vmatpush.bf16.msra.mxu0 0
        %6891 = vmatpush.bf16.msra.mxu0 0
        %6892 = vmatpush.bf16.msra.mxu0 0
        %6893 = vmatpush.bf16.msra.mxu0 0
        %6894 = vmatpush.bf16.msra.mxu0 0
        %6895 = vmatpush.bf16.msra.mxu0 0
        %6896 = vmatpush.bf16.msra.mxu0 %v6887
        %6897 = vmatmul.bf16.gmra.mxu0 %v6838
        %v6898 = vpop.f32.mrf.mxu0
        %v6899 = vadd.f32 0.0, %v6898
        %v6900 = vpop.f32.mrf.mxu0
        %v6901 = vadd.f32 0.0, %v6900
        %6902 = vmatmul.bf16.gmra.mxu0 %v6841
        %v6903 = vpop.f32.mrf.mxu0
        %v6904 = vadd.f32 0.0, %v6903
        %v6905 = vpop.f32.mrf.mxu0
        %v6906 = vadd.f32 0.0, %v6905
        %6907 = vmatmul.bf16.gmra.mxu0 %v6844
        %v6908 = vpop.f32.mrf.mxu0
        %v6909 = vadd.f32 0.0, %v6908
        %v6910 = vpop.f32.mrf.mxu0
        %v6911 = vadd.f32 0.0, %v6910
        %6912 = vmatmul.bf16.gmra.mxu0 %v6847
        %v6913 = vpop.f32.mrf.mxu0
        %v6914 = vadd.f32 0.0, %v6913
        %v6915 = vpop.f32.mrf.mxu0
        %v6916 = vadd.f32 0.0, %v6915
        %6917 = vmatmul.bf16.gmra.mxu0 %v6850
        %v6918 = vpop.f32.mrf.mxu0
        %v6919 = vadd.f32 0.0, %v6918
        %v6920 = vpop.f32.mrf.mxu0
        %v6921 = vadd.f32 0.0, %v6920
        %6922 = vmatmul.bf16.gmra.mxu0 %v6853
        %v6923 = vpop.f32.mrf.mxu0
        %v6924 = vadd.f32 0.0, %v6923
        %v6925 = vpop.f32.mrf.mxu0
        %v6926 = vadd.f32 0.0, %v6925
        %6927 = vmatmul.bf16.gmra.mxu0 %v6856
        %v6928 = vpop.f32.mrf.mxu0
        %v6929 = vadd.f32 0.0, %v6928
        %v6930 = vpop.f32.mrf.mxu0
        %v6931 = vadd.f32 0.0, %v6930
        %6932 = vmatmul.bf16.gmra.mxu0 %v6859
        %v6933 = vpop.f32.mrf.mxu0
        %v6934 = vadd.f32 0.0, %v6933
        %v6935 = vpop.f32.mrf.mxu0
        %v6936 = vadd.f32 0.0, %v6935
        %6937 = vmatmul.bf16.gmra.mxu0 %v6862
        %v6938 = vpop.f32.mrf.mxu0
        %v6939 = vadd.f32 0.0, %v6938
        %v6940 = vpop.f32.mrf.mxu0
        %v6941 = vadd.f32 0.0, %v6940
        %6942 = vmatmul.bf16.gmra.mxu0 %v6865
        %v6943 = vpop.f32.mrf.mxu0
        %v6944 = vadd.f32 0.0, %v6943
        %v6945 = vpop.f32.mrf.mxu0
        %v6946 = vadd.f32 0.0, %v6945
        %6947 = vmatmul.bf16.gmra.mxu0 %v6868
        %v6948 = vpop.f32.mrf.mxu0
        %v6949 = vadd.f32 0.0, %v6948
        %v6950 = vpop.f32.mrf.mxu0
        %v6951 = vadd.f32 0.0, %v6950
        %6952 = vmatmul.bf16.gmra.mxu0 %v6871
        %v6953 = vpop.f32.mrf.mxu0
        %v6954 = vadd.f32 0.0, %v6953
        %v6955 = vpop.f32.mrf.mxu0
        %v6956 = vadd.f32 0.0, %v6955
        %6957 = vmatmul.bf16.gmra.mxu0 %v6874
        %v6958 = vpop.f32.mrf.mxu0
        %v6959 = vadd.f32 0.0, %v6958
        %v6960 = vpop.f32.mrf.mxu0
        %v6961 = vadd.f32 0.0, %v6960
        %6962 = vmatmul.bf16.gmra.mxu0 %v6877
        %v6963 = vpop.f32.mrf.mxu0
        %v6964 = vadd.f32 0.0, %v6963
        %v6965 = vpop.f32.mrf.mxu0
        %v6966 = vadd.f32 0.0, %v6965
        %6967 = vmatmul.bf16.gmra.mxu0 %v6880
        %v6968 = vpop.f32.mrf.mxu0
        %v6969 = vadd.f32 0.0, %v6968
        %v6970 = vpop.f32.mrf.mxu0
        %v6971 = vadd.f32 0.0, %v6970
        %6972 = vmatmul.bf16.gmra.mxu0 %v6883
        %v6973 = vpop.f32.mrf.mxu0
        %v6974 = vadd.f32 0.0, %v6973
        %v6975 = vpop.f32.mrf.mxu0
        %v6976 = vadd.f32 0.0, %v6975
        %6977 = vdwg.mxu0
        %v7010 = vunpack.c.l.b16 %v6390
        %v7011 = vunpack.c.l.b16 %v6391
        %v7012 = vunpack.c.l.b16 %v6392
        %v7013 = vunpack.c.l.b16 %v6393
        %v7014 = vunpack.c.l.b16 %v6394
        %v7015 = vunpack.c.l.b16 %v6395
        %v7016 = vunpack.c.l.b16 %v6396
        %v7017 = vunpack.c.l.b16 %v6397
        %v7018 = vunpack.c.l.b16 %v6398
        %v7019 = vunpack.c.l.b16 %v6399
        %v7020 = vunpack.c.l.b16 %v6400
        %v7021 = vunpack.c.l.b16 %v6401
        %v7022 = vunpack.c.l.b16 %v6402
        %v7023 = vunpack.c.l.b16 %v6403
        %v7024 = vunpack.c.l.b16 %v6404
        %v7025 = vunpack.c.l.b16 %v6405
        %v7026 = vunpack.c.l.b16 %v6406
        %v7027 = vunpack.c.l.b16 %v6407
        %v7028 = vunpack.c.l.b16 %v6408
        %v7029 = vunpack.c.l.b16 %v6409
        %v7030 = vunpack.c.l.b16 %v6410
        %v7031 = vunpack.c.l.b16 %v6411
        %v7032 = vunpack.c.l.b16 %v6412
        %v7033 = vunpack.c.l.b16 %v6413
        %v7034 = vunpack.c.l.b16 %v6414
        %v7035 = vunpack.c.l.b16 %v6415
        %v7036 = vunpack.c.l.b16 %v6416
        %v7037 = vunpack.c.l.b16 %v6417
        %v7038 = vunpack.c.l.b16 %v6418
        %v7039 = vunpack.c.l.b16 %v6419
        %v7040 = vunpack.c.l.b16 %v6420
        %v7041 = vunpack.c.l.b16 %v6421
        %v7042 = vpack.c.b16 %v7011, %v7010
        %v7043 = vpack.c.b16 %v7013, %v7012
        %v7044 = vpack.c.b16 %v7015, %v7014
        %v7045 = vpack.c.b16 %v7017, %v7016
        %v7046 = vpack.c.b16 %v7019, %v7018
        %v7047 = vpack.c.b16 %v7021, %v7020
        %v7048 = vpack.c.b16 %v7023, %v7022
        %v7049 = vpack.c.b16 %v7025, %v7024
        %v7050 = vpack.c.b16 %v7027, %v7026
        %v7051 = vpack.c.b16 %v7029, %v7028
        %v7052 = vpack.c.b16 %v7031, %v7030
        %v7053 = vpack.c.b16 %v7033, %v7032
        %v7054 = vpack.c.b16 %v7035, %v7034
        %v7055 = vpack.c.b16 %v7037, %v7036
        %v7056 = vpack.c.b16 %v7039, %v7038
        %v7057 = vpack.c.b16 %v7041, %v7040
        %v7059 = vsel %vm6836, %v7042, 0
        %v7062 = vsel %vm6836, %v7043, 0
        %v7065 = vsel %vm6836, %v7044, 0
        %v7068 = vsel %vm6836, %v7045, 0
        %v7071 = vsel %vm6836, %v7046, 0
        %v7074 = vsel %vm6836, %v7047, 0
        %v7077 = vsel %vm6836, %v7048, 0
        %v7080 = vsel %vm6836, %v7049, 0
        %v7083 = vsel %vm6836, %v7050, 0
        %v7086 = vsel %vm6836, %v7051, 0
        %v7089 = vsel %vm6836, %v7052, 0
        %v7092 = vsel %vm6836, %v7053, 0
        %v7095 = vsel %vm6836, %v7054, 0
        %v7098 = vsel %vm6836, %v7055, 0
        %v7101 = vsel %vm6836, %v7056, 0
        %v7104 = vsel %vm6836, %v7057, 0
        %v7107 = vsel %vm6885, %v6422, 0
        %7109 = vmatpush.bf16.msra.mxu0 0
        %7110 = vmatpush.bf16.msra.mxu0 0
        %7111 = vmatpush.bf16.msra.mxu0 0
        %7112 = vmatpush.bf16.msra.mxu0 0
        %7113 = vmatpush.bf16.msra.mxu0 0
        %7114 = vmatpush.bf16.msra.mxu0 0
        %7115 = vmatpush.bf16.msra.mxu0 0
        %7116 = vmatpush.bf16.msra.mxu0 %v7107
        %7117 = vmatmul.bf16.gmra.mxu0 %v7059
        %v7118 = vpop.f32.mrf.mxu0
        %v7119 = vadd.f32 %v6899, %v7118
        %v7120 = vpop.f32.mrf.mxu0
        %v7121 = vadd.f32 %v6901, %v7120
        %7122 = vmatmul.bf16.gmra.mxu0 %v7062
        %v7123 = vpop.f32.mrf.mxu0
        %v7124 = vadd.f32 %v6904, %v7123
        %v7125 = vpop.f32.mrf.mxu0
        %v7126 = vadd.f32 %v6906, %v7125
        %7127 = vmatmul.bf16.gmra.mxu0 %v7065
        %v7128 = vpop.f32.mrf.mxu0
        %v7129 = vadd.f32 %v6909, %v7128
        %v7130 = vpop.f32.mrf.mxu0
        %v7131 = vadd.f32 %v6911, %v7130
        %7132 = vmatmul.bf16.gmra.mxu0 %v7068
        %v7133 = vpop.f32.mrf.mxu0
        %v7134 = vadd.f32 %v6914, %v7133
        %v7135 = vpop.f32.mrf.mxu0
        %v7136 = vadd.f32 %v6916, %v7135
        %7137 = vmatmul.bf16.gmra.mxu0 %v7071
        %v7138 = vpop.f32.mrf.mxu0
        %v7139 = vadd.f32 %v6919, %v7138
        %v7140 = vpop.f32.mrf.mxu0
        %v7141 = vadd.f32 %v6921, %v7140
        %7142 = vmatmul.bf16.gmra.mxu0 %v7074
        %v7143 = vpop.f32.mrf.mxu0
        %v7144 = vadd.f32 %v6924, %v7143
        %v7145 = vpop.f32.mrf.mxu0
        %v7146 = vadd.f32 %v6926, %v7145
        %7147 = vmatmul.bf16.gmra.mxu0 %v7077
        %v7148 = vpop.f32.mrf.mxu0
        %v7149 = vadd.f32 %v6929, %v7148
        %v7150 = vpop.f32.mrf.mxu0
        %v7151 = vadd.f32 %v6931, %v7150
        %7152 = vmatmul.bf16.gmra.mxu0 %v7080
        %v7153 = vpop.f32.mrf.mxu0
        %v7154 = vadd.f32 %v6934, %v7153
        %v7155 = vpop.f32.mrf.mxu0
        %v7156 = vadd.f32 %v6936, %v7155
        %7157 = vmatmul.bf16.gmra.mxu0 %v7083
        %v7158 = vpop.f32.mrf.mxu0
        %v7159 = vadd.f32 %v6939, %v7158
        %v7160 = vpop.f32.mrf.mxu0
        %v7161 = vadd.f32 %v6941, %v7160
        %7162 = vmatmul.bf16.gmra.mxu0 %v7086
        %v7163 = vpop.f32.mrf.mxu0
        %v7164 = vadd.f32 %v6944, %v7163
        %v7165 = vpop.f32.mrf.mxu0
        %v7166 = vadd.f32 %v6946, %v7165
        %7167 = vmatmul.bf16.gmra.mxu0 %v7089
        %v7168 = vpop.f32.mrf.mxu0
        %v7169 = vadd.f32 %v6949, %v7168
        %v7170 = vpop.f32.mrf.mxu0
        %v7171 = vadd.f32 %v6951, %v7170
        %7172 = vmatmul.bf16.gmra.mxu0 %v7092
        %v7173 = vpop.f32.mrf.mxu0
        %v7174 = vadd.f32 %v6954, %v7173
        %v7175 = vpop.f32.mrf.mxu0
        %v7176 = vadd.f32 %v6956, %v7175
        %7177 = vmatmul.bf16.gmra.mxu0 %v7095
        %v7178 = vpop.f32.mrf.mxu0
        %v7179 = vadd.f32 %v6959, %v7178
        %v7180 = vpop.f32.mrf.mxu0
        %v7181 = vadd.f32 %v6961, %v7180
        %7182 = vmatmul.bf16.gmra.mxu0 %v7098
        %v7183 = vpop.f32.mrf.mxu0
        %v7184 = vadd.f32 %v6964, %v7183
        %v7185 = vpop.f32.mrf.mxu0
        %v7186 = vadd.f32 %v6966, %v7185
        %7187 = vmatmul.bf16.gmra.mxu0 %v7101
        %v7188 = vpop.f32.mrf.mxu0
        %v7189 = vadd.f32 %v6969, %v7188
        %v7190 = vpop.f32.mrf.mxu0
        %v7191 = vadd.f32 %v6971, %v7190
        %7192 = vmatmul.bf16.gmra.mxu0 %v7104
        %v7193 = vpop.f32.mrf.mxu0
        %v7194 = vadd.f32 %v6974, %v7193
        %v7195 = vpop.f32.mrf.mxu0
        %v7196 = vadd.f32 %v6976, %v7195
        %7197 = vdwg.mxu0
        %v7198 = vld [vmem:[%s6389] sm:$0xe]
        %v7199 = vld [vmem:[%s6389 + $0x14] sm:$0xe]
        %v7200 = vld [vmem:[%s6389 + $0x28] sm:$0xe]
        %v7201 = vld [vmem:[%s6389 + $0x3c] sm:$0xe]
        %v7202 = vld [vmem:[%s6389 + $0x50] sm:$0xe]
        %v7203 = vld [vmem:[%s6389 + $0x64] sm:$0xe]
        %v7204 = vld [vmem:[%s6389 + $0x78] sm:$0xe]
        %v7205 = vld [vmem:[%s6389 + $0x8c] sm:$0xe]
        %vm7222 = vcmask 1042432
        %vm7223 = vcmask 1046532
        %vm7224 = vmor %vm7222, %vm7223
        %v7225 = vrot.slane %v7198, 5
        %v7226 = vrot.slane %v7225, 4
        %v7227 = vrot.slane %v6391, 5
        %v7228 = vsel %vm7224, %v7226, %v7227
        %v7229 = vrot.slane %v7227, 4
        %v7230 = vrot.slane %v6392, 5
        %v7231 = vsel %vm7224, %v7229, %v7230
        %v7232 = vrot.slane %v7230, 4
        %v7233 = vrot.slane %v6393, 5
        %v7234 = vsel %vm7224, %v7232, %v7233
        %v7235 = vrot.slane %v7233, 4
        %v7236 = vrot.slane %v6423, 5
        %v7237 = vsel %vm7224, %v7235, %v7236
        %v7238 = vrot.slane %v7199, 5
        %v7239 = vrot.slane %v7238, 4
        %v7240 = vrot.slane %v6395, 5
        %v7241 = vsel %vm7224, %v7239, %v7240
        %v7242 = vrot.slane %v7240, 4
        %v7243 = vrot.slane %v6396, 5
        %v7244 = vsel %vm7224, %v7242, %v7243
        %v7245 = vrot.slane %v7243, 4
        %v7246 = vrot.slane %v6397, 5
        %v7247 = vsel %vm7224, %v7245, %v7246
        %v7248 = vrot.slane %v7246, 4
        %v7249 = vrot.slane %v6424, 5
        %v7250 = vsel %vm7224, %v7248, %v7249
        %v7251 = vrot.slane %v7200, 5
        %v7252 = vrot.slane %v7251, 4
        %v7253 = vrot.slane %v6399, 5
        %v7254 = vsel %vm7224, %v7252, %v7253
        %v7255 = vrot.slane %v7253, 4
        %v7256 = vrot.slane %v6400, 5
        %v7257 = vsel %vm7224, %v7255, %v7256
        %v7258 = vrot.slane %v7256, 4
        %v7259 = vrot.slane %v6401, 5
        %v7260 = vsel %vm7224, %v7258, %v7259
        %v7261 = vrot.slane %v7259, 4
        %v7262 = vrot.slane %v6425, 5
        %v7263 = vsel %vm7224, %v7261, %v7262
        %v7264 = vrot.slane %v7201, 5
        %v7265 = vrot.slane %v7264, 4
        %v7266 = vrot.slane %v6403, 5
        %v7267 = vsel %vm7224, %v7265, %v7266
        %v7268 = vrot.slane %v7266, 4
        %v7269 = vrot.slane %v6404, 5
        %v7270 = vsel %vm7224, %v7268, %v7269
        %v7271 = vrot.slane %v7269, 4
        %v7272 = vrot.slane %v6405, 5
        %v7273 = vsel %vm7224, %v7271, %v7272
        %v7274 = vrot.slane %v7272, 4
        %v7275 = vrot.slane %v6426, 5
        %v7276 = vsel %vm7224, %v7274, %v7275
        %v7277 = vrot.slane %v7202, 5
        %v7278 = vrot.slane %v7277, 4
        %v7279 = vrot.slane %v6407, 5
        %v7280 = vsel %vm7224, %v7278, %v7279
        %v7281 = vrot.slane %v7279, 4
        %v7282 = vrot.slane %v6408, 5
        %v7283 = vsel %vm7224, %v7281, %v7282
        %v7284 = vrot.slane %v7282, 4
        %v7285 = vrot.slane %v6409, 5
        %v7286 = vsel %vm7224, %v7284, %v7285
        %v7287 = vrot.slane %v7285, 4
        %v7288 = vrot.slane %v6427, 5
        %v7289 = vsel %vm7224, %v7287, %v7288
        %v7290 = vrot.slane %v7203, 5
        %v7291 = vrot.slane %v7290, 4
        %v7292 = vrot.slane %v6411, 5
        %v7293 = vsel %vm7224, %v7291, %v7292
        %v7294 = vrot.slane %v7292, 4
        %v7295 = vrot.slane %v6412, 5
        %v7296 = vsel %vm7224, %v7294, %v7295
        %v7297 = vrot.slane %v7295, 4
        %v7298 = vrot.slane %v6413, 5
        %v7299 = vsel %vm7224, %v7297, %v7298
        %v7300 = vrot.slane %v7298, 4
        %v7301 = vrot.slane %v6428, 5
        %v7302 = vsel %vm7224, %v7300, %v7301
        %v7303 = vrot.slane %v7204, 5
        %v7304 = vrot.slane %v7303, 4
        %v7305 = vrot.slane %v6415, 5
        %v7306 = vsel %vm7224, %v7304, %v7305
        %v7307 = vrot.slane %v7305, 4
        %v7308 = vrot.slane %v6416, 5
        %v7309 = vsel %vm7224, %v7307, %v7308
        %v7310 = vrot.slane %v7308, 4
        %v7311 = vrot.slane %v6417, 5
        %v7312 = vsel %vm7224, %v7310, %v7311
        %v7313 = vrot.slane %v7311, 4
        %v7314 = vrot.slane %v6429, 5
        %v7315 = vsel %vm7224, %v7313, %v7314
        %v7316 = vrot.slane %v7205, 5
        %v7317 = vrot.slane %v7316, 4
        %v7318 = vrot.slane %v6419, 5
        %v7319 = vsel %vm7224, %v7317, %v7318
        %v7320 = vrot.slane %v7318, 4
        %v7321 = vrot.slane %v6420, 5
        %v7322 = vsel %vm7224, %v7320, %v7321
        %v7323 = vrot.slane %v7321, 4
        %v7324 = vrot.slane %v6421, 5
        %v7325 = vsel %vm7224, %v7323, %v7324
        %v7326 = vrot.slane %v7324, 4
        %v7327 = vrot.slane %v6430, 5
        %v7328 = vsel %vm7224, %v7326, %v7327
        %s7329 = scalar_lea.vmem %s6, 8
        %v7330 = vld [vmem:[%s7329] sm:$0xf]
        %v7331 = vunpack.c.l.b16 %v7228
        %v7332 = vunpack.c.l.b16 %v7231
        %v7333 = vunpack.c.l.b16 %v7234
        %v7334 = vunpack.c.l.b16 %v7237
        %v7335 = vunpack.c.l.b16 %v7241
        %v7336 = vunpack.c.l.b16 %v7244
        %v7337 = vunpack.c.l.b16 %v7247
        %v7338 = vunpack.c.l.b16 %v7250
        %v7339 = vunpack.c.l.b16 %v7254
        %v7340 = vunpack.c.l.b16 %v7257
        %v7341 = vunpack.c.l.b16 %v7260
        %v7342 = vunpack.c.l.b16 %v7263
        %v7343 = vunpack.c.l.b16 %v7267
        %v7344 = vunpack.c.l.b16 %v7270
        %v7345 = vunpack.c.l.b16 %v7273
        %v7346 = vunpack.c.l.b16 %v7276
        %v7347 = vunpack.c.l.b16 %v7280
        %v7348 = vunpack.c.l.b16 %v7283
        %v7349 = vunpack.c.l.b16 %v7286
        %v7350 = vunpack.c.l.b16 %v7289
        %v7351 = vunpack.c.l.b16 %v7293
        %v7352 = vunpack.c.l.b16 %v7296
        %v7353 = vunpack.c.l.b16 %v7299
        %v7354 = vunpack.c.l.b16 %v7302
        %v7355 = vunpack.c.l.b16 %v7306
        %v7356 = vunpack.c.l.b16 %v7309
        %v7357 = vunpack.c.l.b16 %v7312
        %v7358 = vunpack.c.l.b16 %v7315
        %v7359 = vunpack.c.l.b16 %v7319
        %v7360 = vunpack.c.l.b16 %v7322
        %v7361 = vunpack.c.l.b16 %v7325
        %v7362 = vunpack.c.l.b16 %v7328
        %v7363 = vpack.c.b16 %v7332, %v7331
        %v7364 = vpack.c.b16 %v7334, %v7333
        %v7365 = vpack.c.b16 %v7336, %v7335
        %v7366 = vpack.c.b16 %v7338, %v7337
        %v7367 = vpack.c.b16 %v7340, %v7339
        %v7368 = vpack.c.b16 %v7342, %v7341
        %v7369 = vpack.c.b16 %v7344, %v7343
        %v7370 = vpack.c.b16 %v7346, %v7345
        %v7371 = vpack.c.b16 %v7348, %v7347
        %v7372 = vpack.c.b16 %v7350, %v7349
        %v7373 = vpack.c.b16 %v7352, %v7351
        %v7374 = vpack.c.b16 %v7354, %v7353
        %v7375 = vpack.c.b16 %v7356, %v7355
        %v7376 = vpack.c.b16 %v7358, %v7357
        %v7377 = vpack.c.b16 %v7360, %v7359
        %v7378 = vpack.c.b16 %v7362, %v7361
        %v7380 = vsel %vm6836, %v7363, 0
        %v7383 = vsel %vm6836, %v7364, 0
        %v7386 = vsel %vm6836, %v7365, 0
        %v7389 = vsel %vm6836, %v7366, 0
        %v7392 = vsel %vm6836, %v7367, 0
        %v7395 = vsel %vm6836, %v7368, 0
        %v7398 = vsel %vm6836, %v7369, 0
        %v7401 = vsel %vm6836, %v7370, 0
        %v7404 = vsel %vm6836, %v7371, 0
        %v7407 = vsel %vm6836, %v7372, 0
        %v7410 = vsel %vm6836, %v7373, 0
        %v7413 = vsel %vm6836, %v7374, 0
        %v7416 = vsel %vm6836, %v7375, 0
        %v7419 = vsel %vm6836, %v7376, 0
        %v7422 = vsel %vm6836, %v7377, 0
        %v7425 = vsel %vm6836, %v7378, 0
        %v7428 = vsel %vm6885, %v7330, 0
        %7430 = vmatpush.bf16.msra.mxu0 0
        %7431 = vmatpush.bf16.msra.mxu0 0
        %7432 = vmatpush.bf16.msra.mxu0 0
        %7433 = vmatpush.bf16.msra.mxu0 0
        %7434 = vmatpush.bf16.msra.mxu0 0
        %7435 = vmatpush.bf16.msra.mxu0 0
        %7436 = vmatpush.bf16.msra.mxu0 0
        %7437 = vmatpush.bf16.msra.mxu0 %v7428
        %7438 = vmatmul.bf16.gmra.mxu0 %v7380
        %v7439 = vpop.f32.mrf.mxu0
        %v7440 = vadd.f32 0.0, %v7439
        %v7441 = vpop.f32.mrf.mxu0
        %v7442 = vadd.f32 0.0, %v7441
        %7443 = vmatmul.bf16.gmra.mxu0 %v7383
        %v7444 = vpop.f32.mrf.mxu0
        %v7445 = vadd.f32 0.0, %v7444
        %v7446 = vpop.f32.mrf.mxu0
        %v7447 = vadd.f32 0.0, %v7446
        %7448 = vmatmul.bf16.gmra.mxu0 %v7386
        %v7449 = vpop.f32.mrf.mxu0
        %v7450 = vadd.f32 0.0, %v7449
        %v7451 = vpop.f32.mrf.mxu0
        %v7452 = vadd.f32 0.0, %v7451
        %7453 = vmatmul.bf16.gmra.mxu0 %v7389
        %v7454 = vpop.f32.mrf.mxu0
        %v7455 = vadd.f32 0.0, %v7454
        %v7456 = vpop.f32.mrf.mxu0
        %v7457 = vadd.f32 0.0, %v7456
        %7458 = vmatmul.bf16.gmra.mxu0 %v7392
        %v7459 = vpop.f32.mrf.mxu0
        %v7460 = vadd.f32 0.0, %v7459
        %v7461 = vpop.f32.mrf.mxu0
        %v7462 = vadd.f32 0.0, %v7461
        %7463 = vmatmul.bf16.gmra.mxu0 %v7395
        %v7464 = vpop.f32.mrf.mxu0
        %v7465 = vadd.f32 0.0, %v7464
        %v7466 = vpop.f32.mrf.mxu0
        %v7467 = vadd.f32 0.0, %v7466
        %7468 = vmatmul.bf16.gmra.mxu0 %v7398
        %v7469 = vpop.f32.mrf.mxu0
        %v7470 = vadd.f32 0.0, %v7469
        %v7471 = vpop.f32.mrf.mxu0
        %v7472 = vadd.f32 0.0, %v7471
        %7473 = vmatmul.bf16.gmra.mxu0 %v7401
        %v7474 = vpop.f32.mrf.mxu0
        %v7475 = vadd.f32 0.0, %v7474
        %v7476 = vpop.f32.mrf.mxu0
        %v7477 = vadd.f32 0.0, %v7476
        %7478 = vmatmul.bf16.gmra.mxu0 %v7404
        %v7479 = vpop.f32.mrf.mxu0
        %v7480 = vadd.f32 0.0, %v7479
        %v7481 = vpop.f32.mrf.mxu0
        %v7482 = vadd.f32 0.0, %v7481
        %7483 = vmatmul.bf16.gmra.mxu0 %v7407
        %v7484 = vpop.f32.mrf.mxu0
        %v7485 = vadd.f32 0.0, %v7484
        %v7486 = vpop.f32.mrf.mxu0
        %v7487 = vadd.f32 0.0, %v7486
        %7488 = vmatmul.bf16.gmra.mxu0 %v7410
        %v7489 = vpop.f32.mrf.mxu0
        %v7490 = vadd.f32 0.0, %v7489
        %v7491 = vpop.f32.mrf.mxu0
        %v7492 = vadd.f32 0.0, %v7491
        %7493 = vmatmul.bf16.gmra.mxu0 %v7413
        %v7494 = vpop.f32.mrf.mxu0
        %v7495 = vadd.f32 0.0, %v7494
        %v7496 = vpop.f32.mrf.mxu0
        %v7497 = vadd.f32 0.0, %v7496
        %7498 = vmatmul.bf16.gmra.mxu0 %v7416
        %v7499 = vpop.f32.mrf.mxu0
        %v7500 = vadd.f32 0.0, %v7499
        %v7501 = vpop.f32.mrf.mxu0
        %v7502 = vadd.f32 0.0, %v7501
        %7503 = vmatmul.bf16.gmra.mxu0 %v7419
        %v7504 = vpop.f32.mrf.mxu0
        %v7505 = vadd.f32 0.0, %v7504
        %v7506 = vpop.f32.mrf.mxu0
        %v7507 = vadd.f32 0.0, %v7506
        %7508 = vmatmul.bf16.gmra.mxu0 %v7422
        %v7509 = vpop.f32.mrf.mxu0
        %v7510 = vadd.f32 0.0, %v7509
        %v7511 = vpop.f32.mrf.mxu0
        %v7512 = vadd.f32 0.0, %v7511
        %7513 = vmatmul.bf16.gmra.mxu0 %v7425
        %v7514 = vpop.f32.mrf.mxu0
        %v7515 = vadd.f32 0.0, %v7514
        %v7516 = vpop.f32.mrf.mxu0
        %v7517 = vadd.f32 0.0, %v7516
        %7518 = vdwg.mxu0
        %v7519 = vadd.f32 %v7119, %v7440
        %v7520 = vadd.f32 %v7121, %v7442
        %v7521 = vadd.f32 %v7124, %v7445
        %v7522 = vadd.f32 %v7126, %v7447
        %v7523 = vadd.f32 %v7129, %v7450
        %v7524 = vadd.f32 %v7131, %v7452
        %v7525 = vadd.f32 %v7134, %v7455
        %v7526 = vadd.f32 %v7136, %v7457
        %v7527 = vadd.f32 %v7139, %v7460
        %v7528 = vadd.f32 %v7141, %v7462
        %v7529 = vadd.f32 %v7144, %v7465
        %v7530 = vadd.f32 %v7146, %v7467
        %v7531 = vadd.f32 %v7149, %v7470
        %v7532 = vadd.f32 %v7151, %v7472
        %v7533 = vadd.f32 %v7154, %v7475
        %v7534 = vadd.f32 %v7156, %v7477
        %v7535 = vadd.f32 %v7159, %v7480
        %v7536 = vadd.f32 %v7161, %v7482
        %v7537 = vadd.f32 %v7164, %v7485
        %v7538 = vadd.f32 %v7166, %v7487
        %v7539 = vadd.f32 %v7169, %v7490
        %v7540 = vadd.f32 %v7171, %v7492
        %v7541 = vadd.f32 %v7174, %v7495
        %v7542 = vadd.f32 %v7176, %v7497
        %v7543 = vadd.f32 %v7179, %v7500
        %v7544 = vadd.f32 %v7181, %v7502
        %v7545 = vadd.f32 %v7184, %v7505
        %v7546 = vadd.f32 %v7186, %v7507
        %v7547 = vadd.f32 %v7189, %v7510
        %v7548 = vadd.f32 %v7191, %v7512
        %v7549 = vadd.f32 %v7194, %v7515
        %v7550 = vadd.f32 %v7196, %v7517
        %s7551 = sadd.s32 %s6386, 1
        %s7552 = smul.u32 %s7551, 5
        %s7553 = smul.addr %s7552, 4
        %s7554 = scalar_lea.vmem [#allocation3], %s7553
        %v7555 = vld [vmem:[%s7554] sm:$0xf]
        %v7556 = vld [vmem:[%s7554 + $0x4] sm:$0xf]
        %v7557 = vld [vmem:[%s7554 + $0x8] sm:$0xf]
        %v7558 = vld [vmem:[%s7554 + $0xc] sm:$0xf]
        %v7559 = vld [vmem:[%s7554 + $0x14] sm:$0xf]
        %v7560 = vld [vmem:[%s7554 + $0x18] sm:$0xf]
        %v7561 = vld [vmem:[%s7554 + $0x1c] sm:$0xf]
        %v7562 = vld [vmem:[%s7554 + $0x20] sm:$0xf]
        %v7563 = vld [vmem:[%s7554 + $0x28] sm:$0xf]
        %v7564 = vld [vmem:[%s7554 + $0x2c] sm:$0xf]
        %v7565 = vld [vmem:[%s7554 + $0x30] sm:$0xf]
        %v7566 = vld [vmem:[%s7554 + $0x34] sm:$0xf]
        %v7567 = vld [vmem:[%s7554 + $0x3c] sm:$0xf]
        %v7568 = vld [vmem:[%s7554 + $0x40] sm:$0xf]
        %v7569 = vld [vmem:[%s7554 + $0x44] sm:$0xf]
        %v7570 = vld [vmem:[%s7554 + $0x48] sm:$0xf]
        %v7571 = vld [vmem:[%s7554 + $0x50] sm:$0xf]
        %v7572 = vld [vmem:[%s7554 + $0x54] sm:$0xf]
        %v7573 = vld [vmem:[%s7554 + $0x58] sm:$0xf]
        %v7574 = vld [vmem:[%s7554 + $0x5c] sm:$0xf]
        %v7575 = vld [vmem:[%s7554 + $0x64] sm:$0xf]
        %v7576 = vld [vmem:[%s7554 + $0x68] sm:$0xf]
        %v7577 = vld [vmem:[%s7554 + $0x6c] sm:$0xf]
        %v7578 = vld [vmem:[%s7554 + $0x70] sm:$0xf]
        %v7579 = vld [vmem:[%s7554 + $0x78] sm:$0xf]
        %v7580 = vld [vmem:[%s7554 + $0x7c] sm:$0xf]
        %v7581 = vld [vmem:[%s7554 + $0x80] sm:$0xf]
        %v7582 = vld [vmem:[%s7554 + $0x84] sm:$0xf]
        %v7583 = vld [vmem:[%s7554 + $0x8c] sm:$0xf]
        %v7584 = vld [vmem:[%s7554 + $0x90] sm:$0xf]
        %v7585 = vld [vmem:[%s7554 + $0x94] sm:$0xf]
        %v7586 = vld [vmem:[%s7554 + $0x98] sm:$0xf]
        %s7587 = scalar_lea.vmem %s6, 12
        %v7588 = vld [vmem:[%s7587] sm:$0xf]
        %v7621 = vunpack.c.l.b16 %v7555
        %v7622 = vunpack.c.l.b16 %v7556
        %v7623 = vunpack.c.l.b16 %v7557
        %v7624 = vunpack.c.l.b16 %v7558
        %v7625 = vunpack.c.l.b16 %v7559
        %v7626 = vunpack.c.l.b16 %v7560
        %v7627 = vunpack.c.l.b16 %v7561
        %v7628 = vunpack.c.l.b16 %v7562
        %v7629 = vunpack.c.l.b16 %v7563
        %v7630 = vunpack.c.l.b16 %v7564
        %v7631 = vunpack.c.l.b16 %v7565
        %v7632 = vunpack.c.l.b16 %v7566
        %v7633 = vunpack.c.l.b16 %v7567
        %v7634 = vunpack.c.l.b16 %v7568
        %v7635 = vunpack.c.l.b16 %v7569
        %v7636 = vunpack.c.l.b16 %v7570
        %v7637 = vunpack.c.l.b16 %v7571
        %v7638 = vunpack.c.l.b16 %v7572
        %v7639 = vunpack.c.l.b16 %v7573
        %v7640 = vunpack.c.l.b16 %v7574
        %v7641 = vunpack.c.l.b16 %v7575
        %v7642 = vunpack.c.l.b16 %v7576
        %v7643 = vunpack.c.l.b16 %v7577
        %v7644 = vunpack.c.l.b16 %v7578
        %v7645 = vunpack.c.l.b16 %v7579
        %v7646 = vunpack.c.l.b16 %v7580
        %v7647 = vunpack.c.l.b16 %v7581
        %v7648 = vunpack.c.l.b16 %v7582
        %v7649 = vunpack.c.l.b16 %v7583
        %v7650 = vunpack.c.l.b16 %v7584
        %v7651 = vunpack.c.l.b16 %v7585
        %v7652 = vunpack.c.l.b16 %v7586
        %v7653 = vpack.c.b16 %v7622, %v7621
        %v7654 = vpack.c.b16 %v7624, %v7623
        %v7655 = vpack.c.b16 %v7626, %v7625
        %v7656 = vpack.c.b16 %v7628, %v7627
        %v7657 = vpack.c.b16 %v7630, %v7629
        %v7658 = vpack.c.b16 %v7632, %v7631
        %v7659 = vpack.c.b16 %v7634, %v7633
        %v7660 = vpack.c.b16 %v7636, %v7635
        %v7661 = vpack.c.b16 %v7638, %v7637
        %v7662 = vpack.c.b16 %v7640, %v7639
        %v7663 = vpack.c.b16 %v7642, %v7641
        %v7664 = vpack.c.b16 %v7644, %v7643
        %v7665 = vpack.c.b16 %v7646, %v7645
        %v7666 = vpack.c.b16 %v7648, %v7647
        %v7667 = vpack.c.b16 %v7650, %v7649
        %v7668 = vpack.c.b16 %v7652, %v7651
        %v7670 = vsel %vm6836, %v7653, 0
        %v7673 = vsel %vm6836, %v7654, 0
        %v7676 = vsel %vm6836, %v7655, 0
        %v7679 = vsel %vm6836, %v7656, 0
        %v7682 = vsel %vm6836, %v7657, 0
        %v7685 = vsel %vm6836, %v7658, 0
        %v7688 = vsel %vm6836, %v7659, 0
        %v7691 = vsel %vm6836, %v7660, 0
        %v7694 = vsel %vm6836, %v7661, 0
        %v7697 = vsel %vm6836, %v7662, 0
        %v7700 = vsel %vm6836, %v7663, 0
        %v7703 = vsel %vm6836, %v7664, 0
        %v7706 = vsel %vm6836, %v7665, 0
        %v7709 = vsel %vm6836, %v7666, 0
        %v7712 = vsel %vm6836, %v7667, 0
        %v7715 = vsel %vm6836, %v7668, 0
        %v7718 = vsel %vm6885, %v7588, 0
        %7720 = vmatpush.bf16.msra.mxu0 0
        %7721 = vmatpush.bf16.msra.mxu0 0
        %7722 = vmatpush.bf16.msra.mxu0 0
        %7723 = vmatpush.bf16.msra.mxu0 0
        %7724 = vmatpush.bf16.msra.mxu0 0
        %7725 = vmatpush.bf16.msra.mxu0 0
        %7726 = vmatpush.bf16.msra.mxu0 0
        %7727 = vmatpush.bf16.msra.mxu0 %v7718
        %7728 = vmatmul.bf16.gmra.mxu0 %v7670
        %v7729 = vpop.f32.mrf.mxu0
        %v7730 = vadd.f32 0.0, %v7729
        %v7731 = vpop.f32.mrf.mxu0
        %v7732 = vadd.f32 0.0, %v7731
        %7733 = vmatmul.bf16.gmra.mxu0 %v7673
        %v7734 = vpop.f32.mrf.mxu0
        %v7735 = vadd.f32 0.0, %v7734
        %v7736 = vpop.f32.mrf.mxu0
        %v7737 = vadd.f32 0.0, %v7736
        %7738 = vmatmul.bf16.gmra.mxu0 %v7676
        %v7739 = vpop.f32.mrf.mxu0
        %v7740 = vadd.f32 0.0, %v7739
        %v7741 = vpop.f32.mrf.mxu0
        %v7742 = vadd.f32 0.0, %v7741
        %7743 = vmatmul.bf16.gmra.mxu0 %v7679
        %v7744 = vpop.f32.mrf.mxu0
        %v7745 = vadd.f32 0.0, %v7744
        %v7746 = vpop.f32.mrf.mxu0
        %v7747 = vadd.f32 0.0, %v7746
        %7748 = vmatmul.bf16.gmra.mxu0 %v7682
        %v7749 = vpop.f32.mrf.mxu0
        %v7750 = vadd.f32 0.0, %v7749
        %v7751 = vpop.f32.mrf.mxu0
        %v7752 = vadd.f32 0.0, %v7751
        %7753 = vmatmul.bf16.gmra.mxu0 %v7685
        %v7754 = vpop.f32.mrf.mxu0
        %v7755 = vadd.f32 0.0, %v7754
        %v7756 = vpop.f32.mrf.mxu0
        %v7757 = vadd.f32 0.0, %v7756
        %7758 = vmatmul.bf16.gmra.mxu0 %v7688
        %v7759 = vpop.f32.mrf.mxu0
        %v7760 = vadd.f32 0.0, %v7759
        %v7761 = vpop.f32.mrf.mxu0
        %v7762 = vadd.f32 0.0, %v7761
        %7763 = vmatmul.bf16.gmra.mxu0 %v7691
        %v7764 = vpop.f32.mrf.mxu0
        %v7765 = vadd.f32 0.0, %v7764
        %v7766 = vpop.f32.mrf.mxu0
        %v7767 = vadd.f32 0.0, %v7766
        %7768 = vmatmul.bf16.gmra.mxu0 %v7694
        %v7769 = vpop.f32.mrf.mxu0
        %v7770 = vadd.f32 0.0, %v7769
        %v7771 = vpop.f32.mrf.mxu0
        %v7772 = vadd.f32 0.0, %v7771
        %7773 = vmatmul.bf16.gmra.mxu0 %v7697
        %v7774 = vpop.f32.mrf.mxu0
        %v7775 = vadd.f32 0.0, %v7774
        %v7776 = vpop.f32.mrf.mxu0
        %v7777 = vadd.f32 0.0, %v7776
        %7778 = vmatmul.bf16.gmra.mxu0 %v7700
        %v7779 = vpop.f32.mrf.mxu0
        %v7780 = vadd.f32 0.0, %v7779
        %v7781 = vpop.f32.mrf.mxu0
        %v7782 = vadd.f32 0.0, %v7781
        %7783 = vmatmul.bf16.gmra.mxu0 %v7703
        %v7784 = vpop.f32.mrf.mxu0
        %v7785 = vadd.f32 0.0, %v7784
        %v7786 = vpop.f32.mrf.mxu0
        %v7787 = vadd.f32 0.0, %v7786
        %7788 = vmatmul.bf16.gmra.mxu0 %v7706
        %v7789 = vpop.f32.mrf.mxu0
        %v7790 = vadd.f32 0.0, %v7789
        %v7791 = vpop.f32.mrf.mxu0
        %v7792 = vadd.f32 0.0, %v7791
        %7793 = vmatmul.bf16.gmra.mxu0 %v7709
        %v7794 = vpop.f32.mrf.mxu0
        %v7795 = vadd.f32 0.0, %v7794
        %v7796 = vpop.f32.mrf.mxu0
        %v7797 = vadd.f32 0.0, %v7796
        %7798 = vmatmul.bf16.gmra.mxu0 %v7712
        %v7799 = vpop.f32.mrf.mxu0
        %v7800 = vadd.f32 0.0, %v7799
        %v7801 = vpop.f32.mrf.mxu0
        %v7802 = vadd.f32 0.0, %v7801
        %7803 = vmatmul.bf16.gmra.mxu0 %v7715
        %v7804 = vpop.f32.mrf.mxu0
        %v7805 = vadd.f32 0.0, %v7804
        %v7806 = vpop.f32.mrf.mxu0
        %v7807 = vadd.f32 0.0, %v7806
        %7808 = vdwg.mxu0
        %v7809 = vadd.f32 %v7519, %v7730
        %v7810 = vadd.f32 %v7520, %v7732
        %v7811 = vadd.f32 %v7521, %v7735
        %v7812 = vadd.f32 %v7522, %v7737
        %v7813 = vadd.f32 %v7523, %v7740
        %v7814 = vadd.f32 %v7524, %v7742
        %v7815 = vadd.f32 %v7525, %v7745
        %v7816 = vadd.f32 %v7526, %v7747
        %v7817 = vadd.f32 %v7527, %v7750
        %v7818 = vadd.f32 %v7528, %v7752
        %v7819 = vadd.f32 %v7529, %v7755
        %v7820 = vadd.f32 %v7530, %v7757
        %v7821 = vadd.f32 %v7531, %v7760
        %v7822 = vadd.f32 %v7532, %v7762
        %v7823 = vadd.f32 %v7533, %v7765
        %v7824 = vadd.f32 %v7534, %v7767
        %v7825 = vadd.f32 %v7535, %v7770
        %v7826 = vadd.f32 %v7536, %v7772
        %v7827 = vadd.f32 %v7537, %v7775
        %v7828 = vadd.f32 %v7538, %v7777
        %v7829 = vadd.f32 %v7539, %v7780
        %v7830 = vadd.f32 %v7540, %v7782
        %v7831 = vadd.f32 %v7541, %v7785
        %v7832 = vadd.f32 %v7542, %v7787
        %v7833 = vadd.f32 %v7543, %v7790
        %v7834 = vadd.f32 %v7544, %v7792
        %v7835 = vadd.f32 %v7545, %v7795
        %v7836 = vadd.f32 %v7546, %v7797
        %v7837 = vadd.f32 %v7547, %v7800
        %v7838 = vadd.f32 %v7548, %v7802
        %v7839 = vadd.f32 %v7549, %v7805
        %v7840 = vadd.f32 %v7550, %v7807
        %v7841 = vld [vmem:[%s7554] sm:$0xf]
        %v7842 = vld [vmem:[%s7554 + $0x4] sm:$0xf]
        %v7843 = vld [vmem:[%s7554 + $0x8] sm:$0xf]
        %v7844 = vld [vmem:[%s7554 + $0xc] sm:$0xf]
        %v7845 = vld [vmem:[%s7554 + $0x10] sm:$0x1]
        %v7846 = vld [vmem:[%s7554 + $0x14] sm:$0xf]
        %v7847 = vld [vmem:[%s7554 + $0x18] sm:$0xf]
        %v7848 = vld [vmem:[%s7554 + $0x1c] sm:$0xf]
        %v7849 = vld [vmem:[%s7554 + $0x20] sm:$0xf]
        %v7850 = vld [vmem:[%s7554 + $0x24] sm:$0x1]
        %v7851 = vld [vmem:[%s7554 + $0x28] sm:$0xf]
        %v7852 = vld [vmem:[%s7554 + $0x2c] sm:$0xf]
        %v7853 = vld [vmem:[%s7554 + $0x30] sm:$0xf]
        %v7854 = vld [vmem:[%s7554 + $0x34] sm:$0xf]
        %v7855 = vld [vmem:[%s7554 + $0x38] sm:$0x1]
        %v7856 = vld [vmem:[%s7554 + $0x3c] sm:$0xf]
        %v7857 = vld [vmem:[%s7554 + $0x40] sm:$0xf]
        %v7858 = vld [vmem:[%s7554 + $0x44] sm:$0xf]
        %v7859 = vld [vmem:[%s7554 + $0x48] sm:$0xf]
        %v7860 = vld [vmem:[%s7554 + $0x4c] sm:$0x1]
        %v7861 = vld [vmem:[%s7554 + $0x50] sm:$0xf]
        %v7862 = vld [vmem:[%s7554 + $0x54] sm:$0xf]
        %v7863 = vld [vmem:[%s7554 + $0x58] sm:$0xf]
        %v7864 = vld [vmem:[%s7554 + $0x5c] sm:$0xf]
        %v7865 = vld [vmem:[%s7554 + $0x60] sm:$0x1]
        %v7866 = vld [vmem:[%s7554 + $0x64] sm:$0xf]
        %v7867 = vld [vmem:[%s7554 + $0x68] sm:$0xf]
        %v7868 = vld [vmem:[%s7554 + $0x6c] sm:$0xf]
        %v7869 = vld [vmem:[%s7554 + $0x70] sm:$0xf]
        %v7870 = vld [vmem:[%s7554 + $0x74] sm:$0x1]
        %v7871 = vld [vmem:[%s7554 + $0x78] sm:$0xf]
        %v7872 = vld [vmem:[%s7554 + $0x7c] sm:$0xf]
        %v7873 = vld [vmem:[%s7554 + $0x80] sm:$0xf]
        %v7874 = vld [vmem:[%s7554 + $0x84] sm:$0xf]
        %v7875 = vld [vmem:[%s7554 + $0x88] sm:$0x1]
        %v7876 = vld [vmem:[%s7554 + $0x8c] sm:$0xf]
        %v7877 = vld [vmem:[%s7554 + $0x90] sm:$0xf]
        %v7878 = vld [vmem:[%s7554 + $0x94] sm:$0xf]
        %v7879 = vld [vmem:[%s7554 + $0x98] sm:$0xf]
        %v7880 = vld [vmem:[%s7554 + $0x9c] sm:$0x1]
        %v7882 = vshrl.u32 %v7841, 16
        %v7884 = vrot.slane %v7882, 4
        %v7885 = vshll.u32 %v7841, 16
        %v7887 = vrot.slane %v7885, 5
        %v7888 = vor.u32 %v7884, %v7887
        %v7889 = vrot.slane %v7888, 4
        %v7891 = vshll.u32 %v7842, 16
        %v7893 = vrot.slane %v7891, 5
        %v7894 = vsel %vm6433, %v7889, %v7893
        %v7895 = vshrl.u32 %v7842, 16
        %v7897 = vrot.slane %v7895, 4
        %v7898 = vor.u32 %v7897, %v7893
        %v7899 = vrot.slane %v7898, 4
        %v7901 = vshll.u32 %v7843, 16
        %v7903 = vrot.slane %v7901, 5
        %v7904 = vsel %vm6433, %v7899, %v7903
        %v7905 = vshrl.u32 %v7843, 16
        %v7907 = vrot.slane %v7905, 4
        %v7908 = vor.u32 %v7907, %v7903
        %v7909 = vrot.slane %v7908, 4
        %v7911 = vshll.u32 %v7844, 16
        %v7913 = vrot.slane %v7911, 5
        %v7914 = vsel %vm6433, %v7909, %v7913
        %v7915 = vshrl.u32 %v7844, 16
        %v7917 = vrot.slane %v7915, 4
        %v7918 = vor.u32 %v7917, %v7913
        %v7919 = vrot.slane %v7918, 4
        %v7921 = vshll.u32 %v7845, 16
        %v7923 = vrot.slane %v7921, 5
        %v7924 = vsel %vm6433, %v7919, %v7923
        %v7926 = vshrl.u32 %v7846, 16
        %v7928 = vrot.slane %v7926, 4
        %v7929 = vshll.u32 %v7846, 16
        %v7931 = vrot.slane %v7929, 5
        %v7932 = vor.u32 %v7928, %v7931
        %v7933 = vrot.slane %v7932, 4
        %v7935 = vshll.u32 %v7847, 16
        %v7937 = vrot.slane %v7935, 5
        %v7938 = vsel %vm6433, %v7933, %v7937
        %v7939 = vshrl.u32 %v7847, 16
        %v7941 = vrot.slane %v7939, 4
        %v7942 = vor.u32 %v7941, %v7937
        %v7943 = vrot.slane %v7942, 4
        %v7945 = vshll.u32 %v7848, 16
        %v7947 = vrot.slane %v7945, 5
        %v7948 = vsel %vm6433, %v7943, %v7947
        %v7949 = vshrl.u32 %v7848, 16
        %v7951 = vrot.slane %v7949, 4
        %v7952 = vor.u32 %v7951, %v7947
        %v7953 = vrot.slane %v7952, 4
        %v7955 = vshll.u32 %v7849, 16
        %v7957 = vrot.slane %v7955, 5
        %v7958 = vsel %vm6433, %v7953, %v7957
        %v7959 = vshrl.u32 %v7849, 16
        %v7961 = vrot.slane %v7959, 4
        %v7962 = vor.u32 %v7961, %v7957
        %v7963 = vrot.slane %v7962, 4
        %v7965 = vshll.u32 %v7850, 16
        %v7967 = vrot.slane %v7965, 5
        %v7968 = vsel %vm6433, %v7963, %v7967
        %v7970 = vshrl.u32 %v7851, 16
        %v7972 = vrot.slane %v7970, 4
        %v7973 = vshll.u32 %v7851, 16
        %v7975 = vrot.slane %v7973, 5
        %v7976 = vor.u32 %v7972, %v7975
        %v7977 = vrot.slane %v7976, 4
        %v7979 = vshll.u32 %v7852, 16
        %v7981 = vrot.slane %v7979, 5
        %v7982 = vsel %vm6433, %v7977, %v7981
        %v7983 = vshrl.u32 %v7852, 16
        %v7985 = vrot.slane %v7983, 4
        %v7986 = vor.u32 %v7985, %v7981
        %v7987 = vrot.slane %v7986, 4
        %v7989 = vshll.u32 %v7853, 16
        %v7991 = vrot.slane %v7989, 5
        %v7992 = vsel %vm6433, %v7987, %v7991
        %v7993 = vshrl.u32 %v7853, 16
        %v7995 = vrot.slane %v7993, 4
        %v7996 = vor.u32 %v7995, %v7991
        %v7997 = vrot.slane %v7996, 4
        %v7999 = vshll.u32 %v7854, 16
        %v8001 = vrot.slane %v7999, 5
        %v8002 = vsel %vm6433, %v7997, %v8001
        %v8003 = vshrl.u32 %v7854, 16
        %v8005 = vrot.slane %v8003, 4
        %v8006 = vor.u32 %v8005, %v8001
        %v8007 = vrot.slane %v8006, 4
        %v8009 = vshll.u32 %v7855, 16
        %v8011 = vrot.slane %v8009, 5
        %v8012 = vsel %vm6433, %v8007, %v8011
        %v8014 = vshrl.u32 %v7856, 16
        %v8016 = vrot.slane %v8014, 4
        %v8017 = vshll.u32 %v7856, 16
        %v8019 = vrot.slane %v8017, 5
        %v8020 = vor.u32 %v8016, %v8019
        %v8021 = vrot.slane %v8020, 4
        %v8023 = vshll.u32 %v7857, 16
        %v8025 = vrot.slane %v8023, 5
        %v8026 = vsel %vm6433, %v8021, %v8025
        %v8027 = vshrl.u32 %v7857, 16
        %v8029 = vrot.slane %v8027, 4
        %v8030 = vor.u32 %v8029, %v8025
        %v8031 = vrot.slane %v8030, 4
        %v8033 = vshll.u32 %v7858, 16
        %v8035 = vrot.slane %v8033, 5
        %v8036 = vsel %vm6433, %v8031, %v8035
        %v8037 = vshrl.u32 %v7858, 16
        %v8039 = vrot.slane %v8037, 4
        %v8040 = vor.u32 %v8039, %v8035
        %v8041 = vrot.slane %v8040, 4
        %v8043 = vshll.u32 %v7859, 16
        %v8045 = vrot.slane %v8043, 5
        %v8046 = vsel %vm6433, %v8041, %v8045
        %v8047 = vshrl.u32 %v7859, 16
        %v8049 = vrot.slane %v8047, 4
        %v8050 = vor.u32 %v8049, %v8045
        %v8051 = vrot.slane %v8050, 4
        %v8053 = vshll.u32 %v7860, 16
        %v8055 = vrot.slane %v8053, 5
        %v8056 = vsel %vm6433, %v8051, %v8055
        %v8058 = vshrl.u32 %v7861, 16
        %v8060 = vrot.slane %v8058, 4
        %v8061 = vshll.u32 %v7861, 16
        %v8063 = vrot.slane %v8061, 5
        %v8064 = vor.u32 %v8060, %v8063
        %v8065 = vrot.slane %v8064, 4
        %v8067 = vshll.u32 %v7862, 16
        %v8069 = vrot.slane %v8067, 5
        %v8070 = vsel %vm6433, %v8065, %v8069
        %v8071 = vshrl.u32 %v7862, 16
        %v8073 = vrot.slane %v8071, 4
        %v8074 = vor.u32 %v8073, %v8069
        %v8075 = vrot.slane %v8074, 4
        %v8077 = vshll.u32 %v7863, 16
        %v8079 = vrot.slane %v8077, 5
        %v8080 = vsel %vm6433, %v8075, %v8079
        %v8081 = vshrl.u32 %v7863, 16
        %v8083 = vrot.slane %v8081, 4
        %v8084 = vor.u32 %v8083, %v8079
        %v8085 = vrot.slane %v8084, 4
        %v8087 = vshll.u32 %v7864, 16
        %v8089 = vrot.slane %v8087, 5
        %v8090 = vsel %vm6433, %v8085, %v8089
        %v8091 = vshrl.u32 %v7864, 16
        %v8093 = vrot.slane %v8091, 4
        %v8094 = vor.u32 %v8093, %v8089
        %v8095 = vrot.slane %v8094, 4
        %v8097 = vshll.u32 %v7865, 16
        %v8099 = vrot.slane %v8097, 5
        %v8100 = vsel %vm6433, %v8095, %v8099
        %v8102 = vshrl.u32 %v7866, 16
        %v8104 = vrot.slane %v8102, 4
        %v8105 = vshll.u32 %v7866, 16
        %v8107 = vrot.slane %v8105, 5
        %v8108 = vor.u32 %v8104, %v8107
        %v8109 = vrot.slane %v8108, 4
        %v8111 = vshll.u32 %v7867, 16
        %v8113 = vrot.slane %v8111, 5
        %v8114 = vsel %vm6433, %v8109, %v8113
        %v8115 = vshrl.u32 %v7867, 16
        %v8117 = vrot.slane %v8115, 4
        %v8118 = vor.u32 %v8117, %v8113
        %v8119 = vrot.slane %v8118, 4
        %v8121 = vshll.u32 %v7868, 16
        %v8123 = vrot.slane %v8121, 5
        %v8124 = vsel %vm6433, %v8119, %v8123
        %v8125 = vshrl.u32 %v7868, 16
        %v8127 = vrot.slane %v8125, 4
        %v8128 = vor.u32 %v8127, %v8123
        %v8129 = vrot.slane %v8128, 4
        %v8131 = vshll.u32 %v7869, 16
        %v8133 = vrot.slane %v8131, 5
        %v8134 = vsel %vm6433, %v8129, %v8133
        %v8135 = vshrl.u32 %v7869, 16
        %v8137 = vrot.slane %v8135, 4
        %v8138 = vor.u32 %v8137, %v8133
        %v8139 = vrot.slane %v8138, 4
        %v8141 = vshll.u32 %v7870, 16
        %v8143 = vrot.slane %v8141, 5
        %v8144 = vsel %vm6433, %v8139, %v8143
        %v8146 = vshrl.u32 %v7871, 16
        %v8148 = vrot.slane %v8146, 4
        %v8149 = vshll.u32 %v7871, 16
        %v8151 = vrot.slane %v8149, 5
        %v8152 = vor.u32 %v8148, %v8151
        %v8153 = vrot.slane %v8152, 4
        %v8155 = vshll.u32 %v7872, 16
        %v8157 = vrot.slane %v8155, 5
        %v8158 = vsel %vm6433, %v8153, %v8157
        %v8159 = vshrl.u32 %v7872, 16
        %v8161 = vrot.slane %v8159, 4
        %v8162 = vor.u32 %v8161, %v8157
        %v8163 = vrot.slane %v8162, 4
        %v8165 = vshll.u32 %v7873, 16
        %v8167 = vrot.slane %v8165, 5
        %v8168 = vsel %vm6433, %v8163, %v8167
        %v8169 = vshrl.u32 %v7873, 16
        %v8171 = vrot.slane %v8169, 4
        %v8172 = vor.u32 %v8171, %v8167
        %v8173 = vrot.slane %v8172, 4
        %v8175 = vshll.u32 %v7874, 16
        %v8177 = vrot.slane %v8175, 5
        %v8178 = vsel %vm6433, %v8173, %v8177
        %v8179 = vshrl.u32 %v7874, 16
        %v8181 = vrot.slane %v8179, 4
        %v8182 = vor.u32 %v8181, %v8177
        %v8183 = vrot.slane %v8182, 4
        %v8185 = vshll.u32 %v7875, 16
        %v8187 = vrot.slane %v8185, 5
        %v8188 = vsel %vm6433, %v8183, %v8187
        %v8190 = vshrl.u32 %v7876, 16
        %v8192 = vrot.slane %v8190, 4
        %v8193 = vshll.u32 %v7876, 16
        %v8195 = vrot.slane %v8193, 5
        %v8196 = vor.u32 %v8192, %v8195
        %v8197 = vrot.slane %v8196, 4
        %v8199 = vshll.u32 %v7877, 16
        %v8201 = vrot.slane %v8199, 5
        %v8202 = vsel %vm6433, %v8197, %v8201
        %v8203 = vshrl.u32 %v7877, 16
        %v8205 = vrot.slane %v8203, 4
        %v8206 = vor.u32 %v8205, %v8201
        %v8207 = vrot.slane %v8206, 4
        %v8209 = vshll.u32 %v7878, 16
        %v8211 = vrot.slane %v8209, 5
        %v8212 = vsel %vm6433, %v8207, %v8211
        %v8213 = vshrl.u32 %v7878, 16
        %v8215 = vrot.slane %v8213, 4
        %v8216 = vor.u32 %v8215, %v8211
        %v8217 = vrot.slane %v8216, 4
        %v8219 = vshll.u32 %v7879, 16
        %v8221 = vrot.slane %v8219, 5
        %v8222 = vsel %vm6433, %v8217, %v8221
        %v8223 = vshrl.u32 %v7879, 16
        %v8225 = vrot.slane %v8223, 4
        %v8226 = vor.u32 %v8225, %v8221
        %v8227 = vrot.slane %v8226, 4
        %v8229 = vshll.u32 %v7880, 16
        %v8231 = vrot.slane %v8229, 5
        %v8232 = vsel %vm6433, %v8227, %v8231
        %s8233 = scalar_lea.vmem %s6, 16
        %v8234 = vld [vmem:[%s8233] sm:$0xf]
        %v8235 = vunpack.c.l.b16 %v7894
        %v8236 = vunpack.c.l.b16 %v7904
        %v8237 = vunpack.c.l.b16 %v7914
        %v8238 = vunpack.c.l.b16 %v7924
        %v8239 = vunpack.c.l.b16 %v7938
        %v8240 = vunpack.c.l.b16 %v7948
        %v8241 = vunpack.c.l.b16 %v7958
        %v8242 = vunpack.c.l.b16 %v7968
        %v8243 = vunpack.c.l.b16 %v7982
        %v8244 = vunpack.c.l.b16 %v7992
        %v8245 = vunpack.c.l.b16 %v8002
        %v8246 = vunpack.c.l.b16 %v8012
        %v8247 = vunpack.c.l.b16 %v8026
        %v8248 = vunpack.c.l.b16 %v8036
        %v8249 = vunpack.c.l.b16 %v8046
        %v8250 = vunpack.c.l.b16 %v8056
        %v8251 = vunpack.c.l.b16 %v8070
        %v8252 = vunpack.c.l.b16 %v8080
        %v8253 = vunpack.c.l.b16 %v8090
        %v8254 = vunpack.c.l.b16 %v8100
        %v8255 = vunpack.c.l.b16 %v8114
        %v8256 = vunpack.c.l.b16 %v8124
        %v8257 = vunpack.c.l.b16 %v8134
        %v8258 = vunpack.c.l.b16 %v8144
        %v8259 = vunpack.c.l.b16 %v8158
        %v8260 = vunpack.c.l.b16 %v8168
        %v8261 = vunpack.c.l.b16 %v8178
        %v8262 = vunpack.c.l.b16 %v8188
        %v8263 = vunpack.c.l.b16 %v8202
        %v8264 = vunpack.c.l.b16 %v8212
        %v8265 = vunpack.c.l.b16 %v8222
        %v8266 = vunpack.c.l.b16 %v8232
        %v8267 = vpack.c.b16 %v8236, %v8235
        %v8268 = vpack.c.b16 %v8238, %v8237
        %v8269 = vpack.c.b16 %v8240, %v8239
        %v8270 = vpack.c.b16 %v8242, %v8241
        %v8271 = vpack.c.b16 %v8244, %v8243
        %v8272 = vpack.c.b16 %v8246, %v8245
        %v8273 = vpack.c.b16 %v8248, %v8247
        %v8274 = vpack.c.b16 %v8250, %v8249
        %v8275 = vpack.c.b16 %v8252, %v8251
        %v8276 = vpack.c.b16 %v8254, %v8253
        %v8277 = vpack.c.b16 %v8256, %v8255
        %v8278 = vpack.c.b16 %v8258, %v8257
        %v8279 = vpack.c.b16 %v8260, %v8259
        %v8280 = vpack.c.b16 %v8262, %v8261
        %v8281 = vpack.c.b16 %v8264, %v8263
        %v8282 = vpack.c.b16 %v8266, %v8265
        %v8284 = vsel %vm6836, %v8267, 0
        %v8287 = vsel %vm6836, %v8268, 0
        %v8290 = vsel %vm6836, %v8269, 0
        %v8293 = vsel %vm6836, %v8270, 0
        %v8296 = vsel %vm6836, %v8271, 0
        %v8299 = vsel %vm6836, %v8272, 0
        %v8302 = vsel %vm6836, %v8273, 0
        %v8305 = vsel %vm6836, %v8274, 0
        %v8308 = vsel %vm6836, %v8275, 0
        %v8311 = vsel %vm6836, %v8276, 0
        %v8314 = vsel %vm6836, %v8277, 0
        %v8317 = vsel %vm6836, %v8278, 0
        %v8320 = vsel %vm6836, %v8279, 0
        %v8323 = vsel %vm6836, %v8280, 0
        %v8326 = vsel %vm6836, %v8281, 0
        %v8329 = vsel %vm6836, %v8282, 0
        %v8332 = vsel %vm6885, %v8234, 0
        %8334 = vmatpush.bf16.msra.mxu0 0
        %8335 = vmatpush.bf16.msra.mxu0 0
        %8336 = vmatpush.bf16.msra.mxu0 0
        %8337 = vmatpush.bf16.msra.mxu0 0
        %8338 = vmatpush.bf16.msra.mxu0 0
        %8339 = vmatpush.bf16.msra.mxu0 0
        %8340 = vmatpush.bf16.msra.mxu0 0
        %8341 = vmatpush.bf16.msra.mxu0 %v8332
        %8342 = vmatmul.bf16.gmra.mxu0 %v8284
        %v8343 = vpop.f32.mrf.mxu0
        %v8344 = vadd.f32 0.0, %v8343
        %v8345 = vpop.f32.mrf.mxu0
        %v8346 = vadd.f32 0.0, %v8345
        %8347 = vmatmul.bf16.gmra.mxu0 %v8287
        %v8348 = vpop.f32.mrf.mxu0
        %v8349 = vadd.f32 0.0, %v8348
        %v8350 = vpop.f32.mrf.mxu0
        %v8351 = vadd.f32 0.0, %v8350
        %8352 = vmatmul.bf16.gmra.mxu0 %v8290
        %v8353 = vpop.f32.mrf.mxu0
        %v8354 = vadd.f32 0.0, %v8353
        %v8355 = vpop.f32.mrf.mxu0
        %v8356 = vadd.f32 0.0, %v8355
        %8357 = vmatmul.bf16.gmra.mxu0 %v8293
        %v8358 = vpop.f32.mrf.mxu0
        %v8359 = vadd.f32 0.0, %v8358
        %v8360 = vpop.f32.mrf.mxu0
        %v8361 = vadd.f32 0.0, %v8360
        %8362 = vmatmul.bf16.gmra.mxu0 %v8296
        %v8363 = vpop.f32.mrf.mxu0
        %v8364 = vadd.f32 0.0, %v8363
        %v8365 = vpop.f32.mrf.mxu0
        %v8366 = vadd.f32 0.0, %v8365
        %8367 = vmatmul.bf16.gmra.mxu0 %v8299
        %v8368 = vpop.f32.mrf.mxu0
        %v8369 = vadd.f32 0.0, %v8368
        %v8370 = vpop.f32.mrf.mxu0
        %v8371 = vadd.f32 0.0, %v8370
        %8372 = vmatmul.bf16.gmra.mxu0 %v8302
        %v8373 = vpop.f32.mrf.mxu0
        %v8374 = vadd.f32 0.0, %v8373
        %v8375 = vpop.f32.mrf.mxu0
        %v8376 = vadd.f32 0.0, %v8375
        %8377 = vmatmul.bf16.gmra.mxu0 %v8305
        %v8378 = vpop.f32.mrf.mxu0
        %v8379 = vadd.f32 0.0, %v8378
        %v8380 = vpop.f32.mrf.mxu0
        %v8381 = vadd.f32 0.0, %v8380
        %8382 = vmatmul.bf16.gmra.mxu0 %v8308
        %v8383 = vpop.f32.mrf.mxu0
        %v8384 = vadd.f32 0.0, %v8383
        %v8385 = vpop.f32.mrf.mxu0
        %v8386 = vadd.f32 0.0, %v8385
        %8387 = vmatmul.bf16.gmra.mxu0 %v8311
        %v8388 = vpop.f32.mrf.mxu0
        %v8389 = vadd.f32 0.0, %v8388
        %v8390 = vpop.f32.mrf.mxu0
        %v8391 = vadd.f32 0.0, %v8390
        %8392 = vmatmul.bf16.gmra.mxu0 %v8314
        %v8393 = vpop.f32.mrf.mxu0
        %v8394 = vadd.f32 0.0, %v8393
        %v8395 = vpop.f32.mrf.mxu0
        %v8396 = vadd.f32 0.0, %v8395
        %8397 = vmatmul.bf16.gmra.mxu0 %v8317
        %v8398 = vpop.f32.mrf.mxu0
        %v8399 = vadd.f32 0.0, %v8398
        %v8400 = vpop.f32.mrf.mxu0
        %v8401 = vadd.f32 0.0, %v8400
        %8402 = vmatmul.bf16.gmra.mxu0 %v8320
        %v8403 = vpop.f32.mrf.mxu0
        %v8404 = vadd.f32 0.0, %v8403
        %v8405 = vpop.f32.mrf.mxu0
        %v8406 = vadd.f32 0.0, %v8405
        %8407 = vmatmul.bf16.gmra.mxu0 %v8323
        %v8408 = vpop.f32.mrf.mxu0
        %v8409 = vadd.f32 0.0, %v8408
        %v8410 = vpop.f32.mrf.mxu0
        %v8411 = vadd.f32 0.0, %v8410
        %8412 = vmatmul.bf16.gmra.mxu0 %v8326
        %v8413 = vpop.f32.mrf.mxu0
        %v8414 = vadd.f32 0.0, %v8413
        %v8415 = vpop.f32.mrf.mxu0
        %v8416 = vadd.f32 0.0, %v8415
        %8417 = vmatmul.bf16.gmra.mxu0 %v8329
        %v8418 = vpop.f32.mrf.mxu0
        %v8419 = vadd.f32 0.0, %v8418
        %v8420 = vpop.f32.mrf.mxu0
        %v8421 = vadd.f32 0.0, %v8420
        %8422 = vdwg.mxu0
        %v8423 = vadd.f32 %v7809, %v8344
        %v8424 = vadd.f32 %v7810, %v8346
        %v8425 = vadd.f32 %v7811, %v8349
        %v8426 = vadd.f32 %v7812, %v8351
        %v8427 = vadd.f32 %v7813, %v8354
        %v8428 = vadd.f32 %v7814, %v8356
        %v8429 = vadd.f32 %v7815, %v8359
        %v8430 = vadd.f32 %v7816, %v8361
        %v8431 = vadd.f32 %v7817, %v8364
        %v8432 = vadd.f32 %v7818, %v8366
        %v8433 = vadd.f32 %v7819, %v8369
        %v8434 = vadd.f32 %v7820, %v8371
        %v8435 = vadd.f32 %v7821, %v8374
        %v8436 = vadd.f32 %v7822, %v8376
        %v8437 = vadd.f32 %v7823, %v8379
        %v8438 = vadd.f32 %v7824, %v8381
        %v8439 = vadd.f32 %v7825, %v8384
        %v8440 = vadd.f32 %v7826, %v8386
        %v8441 = vadd.f32 %v7827, %v8389
        %v8442 = vadd.f32 %v7828, %v8391
        %v8443 = vadd.f32 %v7829, %v8394
        %v8444 = vadd.f32 %v7830, %v8396
        %v8445 = vadd.f32 %v7831, %v8399
        %v8446 = vadd.f32 %v7832, %v8401
        %v8447 = vadd.f32 %v7833, %v8404
        %v8448 = vadd.f32 %v7834, %v8406
        %v8449 = vadd.f32 %v7835, %v8409
        %v8450 = vadd.f32 %v7836, %v8411
        %v8451 = vadd.f32 %v7837, %v8414
        %v8452 = vadd.f32 %v7838, %v8416
        %v8453 = vadd.f32 %v7839, %v8419
        %v8454 = vadd.f32 %v7840, %v8421
        %v8455 = vld [vmem:[%s7554] sm:$0xe]
        %v8456 = vld [vmem:[%s7554 + $0x14] sm:$0xe]
        %v8457 = vld [vmem:[%s7554 + $0x28] sm:$0xe]
        %v8458 = vld [vmem:[%s7554 + $0x3c] sm:$0xe]
        %v8459 = vld [vmem:[%s7554 + $0x50] sm:$0xe]
        %v8460 = vld [vmem:[%s7554 + $0x64] sm:$0xe]
        %v8461 = vld [vmem:[%s7554 + $0x78] sm:$0xe]
        %v8462 = vld [vmem:[%s7554 + $0x8c] sm:$0xe]
        %v8503 = vrot.slane %v8455, 5
        %v8504 = vrot.slane %v8503, 4
        %v8505 = vrot.slane %v7842, 5
        %v8506 = vsel %vm7224, %v8504, %v8505
        %v8507 = vrot.slane %v8505, 4
        %v8508 = vrot.slane %v7843, 5
        %v8509 = vsel %vm7224, %v8507, %v8508
        %v8510 = vrot.slane %v8508, 4
        %v8511 = vrot.slane %v7844, 5
        %v8512 = vsel %vm7224, %v8510, %v8511
        %v8513 = vrot.slane %v8511, 4
        %v8514 = vrot.slane %v7845, 5
        %v8515 = vsel %vm7224, %v8513, %v8514
        %v8516 = vrot.slane %v8456, 5
        %v8517 = vrot.slane %v8516, 4
        %v8518 = vrot.slane %v7847, 5
        %v8519 = vsel %vm7224, %v8517, %v8518
        %v8520 = vrot.slane %v8518, 4
        %v8521 = vrot.slane %v7848, 5
        %v8522 = vsel %vm7224, %v8520, %v8521
        %v8523 = vrot.slane %v8521, 4
        %v8524 = vrot.slane %v7849, 5
        %v8525 = vsel %vm7224, %v8523, %v8524
        %v8526 = vrot.slane %v8524, 4
        %v8527 = vrot.slane %v7850, 5
        %v8528 = vsel %vm7224, %v8526, %v8527
        %v8529 = vrot.slane %v8457, 5
        %v8530 = vrot.slane %v8529, 4
        %v8531 = vrot.slane %v7852, 5
        %v8532 = vsel %vm7224, %v8530, %v8531
        %v8533 = vrot.slane %v8531, 4
        %v8534 = vrot.slane %v7853, 5
        %v8535 = vsel %vm7224, %v8533, %v8534
        %v8536 = vrot.slane %v8534, 4
        %v8537 = vrot.slane %v7854, 5
        %v8538 = vsel %vm7224, %v8536, %v8537
        %v8539 = vrot.slane %v8537, 4
        %v8540 = vrot.slane %v7855, 5
        %v8541 = vsel %vm7224, %v8539, %v8540
        %v8542 = vrot.slane %v8458, 5
        %v8543 = vrot.slane %v8542, 4
        %v8544 = vrot.slane %v7857, 5
        %v8545 = vsel %vm7224, %v8543, %v8544
        %v8546 = vrot.slane %v8544, 4
        %v8547 = vrot.slane %v7858, 5
        %v8548 = vsel %vm7224, %v8546, %v8547
        %v8549 = vrot.slane %v8547, 4
        %v8550 = vrot.slane %v7859, 5
        %v8551 = vsel %vm7224, %v8549, %v8550
        %v8552 = vrot.slane %v8550, 4
        %v8553 = vrot.slane %v7860, 5
        %v8554 = vsel %vm7224, %v8552, %v8553
        %v8555 = vrot.slane %v8459, 5
        %v8556 = vrot.slane %v8555, 4
        %v8557 = vrot.slane %v7862, 5
        %v8558 = vsel %vm7224, %v8556, %v8557
        %v8559 = vrot.slane %v8557, 4
        %v8560 = vrot.slane %v7863, 5
        %v8561 = vsel %vm7224, %v8559, %v8560
        %v8562 = vrot.slane %v8560, 4
        %v8563 = vrot.slane %v7864, 5
        %v8564 = vsel %vm7224, %v8562, %v8563
        %v8565 = vrot.slane %v8563, 4
        %v8566 = vrot.slane %v7865, 5
        %v8567 = vsel %vm7224, %v8565, %v8566
        %v8568 = vrot.slane %v8460, 5
        %v8569 = vrot.slane %v8568, 4
        %v8570 = vrot.slane %v7867, 5
        %v8571 = vsel %vm7224, %v8569, %v8570
        %v8572 = vrot.slane %v8570, 4
        %v8573 = vrot.slane %v7868, 5
        %v8574 = vsel %vm7224, %v8572, %v8573
        %v8575 = vrot.slane %v8573, 4
        %v8576 = vrot.slane %v7869, 5
        %v8577 = vsel %vm7224, %v8575, %v8576
        %v8578 = vrot.slane %v8576, 4
        %v8579 = vrot.slane %v7870, 5
        %v8580 = vsel %vm7224, %v8578, %v8579
        %v8581 = vrot.slane %v8461, 5
        %v8582 = vrot.slane %v8581, 4
        %v8583 = vrot.slane %v7872, 5
        %v8584 = vsel %vm7224, %v8582, %v8583
        %v8585 = vrot.slane %v8583, 4
        %v8586 = vrot.slane %v7873, 5
        %v8587 = vsel %vm7224, %v8585, %v8586
        %v8588 = vrot.slane %v8586, 4
        %v8589 = vrot.slane %v7874, 5
        %v8590 = vsel %vm7224, %v8588, %v8589
        %v8591 = vrot.slane %v8589, 4
        %v8592 = vrot.slane %v7875, 5
        %v8593 = vsel %vm7224, %v8591, %v8592
        %v8594 = vrot.slane %v8462, 5
        %v8595 = vrot.slane %v8594, 4
        %v8596 = vrot.slane %v7877, 5
        %v8597 = vsel %vm7224, %v8595, %v8596
        %v8598 = vrot.slane %v8596, 4
        %v8599 = vrot.slane %v7878, 5
        %v8600 = vsel %vm7224, %v8598, %v8599
        %v8601 = vrot.slane %v8599, 4
        %v8602 = vrot.slane %v7879, 5
        %v8603 = vsel %vm7224, %v8601, %v8602
        %v8604 = vrot.slane %v8602, 4
        %v8605 = vrot.slane %v7880, 5
        %v8606 = vsel %vm7224, %v8604, %v8605
        %s8607 = scalar_lea.vmem %s6, 20
        %v8608 = vld [vmem:[%s8607] sm:$0xf]
        %v8609 = vunpack.c.l.b16 %v8506
        %v8610 = vunpack.c.l.b16 %v8509
        %v8611 = vunpack.c.l.b16 %v8512
        %v8612 = vunpack.c.l.b16 %v8515
        %v8613 = vunpack.c.l.b16 %v8519
        %v8614 = vunpack.c.l.b16 %v8522
        %v8615 = vunpack.c.l.b16 %v8525
        %v8616 = vunpack.c.l.b16 %v8528
        %v8617 = vunpack.c.l.b16 %v8532
        %v8618 = vunpack.c.l.b16 %v8535
        %v8619 = vunpack.c.l.b16 %v8538
        %v8620 = vunpack.c.l.b16 %v8541
        %v8621 = vunpack.c.l.b16 %v8545
        %v8622 = vunpack.c.l.b16 %v8548
        %v8623 = vunpack.c.l.b16 %v8551
        %v8624 = vunpack.c.l.b16 %v8554
        %v8625 = vunpack.c.l.b16 %v8558
        %v8626 = vunpack.c.l.b16 %v8561
        %v8627 = vunpack.c.l.b16 %v8564
        %v8628 = vunpack.c.l.b16 %v8567
        %v8629 = vunpack.c.l.b16 %v8571
        %v8630 = vunpack.c.l.b16 %v8574
        %v8631 = vunpack.c.l.b16 %v8577
        %v8632 = vunpack.c.l.b16 %v8580
        %v8633 = vunpack.c.l.b16 %v8584
        %v8634 = vunpack.c.l.b16 %v8587
        %v8635 = vunpack.c.l.b16 %v8590
        %v8636 = vunpack.c.l.b16 %v8593
        %v8637 = vunpack.c.l.b16 %v8597
        %v8638 = vunpack.c.l.b16 %v8600
        %v8639 = vunpack.c.l.b16 %v8603
        %v8640 = vunpack.c.l.b16 %v8606
        %v8641 = vpack.c.b16 %v8610, %v8609
        %v8642 = vpack.c.b16 %v8612, %v8611
        %v8643 = vpack.c.b16 %v8614, %v8613
        %v8644 = vpack.c.b16 %v8616, %v8615
        %v8645 = vpack.c.b16 %v8618, %v8617
        %v8646 = vpack.c.b16 %v8620, %v8619
        %v8647 = vpack.c.b16 %v8622, %v8621
        %v8648 = vpack.c.b16 %v8624, %v8623
        %v8649 = vpack.c.b16 %v8626, %v8625
        %v8650 = vpack.c.b16 %v8628, %v8627
        %v8651 = vpack.c.b16 %v8630, %v8629
        %v8652 = vpack.c.b16 %v8632, %v8631
        %v8653 = vpack.c.b16 %v8634, %v8633
        %v8654 = vpack.c.b16 %v8636, %v8635
        %v8655 = vpack.c.b16 %v8638, %v8637
        %v8656 = vpack.c.b16 %v8640, %v8639
        %v8658 = vsel %vm6836, %v8641, 0
        %v8661 = vsel %vm6836, %v8642, 0
        %v8664 = vsel %vm6836, %v8643, 0
        %v8667 = vsel %vm6836, %v8644, 0
        %v8670 = vsel %vm6836, %v8645, 0
        %v8673 = vsel %vm6836, %v8646, 0
        %v8676 = vsel %vm6836, %v8647, 0
        %v8679 = vsel %vm6836, %v8648, 0
        %v8682 = vsel %vm6836, %v8649, 0
        %v8685 = vsel %vm6836, %v8650, 0
        %v8688 = vsel %vm6836, %v8651, 0
        %v8691 = vsel %vm6836, %v8652, 0
        %v8694 = vsel %vm6836, %v8653, 0
        %v8697 = vsel %vm6836, %v8654, 0
        %v8700 = vsel %vm6836, %v8655, 0
        %v8703 = vsel %vm6836, %v8656, 0
        %v8706 = vsel %vm6885, %v8608, 0
        %8708 = vmatpush.bf16.msra.mxu0 0
        %8709 = vmatpush.bf16.msra.mxu0 0
        %8710 = vmatpush.bf16.msra.mxu0 0
        %8711 = vmatpush.bf16.msra.mxu0 0
        %8712 = vmatpush.bf16.msra.mxu0 0
        %8713 = vmatpush.bf16.msra.mxu0 0
        %8714 = vmatpush.bf16.msra.mxu0 0
        %8715 = vmatpush.bf16.msra.mxu0 %v8706
        %8716 = vmatmul.bf16.gmra.mxu0 %v8658
        %v8717 = vpop.f32.mrf.mxu0
        %v8718 = vadd.f32 0.0, %v8717
        %v8719 = vpop.f32.mrf.mxu0
        %v8720 = vadd.f32 0.0, %v8719
        %8721 = vmatmul.bf16.gmra.mxu0 %v8661
        %v8722 = vpop.f32.mrf.mxu0
        %v8723 = vadd.f32 0.0, %v8722
        %v8724 = vpop.f32.mrf.mxu0
        %v8725 = vadd.f32 0.0, %v8724
        %8726 = vmatmul.bf16.gmra.mxu0 %v8664
        %v8727 = vpop.f32.mrf.mxu0
        %v8728 = vadd.f32 0.0, %v8727
        %v8729 = vpop.f32.mrf.mxu0
        %v8730 = vadd.f32 0.0, %v8729
        %8731 = vmatmul.bf16.gmra.mxu0 %v8667
        %v8732 = vpop.f32.mrf.mxu0
        %v8733 = vadd.f32 0.0, %v8732
        %v8734 = vpop.f32.mrf.mxu0
        %v8735 = vadd.f32 0.0, %v8734
        %8736 = vmatmul.bf16.gmra.mxu0 %v8670
        %v8737 = vpop.f32.mrf.mxu0
        %v8738 = vadd.f32 0.0, %v8737
        %v8739 = vpop.f32.mrf.mxu0
        %v8740 = vadd.f32 0.0, %v8739
        %8741 = vmatmul.bf16.gmra.mxu0 %v8673
        %v8742 = vpop.f32.mrf.mxu0
        %v8743 = vadd.f32 0.0, %v8742
        %v8744 = vpop.f32.mrf.mxu0
        %v8745 = vadd.f32 0.0, %v8744
        %8746 = vmatmul.bf16.gmra.mxu0 %v8676
        %v8747 = vpop.f32.mrf.mxu0
        %v8748 = vadd.f32 0.0, %v8747
        %v8749 = vpop.f32.mrf.mxu0
        %v8750 = vadd.f32 0.0, %v8749
        %8751 = vmatmul.bf16.gmra.mxu0 %v8679
        %v8752 = vpop.f32.mrf.mxu0
        %v8753 = vadd.f32 0.0, %v8752
        %v8754 = vpop.f32.mrf.mxu0
        %v8755 = vadd.f32 0.0, %v8754
        %8756 = vmatmul.bf16.gmra.mxu0 %v8682
        %v8757 = vpop.f32.mrf.mxu0
        %v8758 = vadd.f32 0.0, %v8757
        %v8759 = vpop.f32.mrf.mxu0
        %v8760 = vadd.f32 0.0, %v8759
        %8761 = vmatmul.bf16.gmra.mxu0 %v8685
        %v8762 = vpop.f32.mrf.mxu0
        %v8763 = vadd.f32 0.0, %v8762
        %v8764 = vpop.f32.mrf.mxu0
        %v8765 = vadd.f32 0.0, %v8764
        %8766 = vmatmul.bf16.gmra.mxu0 %v8688
        %v8767 = vpop.f32.mrf.mxu0
        %v8768 = vadd.f32 0.0, %v8767
        %v8769 = vpop.f32.mrf.mxu0
        %v8770 = vadd.f32 0.0, %v8769
        %8771 = vmatmul.bf16.gmra.mxu0 %v8691
        %v8772 = vpop.f32.mrf.mxu0
        %v8773 = vadd.f32 0.0, %v8772
        %v8774 = vpop.f32.mrf.mxu0
        %v8775 = vadd.f32 0.0, %v8774
        %8776 = vmatmul.bf16.gmra.mxu0 %v8694
        %v8777 = vpop.f32.mrf.mxu0
        %v8778 = vadd.f32 0.0, %v8777
        %v8779 = vpop.f32.mrf.mxu0
        %v8780 = vadd.f32 0.0, %v8779
        %8781 = vmatmul.bf16.gmra.mxu0 %v8697
        %v8782 = vpop.f32.mrf.mxu0
        %v8783 = vadd.f32 0.0, %v8782
        %v8784 = vpop.f32.mrf.mxu0
        %v8785 = vadd.f32 0.0, %v8784
        %8786 = vmatmul.bf16.gmra.mxu0 %v8700
        %v8787 = vpop.f32.mrf.mxu0
        %v8788 = vadd.f32 0.0, %v8787
        %v8789 = vpop.f32.mrf.mxu0
        %v8790 = vadd.f32 0.0, %v8789
        %8791 = vmatmul.bf16.gmra.mxu0 %v8703
        %v8792 = vpop.f32.mrf.mxu0
        %v8793 = vadd.f32 0.0, %v8792
        %v8794 = vpop.f32.mrf.mxu0
        %v8795 = vadd.f32 0.0, %v8794
        %8796 = vdwg.mxu0
        %v8797 = vadd.f32 %v8423, %v8718
        %v8798 = vadd.f32 %v8424, %v8720
        %v8799 = vadd.f32 %v8425, %v8723
        %v8800 = vadd.f32 %v8426, %v8725
        %v8801 = vadd.f32 %v8427, %v8728
        %v8802 = vadd.f32 %v8428, %v8730
        %v8803 = vadd.f32 %v8429, %v8733
        %v8804 = vadd.f32 %v8430, %v8735
        %v8805 = vadd.f32 %v8431, %v8738
        %v8806 = vadd.f32 %v8432, %v8740
        %v8807 = vadd.f32 %v8433, %v8743
        %v8808 = vadd.f32 %v8434, %v8745
        %v8809 = vadd.f32 %v8435, %v8748
        %v8810 = vadd.f32 %v8436, %v8750
        %v8811 = vadd.f32 %v8437, %v8753
        %v8812 = vadd.f32 %v8438, %v8755
        %v8813 = vadd.f32 %v8439, %v8758
        %v8814 = vadd.f32 %v8440, %v8760
        %v8815 = vadd.f32 %v8441, %v8763
        %v8816 = vadd.f32 %v8442, %v8765
        %v8817 = vadd.f32 %v8443, %v8768
        %v8818 = vadd.f32 %v8444, %v8770
        %v8819 = vadd.f32 %v8445, %v8773
        %v8820 = vadd.f32 %v8446, %v8775
        %v8821 = vadd.f32 %v8447, %v8778
        %v8822 = vadd.f32 %v8448, %v8780
        %v8823 = vadd.f32 %v8449, %v8783
        %v8824 = vadd.f32 %v8450, %v8785
        %v8825 = vadd.f32 %v8451, %v8788
        %v8826 = vadd.f32 %v8452, %v8790
        %v8827 = vadd.f32 %v8453, %v8793
        %v8828 = vadd.f32 %v8454, %v8795
        %s8829 = sadd.s32 %s6386, 2
        %s8830 = smul.u32 %s8829, 5
        %s8831 = smul.addr %s8830, 4
        %s8832 = scalar_lea.vmem [#allocation3], %s8831
        %v8833 = vld [vmem:[%s8832] sm:$0xf]
        %v8834 = vld [vmem:[%s8832 + $0x4] sm:$0xf]
        %v8835 = vld [vmem:[%s8832 + $0x8] sm:$0xf]
        %v8836 = vld [vmem:[%s8832 + $0xc] sm:$0xf]
        %v8837 = vld [vmem:[%s8832 + $0x14] sm:$0xf]
        %v8838 = vld [vmem:[%s8832 + $0x18] sm:$0xf]
        %v8839 = vld [vmem:[%s8832 + $0x1c] sm:$0xf]
        %v8840 = vld [vmem:[%s8832 + $0x20] sm:$0xf]
        %v8841 = vld [vmem:[%s8832 + $0x28] sm:$0xf]
        %v8842 = vld [vmem:[%s8832 + $0x2c] sm:$0xf]
        %v8843 = vld [vmem:[%s8832 + $0x30] sm:$0xf]
        %v8844 = vld [vmem:[%s8832 + $0x34] sm:$0xf]
        %v8845 = vld [vmem:[%s8832 + $0x3c] sm:$0xf]
        %v8846 = vld [vmem:[%s8832 + $0x40] sm:$0xf]
        %v8847 = vld [vmem:[%s8832 + $0x44] sm:$0xf]
        %v8848 = vld [vmem:[%s8832 + $0x48] sm:$0xf]
        %v8849 = vld [vmem:[%s8832 + $0x50] sm:$0xf]
        %v8850 = vld [vmem:[%s8832 + $0x54] sm:$0xf]
        %v8851 = vld [vmem:[%s8832 + $0x58] sm:$0xf]
        %v8852 = vld [vmem:[%s8832 + $0x5c] sm:$0xf]
        %v8853 = vld [vmem:[%s8832 + $0x64] sm:$0xf]
        %v8854 = vld [vmem:[%s8832 + $0x68] sm:$0xf]
        %v8855 = vld [vmem:[%s8832 + $0x6c] sm:$0xf]
        %v8856 = vld [vmem:[%s8832 + $0x70] sm:$0xf]
        %v8857 = vld [vmem:[%s8832 + $0x78] sm:$0xf]
        %v8858 = vld [vmem:[%s8832 + $0x7c] sm:$0xf]
        %v8859 = vld [vmem:[%s8832 + $0x80] sm:$0xf]
        %v8860 = vld [vmem:[%s8832 + $0x84] sm:$0xf]
        %v8861 = vld [vmem:[%s8832 + $0x8c] sm:$0xf]
        %v8862 = vld [vmem:[%s8832 + $0x90] sm:$0xf]
        %v8863 = vld [vmem:[%s8832 + $0x94] sm:$0xf]
        %v8864 = vld [vmem:[%s8832 + $0x98] sm:$0xf]
        %s8865 = scalar_lea.vmem %s6, 24
        %v8866 = vld [vmem:[%s8865] sm:$0xf]
        %v8899 = vunpack.c.l.b16 %v8833
        %v8900 = vunpack.c.l.b16 %v8834
        %v8901 = vunpack.c.l.b16 %v8835
        %v8902 = vunpack.c.l.b16 %v8836
        %v8903 = vunpack.c.l.b16 %v8837
        %v8904 = vunpack.c.l.b16 %v8838
        %v8905 = vunpack.c.l.b16 %v8839
        %v8906 = vunpack.c.l.b16 %v8840
        %v8907 = vunpack.c.l.b16 %v8841
        %v8908 = vunpack.c.l.b16 %v8842
        %v8909 = vunpack.c.l.b16 %v8843
        %v8910 = vunpack.c.l.b16 %v8844
        %v8911 = vunpack.c.l.b16 %v8845
        %v8912 = vunpack.c.l.b16 %v8846
        %v8913 = vunpack.c.l.b16 %v8847
        %v8914 = vunpack.c.l.b16 %v8848
        %v8915 = vunpack.c.l.b16 %v8849
        %v8916 = vunpack.c.l.b16 %v8850
        %v8917 = vunpack.c.l.b16 %v8851
        %v8918 = vunpack.c.l.b16 %v8852
        %v8919 = vunpack.c.l.b16 %v8853
        %v8920 = vunpack.c.l.b16 %v8854
        %v8921 = vunpack.c.l.b16 %v8855
        %v8922 = vunpack.c.l.b16 %v8856
        %v8923 = vunpack.c.l.b16 %v8857
        %v8924 = vunpack.c.l.b16 %v8858
        %v8925 = vunpack.c.l.b16 %v8859
        %v8926 = vunpack.c.l.b16 %v8860
        %v8927 = vunpack.c.l.b16 %v8861
        %v8928 = vunpack.c.l.b16 %v8862
        %v8929 = vunpack.c.l.b16 %v8863
        %v8930 = vunpack.c.l.b16 %v8864
        %v8931 = vpack.c.b16 %v8900, %v8899
        %v8932 = vpack.c.b16 %v8902, %v8901
        %v8933 = vpack.c.b16 %v8904, %v8903
        %v8934 = vpack.c.b16 %v8906, %v8905
        %v8935 = vpack.c.b16 %v8908, %v8907
        %v8936 = vpack.c.b16 %v8910, %v8909
        %v8937 = vpack.c.b16 %v8912, %v8911
        %v8938 = vpack.c.b16 %v8914, %v8913
        %v8939 = vpack.c.b16 %v8916, %v8915
        %v8940 = vpack.c.b16 %v8918, %v8917
        %v8941 = vpack.c.b16 %v8920, %v8919
        %v8942 = vpack.c.b16 %v8922, %v8921
        %v8943 = vpack.c.b16 %v8924, %v8923
        %v8944 = vpack.c.b16 %v8926, %v8925
        %v8945 = vpack.c.b16 %v8928, %v8927
        %v8946 = vpack.c.b16 %v8930, %v8929
        %v8948 = vsel %vm6836, %v8931, 0
        %v8951 = vsel %vm6836, %v8932, 0
        %v8954 = vsel %vm6836, %v8933, 0
        %v8957 = vsel %vm6836, %v8934, 0
        %v8960 = vsel %vm6836, %v8935, 0
        %v8963 = vsel %vm6836, %v8936, 0
        %v8966 = vsel %vm6836, %v8937, 0
        %v8969 = vsel %vm6836, %v8938, 0
        %v8972 = vsel %vm6836, %v8939, 0
        %v8975 = vsel %vm6836, %v8940, 0
        %v8978 = vsel %vm6836, %v8941, 0
        %v8981 = vsel %vm6836, %v8942, 0
        %v8984 = vsel %vm6836, %v8943, 0
        %v8987 = vsel %vm6836, %v8944, 0
        %v8990 = vsel %vm6836, %v8945, 0
        %v8993 = vsel %vm6836, %v8946, 0
        %v8996 = vsel %vm6885, %v8866, 0
        %8998 = vmatpush.bf16.msra.mxu0 0
        %8999 = vmatpush.bf16.msra.mxu0 0
        %9000 = vmatpush.bf16.msra.mxu0 0
        %9001 = vmatpush.bf16.msra.mxu0 0
        %9002 = vmatpush.bf16.msra.mxu0 0
        %9003 = vmatpush.bf16.msra.mxu0 0
        %9004 = vmatpush.bf16.msra.mxu0 0
        %9005 = vmatpush.bf16.msra.mxu0 %v8996
        %9006 = vmatmul.bf16.gmra.mxu0 %v8948
        %v9007 = vpop.f32.mrf.mxu0
        %v9008 = vadd.f32 0.0, %v9007
        %v9009 = vpop.f32.mrf.mxu0
        %v9010 = vadd.f32 0.0, %v9009
        %9011 = vmatmul.bf16.gmra.mxu0 %v8951
        %v9012 = vpop.f32.mrf.mxu0
        %v9013 = vadd.f32 0.0, %v9012
        %v9014 = vpop.f32.mrf.mxu0
        %v9015 = vadd.f32 0.0, %v9014
        %9016 = vmatmul.bf16.gmra.mxu0 %v8954
        %v9017 = vpop.f32.mrf.mxu0
        %v9018 = vadd.f32 0.0, %v9017
        %v9019 = vpop.f32.mrf.mxu0
        %v9020 = vadd.f32 0.0, %v9019
        %9021 = vmatmul.bf16.gmra.mxu0 %v8957
        %v9022 = vpop.f32.mrf.mxu0
        %v9023 = vadd.f32 0.0, %v9022
        %v9024 = vpop.f32.mrf.mxu0
        %v9025 = vadd.f32 0.0, %v9024
        %9026 = vmatmul.bf16.gmra.mxu0 %v8960
        %v9027 = vpop.f32.mrf.mxu0
        %v9028 = vadd.f32 0.0, %v9027
        %v9029 = vpop.f32.mrf.mxu0
        %v9030 = vadd.f32 0.0, %v9029
        %9031 = vmatmul.bf16.gmra.mxu0 %v8963
        %v9032 = vpop.f32.mrf.mxu0
        %v9033 = vadd.f32 0.0, %v9032
        %v9034 = vpop.f32.mrf.mxu0
        %v9035 = vadd.f32 0.0, %v9034
        %9036 = vmatmul.bf16.gmra.mxu0 %v8966
        %v9037 = vpop.f32.mrf.mxu0
        %v9038 = vadd.f32 0.0, %v9037
        %v9039 = vpop.f32.mrf.mxu0
        %v9040 = vadd.f32 0.0, %v9039
        %9041 = vmatmul.bf16.gmra.mxu0 %v8969
        %v9042 = vpop.f32.mrf.mxu0
        %v9043 = vadd.f32 0.0, %v9042
        %v9044 = vpop.f32.mrf.mxu0
        %v9045 = vadd.f32 0.0, %v9044
        %9046 = vmatmul.bf16.gmra.mxu0 %v8972
        %v9047 = vpop.f32.mrf.mxu0
        %v9048 = vadd.f32 0.0, %v9047
        %v9049 = vpop.f32.mrf.mxu0
        %v9050 = vadd.f32 0.0, %v9049
        %9051 = vmatmul.bf16.gmra.mxu0 %v8975
        %v9052 = vpop.f32.mrf.mxu0
        %v9053 = vadd.f32 0.0, %v9052
        %v9054 = vpop.f32.mrf.mxu0
        %v9055 = vadd.f32 0.0, %v9054
        %9056 = vmatmul.bf16.gmra.mxu0 %v8978
        %v9057 = vpop.f32.mrf.mxu0
        %v9058 = vadd.f32 0.0, %v9057
        %v9059 = vpop.f32.mrf.mxu0
        %v9060 = vadd.f32 0.0, %v9059
        %9061 = vmatmul.bf16.gmra.mxu0 %v8981
        %v9062 = vpop.f32.mrf.mxu0
        %v9063 = vadd.f32 0.0, %v9062
        %v9064 = vpop.f32.mrf.mxu0
        %v9065 = vadd.f32 0.0, %v9064
        %9066 = vmatmul.bf16.gmra.mxu0 %v8984
        %v9067 = vpop.f32.mrf.mxu0
        %v9068 = vadd.f32 0.0, %v9067
        %v9069 = vpop.f32.mrf.mxu0
        %v9070 = vadd.f32 0.0, %v9069
        %9071 = vmatmul.bf16.gmra.mxu0 %v8987
        %v9072 = vpop.f32.mrf.mxu0
        %v9073 = vadd.f32 0.0, %v9072
        %v9074 = vpop.f32.mrf.mxu0
        %v9075 = vadd.f32 0.0, %v9074
        %9076 = vmatmul.bf16.gmra.mxu0 %v8990
        %v9077 = vpop.f32.mrf.mxu0
        %v9078 = vadd.f32 0.0, %v9077
        %v9079 = vpop.f32.mrf.mxu0
        %v9080 = vadd.f32 0.0, %v9079
        %9081 = vmatmul.bf16.gmra.mxu0 %v8993
        %v9082 = vpop.f32.mrf.mxu0
        %v9083 = vadd.f32 0.0, %v9082
        %v9084 = vpop.f32.mrf.mxu0
        %v9085 = vadd.f32 0.0, %v9084
        %9086 = vdwg.mxu0
        %v9087 = vadd.f32 %v8797, %v9008
        %v9088 = vadd.f32 %v8798, %v9010
        %v9089 = vadd.f32 %v8799, %v9013
        %v9090 = vadd.f32 %v8800, %v9015
        %v9091 = vadd.f32 %v8801, %v9018
        %v9092 = vadd.f32 %v8802, %v9020
        %v9093 = vadd.f32 %v8803, %v9023
        %v9094 = vadd.f32 %v8804, %v9025
        %v9095 = vadd.f32 %v8805, %v9028
        %v9096 = vadd.f32 %v8806, %v9030
        %v9097 = vadd.f32 %v8807, %v9033
        %v9098 = vadd.f32 %v8808, %v9035
        %v9099 = vadd.f32 %v8809, %v9038
        %v9100 = vadd.f32 %v8810, %v9040
        %v9101 = vadd.f32 %v8811, %v9043
        %v9102 = vadd.f32 %v8812, %v9045
        %v9103 = vadd.f32 %v8813, %v9048
        %v9104 = vadd.f32 %v8814, %v9050
        %v9105 = vadd.f32 %v8815, %v9053
        %v9106 = vadd.f32 %v8816, %v9055
        %v9107 = vadd.f32 %v8817, %v9058
        %v9108 = vadd.f32 %v8818, %v9060
        %v9109 = vadd.f32 %v8819, %v9063
        %v9110 = vadd.f32 %v8820, %v9065
        %v9111 = vadd.f32 %v8821, %v9068
        %v9112 = vadd.f32 %v8822, %v9070
        %v9113 = vadd.f32 %v8823, %v9073
        %v9114 = vadd.f32 %v8824, %v9075
        %v9115 = vadd.f32 %v8825, %v9078
        %v9116 = vadd.f32 %v8826, %v9080
        %v9117 = vadd.f32 %v8827, %v9083
        %v9118 = vadd.f32 %v8828, %v9085
        %v9119 = vld [vmem:[%s8832] sm:$0xf]
        %v9120 = vld [vmem:[%s8832 + $0x4] sm:$0xf]
        %v9121 = vld [vmem:[%s8832 + $0x8] sm:$0xf]
        %v9122 = vld [vmem:[%s8832 + $0xc] sm:$0xf]
        %v9123 = vld [vmem:[%s8832 + $0x10] sm:$0x1]
        %v9124 = vld [vmem:[%s8832 + $0x14] sm:$0xf]
        %v9125 = vld [vmem:[%s8832 + $0x18] sm:$0xf]
        %v9126 = vld [vmem:[%s8832 + $0x1c] sm:$0xf]
        %v9127 = vld [vmem:[%s8832 + $0x20] sm:$0xf]
        %v9128 = vld [vmem:[%s8832 + $0x24] sm:$0x1]
        %v9129 = vld [vmem:[%s8832 + $0x28] sm:$0xf]
        %v9130 = vld [vmem:[%s8832 + $0x2c] sm:$0xf]
        %v9131 = vld [vmem:[%s8832 + $0x30] sm:$0xf]
        %v9132 = vld [vmem:[%s8832 + $0x34] sm:$0xf]
        %v9133 = vld [vmem:[%s8832 + $0x38] sm:$0x1]
        %v9134 = vld [vmem:[%s8832 + $0x3c] sm:$0xf]
        %v9135 = vld [vmem:[%s8832 + $0x40] sm:$0xf]
        %v9136 = vld [vmem:[%s8832 + $0x44] sm:$0xf]
        %v9137 = vld [vmem:[%s8832 + $0x48] sm:$0xf]
        %v9138 = vld [vmem:[%s8832 + $0x4c] sm:$0x1]
        %v9139 = vld [vmem:[%s8832 + $0x50] sm:$0xf]
        %v9140 = vld [vmem:[%s8832 + $0x54] sm:$0xf]
        %v9141 = vld [vmem:[%s8832 + $0x58] sm:$0xf]
        %v9142 = vld [vmem:[%s8832 + $0x5c] sm:$0xf]
        %v9143 = vld [vmem:[%s8832 + $0x60] sm:$0x1]
        %v9144 = vld [vmem:[%s8832 + $0x64] sm:$0xf]
        %v9145 = vld [vmem:[%s8832 + $0x68] sm:$0xf]
        %v9146 = vld [vmem:[%s8832 + $0x6c] sm:$0xf]
        %v9147 = vld [vmem:[%s8832 + $0x70] sm:$0xf]
        %v9148 = vld [vmem:[%s8832 + $0x74] sm:$0x1]
        %v9149 = vld [vmem:[%s8832 + $0x78] sm:$0xf]
        %v9150 = vld [vmem:[%s8832 + $0x7c] sm:$0xf]
        %v9151 = vld [vmem:[%s8832 + $0x80] sm:$0xf]
        %v9152 = vld [vmem:[%s8832 + $0x84] sm:$0xf]
        %v9153 = vld [vmem:[%s8832 + $0x88] sm:$0x1]
        %v9154 = vld [vmem:[%s8832 + $0x8c] sm:$0xf]
        %v9155 = vld [vmem:[%s8832 + $0x90] sm:$0xf]
        %v9156 = vld [vmem:[%s8832 + $0x94] sm:$0xf]
        %v9157 = vld [vmem:[%s8832 + $0x98] sm:$0xf]
        %v9158 = vld [vmem:[%s8832 + $0x9c] sm:$0x1]
        %v9160 = vshrl.u32 %v9119, 16
        %v9162 = vrot.slane %v9160, 4
        %v9163 = vshll.u32 %v9119, 16
        %v9165 = vrot.slane %v9163, 5
        %v9166 = vor.u32 %v9162, %v9165
        %v9167 = vrot.slane %v9166, 4
        %v9169 = vshll.u32 %v9120, 16
        %v9171 = vrot.slane %v9169, 5
        %v9172 = vsel %vm6433, %v9167, %v9171
        %v9173 = vshrl.u32 %v9120, 16
        %v9175 = vrot.slane %v9173, 4
        %v9176 = vor.u32 %v9175, %v9171
        %v9177 = vrot.slane %v9176, 4
        %v9179 = vshll.u32 %v9121, 16
        %v9181 = vrot.slane %v9179, 5
        %v9182 = vsel %vm6433, %v9177, %v9181
        %v9183 = vshrl.u32 %v9121, 16
        %v9185 = vrot.slane %v9183, 4
        %v9186 = vor.u32 %v9185, %v9181
        %v9187 = vrot.slane %v9186, 4
        %v9189 = vshll.u32 %v9122, 16
        %v9191 = vrot.slane %v9189, 5
        %v9192 = vsel %vm6433, %v9187, %v9191
        %v9193 = vshrl.u32 %v9122, 16
        %v9195 = vrot.slane %v9193, 4
        %v9196 = vor.u32 %v9195, %v9191
        %v9197 = vrot.slane %v9196, 4
        %v9199 = vshll.u32 %v9123, 16
        %v9201 = vrot.slane %v9199, 5
        %v9202 = vsel %vm6433, %v9197, %v9201
        %v9204 = vshrl.u32 %v9124, 16
        %v9206 = vrot.slane %v9204, 4
        %v9207 = vshll.u32 %v9124, 16
        %v9209 = vrot.slane %v9207, 5
        %v9210 = vor.u32 %v9206, %v9209
        %v9211 = vrot.slane %v9210, 4
        %v9213 = vshll.u32 %v9125, 16
        %v9215 = vrot.slane %v9213, 5
        %v9216 = vsel %vm6433, %v9211, %v9215
        %v9217 = vshrl.u32 %v9125, 16
        %v9219 = vrot.slane %v9217, 4
        %v9220 = vor.u32 %v9219, %v9215
        %v9221 = vrot.slane %v9220, 4
        %v9223 = vshll.u32 %v9126, 16
        %v9225 = vrot.slane %v9223, 5
        %v9226 = vsel %vm6433, %v9221, %v9225
        %v9227 = vshrl.u32 %v9126, 16
        %v9229 = vrot.slane %v9227, 4
        %v9230 = vor.u32 %v9229, %v9225
        %v9231 = vrot.slane %v9230, 4
        %v9233 = vshll.u32 %v9127, 16
        %v9235 = vrot.slane %v9233, 5
        %v9236 = vsel %vm6433, %v9231, %v9235
        %v9237 = vshrl.u32 %v9127, 16
        %v9239 = vrot.slane %v9237, 4
        %v9240 = vor.u32 %v9239, %v9235
        %v9241 = vrot.slane %v9240, 4
        %v9243 = vshll.u32 %v9128, 16
        %v9245 = vrot.slane %v9243, 5
        %v9246 = vsel %vm6433, %v9241, %v9245
        %v9248 = vshrl.u32 %v9129, 16
        %v9250 = vrot.slane %v9248, 4
        %v9251 = vshll.u32 %v9129, 16
        %v9253 = vrot.slane %v9251, 5
        %v9254 = vor.u32 %v9250, %v9253
        %v9255 = vrot.slane %v9254, 4
        %v9257 = vshll.u32 %v9130, 16
        %v9259 = vrot.slane %v9257, 5
        %v9260 = vsel %vm6433, %v9255, %v9259
        %v9261 = vshrl.u32 %v9130, 16
        %v9263 = vrot.slane %v9261, 4
        %v9264 = vor.u32 %v9263, %v9259
        %v9265 = vrot.slane %v9264, 4
        %v9267 = vshll.u32 %v9131, 16
        %v9269 = vrot.slane %v9267, 5
        %v9270 = vsel %vm6433, %v9265, %v9269
        %v9271 = vshrl.u32 %v9131, 16
        %v9273 = vrot.slane %v9271, 4
        %v9274 = vor.u32 %v9273, %v9269
        %v9275 = vrot.slane %v9274, 4
        %v9277 = vshll.u32 %v9132, 16
        %v9279 = vrot.slane %v9277, 5
        %v9280 = vsel %vm6433, %v9275, %v9279
        %v9281 = vshrl.u32 %v9132, 16
        %v9283 = vrot.slane %v9281, 4
        %v9284 = vor.u32 %v9283, %v9279
        %v9285 = vrot.slane %v9284, 4
        %v9287 = vshll.u32 %v9133, 16
        %v9289 = vrot.slane %v9287, 5
        %v9290 = vsel %vm6433, %v9285, %v9289
        %v9292 = vshrl.u32 %v9134, 16
        %v9294 = vrot.slane %v9292, 4
        %v9295 = vshll.u32 %v9134, 16
        %v9297 = vrot.slane %v9295, 5
        %v9298 = vor.u32 %v9294, %v9297
        %v9299 = vrot.slane %v9298, 4
        %v9301 = vshll.u32 %v9135, 16
        %v9303 = vrot.slane %v9301, 5
        %v9304 = vsel %vm6433, %v9299, %v9303
        %v9305 = vshrl.u32 %v9135, 16
        %v9307 = vrot.slane %v9305, 4
        %v9308 = vor.u32 %v9307, %v9303
        %v9309 = vrot.slane %v9308, 4
        %v9311 = vshll.u32 %v9136, 16
        %v9313 = vrot.slane %v9311, 5
        %v9314 = vsel %vm6433, %v9309, %v9313
        %v9315 = vshrl.u32 %v9136, 16
        %v9317 = vrot.slane %v9315, 4
        %v9318 = vor.u32 %v9317, %v9313
        %v9319 = vrot.slane %v9318, 4
        %v9321 = vshll.u32 %v9137, 16
        %v9323 = vrot.slane %v9321, 5
        %v9324 = vsel %vm6433, %v9319, %v9323
        %v9325 = vshrl.u32 %v9137, 16
        %v9327 = vrot.slane %v9325, 4
        %v9328 = vor.u32 %v9327, %v9323
        %v9329 = vrot.slane %v9328, 4
        %v9331 = vshll.u32 %v9138, 16
        %v9333 = vrot.slane %v9331, 5
        %v9334 = vsel %vm6433, %v9329, %v9333
        %v9336 = vshrl.u32 %v9139, 16
        %v9338 = vrot.slane %v9336, 4
        %v9339 = vshll.u32 %v9139, 16
        %v9341 = vrot.slane %v9339, 5
        %v9342 = vor.u32 %v9338, %v9341
        %v9343 = vrot.slane %v9342, 4
        %v9345 = vshll.u32 %v9140, 16
        %v9347 = vrot.slane %v9345, 5
        %v9348 = vsel %vm6433, %v9343, %v9347
        %v9349 = vshrl.u32 %v9140, 16
        %v9351 = vrot.slane %v9349, 4
        %v9352 = vor.u32 %v9351, %v9347
        %v9353 = vrot.slane %v9352, 4
        %v9355 = vshll.u32 %v9141, 16
        %v9357 = vrot.slane %v9355, 5
        %v9358 = vsel %vm6433, %v9353, %v9357
        %v9359 = vshrl.u32 %v9141, 16
        %v9361 = vrot.slane %v9359, 4
        %v9362 = vor.u32 %v9361, %v9357
        %v9363 = vrot.slane %v9362, 4
        %v9365 = vshll.u32 %v9142, 16
        %v9367 = vrot.slane %v9365, 5
        %v9368 = vsel %vm6433, %v9363, %v9367
        %v9369 = vshrl.u32 %v9142, 16
        %v9371 = vrot.slane %v9369, 4
        %v9372 = vor.u32 %v9371, %v9367
        %v9373 = vrot.slane %v9372, 4
        %v9375 = vshll.u32 %v9143, 16
        %v9377 = vrot.slane %v9375, 5
        %v9378 = vsel %vm6433, %v9373, %v9377
        %v9380 = vshrl.u32 %v9144, 16
        %v9382 = vrot.slane %v9380, 4
        %v9383 = vshll.u32 %v9144, 16
        %v9385 = vrot.slane %v9383, 5
        %v9386 = vor.u32 %v9382, %v9385
        %v9387 = vrot.slane %v9386, 4
        %v9389 = vshll.u32 %v9145, 16
        %v9391 = vrot.slane %v9389, 5
        %v9392 = vsel %vm6433, %v9387, %v9391
        %v9393 = vshrl.u32 %v9145, 16
        %v9395 = vrot.slane %v9393, 4
        %v9396 = vor.u32 %v9395, %v9391
        %v9397 = vrot.slane %v9396, 4
        %v9399 = vshll.u32 %v9146, 16
        %v9401 = vrot.slane %v9399, 5
        %v9402 = vsel %vm6433, %v9397, %v9401
        %v9403 = vshrl.u32 %v9146, 16
        %v9405 = vrot.slane %v9403, 4
        %v9406 = vor.u32 %v9405, %v9401
        %v9407 = vrot.slane %v9406, 4
        %v9409 = vshll.u32 %v9147, 16
        %v9411 = vrot.slane %v9409, 5
        %v9412 = vsel %vm6433, %v9407, %v9411
        %v9413 = vshrl.u32 %v9147, 16
        %v9415 = vrot.slane %v9413, 4
        %v9416 = vor.u32 %v9415, %v9411
        %v9417 = vrot.slane %v9416, 4
        %v9419 = vshll.u32 %v9148, 16
        %v9421 = vrot.slane %v9419, 5
        %v9422 = vsel %vm6433, %v9417, %v9421
        %v9424 = vshrl.u32 %v9149, 16
        %v9426 = vrot.slane %v9424, 4
        %v9427 = vshll.u32 %v9149, 16
        %v9429 = vrot.slane %v9427, 5
        %v9430 = vor.u32 %v9426, %v9429
        %v9431 = vrot.slane %v9430, 4
        %v9433 = vshll.u32 %v9150, 16
        %v9435 = vrot.slane %v9433, 5
        %v9436 = vsel %vm6433, %v9431, %v9435
        %v9437 = vshrl.u32 %v9150, 16
        %v9439 = vrot.slane %v9437, 4
        %v9440 = vor.u32 %v9439, %v9435
        %v9441 = vrot.slane %v9440, 4
        %v9443 = vshll.u32 %v9151, 16
        %v9445 = vrot.slane %v9443, 5
        %v9446 = vsel %vm6433, %v9441, %v9445
        %v9447 = vshrl.u32 %v9151, 16
        %v9449 = vrot.slane %v9447, 4
        %v9450 = vor.u32 %v9449, %v9445
        %v9451 = vrot.slane %v9450, 4
        %v9453 = vshll.u32 %v9152, 16
        %v9455 = vrot.slane %v9453, 5
        %v9456 = vsel %vm6433, %v9451, %v9455
        %v9457 = vshrl.u32 %v9152, 16
        %v9459 = vrot.slane %v9457, 4
        %v9460 = vor.u32 %v9459, %v9455
        %v9461 = vrot.slane %v9460, 4
        %v9463 = vshll.u32 %v9153, 16
        %v9465 = vrot.slane %v9463, 5
        %v9466 = vsel %vm6433, %v9461, %v9465
        %v9468 = vshrl.u32 %v9154, 16
        %v9470 = vrot.slane %v9468, 4
        %v9471 = vshll.u32 %v9154, 16
        %v9473 = vrot.slane %v9471, 5
        %v9474 = vor.u32 %v9470, %v9473
        %v9475 = vrot.slane %v9474, 4
        %v9477 = vshll.u32 %v9155, 16
        %v9479 = vrot.slane %v9477, 5
        %v9480 = vsel %vm6433, %v9475, %v9479
        %v9481 = vshrl.u32 %v9155, 16
        %v9483 = vrot.slane %v9481, 4
        %v9484 = vor.u32 %v9483, %v9479
        %v9485 = vrot.slane %v9484, 4
        %v9487 = vshll.u32 %v9156, 16
        %v9489 = vrot.slane %v9487, 5
        %v9490 = vsel %vm6433, %v9485, %v9489
        %v9491 = vshrl.u32 %v9156, 16
        %v9493 = vrot.slane %v9491, 4
        %v9494 = vor.u32 %v9493, %v9489
        %v9495 = vrot.slane %v9494, 4
        %v9497 = vshll.u32 %v9157, 16
        %v9499 = vrot.slane %v9497, 5
        %v9500 = vsel %vm6433, %v9495, %v9499
        %v9501 = vshrl.u32 %v9157, 16
        %v9503 = vrot.slane %v9501, 4
        %v9504 = vor.u32 %v9503, %v9499
        %v9505 = vrot.slane %v9504, 4
        %v9507 = vshll.u32 %v9158, 16
        %v9509 = vrot.slane %v9507, 5
        %v9510 = vsel %vm6433, %v9505, %v9509
        %s9511 = scalar_lea.vmem %s6, 28
        %v9512 = vld [vmem:[%s9511] sm:$0xf]
        %v9513 = vunpack.c.l.b16 %v9172
        %v9514 = vunpack.c.l.b16 %v9182
        %v9515 = vunpack.c.l.b16 %v9192
        %v9516 = vunpack.c.l.b16 %v9202
        %v9517 = vunpack.c.l.b16 %v9216
        %v9518 = vunpack.c.l.b16 %v9226
        %v9519 = vunpack.c.l.b16 %v9236
        %v9520 = vunpack.c.l.b16 %v9246
        %v9521 = vunpack.c.l.b16 %v9260
        %v9522 = vunpack.c.l.b16 %v9270
        %v9523 = vunpack.c.l.b16 %v9280
        %v9524 = vunpack.c.l.b16 %v9290
        %v9525 = vunpack.c.l.b16 %v9304
        %v9526 = vunpack.c.l.b16 %v9314
        %v9527 = vunpack.c.l.b16 %v9324
        %v9528 = vunpack.c.l.b16 %v9334
        %v9529 = vunpack.c.l.b16 %v9348
        %v9530 = vunpack.c.l.b16 %v9358
        %v9531 = vunpack.c.l.b16 %v9368
        %v9532 = vunpack.c.l.b16 %v9378
        %v9533 = vunpack.c.l.b16 %v9392
        %v9534 = vunpack.c.l.b16 %v9402
        %v9535 = vunpack.c.l.b16 %v9412
        %v9536 = vunpack.c.l.b16 %v9422
        %v9537 = vunpack.c.l.b16 %v9436
        %v9538 = vunpack.c.l.b16 %v9446
        %v9539 = vunpack.c.l.b16 %v9456
        %v9540 = vunpack.c.l.b16 %v9466
        %v9541 = vunpack.c.l.b16 %v9480
        %v9542 = vunpack.c.l.b16 %v9490
        %v9543 = vunpack.c.l.b16 %v9500
        %v9544 = vunpack.c.l.b16 %v9510
        %v9545 = vpack.c.b16 %v9514, %v9513
        %v9546 = vpack.c.b16 %v9516, %v9515
        %v9547 = vpack.c.b16 %v9518, %v9517
        %v9548 = vpack.c.b16 %v9520, %v9519
        %v9549 = vpack.c.b16 %v9522, %v9521
        %v9550 = vpack.c.b16 %v9524, %v9523
        %v9551 = vpack.c.b16 %v9526, %v9525
        %v9552 = vpack.c.b16 %v9528, %v9527
        %v9553 = vpack.c.b16 %v9530, %v9529
        %v9554 = vpack.c.b16 %v9532, %v9531
        %v9555 = vpack.c.b16 %v9534, %v9533
        %v9556 = vpack.c.b16 %v9536, %v9535
        %v9557 = vpack.c.b16 %v9538, %v9537
        %v9558 = vpack.c.b16 %v9540, %v9539
        %v9559 = vpack.c.b16 %v9542, %v9541
        %v9560 = vpack.c.b16 %v9544, %v9543
        %v9562 = vsel %vm6836, %v9545, 0
        %v9565 = vsel %vm6836, %v9546, 0
        %v9568 = vsel %vm6836, %v9547, 0
        %v9571 = vsel %vm6836, %v9548, 0
        %v9574 = vsel %vm6836, %v9549, 0
        %v9577 = vsel %vm6836, %v9550, 0
        %v9580 = vsel %vm6836, %v9551, 0
        %v9583 = vsel %vm6836, %v9552, 0
        %v9586 = vsel %vm6836, %v9553, 0
        %v9589 = vsel %vm6836, %v9554, 0
        %v9592 = vsel %vm6836, %v9555, 0
        %v9595 = vsel %vm6836, %v9556, 0
        %v9598 = vsel %vm6836, %v9557, 0
        %v9601 = vsel %vm6836, %v9558, 0
        %v9604 = vsel %vm6836, %v9559, 0
        %v9607 = vsel %vm6836, %v9560, 0
        %v9610 = vsel %vm6885, %v9512, 0
        %9612 = vmatpush.bf16.msra.mxu0 0
        %9613 = vmatpush.bf16.msra.mxu0 0
        %9614 = vmatpush.bf16.msra.mxu0 0
        %9615 = vmatpush.bf16.msra.mxu0 0
        %9616 = vmatpush.bf16.msra.mxu0 0
        %9617 = vmatpush.bf16.msra.mxu0 0
        %9618 = vmatpush.bf16.msra.mxu0 0
        %9619 = vmatpush.bf16.msra.mxu0 %v9610
        %9620 = vmatmul.bf16.gmra.mxu0 %v9562
        %v9621 = vpop.f32.mrf.mxu0
        %v9622 = vadd.f32 0.0, %v9621
        %v9623 = vpop.f32.mrf.mxu0
        %v9624 = vadd.f32 0.0, %v9623
        %9625 = vmatmul.bf16.gmra.mxu0 %v9565
        %v9626 = vpop.f32.mrf.mxu0
        %v9627 = vadd.f32 0.0, %v9626
        %v9628 = vpop.f32.mrf.mxu0
        %v9629 = vadd.f32 0.0, %v9628
        %9630 = vmatmul.bf16.gmra.mxu0 %v9568
        %v9631 = vpop.f32.mrf.mxu0
        %v9632 = vadd.f32 0.0, %v9631
        %v9633 = vpop.f32.mrf.mxu0
        %v9634 = vadd.f32 0.0, %v9633
        %9635 = vmatmul.bf16.gmra.mxu0 %v9571
        %v9636 = vpop.f32.mrf.mxu0
        %v9637 = vadd.f32 0.0, %v9636
        %v9638 = vpop.f32.mrf.mxu0
        %v9639 = vadd.f32 0.0, %v9638
        %9640 = vmatmul.bf16.gmra.mxu0 %v9574
        %v9641 = vpop.f32.mrf.mxu0
        %v9642 = vadd.f32 0.0, %v9641
        %v9643 = vpop.f32.mrf.mxu0
        %v9644 = vadd.f32 0.0, %v9643
        %9645 = vmatmul.bf16.gmra.mxu0 %v9577
        %v9646 = vpop.f32.mrf.mxu0
        %v9647 = vadd.f32 0.0, %v9646
        %v9648 = vpop.f32.mrf.mxu0
        %v9649 = vadd.f32 0.0, %v9648
        %9650 = vmatmul.bf16.gmra.mxu0 %v9580
        %v9651 = vpop.f32.mrf.mxu0
        %v9652 = vadd.f32 0.0, %v9651
        %v9653 = vpop.f32.mrf.mxu0
        %v9654 = vadd.f32 0.0, %v9653
        %9655 = vmatmul.bf16.gmra.mxu0 %v9583
        %v9656 = vpop.f32.mrf.mxu0
        %v9657 = vadd.f32 0.0, %v9656
        %v9658 = vpop.f32.mrf.mxu0
        %v9659 = vadd.f32 0.0, %v9658
        %9660 = vmatmul.bf16.gmra.mxu0 %v9586
        %v9661 = vpop.f32.mrf.mxu0
        %v9662 = vadd.f32 0.0, %v9661
        %v9663 = vpop.f32.mrf.mxu0
        %v9664 = vadd.f32 0.0, %v9663
        %9665 = vmatmul.bf16.gmra.mxu0 %v9589
        %v9666 = vpop.f32.mrf.mxu0
        %v9667 = vadd.f32 0.0, %v9666
        %v9668 = vpop.f32.mrf.mxu0
        %v9669 = vadd.f32 0.0, %v9668
        %9670 = vmatmul.bf16.gmra.mxu0 %v9592
        %v9671 = vpop.f32.mrf.mxu0
        %v9672 = vadd.f32 0.0, %v9671
        %v9673 = vpop.f32.mrf.mxu0
        %v9674 = vadd.f32 0.0, %v9673
        %9675 = vmatmul.bf16.gmra.mxu0 %v9595
        %v9676 = vpop.f32.mrf.mxu0
        %v9677 = vadd.f32 0.0, %v9676
        %v9678 = vpop.f32.mrf.mxu0
        %v9679 = vadd.f32 0.0, %v9678
        %9680 = vmatmul.bf16.gmra.mxu0 %v9598
        %v9681 = vpop.f32.mrf.mxu0
        %v9682 = vadd.f32 0.0, %v9681
        %v9683 = vpop.f32.mrf.mxu0
        %v9684 = vadd.f32 0.0, %v9683
        %9685 = vmatmul.bf16.gmra.mxu0 %v9601
        %v9686 = vpop.f32.mrf.mxu0
        %v9687 = vadd.f32 0.0, %v9686
        %v9688 = vpop.f32.mrf.mxu0
        %v9689 = vadd.f32 0.0, %v9688
        %9690 = vmatmul.bf16.gmra.mxu0 %v9604
        %v9691 = vpop.f32.mrf.mxu0
        %v9692 = vadd.f32 0.0, %v9691
        %v9693 = vpop.f32.mrf.mxu0
        %v9694 = vadd.f32 0.0, %v9693
        %9695 = vmatmul.bf16.gmra.mxu0 %v9607
        %v9696 = vpop.f32.mrf.mxu0
        %v9697 = vadd.f32 0.0, %v9696
        %v9698 = vpop.f32.mrf.mxu0
        %v9699 = vadd.f32 0.0, %v9698
        %9700 = vdwg.mxu0
        %v9701 = vadd.f32 %v9087, %v9622
        %v9702 = vadd.f32 %v9088, %v9624
        %v9703 = vadd.f32 %v9089, %v9627
        %v9704 = vadd.f32 %v9090, %v9629
        %v9705 = vadd.f32 %v9091, %v9632
        %v9706 = vadd.f32 %v9092, %v9634
        %v9707 = vadd.f32 %v9093, %v9637
        %v9708 = vadd.f32 %v9094, %v9639
        %v9709 = vadd.f32 %v9095, %v9642
        %v9710 = vadd.f32 %v9096, %v9644
        %v9711 = vadd.f32 %v9097, %v9647
        %v9712 = vadd.f32 %v9098, %v9649
        %v9713 = vadd.f32 %v9099, %v9652
        %v9714 = vadd.f32 %v9100, %v9654
        %v9715 = vadd.f32 %v9101, %v9657
        %v9716 = vadd.f32 %v9102, %v9659
        %v9717 = vadd.f32 %v9103, %v9662
        %v9718 = vadd.f32 %v9104, %v9664
        %v9719 = vadd.f32 %v9105, %v9667
        %v9720 = vadd.f32 %v9106, %v9669
        %v9721 = vadd.f32 %v9107, %v9672
        %v9722 = vadd.f32 %v9108, %v9674
        %v9723 = vadd.f32 %v9109, %v9677
        %v9724 = vadd.f32 %v9110, %v9679
        %v9725 = vadd.f32 %v9111, %v9682
        %v9726 = vadd.f32 %v9112, %v9684
        %v9727 = vadd.f32 %v9113, %v9687
        %v9728 = vadd.f32 %v9114, %v9689
        %v9729 = vadd.f32 %v9115, %v9692
        %v9730 = vadd.f32 %v9116, %v9694
        %v9731 = vadd.f32 %v9117, %v9697
        %v9732 = vadd.f32 %v9118, %v9699
        %v9733 = vld [vmem:[%s8832] sm:$0xe]
        %v9734 = vld [vmem:[%s8832 + $0x14] sm:$0xe]
        %v9735 = vld [vmem:[%s8832 + $0x28] sm:$0xe]
        %v9736 = vld [vmem:[%s8832 + $0x3c] sm:$0xe]
        %v9737 = vld [vmem:[%s8832 + $0x50] sm:$0xe]
        %v9738 = vld [vmem:[%s8832 + $0x64] sm:$0xe]
        %v9739 = vld [vmem:[%s8832 + $0x78] sm:$0xe]
        %v9740 = vld [vmem:[%s8832 + $0x8c] sm:$0xe]
        %v9781 = vrot.slane %v9733, 5
        %v9782 = vrot.slane %v9781, 4
        %v9783 = vrot.slane %v9120, 5
        %v9784 = vsel %vm7224, %v9782, %v9783
        %v9785 = vrot.slane %v9783, 4
        %v9786 = vrot.slane %v9121, 5
        %v9787 = vsel %vm7224, %v9785, %v9786
        %v9788 = vrot.slane %v9786, 4
        %v9789 = vrot.slane %v9122, 5
        %v9790 = vsel %vm7224, %v9788, %v9789
        %v9791 = vrot.slane %v9789, 4
        %v9792 = vrot.slane %v9123, 5
        %v9793 = vsel %vm7224, %v9791, %v9792
        %v9794 = vrot.slane %v9734, 5
        %v9795 = vrot.slane %v9794, 4
        %v9796 = vrot.slane %v9125, 5
        %v9797 = vsel %vm7224, %v9795, %v9796
        %v9798 = vrot.slane %v9796, 4
        %v9799 = vrot.slane %v9126, 5
        %v9800 = vsel %vm7224, %v9798, %v9799
        %v9801 = vrot.slane %v9799, 4
        %v9802 = vrot.slane %v9127, 5
        %v9803 = vsel %vm7224, %v9801, %v9802
        %v9804 = vrot.slane %v9802, 4
        %v9805 = vrot.slane %v9128, 5
        %v9806 = vsel %vm7224, %v9804, %v9805
        %v9807 = vrot.slane %v9735, 5
        %v9808 = vrot.slane %v9807, 4
        %v9809 = vrot.slane %v9130, 5
        %v9810 = vsel %vm7224, %v9808, %v9809
        %v9811 = vrot.slane %v9809, 4
        %v9812 = vrot.slane %v9131, 5
        %v9813 = vsel %vm7224, %v9811, %v9812
        %v9814 = vrot.slane %v9812, 4
        %v9815 = vrot.slane %v9132, 5
        %v9816 = vsel %vm7224, %v9814, %v9815
        %v9817 = vrot.slane %v9815, 4
        %v9818 = vrot.slane %v9133, 5
        %v9819 = vsel %vm7224, %v9817, %v9818
        %v9820 = vrot.slane %v9736, 5
        %v9821 = vrot.slane %v9820, 4
        %v9822 = vrot.slane %v9135, 5
        %v9823 = vsel %vm7224, %v9821, %v9822
        %v9824 = vrot.slane %v9822, 4
        %v9825 = vrot.slane %v9136, 5
        %v9826 = vsel %vm7224, %v9824, %v9825
        %v9827 = vrot.slane %v9825, 4
        %v9828 = vrot.slane %v9137, 5
        %v9829 = vsel %vm7224, %v9827, %v9828
        %v9830 = vrot.slane %v9828, 4
        %v9831 = vrot.slane %v9138, 5
        %v9832 = vsel %vm7224, %v9830, %v9831
        %v9833 = vrot.slane %v9737, 5
        %v9834 = vrot.slane %v9833, 4
        %v9835 = vrot.slane %v9140, 5
        %v9836 = vsel %vm7224, %v9834, %v9835
        %v9837 = vrot.slane %v9835, 4
        %v9838 = vrot.slane %v9141, 5
        %v9839 = vsel %vm7224, %v9837, %v9838
        %v9840 = vrot.slane %v9838, 4
        %v9841 = vrot.slane %v9142, 5
        %v9842 = vsel %vm7224, %v9840, %v9841
        %v9843 = vrot.slane %v9841, 4
        %v9844 = vrot.slane %v9143, 5
        %v9845 = vsel %vm7224, %v9843, %v9844
        %v9846 = vrot.slane %v9738, 5
        %v9847 = vrot.slane %v9846, 4
        %v9848 = vrot.slane %v9145, 5
        %v9849 = vsel %vm7224, %v9847, %v9848
        %v9850 = vrot.slane %v9848, 4
        %v9851 = vrot.slane %v9146, 5
        %v9852 = vsel %vm7224, %v9850, %v9851
        %v9853 = vrot.slane %v9851, 4
        %v9854 = vrot.slane %v9147, 5
        %v9855 = vsel %vm7224, %v9853, %v9854
        %v9856 = vrot.slane %v9854, 4
        %v9857 = vrot.slane %v9148, 5
        %v9858 = vsel %vm7224, %v9856, %v9857
        %v9859 = vrot.slane %v9739, 5
        %v9860 = vrot.slane %v9859, 4
        %v9861 = vrot.slane %v9150, 5
        %v9862 = vsel %vm7224, %v9860, %v9861
        %v9863 = vrot.slane %v9861, 4
        %v9864 = vrot.slane %v9151, 5
        %v9865 = vsel %vm7224, %v9863, %v9864
        %v9866 = vrot.slane %v9864, 4
        %v9867 = vrot.slane %v9152, 5
        %v9868 = vsel %vm7224, %v9866, %v9867
        %v9869 = vrot.slane %v9867, 4
        %v9870 = vrot.slane %v9153, 5
        %v9871 = vsel %vm7224, %v9869, %v9870
        %v9872 = vrot.slane %v9740, 5
        %v9873 = vrot.slane %v9872, 4
        %v9874 = vrot.slane %v9155, 5
        %v9875 = vsel %vm7224, %v9873, %v9874
        %v9876 = vrot.slane %v9874, 4
        %v9877 = vrot.slane %v9156, 5
        %v9878 = vsel %vm7224, %v9876, %v9877
        %v9879 = vrot.slane %v9877, 4
        %v9880 = vrot.slane %v9157, 5
        %v9881 = vsel %vm7224, %v9879, %v9880
        %v9882 = vrot.slane %v9880, 4
        %v9883 = vrot.slane %v9158, 5
        %v9884 = vsel %vm7224, %v9882, %v9883
        %s9885 = scalar_lea.vmem %s6, 32
        %v9886 = vld [vmem:[%s9885] sm:$0xf]
        %v9887 = vunpack.c.l.b16 %v9784
        %v9888 = vunpack.c.l.b16 %v9787
        %v9889 = vunpack.c.l.b16 %v9790
        %v9890 = vunpack.c.l.b16 %v9793
        %v9891 = vunpack.c.l.b16 %v9797
        %v9892 = vunpack.c.l.b16 %v9800
        %v9893 = vunpack.c.l.b16 %v9803
        %v9894 = vunpack.c.l.b16 %v9806
        %v9895 = vunpack.c.l.b16 %v9810
        %v9896 = vunpack.c.l.b16 %v9813
        %v9897 = vunpack.c.l.b16 %v9816
        %v9898 = vunpack.c.l.b16 %v9819
        %v9899 = vunpack.c.l.b16 %v9823
        %v9900 = vunpack.c.l.b16 %v9826
        %v9901 = vunpack.c.l.b16 %v9829
        %v9902 = vunpack.c.l.b16 %v9832
        %v9903 = vunpack.c.l.b16 %v9836
        %v9904 = vunpack.c.l.b16 %v9839
        %v9905 = vunpack.c.l.b16 %v9842
        %v9906 = vunpack.c.l.b16 %v9845
        %v9907 = vunpack.c.l.b16 %v9849
        %v9908 = vunpack.c.l.b16 %v9852
        %v9909 = vunpack.c.l.b16 %v9855
        %v9910 = vunpack.c.l.b16 %v9858
        %v9911 = vunpack.c.l.b16 %v9862
        %v9912 = vunpack.c.l.b16 %v9865
        %v9913 = vunpack.c.l.b16 %v9868
        %v9914 = vunpack.c.l.b16 %v9871
        %v9915 = vunpack.c.l.b16 %v9875
        %v9916 = vunpack.c.l.b16 %v9878
        %v9917 = vunpack.c.l.b16 %v9881
        %v9918 = vunpack.c.l.b16 %v9884
        %v9919 = vpack.c.b16 %v9888, %v9887
        %v9920 = vpack.c.b16 %v9890, %v9889
        %v9921 = vpack.c.b16 %v9892, %v9891
        %v9922 = vpack.c.b16 %v9894, %v9893
        %v9923 = vpack.c.b16 %v9896, %v9895
        %v9924 = vpack.c.b16 %v9898, %v9897
        %v9925 = vpack.c.b16 %v9900, %v9899
        %v9926 = vpack.c.b16 %v9902, %v9901
        %v9927 = vpack.c.b16 %v9904, %v9903
        %v9928 = vpack.c.b16 %v9906, %v9905
        %v9929 = vpack.c.b16 %v9908, %v9907
        %v9930 = vpack.c.b16 %v9910, %v9909
        %v9931 = vpack.c.b16 %v9912, %v9911
        %v9932 = vpack.c.b16 %v9914, %v9913
        %v9933 = vpack.c.b16 %v9916, %v9915
        %v9934 = vpack.c.b16 %v9918, %v9917
        %v9936 = vsel %vm6836, %v9919, 0
        %v9939 = vsel %vm6836, %v9920, 0
        %v9942 = vsel %vm6836, %v9921, 0
        %v9945 = vsel %vm6836, %v9922, 0
        %v9948 = vsel %vm6836, %v9923, 0
        %v9951 = vsel %vm6836, %v9924, 0
        %v9954 = vsel %vm6836, %v9925, 0
        %v9957 = vsel %vm6836, %v9926, 0
        %v9960 = vsel %vm6836, %v9927, 0
        %v9963 = vsel %vm6836, %v9928, 0
        %v9966 = vsel %vm6836, %v9929, 0
        %v9969 = vsel %vm6836, %v9930, 0
        %v9972 = vsel %vm6836, %v9931, 0
        %v9975 = vsel %vm6836, %v9932, 0
        %v9978 = vsel %vm6836, %v9933, 0
        %v9981 = vsel %vm6836, %v9934, 0
        %v9984 = vsel %vm6885, %v9886, 0
        %9986 = vmatpush.bf16.msra.mxu0 0
        %9987 = vmatpush.bf16.msra.mxu0 0
        %9988 = vmatpush.bf16.msra.mxu0 0
        %9989 = vmatpush.bf16.msra.mxu0 0
        %9990 = vmatpush.bf16.msra.mxu0 0
        %9991 = vmatpush.bf16.msra.mxu0 0
        %9992 = vmatpush.bf16.msra.mxu0 0
        %9993 = vmatpush.bf16.msra.mxu0 %v9984
        %9994 = vmatmul.bf16.gmra.mxu0 %v9936
        %v9995 = vpop.f32.mrf.mxu0
        %v9996 = vadd.f32 0.0, %v9995
        %v9997 = vpop.f32.mrf.mxu0
        %v9998 = vadd.f32 0.0, %v9997
        %9999 = vmatmul.bf16.gmra.mxu0 %v9939
        %v10000 = vpop.f32.mrf.mxu0
        %v10001 = vadd.f32 0.0, %v10000
        %v10002 = vpop.f32.mrf.mxu0
        %v10003 = vadd.f32 0.0, %v10002
        %10004 = vmatmul.bf16.gmra.mxu0 %v9942
        %v10005 = vpop.f32.mrf.mxu0
        %v10006 = vadd.f32 0.0, %v10005
        %v10007 = vpop.f32.mrf.mxu0
        %v10008 = vadd.f32 0.0, %v10007
        %10009 = vmatmul.bf16.gmra.mxu0 %v9945
        %v10010 = vpop.f32.mrf.mxu0
        %v10011 = vadd.f32 0.0, %v10010
        %v10012 = vpop.f32.mrf.mxu0
        %v10013 = vadd.f32 0.0, %v10012
        %10014 = vmatmul.bf16.gmra.mxu0 %v9948
        %v10015 = vpop.f32.mrf.mxu0
        %v10016 = vadd.f32 0.0, %v10015
        %v10017 = vpop.f32.mrf.mxu0
        %v10018 = vadd.f32 0.0, %v10017
        %10019 = vmatmul.bf16.gmra.mxu0 %v9951
        %v10020 = vpop.f32.mrf.mxu0
        %v10021 = vadd.f32 0.0, %v10020
        %v10022 = vpop.f32.mrf.mxu0
        %v10023 = vadd.f32 0.0, %v10022
        %10024 = vmatmul.bf16.gmra.mxu0 %v9954
        %v10025 = vpop.f32.mrf.mxu0
        %v10026 = vadd.f32 0.0, %v10025
        %v10027 = vpop.f32.mrf.mxu0
        %v10028 = vadd.f32 0.0, %v10027
        %10029 = vmatmul.bf16.gmra.mxu0 %v9957
        %v10030 = vpop.f32.mrf.mxu0
        %v10031 = vadd.f32 0.0, %v10030
        %v10032 = vpop.f32.mrf.mxu0
        %v10033 = vadd.f32 0.0, %v10032
        %10034 = vmatmul.bf16.gmra.mxu0 %v9960
        %v10035 = vpop.f32.mrf.mxu0
        %v10036 = vadd.f32 0.0, %v10035
        %v10037 = vpop.f32.mrf.mxu0
        %v10038 = vadd.f32 0.0, %v10037
        %10039 = vmatmul.bf16.gmra.mxu0 %v9963
        %v10040 = vpop.f32.mrf.mxu0
        %v10041 = vadd.f32 0.0, %v10040
        %v10042 = vpop.f32.mrf.mxu0
        %v10043 = vadd.f32 0.0, %v10042
        %10044 = vmatmul.bf16.gmra.mxu0 %v9966
        %v10045 = vpop.f32.mrf.mxu0
        %v10046 = vadd.f32 0.0, %v10045
        %v10047 = vpop.f32.mrf.mxu0
        %v10048 = vadd.f32 0.0, %v10047
        %10049 = vmatmul.bf16.gmra.mxu0 %v9969
        %v10050 = vpop.f32.mrf.mxu0
        %v10051 = vadd.f32 0.0, %v10050
        %v10052 = vpop.f32.mrf.mxu0
        %v10053 = vadd.f32 0.0, %v10052
        %10054 = vmatmul.bf16.gmra.mxu0 %v9972
        %v10055 = vpop.f32.mrf.mxu0
        %v10056 = vadd.f32 0.0, %v10055
        %v10057 = vpop.f32.mrf.mxu0
        %v10058 = vadd.f32 0.0, %v10057
        %10059 = vmatmul.bf16.gmra.mxu0 %v9975
        %v10060 = vpop.f32.mrf.mxu0
        %v10061 = vadd.f32 0.0, %v10060
        %v10062 = vpop.f32.mrf.mxu0
        %v10063 = vadd.f32 0.0, %v10062
        %10064 = vmatmul.bf16.gmra.mxu0 %v9978
        %v10065 = vpop.f32.mrf.mxu0
        %v10066 = vadd.f32 0.0, %v10065
        %v10067 = vpop.f32.mrf.mxu0
        %v10068 = vadd.f32 0.0, %v10067
        %10069 = vmatmul.bf16.gmra.mxu0 %v9981
        %v10070 = vpop.f32.mrf.mxu0
        %v10071 = vadd.f32 0.0, %v10070
        %v10072 = vpop.f32.mrf.mxu0
        %v10073 = vadd.f32 0.0, %v10072
        %10074 = vdwg.mxu0
        %v10075 = vadd.f32 %v9701, %v9996
        %v10076 = vadd.f32 %v9702, %v9998
        %v10077 = vadd.f32 %v9703, %v10001
        %v10078 = vadd.f32 %v9704, %v10003
        %v10079 = vadd.f32 %v9705, %v10006
        %v10080 = vadd.f32 %v9706, %v10008
        %v10081 = vadd.f32 %v9707, %v10011
        %v10082 = vadd.f32 %v9708, %v10013
        %v10083 = vadd.f32 %v9709, %v10016
        %v10084 = vadd.f32 %v9710, %v10018
        %v10085 = vadd.f32 %v9711, %v10021
        %v10086 = vadd.f32 %v9712, %v10023
        %v10087 = vadd.f32 %v9713, %v10026
        %v10088 = vadd.f32 %v9714, %v10028
        %v10089 = vadd.f32 %v9715, %v10031
        %v10090 = vadd.f32 %v9716, %v10033
        %v10091 = vadd.f32 %v9717, %v10036
        %v10092 = vadd.f32 %v9718, %v10038
        %v10093 = vadd.f32 %v9719, %v10041
        %v10094 = vadd.f32 %v9720, %v10043
        %v10095 = vadd.f32 %v9721, %v10046
        %v10096 = vadd.f32 %v9722, %v10048
        %v10097 = vadd.f32 %v9723, %v10051
        %v10098 = vadd.f32 %v9724, %v10053
        %v10099 = vadd.f32 %v9725, %v10056
        %v10100 = vadd.f32 %v9726, %v10058
        %v10101 = vadd.f32 %v9727, %v10061
        %v10102 = vadd.f32 %v9728, %v10063
        %v10103 = vadd.f32 %v9729, %v10066
        %v10104 = vadd.f32 %v9730, %v10068
        %v10105 = vadd.f32 %v9731, %v10071
        %v10106 = vadd.f32 %v9732, %v10073
        %v10108 = vperm.slane %v1046, 0
        %v10110 = vadd.f32 %v10075, %v10108
        %v10111 = vadd.f32 %v10076, %v10108
        %v10112 = vadd.f32 %v10077, %v10108
        %v10113 = vadd.f32 %v10078, %v10108
        %v10114 = vadd.f32 %v10079, %v10108
        %v10115 = vadd.f32 %v10080, %v10108
        %v10116 = vadd.f32 %v10081, %v10108
        %v10117 = vadd.f32 %v10082, %v10108
        %v10118 = vadd.f32 %v10083, %v10108
        %v10119 = vadd.f32 %v10084, %v10108
        %v10120 = vadd.f32 %v10085, %v10108
        %v10121 = vadd.f32 %v10086, %v10108
        %v10122 = vadd.f32 %v10087, %v10108
        %v10123 = vadd.f32 %v10088, %v10108
        %v10124 = vadd.f32 %v10089, %v10108
        %v10125 = vadd.f32 %v10090, %v10108
        %v10126 = vadd.f32 %v10091, %v10108
        %v10127 = vadd.f32 %v10092, %v10108
        %v10128 = vadd.f32 %v10093, %v10108
        %v10129 = vadd.f32 %v10094, %v10108
        %v10130 = vadd.f32 %v10095, %v10108
        %v10131 = vadd.f32 %v10096, %v10108
        %v10132 = vadd.f32 %v10097, %v10108
        %v10133 = vadd.f32 %v10098, %v10108
        %v10134 = vadd.f32 %v10099, %v10108
        %v10135 = vadd.f32 %v10100, %v10108
        %v10136 = vadd.f32 %v10101, %v10108
        %v10137 = vadd.f32 %v10102, %v10108
        %v10138 = vadd.f32 %v10103, %v10108
        %v10139 = vadd.f32 %v10104, %v10108
        %v10140 = vadd.f32 %v10105, %v10108
        %v10141 = vadd.f32 %v10106, %v10108
        %s10142 = smul.u32 %s6386, 32
        %s10143 = scalar_lea.vmem %s329, %s10142
        %v10144 = vld [vmem:[%s10143] sm:$0xff]
        %v10145 = vld [vmem:[%s10143 + $0x8] sm:$0xff]
        %v10146 = vld [vmem:[%s10143 + $0x10] sm:$0xff]
        %v10147 = vld [vmem:[%s10143 + $0x18] sm:$0xff]
        %v10148 = vld [vmem:[%s10143 + $0x20] sm:$0xff]
        %v10149 = vld [vmem:[%s10143 + $0x28] sm:$0xff]
        %v10150 = vld [vmem:[%s10143 + $0x30] sm:$0xff]
        %v10151 = vld [vmem:[%s10143 + $0x38] sm:$0xff]
        %v10152 = vld [vmem:[%s10143 + $0x40] sm:$0xff]
        %v10153 = vld [vmem:[%s10143 + $0x48] sm:$0xff]
        %v10154 = vld [vmem:[%s10143 + $0x50] sm:$0xff]
        %v10155 = vld [vmem:[%s10143 + $0x58] sm:$0xff]
        %v10156 = vld [vmem:[%s10143 + $0x60] sm:$0xff]
        %v10157 = vld [vmem:[%s10143 + $0x68] sm:$0xff]
        %v10158 = vld [vmem:[%s10143 + $0x70] sm:$0xff]
        %v10159 = vld [vmem:[%s10143 + $0x78] sm:$0xff]
        %v10160 = vld [vmem:[%s10143 + $0x80] sm:$0xff]
        %v10161 = vld [vmem:[%s10143 + $0x88] sm:$0xff]
        %v10162 = vld [vmem:[%s10143 + $0x90] sm:$0xff]
        %v10163 = vld [vmem:[%s10143 + $0x98] sm:$0xff]
        %v10164 = vld [vmem:[%s10143 + $0xa0] sm:$0xff]
        %v10165 = vld [vmem:[%s10143 + $0xa8] sm:$0xff]
        %v10166 = vld [vmem:[%s10143 + $0xb0] sm:$0xff]
        %v10167 = vld [vmem:[%s10143 + $0xb8] sm:$0xff]
        %v10168 = vld [vmem:[%s10143 + $0xc0] sm:$0xff]
        %v10169 = vld [vmem:[%s10143 + $0xc8] sm:$0xff]
        %v10170 = vld [vmem:[%s10143 + $0xd0] sm:$0xff]
        %v10171 = vld [vmem:[%s10143 + $0xd8] sm:$0xff]
        %v10172 = vld [vmem:[%s10143 + $0xe0] sm:$0xff]
        %v10173 = vld [vmem:[%s10143 + $0xe8] sm:$0xff]
        %v10174 = vld [vmem:[%s10143 + $0xf0] sm:$0xff]
        %v10175 = vld [vmem:[%s10143 + $0xf8] sm:$0xff]
        %v10176 = vadd.f32 %v10110, %v10144
        %v10177 = vadd.f32 %v10111, %v10145
        %v10178 = vadd.f32 %v10112, %v10146
        %v10179 = vadd.f32 %v10113, %v10147
        %v10180 = vadd.f32 %v10114, %v10148
        %v10181 = vadd.f32 %v10115, %v10149
        %v10182 = vadd.f32 %v10116, %v10150
        %v10183 = vadd.f32 %v10117, %v10151
        %v10184 = vadd.f32 %v10118, %v10152
        %v10185 = vadd.f32 %v10119, %v10153
        %v10186 = vadd.f32 %v10120, %v10154
        %v10187 = vadd.f32 %v10121, %v10155
        %v10188 = vadd.f32 %v10122, %v10156
        %v10189 = vadd.f32 %v10123, %v10157
        %v10190 = vadd.f32 %v10124, %v10158
        %v10191 = vadd.f32 %v10125, %v10159
        %v10192 = vadd.f32 %v10126, %v10160
        %v10193 = vadd.f32 %v10127, %v10161
        %v10194 = vadd.f32 %v10128, %v10162
        %v10195 = vadd.f32 %v10129, %v10163
        %v10196 = vadd.f32 %v10130, %v10164
        %v10197 = vadd.f32 %v10131, %v10165
        %v10198 = vadd.f32 %v10132, %v10166
        %v10199 = vadd.f32 %v10133, %v10167
        %v10200 = vadd.f32 %v10134, %v10168
        %v10201 = vadd.f32 %v10135, %v10169
        %v10202 = vadd.f32 %v10136, %v10170
        %v10203 = vadd.f32 %v10137, %v10171
        %v10204 = vadd.f32 %v10138, %v10172
        %v10205 = vadd.f32 %v10139, %v10173
        %v10206 = vadd.f32 %v10140, %v10174
        %v10207 = vadd.f32 %v10141, %v10175
        %10208 = vst.msk [vmem:[%s10143] sm:$0xff] %vm6836, %v10176
        %10209 = vst.msk [vmem:[%s10143 + $0x8] sm:$0xff] %vm6836, %v10177
        %10210 = vst.msk [vmem:[%s10143 + $0x10] sm:$0xff] %vm6836, %v10178
        %10211 = vst.msk [vmem:[%s10143 + $0x18] sm:$0xff] %vm6836, %v10179
        %10212 = vst.msk [vmem:[%s10143 + $0x20] sm:$0xff] %vm6836, %v10180
        %10213 = vst.msk [vmem:[%s10143 + $0x28] sm:$0xff] %vm6836, %v10181
        %10214 = vst.msk [vmem:[%s10143 + $0x30] sm:$0xff] %vm6836, %v10182
        %10215 = vst.msk [vmem:[%s10143 + $0x38] sm:$0xff] %vm6836, %v10183
        %10216 = vst.msk [vmem:[%s10143 + $0x40] sm:$0xff] %vm6836, %v10184
        %10217 = vst.msk [vmem:[%s10143 + $0x48] sm:$0xff] %vm6836, %v10185
        %10218 = vst.msk [vmem:[%s10143 + $0x50] sm:$0xff] %vm6836, %v10186
        %10219 = vst.msk [vmem:[%s10143 + $0x58] sm:$0xff] %vm6836, %v10187
        %10220 = vst.msk [vmem:[%s10143 + $0x60] sm:$0xff] %vm6836, %v10188
        %10221 = vst.msk [vmem:[%s10143 + $0x68] sm:$0xff] %vm6836, %v10189
        %10222 = vst.msk [vmem:[%s10143 + $0x70] sm:$0xff] %vm6836, %v10190
        %10223 = vst.msk [vmem:[%s10143 + $0x78] sm:$0xff] %vm6836, %v10191
        %10224 = vst.msk [vmem:[%s10143 + $0x80] sm:$0xff] %vm6836, %v10192
        %10225 = vst.msk [vmem:[%s10143 + $0x88] sm:$0xff] %vm6836, %v10193
        %10226 = vst.msk [vmem:[%s10143 + $0x90] sm:$0xff] %vm6836, %v10194
        %10227 = vst.msk [vmem:[%s10143 + $0x98] sm:$0xff] %vm6836, %v10195
        %10228 = vst.msk [vmem:[%s10143 + $0xa0] sm:$0xff] %vm6836, %v10196
        %10229 = vst.msk [vmem:[%s10143 + $0xa8] sm:$0xff] %vm6836, %v10197
        %10230 = vst.msk [vmem:[%s10143 + $0xb0] sm:$0xff] %vm6836, %v10198
        %10231 = vst.msk [vmem:[%s10143 + $0xb8] sm:$0xff] %vm6836, %v10199
        %10232 = vst.msk [vmem:[%s10143 + $0xc0] sm:$0xff] %vm6836, %v10200
        %10233 = vst.msk [vmem:[%s10143 + $0xc8] sm:$0xff] %vm6836, %v10201
        %10234 = vst.msk [vmem:[%s10143 + $0xd0] sm:$0xff] %vm6836, %v10202
        %10235 = vst.msk [vmem:[%s10143 + $0xd8] sm:$0xff] %vm6836, %v10203
        %10236 = vst.msk [vmem:[%s10143 + $0xe0] sm:$0xff] %vm6836, %v10204
        %10237 = vst.msk [vmem:[%s10143 + $0xe8] sm:$0xff] %vm6836, %v10205
        %10238 = vst.msk [vmem:[%s10143 + $0xf0] sm:$0xff] %vm6836, %v10206
        %10239 = vst.msk [vmem:[%s10143 + $0xf8] sm:$0xff] %vm6836, %v10207
      $region103: #{tpu_custom_call.1} parent=51 // loop_footer
        %s6385 = sadd.s32 1, %s6381
      $region104: #{tpu_custom_call.1} parent=51 // loop_footer_branch
        %6380 = sbr.rel target = $region100
      $region105: #{tpu_custom_call.1} parent=51 // loop_exit
        _
      %s10240 = smul.u32 16, %s24
      %p10241 = scmp.lt.s32.totalorder %s23, 1
      %s10242 = scalar_select %p10241, %s23, 1
      %p10243 = scmp.lt.s32.totalorder %s10240, 31
      %s10244 = scalar_select %p10243, %s10240, 31
      %s10245 = smul.addr %s10244, 4
      %s10246 = smul.addr %s10242, 128
      %s10247 = sadd.s32 %s10245, %s10246
      %s10248 = smul.addr %s10247, 8
      %s10249 = scalar_lea.vmem %s8, %s10248
      // Predicated region
      $region106: #{tpu_custom_call.1} parent=51 // pred_check
        %p10250 = pneg %p224
      $region107: #{tpu_custom_call.1} parent=51 // pred_check_branch
        %10252 = sbr.rel (%p10250) target = $region109
      $region108: #{tpu_custom_call.1} parent=51 // pred_region
        %s10253 = smul.u32 16, %s24
      $region109: #{tpu_custom_call.1} parent=51 // pred_fallthru
        _
    $region52: #{tpu_custom_call.1} parent=5 // pred_fallthru
      _
    %p10254 = scmp.le.s32.totalorder 2, %s14
    // Predicated region
    $region110: #{tpu_custom_call.1} parent=5 // pred_check
      %p10255 = pneg %p10254
    $region111: #{tpu_custom_call.1} parent=5 // pred_check_branch
      %10257 = sbr.rel (%p10255) target = $region113
    $region112: #{tpu_custom_call.1} parent=5 // pred_region
      %s10258 = ssub.s32 %s14, 2
      // Predicated region
      $region114: #{tpu_custom_call.1} parent=112 // pred_check
        %p10259 = pneg %p230
      $region115: #{tpu_custom_call.1} parent=112 // pred_check_branch
        %10261 = sbr.rel (%p10259) target = $region117
      $region116: #{tpu_custom_call.1} parent=112 // pred_region
        %s10262 = smul.u32 16, %s26
        %p10263 = scmp.lt.s32.totalorder %s25, 1
        %s10264 = scalar_select %p10263, %s25, 1
        %p10265 = scmp.lt.s32.totalorder %s10262, 31
        %s10266 = scalar_select %p10265, %s10262, 31
        %s10267 = smul.addr %s10266, 4
        %s10268 = smul.addr %s10264, 128
        %s10269 = sadd.s32 %s10267, %s10268
        %s10270 = smul.addr %s10269, 8
        %s10271 = scalar_lea.vmem %s8, %s10270
      $region117: #{tpu_custom_call.1} parent=112 // pred_fallthru
        _
    $region113: #{tpu_custom_call.1} parent=5 // pred_fallthru
      _
  $region6: #{tpu_custom_call.1} parent=0 // loop_footer
    %s18 = sadd.s32 1, %s14
  $region7: #{tpu_custom_call.1} parent=0 // loop_footer_branch
    %13 = sbr.rel target = $region3
  $region8: #{tpu_custom_call.1} parent=0 // loop_exit
    _

</llo_original>
